<compile_context>
chip_gen: v6e
topology: v6e:2x2x1
jax: 0.10.0
libtpu: 0.0.40
codegen_flags: <defaults>
</compile_context>

<pallas_src>
import functools

import jax
import jax.numpy as jnp
import numpy as np
from jax.experimental import pallas as pl
from jax.experimental.pallas import tpu as pltpu

HP, WP = 28, 32          # padded image grid carried through the conv stage
LANES = HP * WP          # 896 = 7 * 128 lanes, fully dense
OUT_H = OUT_W = 22       # conv3 output spatial size (feeds the FC head)
N1 = 256                 # fc1 width 242 padded to a lane-dense 256
N2 = 128                 # fc2 width 3 padded to a lane-dense 128
MAX_TB = 128             # max batch elements per grid step (sublane-aligned)


def _round_up(n, m):
    return ((n + m - 1) // m) * m


def _shift(arr, kh, kw):
    """Return view with arr_shifted[:, L] == arr[:, L + kh*WP + kw] (lane rotate)."""
    s = kh * WP + kw
    if s == 0:
        return arr
    # roll(x, shift)[i] == x[(i - shift) % n]  ==> shift = LANES - s gives x[i + s].
    return pltpu.roll(arr, shift=LANES - s, axis=arr.ndim - 1)


def net_kernel(x_ref, w1_ref, b1_ref, w2_ref, b2_ref,
               wc_ref, bc_ref, fc2w_ref, fc2b_ref, out_ref):
    x = x_ref[...]                                  # [TB, 896] f32, lane = h*32 + w
    shape = x.shape

    # ---- Conv2d(1, 3, 3) + ReLU (VPU; rolls hoisted over output channels) ----
    acc1 = [jnp.full(shape, b1_ref[oc], jnp.float32) for oc in range(3)]
    for kh in range(3):
        for kw in range(3):
            xs = _shift(x, kh, kw)                  # hoisted, reused by all oc
            for oc in range(3):
                acc1[oc] = acc1[oc] + w1_ref[oc * 9 + kh * 3 + kw] * xs
    h1 = [jnp.maximum(a, 0.0) for a in acc1]

    # ---- Conv2d(3, 6, 3) + ReLU, streamed into the fused (conv3 . fc1) matmul ----
    fc1_acc = jnp.zeros((shape[0], N1), jnp.float32) + bc_ref[...]
    for g in range(2):                              # output-channel groups of 3
        ocs = (3 * g, 3 * g + 1, 3 * g + 2)
        acc2 = [jnp.full(shape, b2_ref[oc], jnp.float32) for oc in ocs]
        for ic in range(3):
            for kh in range(3):
                for kw in range(3):
                    hs = _shift(h1[ic], kh, kw)     # hoisted, reused by 3 ocs
                    for j, oc in enumerate(ocs):
                        acc2[j] = acc2[j] + w2_ref[oc * 27 + ic * 9 + kh * 3 + kw] * hs
        for j, oc in enumerate(ocs):
            h2 = jnp.maximum(acc2[j], 0.0)          # [TB, 896]
            # Junk lanes of h2 meet zero rows of wc -> contribute exactly 0.
            fc1_acc = fc1_acc + jnp.dot(h2, wc_ref[oc],
                                        preferred_element_type=jnp.float32)

    # ---- ReLU(fc1) then Linear(242, 3) (both padded to lane-dense widths) ----
    h = jnp.maximum(fc1_acc, 0.0)                   # [TB, 256]
    out_ref[...] = (jnp.dot(h, fc2w_ref[...], preferred_element_type=jnp.float32)
                    + fc2b_ref[...])                # [TB, 128]


def _build_fused_fc1(w3, b3, fc1_w, fc1_b):
    """Fold Conv2d(6,1,3) (linear, no ReLU) into the fc1 weights/bias.

    Returns Wc[6, 896, N1] indexed by (conv2 channel, 28x32 lane, fc1 unit) and
    bc[1, N1] so that fc1_pre = sum_ic h2[ic] @ Wc[ic] + bc.
    """
    hh, ww = jnp.meshgrid(jnp.arange(OUT_H), jnp.arange(OUT_W), indexing="ij")
    out_flat = (hh * OUT_W + ww).reshape(-1)                       # (484,)
    conv3_mat = jnp.zeros((6, LANES, OUT_H * OUT_W), jnp.float32)  # banded conv3
    for kh in range(3):
        for kw in range(3):
            in_flat = ((hh + kh) * WP + (ww + kw)).reshape(-1)     # (484,)
            conv3_mat = conv3_mat.at[:, in_flat, out_flat].add(
                w3[0, :, kh, kw][:, None])
    wc = jnp.einsum("clj,jo->clo", conv3_mat, fc1_w)               # (6, 896, 242)
    bc = fc1_b + b3[0] * jnp.sum(fc1_w, axis=0)                    # (242,)
    wc = jnp.pad(wc, ((0, 0), (0, 0), (0, N1 - wc.shape[-1])))
    bc = jnp.pad(bc, (0, N1 - bc.shape[0])).reshape(1, N1)
    return wc, bc


def net_forward(x, params):
    B = x.shape[0]
    tb = min(MAX_TB, _round_up(max(B, 1), 8))       # adaptive batch tile
    bp = _round_up(B, tb)

    # Pack input: [B,1,28,28] -> [bp, 896] (W padded 28->32 with zeros).
    x3 = x[:, 0, :, :].astype(jnp.float32)
    xp = jnp.pad(x3, ((0, bp - B), (0, HP - 28), (0, WP - 28))).reshape(bp, LANES)

    wc, bc = _build_fused_fc1(params["w3"], params["b3"],
                              params["fc1_w"], params["fc1_b"])
    fc2w = jnp.pad(params["fc2_w"], ((0, N1 - 242), (0, N2 - 3)))  # (256, 128)
    fc2b = jnp.pad(params["fc2_b"], (0, N2 - 3)).reshape(1, N2)    # (1, 128)

    smem = pl.BlockSpec(memory_space=pltpu.MemorySpace.SMEM)
    out = pl.pallas_call(
        net_kernel,
        out_shape=jax.ShapeDtypeStruct((bp, N2), jnp.float32),
        grid=(bp // tb,),
        in_specs=[
            pl.BlockSpec((tb, LANES), lambda b: (b, 0)),        # x batch tile
            smem, smem,                                         # conv1 w (flat), b
            smem, smem,                                         # conv2 w (flat), b
            pl.BlockSpec((6, LANES, N1), lambda b: (0, 0, 0)),  # fused conv3*fc1 W
            pl.BlockSpec((1, N1), lambda b: (0, 0)),            # fused bias
            pl.BlockSpec((N1, N2), lambda b: (0, 0)),           # fc2 W (padded)
            pl.BlockSpec((1, N2), lambda b: (0, 0)),            # fc2 b (padded)
        ],
        out_specs=pl.BlockSpec((tb, N2), lambda b: (b, 0)),
        compiler_params=pltpu.CompilerParams(
            dimension_semantics=("parallel",),                  # megacore sharding
            vmem_limit_bytes=48 * 1024 * 1024),
    )(xp,
      params["w1"].reshape(-1), params["b1"],
      params["w2"].reshape(-1), params["b2"],
      wc, bc, fc2w, fc2b)
    return out[:B, :3]


def init_params(key):
    ks = jax.random.split(key, 10)

    def u(k, shape, fan_in):
        lim = 1.0 / np.sqrt(fan_in)
        return jax.random.uniform(k, shape, jnp.float32, -lim, lim)

    return {
        "w1": u(ks[0], (3, 1, 3, 3), 9), "b1": u(ks[1], (3,), 9),
        "w2": u(ks[2], (6, 3, 3, 3), 27), "b2": u(ks[3], (6,), 27),
        "w3": u(ks[4], (1, 6, 3, 3), 54), "b3": u(ks[5], (1,), 54),
        "fc1_w": u(ks[6], (484, 242), 484), "fc1_b": u(ks[7], (242,), 484),
        "fc2_w": u(ks[8], (242, 3), 242), "fc2_b": u(ks[9], (3,), 242),
    }


def ref_forward(x, p):
    dn = ("NCHW", "OIHW", "NCHW")
    conv = functools.partial(jax.lax.conv_general_dilated,
                             window_strides=(1, 1), padding="VALID",
                             dimension_numbers=dn,
                             precision=jax.lax.Precision.HIGHEST)
    h = conv(x, p["w1"]) + p["b1"][None, :, None, None]
    h = jnp.maximum(h, 0.0)
    h = conv(h, p["w2"]) + p["b2"][None, :, None, None]
    h = jnp.maximum(h, 0.0)
    h = conv(h, p["w3"]) + p["b3"][None, :, None, None]
    h = h.reshape(x.shape[0], -1)                                  # [B, 484]
    h = jnp.maximum(jnp.dot(h, p["fc1_w"], precision=jax.lax.Precision.HIGHEST)
                    + p["fc1_b"], 0.0)                             # [B, 242]
    return jnp.dot(h, p["fc2_w"],
                   precision=jax.lax.Precision.HIGHEST) + p["fc2_b"]   # [B, 3]


if __name__ == "__main__":
    key = jax.random.PRNGKey(0)
    kx, kp = jax.random.split(key)
    B = 2
    x = jax.random.normal(kx, (B, 1, 28, 28), jnp.float32)
    params = init_params(kp)

    out = jax.jit(net_forward)(x, params)
    out = jax.block_until_ready(out)

    expected = ref_forward(x, params)
    np.testing.assert_allclose(np.asarray(out), np.asarray(expected),
                               rtol=2e-3, atol=2e-3)
    print("KERNEL_OK")
</pallas_src>

<mosaic_0001>
module attributes {stable_mosaic.version = 11 : i64} {
  func.func @net_kernel(%arg0: i32, %arg1: memref<8x896xf32, #tpu.memory_space<vmem>>, %arg2: memref<27xf32, #tpu.memory_space<smem>>, %arg3: memref<3xf32, #tpu.memory_space<smem>>, %arg4: memref<162xf32, #tpu.memory_space<smem>>, %arg5: memref<6xf32, #tpu.memory_space<smem>>, %arg6: memref<6x896x256xf32, #tpu.memory_space<vmem>>, %arg7: memref<1x256xf32, #tpu.memory_space<vmem>>, %arg8: memref<256x128xf32, #tpu.memory_space<vmem>>, %arg9: memref<1x128xf32, #tpu.memory_space<vmem>>, %arg10: memref<8x128xf32, #tpu.memory_space<vmem>>) attributes {dimension_semantics = [#tpu.dimension_semantics<parallel>], iteration_bounds = array<i64: 1>, scalar_prefetch = 0 : i64, scratch_operands = 0 : i64, tpu.core_type = #tpu.core_type<tc>, window_params = [{transform_indices = @transform_0, window_bounds = array<i64: 8, 896>}, {transform_indices = @transform_1, window_bounds = array<i64: 27>}, {transform_indices = @transform_2, window_bounds = array<i64: 3>}, {transform_indices = @transform_3, window_bounds = array<i64: 162>}, {transform_indices = @transform_4, window_bounds = array<i64: 6>}, {pipeline_mode = #tpu.pipeline_mode<synchronous>, transform_indices = @transform_5, window_bounds = array<i64: 6, 896, 256>}, {pipeline_mode = #tpu.pipeline_mode<synchronous>, transform_indices = @transform_6, window_bounds = array<i64: 1, 256>}, {pipeline_mode = #tpu.pipeline_mode<synchronous>, transform_indices = @transform_7, window_bounds = array<i64: 256, 128>}, {pipeline_mode = #tpu.pipeline_mode<synchronous>, transform_indices = @transform_8, window_bounds = array<i64: 1, 128>}, {transform_indices = @transform_9, window_bounds = array<i64: 8, 128>}]} {
    %c0 = arith.constant 0 : index
    %c0_0 = arith.constant 0 : index
    %0 = vector.load %arg1[%c0, %c0_0] : memref<8x896xf32, #tpu.memory_space<vmem>>, vector<8x896xf32>
    %c0_1 = arith.constant 0 : index
    %1 = memref.load %arg3[%c0_1] : memref<3xf32, #tpu.memory_space<smem>>
    %2 = vector.broadcast %1 : f32 to vector<8x896xf32>
    %c1 = arith.constant 1 : index
    %3 = memref.load %arg3[%c1] : memref<3xf32, #tpu.memory_space<smem>>
    %4 = vector.broadcast %3 : f32 to vector<8x896xf32>
    %c2 = arith.constant 2 : index
    %5 = memref.load %arg3[%c2] : memref<3xf32, #tpu.memory_space<smem>>
    %6 = vector.broadcast %5 : f32 to vector<8x896xf32>
    %c0_2 = arith.constant 0 : index
    %7 = memref.load %arg2[%c0_2] : memref<27xf32, #tpu.memory_space<smem>>
    %8 = vector.broadcast %7 : f32 to vector<8x896xf32>
    %9 = arith.mulf %8, %0 : vector<8x896xf32>
    %10 = arith.addf %2, %9 : vector<8x896xf32>
    %c9 = arith.constant 9 : index
    %11 = memref.load %arg2[%c9] : memref<27xf32, #tpu.memory_space<smem>>
    %12 = vector.broadcast %11 : f32 to vector<8x896xf32>
    %13 = arith.mulf %12, %0 : vector<8x896xf32>
    %14 = arith.addf %4, %13 : vector<8x896xf32>
    %c18 = arith.constant 18 : index
    %15 = memref.load %arg2[%c18] : memref<27xf32, #tpu.memory_space<smem>>
    %16 = vector.broadcast %15 : f32 to vector<8x896xf32>
    %17 = arith.mulf %16, %0 : vector<8x896xf32>
    %18 = arith.addf %6, %17 : vector<8x896xf32>
    %c895_i32 = arith.constant 895 : i32
    %19 = tpu.dynamic_rotate %0 by %c895_i32 dim 1 : vector<8x896xf32>, i32 -> vector<8x896xf32>
    %c1_3 = arith.constant 1 : index
    %20 = memref.load %arg2[%c1_3] : memref<27xf32, #tpu.memory_space<smem>>
    %21 = vector.broadcast %20 : f32 to vector<8x896xf32>
    %22 = arith.mulf %21, %19 : vector<8x896xf32>
    %23 = arith.addf %10, %22 : vector<8x896xf32>
    %c10 = arith.constant 10 : index
    %24 = memref.load %arg2[%c10] : memref<27xf32, #tpu.memory_space<smem>>
    %25 = vector.broadcast %24 : f32 to vector<8x896xf32>
    %26 = arith.mulf %25, %19 : vector<8x896xf32>
    %27 = arith.addf %14, %26 : vector<8x896xf32>
    %c19 = arith.constant 19 : index
    %28 = memref.load %arg2[%c19] : memref<27xf32, #tpu.memory_space<smem>>
    %29 = vector.broadcast %28 : f32 to vector<8x896xf32>
    %30 = arith.mulf %29, %19 : vector<8x896xf32>
    %31 = arith.addf %18, %30 : vector<8x896xf32>
    %c894_i32 = arith.constant 894 : i32
    %32 = tpu.dynamic_rotate %0 by %c894_i32 dim 1 : vector<8x896xf32>, i32 -> vector<8x896xf32>
    %c2_4 = arith.constant 2 : index
    %33 = memref.load %arg2[%c2_4] : memref<27xf32, #tpu.memory_space<smem>>
    %34 = vector.broadcast %33 : f32 to vector<8x896xf32>
    %35 = arith.mulf %34, %32 : vector<8x896xf32>
    %36 = arith.addf %23, %35 : vector<8x896xf32>
    %c11 = arith.constant 11 : index
    %37 = memref.load %arg2[%c11] : memref<27xf32, #tpu.memory_space<smem>>
    %38 = vector.broadcast %37 : f32 to vector<8x896xf32>
    %39 = arith.mulf %38, %32 : vector<8x896xf32>
    %40 = arith.addf %27, %39 : vector<8x896xf32>
    %c20 = arith.constant 20 : index
    %41 = memref.load %arg2[%c20] : memref<27xf32, #tpu.memory_space<smem>>
    %42 = vector.broadcast %41 : f32 to vector<8x896xf32>
    %43 = arith.mulf %42, %32 : vector<8x896xf32>
    %44 = arith.addf %31, %43 : vector<8x896xf32>
    %c864_i32 = arith.constant 864 : i32
    %45 = tpu.dynamic_rotate %0 by %c864_i32 dim 1 : vector<8x896xf32>, i32 -> vector<8x896xf32>
    %c3 = arith.constant 3 : index
    %46 = memref.load %arg2[%c3] : memref<27xf32, #tpu.memory_space<smem>>
    %47 = vector.broadcast %46 : f32 to vector<8x896xf32>
    %48 = arith.mulf %47, %45 : vector<8x896xf32>
    %49 = arith.addf %36, %48 : vector<8x896xf32>
    %c12 = arith.constant 12 : index
    %50 = memref.load %arg2[%c12] : memref<27xf32, #tpu.memory_space<smem>>
    %51 = vector.broadcast %50 : f32 to vector<8x896xf32>
    %52 = arith.mulf %51, %45 : vector<8x896xf32>
    %53 = arith.addf %40, %52 : vector<8x896xf32>
    %c21 = arith.constant 21 : index
    %54 = memref.load %arg2[%c21] : memref<27xf32, #tpu.memory_space<smem>>
    %55 = vector.broadcast %54 : f32 to vector<8x896xf32>
    %56 = arith.mulf %55, %45 : vector<8x896xf32>
    %57 = arith.addf %44, %56 : vector<8x896xf32>
    %c863_i32 = arith.constant 863 : i32
    %58 = tpu.dynamic_rotate %0 by %c863_i32 dim 1 : vector<8x896xf32>, i32 -> vector<8x896xf32>
    %c4 = arith.constant 4 : index
    %59 = memref.load %arg2[%c4] : memref<27xf32, #tpu.memory_space<smem>>
    %60 = vector.broadcast %59 : f32 to vector<8x896xf32>
    %61 = arith.mulf %60, %58 : vector<8x896xf32>
    %62 = arith.addf %49, %61 : vector<8x896xf32>
    %c13 = arith.constant 13 : index
    %63 = memref.load %arg2[%c13] : memref<27xf32, #tpu.memory_space<smem>>
    %64 = vector.broadcast %63 : f32 to vector<8x896xf32>
    %65 = arith.mulf %64, %58 : vector<8x896xf32>
    %66 = arith.addf %53, %65 : vector<8x896xf32>
    %c22 = arith.constant 22 : index
    %67 = memref.load %arg2[%c22] : memref<27xf32, #tpu.memory_space<smem>>
    %68 = vector.broadcast %67 : f32 to vector<8x896xf32>
    %69 = arith.mulf %68, %58 : vector<8x896xf32>
    %70 = arith.addf %57, %69 : vector<8x896xf32>
    %c862_i32 = arith.constant 862 : i32
    %71 = tpu.dynamic_rotate %0 by %c862_i32 dim 1 : vector<8x896xf32>, i32 -> vector<8x896xf32>
    %c5 = arith.constant 5 : index
    %72 = memref.load %arg2[%c5] : memref<27xf32, #tpu.memory_space<smem>>
    %73 = vector.broadcast %72 : f32 to vector<8x896xf32>
    %74 = arith.mulf %73, %71 : vector<8x896xf32>
    %75 = arith.addf %62, %74 : vector<8x896xf32>
    %c14 = arith.constant 14 : index
    %76 = memref.load %arg2[%c14] : memref<27xf32, #tpu.memory_space<smem>>
    %77 = vector.broadcast %76 : f32 to vector<8x896xf32>
    %78 = arith.mulf %77, %71 : vector<8x896xf32>
    %79 = arith.addf %66, %78 : vector<8x896xf32>
    %c23 = arith.constant 23 : index
    %80 = memref.load %arg2[%c23] : memref<27xf32, #tpu.memory_space<smem>>
    %81 = vector.broadcast %80 : f32 to vector<8x896xf32>
    %82 = arith.mulf %81, %71 : vector<8x896xf32>
    %83 = arith.addf %70, %82 : vector<8x896xf32>
    %c832_i32 = arith.constant 832 : i32
    %84 = tpu.dynamic_rotate %0 by %c832_i32 dim 1 : vector<8x896xf32>, i32 -> vector<8x896xf32>
    %c6 = arith.constant 6 : index
    %85 = memref.load %arg2[%c6] : memref<27xf32, #tpu.memory_space<smem>>
    %86 = vector.broadcast %85 : f32 to vector<8x896xf32>
    %87 = arith.mulf %86, %84 : vector<8x896xf32>
    %88 = arith.addf %75, %87 : vector<8x896xf32>
    %c15 = arith.constant 15 : index
    %89 = memref.load %arg2[%c15] : memref<27xf32, #tpu.memory_space<smem>>
    %90 = vector.broadcast %89 : f32 to vector<8x896xf32>
    %91 = arith.mulf %90, %84 : vector<8x896xf32>
    %92 = arith.addf %79, %91 : vector<8x896xf32>
    %c24 = arith.constant 24 : index
    %93 = memref.load %arg2[%c24] : memref<27xf32, #tpu.memory_space<smem>>
    %94 = vector.broadcast %93 : f32 to vector<8x896xf32>
    %95 = arith.mulf %94, %84 : vector<8x896xf32>
    %96 = arith.addf %83, %95 : vector<8x896xf32>
    %c831_i32 = arith.constant 831 : i32
    %97 = tpu.dynamic_rotate %0 by %c831_i32 dim 1 : vector<8x896xf32>, i32 -> vector<8x896xf32>
    %c7 = arith.constant 7 : index
    %98 = memref.load %arg2[%c7] : memref<27xf32, #tpu.memory_space<smem>>
    %99 = vector.broadcast %98 : f32 to vector<8x896xf32>
    %100 = arith.mulf %99, %97 : vector<8x896xf32>
    %101 = arith.addf %88, %100 : vector<8x896xf32>
    %c16 = arith.constant 16 : index
    %102 = memref.load %arg2[%c16] : memref<27xf32, #tpu.memory_space<smem>>
    %103 = vector.broadcast %102 : f32 to vector<8x896xf32>
    %104 = arith.mulf %103, %97 : vector<8x896xf32>
    %105 = arith.addf %92, %104 : vector<8x896xf32>
    %c25 = arith.constant 25 : index
    %106 = memref.load %arg2[%c25] : memref<27xf32, #tpu.memory_space<smem>>
    %107 = vector.broadcast %106 : f32 to vector<8x896xf32>
    %108 = arith.mulf %107, %97 : vector<8x896xf32>
    %109 = arith.addf %96, %108 : vector<8x896xf32>
    %c830_i32 = arith.constant 830 : i32
    %110 = tpu.dynamic_rotate %0 by %c830_i32 dim 1 : vector<8x896xf32>, i32 -> vector<8x896xf32>
    %c8 = arith.constant 8 : index
    %111 = memref.load %arg2[%c8] : memref<27xf32, #tpu.memory_space<smem>>
    %112 = vector.broadcast %111 : f32 to vector<8x896xf32>
    %113 = arith.mulf %112, %110 : vector<8x896xf32>
    %114 = arith.addf %101, %113 : vector<8x896xf32>
    %c17 = arith.constant 17 : index
    %115 = memref.load %arg2[%c17] : memref<27xf32, #tpu.memory_space<smem>>
    %116 = vector.broadcast %115 : f32 to vector<8x896xf32>
    %117 = arith.mulf %116, %110 : vector<8x896xf32>
    %118 = arith.addf %105, %117 : vector<8x896xf32>
    %c26 = arith.constant 26 : index
    %119 = memref.load %arg2[%c26] : memref<27xf32, #tpu.memory_space<smem>>
    %120 = vector.broadcast %119 : f32 to vector<8x896xf32>
    %121 = arith.mulf %120, %110 : vector<8x896xf32>
    %122 = arith.addf %109, %121 : vector<8x896xf32>
    %cst = arith.constant 0.000000e+00 : f32
    %123 = vector.broadcast %cst : f32 to vector<8x896xf32>
    %124 = arith.maximumf %114, %123 : vector<8x896xf32>
    %cst_5 = arith.constant 0.000000e+00 : f32
    %125 = vector.broadcast %cst_5 : f32 to vector<8x896xf32>
    %126 = arith.maximumf %118, %125 : vector<8x896xf32>
    %cst_6 = arith.constant 0.000000e+00 : f32
    %127 = vector.broadcast %cst_6 : f32 to vector<8x896xf32>
    %128 = arith.maximumf %122, %127 : vector<8x896xf32>
    %cst_7 = arith.constant 0.000000e+00 : f32
    %129 = vector.broadcast %cst_7 : f32 to vector<8x256xf32>
    %c0_8 = arith.constant 0 : index
    %c0_9 = arith.constant 0 : index
    %130 = vector.load %arg7[%c0_8, %c0_9] : memref<1x256xf32, #tpu.memory_space<vmem>>, vector<1x256xf32>
    %131 = vector.broadcast %130 : vector<1x256xf32> to vector<8x256xf32>
    %132 = arith.addf %129, %131 : vector<8x256xf32>
    %c0_10 = arith.constant 0 : index
    %133 = memref.load %arg5[%c0_10] : memref<6xf32, #tpu.memory_space<smem>>
    %134 = vector.broadcast %133 : f32 to vector<8x896xf32>
    %c1_11 = arith.constant 1 : index
    %135 = memref.load %arg5[%c1_11] : memref<6xf32, #tpu.memory_space<smem>>
    %136 = vector.broadcast %135 : f32 to vector<8x896xf32>
    %c2_12 = arith.constant 2 : index
    %137 = memref.load %arg5[%c2_12] : memref<6xf32, #tpu.memory_space<smem>>
    %138 = vector.broadcast %137 : f32 to vector<8x896xf32>
    %c0_13 = arith.constant 0 : index
    %139 = memref.load %arg4[%c0_13] : memref<162xf32, #tpu.memory_space<smem>>
    %140 = vector.broadcast %139 : f32 to vector<8x896xf32>
    %141 = arith.mulf %140, %124 : vector<8x896xf32>
    %142 = arith.addf %134, %141 : vector<8x896xf32>
    %c27 = arith.constant 27 : index
    %143 = memref.load %arg4[%c27] : memref<162xf32, #tpu.memory_space<smem>>
    %144 = vector.broadcast %143 : f32 to vector<8x896xf32>
    %145 = arith.mulf %144, %124 : vector<8x896xf32>
    %146 = arith.addf %136, %145 : vector<8x896xf32>
    %c54 = arith.constant 54 : index
    %147 = memref.load %arg4[%c54] : memref<162xf32, #tpu.memory_space<smem>>
    %148 = vector.broadcast %147 : f32 to vector<8x896xf32>
    %149 = arith.mulf %148, %124 : vector<8x896xf32>
    %150 = arith.addf %138, %149 : vector<8x896xf32>
    %c895_i32_14 = arith.constant 895 : i32
    %151 = tpu.dynamic_rotate %124 by %c895_i32_14 dim 1 : vector<8x896xf32>, i32 -> vector<8x896xf32>
    %c1_15 = arith.constant 1 : index
    %152 = memref.load %arg4[%c1_15] : memref<162xf32, #tpu.memory_space<smem>>
    %153 = vector.broadcast %152 : f32 to vector<8x896xf32>
    %154 = arith.mulf %153, %151 : vector<8x896xf32>
    %155 = arith.addf %142, %154 : vector<8x896xf32>
    %c28 = arith.constant 28 : index
    %156 = memref.load %arg4[%c28] : memref<162xf32, #tpu.memory_space<smem>>
    %157 = vector.broadcast %156 : f32 to vector<8x896xf32>
    %158 = arith.mulf %157, %151 : vector<8x896xf32>
    %159 = arith.addf %146, %158 : vector<8x896xf32>
    %c55 = arith.constant 55 : index
    %160 = memref.load %arg4[%c55] : memref<162xf32, #tpu.memory_space<smem>>
    %161 = vector.broadcast %160 : f32 to vector<8x896xf32>
    %162 = arith.mulf %161, %151 : vector<8x896xf32>
    %163 = arith.addf %150, %162 : vector<8x896xf32>
    %c894_i32_16 = arith.constant 894 : i32
    %164 = tpu.dynamic_rotate %124 by %c894_i32_16 dim 1 : vector<8x896xf32>, i32 -> vector<8x896xf32>
    %c2_17 = arith.constant 2 : index
    %165 = memref.load %arg4[%c2_17] : memref<162xf32, #tpu.memory_space<smem>>
    %166 = vector.broadcast %165 : f32 to vector<8x896xf32>
    %167 = arith.mulf %166, %164 : vector<8x896xf32>
    %168 = arith.addf %155, %167 : vector<8x896xf32>
    %c29 = arith.constant 29 : index
    %169 = memref.load %arg4[%c29] : memref<162xf32, #tpu.memory_space<smem>>
    %170 = vector.broadcast %169 : f32 to vector<8x896xf32>
    %171 = arith.mulf %170, %164 : vector<8x896xf32>
    %172 = arith.addf %159, %171 : vector<8x896xf32>
    %c56 = arith.constant 56 : index
    %173 = memref.load %arg4[%c56] : memref<162xf32, #tpu.memory_space<smem>>
    %174 = vector.broadcast %173 : f32 to vector<8x896xf32>
    %175 = arith.mulf %174, %164 : vector<8x896xf32>
    %176 = arith.addf %163, %175 : vector<8x896xf32>
    %c864_i32_18 = arith.constant 864 : i32
    %177 = tpu.dynamic_rotate %124 by %c864_i32_18 dim 1 : vector<8x896xf32>, i32 -> vector<8x896xf32>
    %c3_19 = arith.constant 3 : index
    %178 = memref.load %arg4[%c3_19] : memref<162xf32, #tpu.memory_space<smem>>
    %179 = vector.broadcast %178 : f32 to vector<8x896xf32>
    %180 = arith.mulf %179, %177 : vector<8x896xf32>
    %181 = arith.addf %168, %180 : vector<8x896xf32>
    %c30 = arith.constant 30 : index
    %182 = memref.load %arg4[%c30] : memref<162xf32, #tpu.memory_space<smem>>
    %183 = vector.broadcast %182 : f32 to vector<8x896xf32>
    %184 = arith.mulf %183, %177 : vector<8x896xf32>
    %185 = arith.addf %172, %184 : vector<8x896xf32>
    %c57 = arith.constant 57 : index
    %186 = memref.load %arg4[%c57] : memref<162xf32, #tpu.memory_space<smem>>
    %187 = vector.broadcast %186 : f32 to vector<8x896xf32>
    %188 = arith.mulf %187, %177 : vector<8x896xf32>
    %189 = arith.addf %176, %188 : vector<8x896xf32>
    %c863_i32_20 = arith.constant 863 : i32
    %190 = tpu.dynamic_rotate %124 by %c863_i32_20 dim 1 : vector<8x896xf32>, i32 -> vector<8x896xf32>
    %c4_21 = arith.constant 4 : index
    %191 = memref.load %arg4[%c4_21] : memref<162xf32, #tpu.memory_space<smem>>
    %192 = vector.broadcast %191 : f32 to vector<8x896xf32>
    %193 = arith.mulf %192, %190 : vector<8x896xf32>
    %194 = arith.addf %181, %193 : vector<8x896xf32>
    %c31 = arith.constant 31 : index
    %195 = memref.load %arg4[%c31] : memref<162xf32, #tpu.memory_space<smem>>
    %196 = vector.broadcast %195 : f32 to vector<8x896xf32>
    %197 = arith.mulf %196, %190 : vector<8x896xf32>
    %198 = arith.addf %185, %197 : vector<8x896xf32>
    %c58 = arith.constant 58 : index
    %199 = memref.load %arg4[%c58] : memref<162xf32, #tpu.memory_space<smem>>
    %200 = vector.broadcast %199 : f32 to vector<8x896xf32>
    %201 = arith.mulf %200, %190 : vector<8x896xf32>
    %202 = arith.addf %189, %201 : vector<8x896xf32>
    %c862_i32_22 = arith.constant 862 : i32
    %203 = tpu.dynamic_rotate %124 by %c862_i32_22 dim 1 : vector<8x896xf32>, i32 -> vector<8x896xf32>
    %c5_23 = arith.constant 5 : index
    %204 = memref.load %arg4[%c5_23] : memref<162xf32, #tpu.memory_space<smem>>
    %205 = vector.broadcast %204 : f32 to vector<8x896xf32>
    %206 = arith.mulf %205, %203 : vector<8x896xf32>
    %207 = arith.addf %194, %206 : vector<8x896xf32>
    %c32 = arith.constant 32 : index
    %208 = memref.load %arg4[%c32] : memref<162xf32, #tpu.memory_space<smem>>
    %209 = vector.broadcast %208 : f32 to vector<8x896xf32>
    %210 = arith.mulf %209, %203 : vector<8x896xf32>
    %211 = arith.addf %198, %210 : vector<8x896xf32>
    %c59 = arith.constant 59 : index
    %212 = memref.load %arg4[%c59] : memref<162xf32, #tpu.memory_space<smem>>
    %213 = vector.broadcast %212 : f32 to vector<8x896xf32>
    %214 = arith.mulf %213, %203 : vector<8x896xf32>
    %215 = arith.addf %202, %214 : vector<8x896xf32>
    %c832_i32_24 = arith.constant 832 : i32
    %216 = tpu.dynamic_rotate %124 by %c832_i32_24 dim 1 : vector<8x896xf32>, i32 -> vector<8x896xf32>
    %c6_25 = arith.constant 6 : index
    %217 = memref.load %arg4[%c6_25] : memref<162xf32, #tpu.memory_space<smem>>
    %218 = vector.broadcast %217 : f32 to vector<8x896xf32>
    %219 = arith.mulf %218, %216 : vector<8x896xf32>
    %220 = arith.addf %207, %219 : vector<8x896xf32>
    %c33 = arith.constant 33 : index
    %221 = memref.load %arg4[%c33] : memref<162xf32, #tpu.memory_space<smem>>
    %222 = vector.broadcast %221 : f32 to vector<8x896xf32>
    %223 = arith.mulf %222, %216 : vector<8x896xf32>
    %224 = arith.addf %211, %223 : vector<8x896xf32>
    %c60 = arith.constant 60 : index
    %225 = memref.load %arg4[%c60] : memref<162xf32, #tpu.memory_space<smem>>
    %226 = vector.broadcast %225 : f32 to vector<8x896xf32>
    %227 = arith.mulf %226, %216 : vector<8x896xf32>
    %228 = arith.addf %215, %227 : vector<8x896xf32>
    %c831_i32_26 = arith.constant 831 : i32
    %229 = tpu.dynamic_rotate %124 by %c831_i32_26 dim 1 : vector<8x896xf32>, i32 -> vector<8x896xf32>
    %c7_27 = arith.constant 7 : index
    %230 = memref.load %arg4[%c7_27] : memref<162xf32, #tpu.memory_space<smem>>
    %231 = vector.broadcast %230 : f32 to vector<8x896xf32>
    %232 = arith.mulf %231, %229 : vector<8x896xf32>
    %233 = arith.addf %220, %232 : vector<8x896xf32>
    %c34 = arith.constant 34 : index
    %234 = memref.load %arg4[%c34] : memref<162xf32, #tpu.memory_space<smem>>
    %235 = vector.broadcast %234 : f32 to vector<8x896xf32>
    %236 = arith.mulf %235, %229 : vector<8x896xf32>
    %237 = arith.addf %224, %236 : vector<8x896xf32>
    %c61 = arith.constant 61 : index
    %238 = memref.load %arg4[%c61] : memref<162xf32, #tpu.memory_space<smem>>
    %239 = vector.broadcast %238 : f32 to vector<8x896xf32>
    %240 = arith.mulf %239, %229 : vector<8x896xf32>
    %241 = arith.addf %228, %240 : vector<8x896xf32>
    %c830_i32_28 = arith.constant 830 : i32
    %242 = tpu.dynamic_rotate %124 by %c830_i32_28 dim 1 : vector<8x896xf32>, i32 -> vector<8x896xf32>
    %c8_29 = arith.constant 8 : index
    %243 = memref.load %arg4[%c8_29] : memref<162xf32, #tpu.memory_space<smem>>
    %244 = vector.broadcast %243 : f32 to vector<8x896xf32>
    %245 = arith.mulf %244, %242 : vector<8x896xf32>
    %246 = arith.addf %233, %245 : vector<8x896xf32>
    %c35 = arith.constant 35 : index
    %247 = memref.load %arg4[%c35] : memref<162xf32, #tpu.memory_space<smem>>
    %248 = vector.broadcast %247 : f32 to vector<8x896xf32>
    %249 = arith.mulf %248, %242 : vector<8x896xf32>
    %250 = arith.addf %237, %249 : vector<8x896xf32>
    %c62 = arith.constant 62 : index
    %251 = memref.load %arg4[%c62] : memref<162xf32, #tpu.memory_space<smem>>
    %252 = vector.broadcast %251 : f32 to vector<8x896xf32>
    %253 = arith.mulf %252, %242 : vector<8x896xf32>
    %254 = arith.addf %241, %253 : vector<8x896xf32>
    %c9_30 = arith.constant 9 : index
    %255 = memref.load %arg4[%c9_30] : memref<162xf32, #tpu.memory_space<smem>>
    %256 = vector.broadcast %255 : f32 to vector<8x896xf32>
    %257 = arith.mulf %256, %126 : vector<8x896xf32>
    %258 = arith.addf %246, %257 : vector<8x896xf32>
    %c36 = arith.constant 36 : index
    %259 = memref.load %arg4[%c36] : memref<162xf32, #tpu.memory_space<smem>>
    %260 = vector.broadcast %259 : f32 to vector<8x896xf32>
    %261 = arith.mulf %260, %126 : vector<8x896xf32>
    %262 = arith.addf %250, %261 : vector<8x896xf32>
    %c63 = arith.constant 63 : index
    %263 = memref.load %arg4[%c63] : memref<162xf32, #tpu.memory_space<smem>>
    %264 = vector.broadcast %263 : f32 to vector<8x896xf32>
    %265 = arith.mulf %264, %126 : vector<8x896xf32>
    %266 = arith.addf %254, %265 : vector<8x896xf32>
    %c895_i32_31 = arith.constant 895 : i32
    %267 = tpu.dynamic_rotate %126 by %c895_i32_31 dim 1 : vector<8x896xf32>, i32 -> vector<8x896xf32>
    %c10_32 = arith.constant 10 : index
    %268 = memref.load %arg4[%c10_32] : memref<162xf32, #tpu.memory_space<smem>>
    %269 = vector.broadcast %268 : f32 to vector<8x896xf32>
    %270 = arith.mulf %269, %267 : vector<8x896xf32>
    %271 = arith.addf %258, %270 : vector<8x896xf32>
    %c37 = arith.constant 37 : index
    %272 = memref.load %arg4[%c37] : memref<162xf32, #tpu.memory_space<smem>>
    %273 = vector.broadcast %272 : f32 to vector<8x896xf32>
    %274 = arith.mulf %273, %267 : vector<8x896xf32>
    %275 = arith.addf %262, %274 : vector<8x896xf32>
    %c64 = arith.constant 64 : index
    %276 = memref.load %arg4[%c64] : memref<162xf32, #tpu.memory_space<smem>>
    %277 = vector.broadcast %276 : f32 to vector<8x896xf32>
    %278 = arith.mulf %277, %267 : vector<8x896xf32>
    %279 = arith.addf %266, %278 : vector<8x896xf32>
    %c894_i32_33 = arith.constant 894 : i32
    %280 = tpu.dynamic_rotate %126 by %c894_i32_33 dim 1 : vector<8x896xf32>, i32 -> vector<8x896xf32>
    %c11_34 = arith.constant 11 : index
    %281 = memref.load %arg4[%c11_34] : memref<162xf32, #tpu.memory_space<smem>>
    %282 = vector.broadcast %281 : f32 to vector<8x896xf32>
    %283 = arith.mulf %282, %280 : vector<8x896xf32>
    %284 = arith.addf %271, %283 : vector<8x896xf32>
    %c38 = arith.constant 38 : index
    %285 = memref.load %arg4[%c38] : memref<162xf32, #tpu.memory_space<smem>>
    %286 = vector.broadcast %285 : f32 to vector<8x896xf32>
    %287 = arith.mulf %286, %280 : vector<8x896xf32>
    %288 = arith.addf %275, %287 : vector<8x896xf32>
    %c65 = arith.constant 65 : index
    %289 = memref.load %arg4[%c65] : memref<162xf32, #tpu.memory_space<smem>>
    %290 = vector.broadcast %289 : f32 to vector<8x896xf32>
    %291 = arith.mulf %290, %280 : vector<8x896xf32>
    %292 = arith.addf %279, %291 : vector<8x896xf32>
    %c864_i32_35 = arith.constant 864 : i32
    %293 = tpu.dynamic_rotate %126 by %c864_i32_35 dim 1 : vector<8x896xf32>, i32 -> vector<8x896xf32>
    %c12_36 = arith.constant 12 : index
    %294 = memref.load %arg4[%c12_36] : memref<162xf32, #tpu.memory_space<smem>>
    %295 = vector.broadcast %294 : f32 to vector<8x896xf32>
    %296 = arith.mulf %295, %293 : vector<8x896xf32>
    %297 = arith.addf %284, %296 : vector<8x896xf32>
    %c39 = arith.constant 39 : index
    %298 = memref.load %arg4[%c39] : memref<162xf32, #tpu.memory_space<smem>>
    %299 = vector.broadcast %298 : f32 to vector<8x896xf32>
    %300 = arith.mulf %299, %293 : vector<8x896xf32>
    %301 = arith.addf %288, %300 : vector<8x896xf32>
    %c66 = arith.constant 66 : index
    %302 = memref.load %arg4[%c66] : memref<162xf32, #tpu.memory_space<smem>>
    %303 = vector.broadcast %302 : f32 to vector<8x896xf32>
    %304 = arith.mulf %303, %293 : vector<8x896xf32>
    %305 = arith.addf %292, %304 : vector<8x896xf32>
    %c863_i32_37 = arith.constant 863 : i32
    %306 = tpu.dynamic_rotate %126 by %c863_i32_37 dim 1 : vector<8x896xf32>, i32 -> vector<8x896xf32>
    %c13_38 = arith.constant 13 : index
    %307 = memref.load %arg4[%c13_38] : memref<162xf32, #tpu.memory_space<smem>>
    %308 = vector.broadcast %307 : f32 to vector<8x896xf32>
    %309 = arith.mulf %308, %306 : vector<8x896xf32>
    %310 = arith.addf %297, %309 : vector<8x896xf32>
    %c40 = arith.constant 40 : index
    %311 = memref.load %arg4[%c40] : memref<162xf32, #tpu.memory_space<smem>>
    %312 = vector.broadcast %311 : f32 to vector<8x896xf32>
    %313 = arith.mulf %312, %306 : vector<8x896xf32>
    %314 = arith.addf %301, %313 : vector<8x896xf32>
    %c67 = arith.constant 67 : index
    %315 = memref.load %arg4[%c67] : memref<162xf32, #tpu.memory_space<smem>>
    %316 = vector.broadcast %315 : f32 to vector<8x896xf32>
    %317 = arith.mulf %316, %306 : vector<8x896xf32>
    %318 = arith.addf %305, %317 : vector<8x896xf32>
    %c862_i32_39 = arith.constant 862 : i32
    %319 = tpu.dynamic_rotate %126 by %c862_i32_39 dim 1 : vector<8x896xf32>, i32 -> vector<8x896xf32>
    %c14_40 = arith.constant 14 : index
    %320 = memref.load %arg4[%c14_40] : memref<162xf32, #tpu.memory_space<smem>>
    %321 = vector.broadcast %320 : f32 to vector<8x896xf32>
    %322 = arith.mulf %321, %319 : vector<8x896xf32>
    %323 = arith.addf %310, %322 : vector<8x896xf32>
    %c41 = arith.constant 41 : index
    %324 = memref.load %arg4[%c41] : memref<162xf32, #tpu.memory_space<smem>>
    %325 = vector.broadcast %324 : f32 to vector<8x896xf32>
    %326 = arith.mulf %325, %319 : vector<8x896xf32>
    %327 = arith.addf %314, %326 : vector<8x896xf32>
    %c68 = arith.constant 68 : index
    %328 = memref.load %arg4[%c68] : memref<162xf32, #tpu.memory_space<smem>>
    %329 = vector.broadcast %328 : f32 to vector<8x896xf32>
    %330 = arith.mulf %329, %319 : vector<8x896xf32>
    %331 = arith.addf %318, %330 : vector<8x896xf32>
    %c832_i32_41 = arith.constant 832 : i32
    %332 = tpu.dynamic_rotate %126 by %c832_i32_41 dim 1 : vector<8x896xf32>, i32 -> vector<8x896xf32>
    %c15_42 = arith.constant 15 : index
    %333 = memref.load %arg4[%c15_42] : memref<162xf32, #tpu.memory_space<smem>>
    %334 = vector.broadcast %333 : f32 to vector<8x896xf32>
    %335 = arith.mulf %334, %332 : vector<8x896xf32>
    %336 = arith.addf %323, %335 : vector<8x896xf32>
    %c42 = arith.constant 42 : index
    %337 = memref.load %arg4[%c42] : memref<162xf32, #tpu.memory_space<smem>>
    %338 = vector.broadcast %337 : f32 to vector<8x896xf32>
    %339 = arith.mulf %338, %332 : vector<8x896xf32>
    %340 = arith.addf %327, %339 : vector<8x896xf32>
    %c69 = arith.constant 69 : index
    %341 = memref.load %arg4[%c69] : memref<162xf32, #tpu.memory_space<smem>>
    %342 = vector.broadcast %341 : f32 to vector<8x896xf32>
    %343 = arith.mulf %342, %332 : vector<8x896xf32>
    %344 = arith.addf %331, %343 : vector<8x896xf32>
    %c831_i32_43 = arith.constant 831 : i32
    %345 = tpu.dynamic_rotate %126 by %c831_i32_43 dim 1 : vector<8x896xf32>, i32 -> vector<8x896xf32>
    %c16_44 = arith.constant 16 : index
    %346 = memref.load %arg4[%c16_44] : memref<162xf32, #tpu.memory_space<smem>>
    %347 = vector.broadcast %346 : f32 to vector<8x896xf32>
    %348 = arith.mulf %347, %345 : vector<8x896xf32>
    %349 = arith.addf %336, %348 : vector<8x896xf32>
    %c43 = arith.constant 43 : index
    %350 = memref.load %arg4[%c43] : memref<162xf32, #tpu.memory_space<smem>>
    %351 = vector.broadcast %350 : f32 to vector<8x896xf32>
    %352 = arith.mulf %351, %345 : vector<8x896xf32>
    %353 = arith.addf %340, %352 : vector<8x896xf32>
    %c70 = arith.constant 70 : index
    %354 = memref.load %arg4[%c70] : memref<162xf32, #tpu.memory_space<smem>>
    %355 = vector.broadcast %354 : f32 to vector<8x896xf32>
    %356 = arith.mulf %355, %345 : vector<8x896xf32>
    %357 = arith.addf %344, %356 : vector<8x896xf32>
    %c830_i32_45 = arith.constant 830 : i32
    %358 = tpu.dynamic_rotate %126 by %c830_i32_45 dim 1 : vector<8x896xf32>, i32 -> vector<8x896xf32>
    %c17_46 = arith.constant 17 : index
    %359 = memref.load %arg4[%c17_46] : memref<162xf32, #tpu.memory_space<smem>>
    %360 = vector.broadcast %359 : f32 to vector<8x896xf32>
    %361 = arith.mulf %360, %358 : vector<8x896xf32>
    %362 = arith.addf %349, %361 : vector<8x896xf32>
    %c44 = arith.constant 44 : index
    %363 = memref.load %arg4[%c44] : memref<162xf32, #tpu.memory_space<smem>>
    %364 = vector.broadcast %363 : f32 to vector<8x896xf32>
    %365 = arith.mulf %364, %358 : vector<8x896xf32>
    %366 = arith.addf %353, %365 : vector<8x896xf32>
    %c71 = arith.constant 71 : index
    %367 = memref.load %arg4[%c71] : memref<162xf32, #tpu.memory_space<smem>>
    %368 = vector.broadcast %367 : f32 to vector<8x896xf32>
    %369 = arith.mulf %368, %358 : vector<8x896xf32>
    %370 = arith.addf %357, %369 : vector<8x896xf32>
    %c18_47 = arith.constant 18 : index
    %371 = memref.load %arg4[%c18_47] : memref<162xf32, #tpu.memory_space<smem>>
    %372 = vector.broadcast %371 : f32 to vector<8x896xf32>
    %373 = arith.mulf %372, %128 : vector<8x896xf32>
    %374 = arith.addf %362, %373 : vector<8x896xf32>
    %c45 = arith.constant 45 : index
    %375 = memref.load %arg4[%c45] : memref<162xf32, #tpu.memory_space<smem>>
    %376 = vector.broadcast %375 : f32 to vector<8x896xf32>
    %377 = arith.mulf %376, %128 : vector<8x896xf32>
    %378 = arith.addf %366, %377 : vector<8x896xf32>
    %c72 = arith.constant 72 : index
    %379 = memref.load %arg4[%c72] : memref<162xf32, #tpu.memory_space<smem>>
    %380 = vector.broadcast %379 : f32 to vector<8x896xf32>
    %381 = arith.mulf %380, %128 : vector<8x896xf32>
    %382 = arith.addf %370, %381 : vector<8x896xf32>
    %c895_i32_48 = arith.constant 895 : i32
    %383 = tpu.dynamic_rotate %128 by %c895_i32_48 dim 1 : vector<8x896xf32>, i32 -> vector<8x896xf32>
    %c19_49 = arith.constant 19 : index
    %384 = memref.load %arg4[%c19_49] : memref<162xf32, #tpu.memory_space<smem>>
    %385 = vector.broadcast %384 : f32 to vector<8x896xf32>
    %386 = arith.mulf %385, %383 : vector<8x896xf32>
    %387 = arith.addf %374, %386 : vector<8x896xf32>
    %c46 = arith.constant 46 : index
    %388 = memref.load %arg4[%c46] : memref<162xf32, #tpu.memory_space<smem>>
    %389 = vector.broadcast %388 : f32 to vector<8x896xf32>
    %390 = arith.mulf %389, %383 : vector<8x896xf32>
    %391 = arith.addf %378, %390 : vector<8x896xf32>
    %c73 = arith.constant 73 : index
    %392 = memref.load %arg4[%c73] : memref<162xf32, #tpu.memory_space<smem>>
    %393 = vector.broadcast %392 : f32 to vector<8x896xf32>
    %394 = arith.mulf %393, %383 : vector<8x896xf32>
    %395 = arith.addf %382, %394 : vector<8x896xf32>
    %c894_i32_50 = arith.constant 894 : i32
    %396 = tpu.dynamic_rotate %128 by %c894_i32_50 dim 1 : vector<8x896xf32>, i32 -> vector<8x896xf32>
    %c20_51 = arith.constant 20 : index
    %397 = memref.load %arg4[%c20_51] : memref<162xf32, #tpu.memory_space<smem>>
    %398 = vector.broadcast %397 : f32 to vector<8x896xf32>
    %399 = arith.mulf %398, %396 : vector<8x896xf32>
    %400 = arith.addf %387, %399 : vector<8x896xf32>
    %c47 = arith.constant 47 : index
    %401 = memref.load %arg4[%c47] : memref<162xf32, #tpu.memory_space<smem>>
    %402 = vector.broadcast %401 : f32 to vector<8x896xf32>
    %403 = arith.mulf %402, %396 : vector<8x896xf32>
    %404 = arith.addf %391, %403 : vector<8x896xf32>
    %c74 = arith.constant 74 : index
    %405 = memref.load %arg4[%c74] : memref<162xf32, #tpu.memory_space<smem>>
    %406 = vector.broadcast %405 : f32 to vector<8x896xf32>
    %407 = arith.mulf %406, %396 : vector<8x896xf32>
    %408 = arith.addf %395, %407 : vector<8x896xf32>
    %c864_i32_52 = arith.constant 864 : i32
    %409 = tpu.dynamic_rotate %128 by %c864_i32_52 dim 1 : vector<8x896xf32>, i32 -> vector<8x896xf32>
    %c21_53 = arith.constant 21 : index
    %410 = memref.load %arg4[%c21_53] : memref<162xf32, #tpu.memory_space<smem>>
    %411 = vector.broadcast %410 : f32 to vector<8x896xf32>
    %412 = arith.mulf %411, %409 : vector<8x896xf32>
    %413 = arith.addf %400, %412 : vector<8x896xf32>
    %c48 = arith.constant 48 : index
    %414 = memref.load %arg4[%c48] : memref<162xf32, #tpu.memory_space<smem>>
    %415 = vector.broadcast %414 : f32 to vector<8x896xf32>
    %416 = arith.mulf %415, %409 : vector<8x896xf32>
    %417 = arith.addf %404, %416 : vector<8x896xf32>
    %c75 = arith.constant 75 : index
    %418 = memref.load %arg4[%c75] : memref<162xf32, #tpu.memory_space<smem>>
    %419 = vector.broadcast %418 : f32 to vector<8x896xf32>
    %420 = arith.mulf %419, %409 : vector<8x896xf32>
    %421 = arith.addf %408, %420 : vector<8x896xf32>
    %c863_i32_54 = arith.constant 863 : i32
    %422 = tpu.dynamic_rotate %128 by %c863_i32_54 dim 1 : vector<8x896xf32>, i32 -> vector<8x896xf32>
    %c22_55 = arith.constant 22 : index
    %423 = memref.load %arg4[%c22_55] : memref<162xf32, #tpu.memory_space<smem>>
    %424 = vector.broadcast %423 : f32 to vector<8x896xf32>
    %425 = arith.mulf %424, %422 : vector<8x896xf32>
    %426 = arith.addf %413, %425 : vector<8x896xf32>
    %c49 = arith.constant 49 : index
    %427 = memref.load %arg4[%c49] : memref<162xf32, #tpu.memory_space<smem>>
    %428 = vector.broadcast %427 : f32 to vector<8x896xf32>
    %429 = arith.mulf %428, %422 : vector<8x896xf32>
    %430 = arith.addf %417, %429 : vector<8x896xf32>
    %c76 = arith.constant 76 : index
    %431 = memref.load %arg4[%c76] : memref<162xf32, #tpu.memory_space<smem>>
    %432 = vector.broadcast %431 : f32 to vector<8x896xf32>
    %433 = arith.mulf %432, %422 : vector<8x896xf32>
    %434 = arith.addf %421, %433 : vector<8x896xf32>
    %c862_i32_56 = arith.constant 862 : i32
    %435 = tpu.dynamic_rotate %128 by %c862_i32_56 dim 1 : vector<8x896xf32>, i32 -> vector<8x896xf32>
    %c23_57 = arith.constant 23 : index
    %436 = memref.load %arg4[%c23_57] : memref<162xf32, #tpu.memory_space<smem>>
    %437 = vector.broadcast %436 : f32 to vector<8x896xf32>
    %438 = arith.mulf %437, %435 : vector<8x896xf32>
    %439 = arith.addf %426, %438 : vector<8x896xf32>
    %c50 = arith.constant 50 : index
    %440 = memref.load %arg4[%c50] : memref<162xf32, #tpu.memory_space<smem>>
    %441 = vector.broadcast %440 : f32 to vector<8x896xf32>
    %442 = arith.mulf %441, %435 : vector<8x896xf32>
    %443 = arith.addf %430, %442 : vector<8x896xf32>
    %c77 = arith.constant 77 : index
    %444 = memref.load %arg4[%c77] : memref<162xf32, #tpu.memory_space<smem>>
    %445 = vector.broadcast %444 : f32 to vector<8x896xf32>
    %446 = arith.mulf %445, %435 : vector<8x896xf32>
    %447 = arith.addf %434, %446 : vector<8x896xf32>
    %c832_i32_58 = arith.constant 832 : i32
    %448 = tpu.dynamic_rotate %128 by %c832_i32_58 dim 1 : vector<8x896xf32>, i32 -> vector<8x896xf32>
    %c24_59 = arith.constant 24 : index
    %449 = memref.load %arg4[%c24_59] : memref<162xf32, #tpu.memory_space<smem>>
    %450 = vector.broadcast %449 : f32 to vector<8x896xf32>
    %451 = arith.mulf %450, %448 : vector<8x896xf32>
    %452 = arith.addf %439, %451 : vector<8x896xf32>
    %c51 = arith.constant 51 : index
    %453 = memref.load %arg4[%c51] : memref<162xf32, #tpu.memory_space<smem>>
    %454 = vector.broadcast %453 : f32 to vector<8x896xf32>
    %455 = arith.mulf %454, %448 : vector<8x896xf32>
    %456 = arith.addf %443, %455 : vector<8x896xf32>
    %c78 = arith.constant 78 : index
    %457 = memref.load %arg4[%c78] : memref<162xf32, #tpu.memory_space<smem>>
    %458 = vector.broadcast %457 : f32 to vector<8x896xf32>
    %459 = arith.mulf %458, %448 : vector<8x896xf32>
    %460 = arith.addf %447, %459 : vector<8x896xf32>
    %c831_i32_60 = arith.constant 831 : i32
    %461 = tpu.dynamic_rotate %128 by %c831_i32_60 dim 1 : vector<8x896xf32>, i32 -> vector<8x896xf32>
    %c25_61 = arith.constant 25 : index
    %462 = memref.load %arg4[%c25_61] : memref<162xf32, #tpu.memory_space<smem>>
    %463 = vector.broadcast %462 : f32 to vector<8x896xf32>
    %464 = arith.mulf %463, %461 : vector<8x896xf32>
    %465 = arith.addf %452, %464 : vector<8x896xf32>
    %c52 = arith.constant 52 : index
    %466 = memref.load %arg4[%c52] : memref<162xf32, #tpu.memory_space<smem>>
    %467 = vector.broadcast %466 : f32 to vector<8x896xf32>
    %468 = arith.mulf %467, %461 : vector<8x896xf32>
    %469 = arith.addf %456, %468 : vector<8x896xf32>
    %c79 = arith.constant 79 : index
    %470 = memref.load %arg4[%c79] : memref<162xf32, #tpu.memory_space<smem>>
    %471 = vector.broadcast %470 : f32 to vector<8x896xf32>
    %472 = arith.mulf %471, %461 : vector<8x896xf32>
    %473 = arith.addf %460, %472 : vector<8x896xf32>
    %c830_i32_62 = arith.constant 830 : i32
    %474 = tpu.dynamic_rotate %128 by %c830_i32_62 dim 1 : vector<8x896xf32>, i32 -> vector<8x896xf32>
    %c26_63 = arith.constant 26 : index
    %475 = memref.load %arg4[%c26_63] : memref<162xf32, #tpu.memory_space<smem>>
    %476 = vector.broadcast %475 : f32 to vector<8x896xf32>
    %477 = arith.mulf %476, %474 : vector<8x896xf32>
    %478 = arith.addf %465, %477 : vector<8x896xf32>
    %c53 = arith.constant 53 : index
    %479 = memref.load %arg4[%c53] : memref<162xf32, #tpu.memory_space<smem>>
    %480 = vector.broadcast %479 : f32 to vector<8x896xf32>
    %481 = arith.mulf %480, %474 : vector<8x896xf32>
    %482 = arith.addf %469, %481 : vector<8x896xf32>
    %c80 = arith.constant 80 : index
    %483 = memref.load %arg4[%c80] : memref<162xf32, #tpu.memory_space<smem>>
    %484 = vector.broadcast %483 : f32 to vector<8x896xf32>
    %485 = arith.mulf %484, %474 : vector<8x896xf32>
    %486 = arith.addf %473, %485 : vector<8x896xf32>
    %cst_64 = arith.constant 0.000000e+00 : f32
    %487 = vector.broadcast %cst_64 : f32 to vector<8x896xf32>
    %488 = arith.maximumf %478, %487 : vector<8x896xf32>
    %c0_65 = arith.constant 0 : index
    %c0_66 = arith.constant 0 : index
    %c0_67 = arith.constant 0 : index
    %489 = vector.load %arg6[%c0_65, %c0_66, %c0_67] : memref<6x896x256xf32, #tpu.memory_space<vmem>>, vector<1x896x256xf32>
    %490 = vector.shape_cast %489 : vector<1x896x256xf32> to vector<896x256xf32>
    %cst_68 = arith.constant dense<0.000000e+00> : vector<8x256xf32>
    %491 = tpu.matmul %488, %490, %cst_68 {dimension_numbers = #tpu.dot_dimension_numbers<[1], [0], [0], [1], [0, 0, 1, 1], [], []>} : vector<8x896xf32>, vector<896x256xf32>, vector<8x256xf32> -> vector<8x256xf32>
    %492 = arith.addf %132, %491 : vector<8x256xf32>
    %cst_69 = arith.constant 0.000000e+00 : f32
    %493 = vector.broadcast %cst_69 : f32 to vector<8x896xf32>
    %494 = arith.maximumf %482, %493 : vector<8x896xf32>
    %c1_70 = arith.constant 1 : index
    %c0_71 = arith.constant 0 : index
    %c0_72 = arith.constant 0 : index
    %495 = vector.load %arg6[%c1_70, %c0_71, %c0_72] : memref<6x896x256xf32, #tpu.memory_space<vmem>>, vector<1x896x256xf32>
    %496 = vector.shape_cast %495 : vector<1x896x256xf32> to vector<896x256xf32>
    %cst_73 = arith.constant dense<0.000000e+00> : vector<8x256xf32>
    %497 = tpu.matmul %494, %496, %cst_73 {dimension_numbers = #tpu.dot_dimension_numbers<[1], [0], [0], [1], [0, 0, 1, 1], [], []>} : vector<8x896xf32>, vector<896x256xf32>, vector<8x256xf32> -> vector<8x256xf32>
    %498 = arith.addf %492, %497 : vector<8x256xf32>
    %cst_74 = arith.constant 0.000000e+00 : f32
    %499 = vector.broadcast %cst_74 : f32 to vector<8x896xf32>
    %500 = arith.maximumf %486, %499 : vector<8x896xf32>
    %c2_75 = arith.constant 2 : index
    %c0_76 = arith.constant 0 : index
    %c0_77 = arith.constant 0 : index
    %501 = vector.load %arg6[%c2_75, %c0_76, %c0_77] : memref<6x896x256xf32, #tpu.memory_space<vmem>>, vector<1x896x256xf32>
    %502 = vector.shape_cast %501 : vector<1x896x256xf32> to vector<896x256xf32>
    %cst_78 = arith.constant dense<0.000000e+00> : vector<8x256xf32>
    %503 = tpu.matmul %500, %502, %cst_78 {dimension_numbers = #tpu.dot_dimension_numbers<[1], [0], [0], [1], [0, 0, 1, 1], [], []>} : vector<8x896xf32>, vector<896x256xf32>, vector<8x256xf32> -> vector<8x256xf32>
    %504 = arith.addf %498, %503 : vector<8x256xf32>
    %c3_79 = arith.constant 3 : index
    %505 = memref.load %arg5[%c3_79] : memref<6xf32, #tpu.memory_space<smem>>
    %506 = vector.broadcast %505 : f32 to vector<8x896xf32>
    %c4_80 = arith.constant 4 : index
    %507 = memref.load %arg5[%c4_80] : memref<6xf32, #tpu.memory_space<smem>>
    %508 = vector.broadcast %507 : f32 to vector<8x896xf32>
    %c5_81 = arith.constant 5 : index
    %509 = memref.load %arg5[%c5_81] : memref<6xf32, #tpu.memory_space<smem>>
    %510 = vector.broadcast %509 : f32 to vector<8x896xf32>
    %c81 = arith.constant 81 : index
    %511 = memref.load %arg4[%c81] : memref<162xf32, #tpu.memory_space<smem>>
    %512 = vector.broadcast %511 : f32 to vector<8x896xf32>
    %513 = arith.mulf %512, %124 : vector<8x896xf32>
    %514 = arith.addf %506, %513 : vector<8x896xf32>
    %c108 = arith.constant 108 : index
    %515 = memref.load %arg4[%c108] : memref<162xf32, #tpu.memory_space<smem>>
    %516 = vector.broadcast %515 : f32 to vector<8x896xf32>
    %517 = arith.mulf %516, %124 : vector<8x896xf32>
    %518 = arith.addf %508, %517 : vector<8x896xf32>
    %c135 = arith.constant 135 : index
    %519 = memref.load %arg4[%c135] : memref<162xf32, #tpu.memory_space<smem>>
    %520 = vector.broadcast %519 : f32 to vector<8x896xf32>
    %521 = arith.mulf %520, %124 : vector<8x896xf32>
    %522 = arith.addf %510, %521 : vector<8x896xf32>
    %c895_i32_82 = arith.constant 895 : i32
    %523 = tpu.dynamic_rotate %124 by %c895_i32_82 dim 1 : vector<8x896xf32>, i32 -> vector<8x896xf32>
    %c82 = arith.constant 82 : index
    %524 = memref.load %arg4[%c82] : memref<162xf32, #tpu.memory_space<smem>>
    %525 = vector.broadcast %524 : f32 to vector<8x896xf32>
    %526 = arith.mulf %525, %523 : vector<8x896xf32>
    %527 = arith.addf %514, %526 : vector<8x896xf32>
    %c109 = arith.constant 109 : index
    %528 = memref.load %arg4[%c109] : memref<162xf32, #tpu.memory_space<smem>>
    %529 = vector.broadcast %528 : f32 to vector<8x896xf32>
    %530 = arith.mulf %529, %523 : vector<8x896xf32>
    %531 = arith.addf %518, %530 : vector<8x896xf32>
    %c136 = arith.constant 136 : index
    %532 = memref.load %arg4[%c136] : memref<162xf32, #tpu.memory_space<smem>>
    %533 = vector.broadcast %532 : f32 to vector<8x896xf32>
    %534 = arith.mulf %533, %523 : vector<8x896xf32>
    %535 = arith.addf %522, %534 : vector<8x896xf32>
    %c894_i32_83 = arith.constant 894 : i32
    %536 = tpu.dynamic_rotate %124 by %c894_i32_83 dim 1 : vector<8x896xf32>, i32 -> vector<8x896xf32>
    %c83 = arith.constant 83 : index
    %537 = memref.load %arg4[%c83] : memref<162xf32, #tpu.memory_space<smem>>
    %538 = vector.broadcast %537 : f32 to vector<8x896xf32>
    %539 = arith.mulf %538, %536 : vector<8x896xf32>
    %540 = arith.addf %527, %539 : vector<8x896xf32>
    %c110 = arith.constant 110 : index
    %541 = memref.load %arg4[%c110] : memref<162xf32, #tpu.memory_space<smem>>
    %542 = vector.broadcast %541 : f32 to vector<8x896xf32>
    %543 = arith.mulf %542, %536 : vector<8x896xf32>
    %544 = arith.addf %531, %543 : vector<8x896xf32>
    %c137 = arith.constant 137 : index
    %545 = memref.load %arg4[%c137] : memref<162xf32, #tpu.memory_space<smem>>
    %546 = vector.broadcast %545 : f32 to vector<8x896xf32>
    %547 = arith.mulf %546, %536 : vector<8x896xf32>
    %548 = arith.addf %535, %547 : vector<8x896xf32>
    %c864_i32_84 = arith.constant 864 : i32
    %549 = tpu.dynamic_rotate %124 by %c864_i32_84 dim 1 : vector<8x896xf32>, i32 -> vector<8x896xf32>
    %c84 = arith.constant 84 : index
    %550 = memref.load %arg4[%c84] : memref<162xf32, #tpu.memory_space<smem>>
    %551 = vector.broadcast %550 : f32 to vector<8x896xf32>
    %552 = arith.mulf %551, %549 : vector<8x896xf32>
    %553 = arith.addf %540, %552 : vector<8x896xf32>
    %c111 = arith.constant 111 : index
    %554 = memref.load %arg4[%c111] : memref<162xf32, #tpu.memory_space<smem>>
    %555 = vector.broadcast %554 : f32 to vector<8x896xf32>
    %556 = arith.mulf %555, %549 : vector<8x896xf32>
    %557 = arith.addf %544, %556 : vector<8x896xf32>
    %c138 = arith.constant 138 : index
    %558 = memref.load %arg4[%c138] : memref<162xf32, #tpu.memory_space<smem>>
    %559 = vector.broadcast %558 : f32 to vector<8x896xf32>
    %560 = arith.mulf %559, %549 : vector<8x896xf32>
    %561 = arith.addf %548, %560 : vector<8x896xf32>
    %c863_i32_85 = arith.constant 863 : i32
    %562 = tpu.dynamic_rotate %124 by %c863_i32_85 dim 1 : vector<8x896xf32>, i32 -> vector<8x896xf32>
    %c85 = arith.constant 85 : index
    %563 = memref.load %arg4[%c85] : memref<162xf32, #tpu.memory_space<smem>>
    %564 = vector.broadcast %563 : f32 to vector<8x896xf32>
    %565 = arith.mulf %564, %562 : vector<8x896xf32>
    %566 = arith.addf %553, %565 : vector<8x896xf32>
    %c112 = arith.constant 112 : index
    %567 = memref.load %arg4[%c112] : memref<162xf32, #tpu.memory_space<smem>>
    %568 = vector.broadcast %567 : f32 to vector<8x896xf32>
    %569 = arith.mulf %568, %562 : vector<8x896xf32>
    %570 = arith.addf %557, %569 : vector<8x896xf32>
    %c139 = arith.constant 139 : index
    %571 = memref.load %arg4[%c139] : memref<162xf32, #tpu.memory_space<smem>>
    %572 = vector.broadcast %571 : f32 to vector<8x896xf32>
    %573 = arith.mulf %572, %562 : vector<8x896xf32>
    %574 = arith.addf %561, %573 : vector<8x896xf32>
    %c862_i32_86 = arith.constant 862 : i32
    %575 = tpu.dynamic_rotate %124 by %c862_i32_86 dim 1 : vector<8x896xf32>, i32 -> vector<8x896xf32>
    %c86 = arith.constant 86 : index
    %576 = memref.load %arg4[%c86] : memref<162xf32, #tpu.memory_space<smem>>
    %577 = vector.broadcast %576 : f32 to vector<8x896xf32>
    %578 = arith.mulf %577, %575 : vector<8x896xf32>
    %579 = arith.addf %566, %578 : vector<8x896xf32>
    %c113 = arith.constant 113 : index
    %580 = memref.load %arg4[%c113] : memref<162xf32, #tpu.memory_space<smem>>
    %581 = vector.broadcast %580 : f32 to vector<8x896xf32>
    %582 = arith.mulf %581, %575 : vector<8x896xf32>
    %583 = arith.addf %570, %582 : vector<8x896xf32>
    %c140 = arith.constant 140 : index
    %584 = memref.load %arg4[%c140] : memref<162xf32, #tpu.memory_space<smem>>
    %585 = vector.broadcast %584 : f32 to vector<8x896xf32>
    %586 = arith.mulf %585, %575 : vector<8x896xf32>
    %587 = arith.addf %574, %586 : vector<8x896xf32>
    %c832_i32_87 = arith.constant 832 : i32
    %588 = tpu.dynamic_rotate %124 by %c832_i32_87 dim 1 : vector<8x896xf32>, i32 -> vector<8x896xf32>
    %c87 = arith.constant 87 : index
    %589 = memref.load %arg4[%c87] : memref<162xf32, #tpu.memory_space<smem>>
    %590 = vector.broadcast %589 : f32 to vector<8x896xf32>
    %591 = arith.mulf %590, %588 : vector<8x896xf32>
    %592 = arith.addf %579, %591 : vector<8x896xf32>
    %c114 = arith.constant 114 : index
    %593 = memref.load %arg4[%c114] : memref<162xf32, #tpu.memory_space<smem>>
    %594 = vector.broadcast %593 : f32 to vector<8x896xf32>
    %595 = arith.mulf %594, %588 : vector<8x896xf32>
    %596 = arith.addf %583, %595 : vector<8x896xf32>
    %c141 = arith.constant 141 : index
    %597 = memref.load %arg4[%c141] : memref<162xf32, #tpu.memory_space<smem>>
    %598 = vector.broadcast %597 : f32 to vector<8x896xf32>
    %599 = arith.mulf %598, %588 : vector<8x896xf32>
    %600 = arith.addf %587, %599 : vector<8x896xf32>
    %c831_i32_88 = arith.constant 831 : i32
    %601 = tpu.dynamic_rotate %124 by %c831_i32_88 dim 1 : vector<8x896xf32>, i32 -> vector<8x896xf32>
    %c88 = arith.constant 88 : index
    %602 = memref.load %arg4[%c88] : memref<162xf32, #tpu.memory_space<smem>>
    %603 = vector.broadcast %602 : f32 to vector<8x896xf32>
    %604 = arith.mulf %603, %601 : vector<8x896xf32>
    %605 = arith.addf %592, %604 : vector<8x896xf32>
    %c115 = arith.constant 115 : index
    %606 = memref.load %arg4[%c115] : memref<162xf32, #tpu.memory_space<smem>>
    %607 = vector.broadcast %606 : f32 to vector<8x896xf32>
    %608 = arith.mulf %607, %601 : vector<8x896xf32>
    %609 = arith.addf %596, %608 : vector<8x896xf32>
    %c142 = arith.constant 142 : index
    %610 = memref.load %arg4[%c142] : memref<162xf32, #tpu.memory_space<smem>>
    %611 = vector.broadcast %610 : f32 to vector<8x896xf32>
    %612 = arith.mulf %611, %601 : vector<8x896xf32>
    %613 = arith.addf %600, %612 : vector<8x896xf32>
    %c830_i32_89 = arith.constant 830 : i32
    %614 = tpu.dynamic_rotate %124 by %c830_i32_89 dim 1 : vector<8x896xf32>, i32 -> vector<8x896xf32>
    %c89 = arith.constant 89 : index
    %615 = memref.load %arg4[%c89] : memref<162xf32, #tpu.memory_space<smem>>
    %616 = vector.broadcast %615 : f32 to vector<8x896xf32>
    %617 = arith.mulf %616, %614 : vector<8x896xf32>
    %618 = arith.addf %605, %617 : vector<8x896xf32>
    %c116 = arith.constant 116 : index
    %619 = memref.load %arg4[%c116] : memref<162xf32, #tpu.memory_space<smem>>
    %620 = vector.broadcast %619 : f32 to vector<8x896xf32>
    %621 = arith.mulf %620, %614 : vector<8x896xf32>
    %622 = arith.addf %609, %621 : vector<8x896xf32>
    %c143 = arith.constant 143 : index
    %623 = memref.load %arg4[%c143] : memref<162xf32, #tpu.memory_space<smem>>
    %624 = vector.broadcast %623 : f32 to vector<8x896xf32>
    %625 = arith.mulf %624, %614 : vector<8x896xf32>
    %626 = arith.addf %613, %625 : vector<8x896xf32>
    %c90 = arith.constant 90 : index
    %627 = memref.load %arg4[%c90] : memref<162xf32, #tpu.memory_space<smem>>
    %628 = vector.broadcast %627 : f32 to vector<8x896xf32>
    %629 = arith.mulf %628, %126 : vector<8x896xf32>
    %630 = arith.addf %618, %629 : vector<8x896xf32>
    %c117 = arith.constant 117 : index
    %631 = memref.load %arg4[%c117] : memref<162xf32, #tpu.memory_space<smem>>
    %632 = vector.broadcast %631 : f32 to vector<8x896xf32>
    %633 = arith.mulf %632, %126 : vector<8x896xf32>
    %634 = arith.addf %622, %633 : vector<8x896xf32>
    %c144 = arith.constant 144 : index
    %635 = memref.load %arg4[%c144] : memref<162xf32, #tpu.memory_space<smem>>
    %636 = vector.broadcast %635 : f32 to vector<8x896xf32>
    %637 = arith.mulf %636, %126 : vector<8x896xf32>
    %638 = arith.addf %626, %637 : vector<8x896xf32>
    %c895_i32_90 = arith.constant 895 : i32
    %639 = tpu.dynamic_rotate %126 by %c895_i32_90 dim 1 : vector<8x896xf32>, i32 -> vector<8x896xf32>
    %c91 = arith.constant 91 : index
    %640 = memref.load %arg4[%c91] : memref<162xf32, #tpu.memory_space<smem>>
    %641 = vector.broadcast %640 : f32 to vector<8x896xf32>
    %642 = arith.mulf %641, %639 : vector<8x896xf32>
    %643 = arith.addf %630, %642 : vector<8x896xf32>
    %c118 = arith.constant 118 : index
    %644 = memref.load %arg4[%c118] : memref<162xf32, #tpu.memory_space<smem>>
    %645 = vector.broadcast %644 : f32 to vector<8x896xf32>
    %646 = arith.mulf %645, %639 : vector<8x896xf32>
    %647 = arith.addf %634, %646 : vector<8x896xf32>
    %c145 = arith.constant 145 : index
    %648 = memref.load %arg4[%c145] : memref<162xf32, #tpu.memory_space<smem>>
    %649 = vector.broadcast %648 : f32 to vector<8x896xf32>
    %650 = arith.mulf %649, %639 : vector<8x896xf32>
    %651 = arith.addf %638, %650 : vector<8x896xf32>
    %c894_i32_91 = arith.constant 894 : i32
    %652 = tpu.dynamic_rotate %126 by %c894_i32_91 dim 1 : vector<8x896xf32>, i32 -> vector<8x896xf32>
    %c92 = arith.constant 92 : index
    %653 = memref.load %arg4[%c92] : memref<162xf32, #tpu.memory_space<smem>>
    %654 = vector.broadcast %653 : f32 to vector<8x896xf32>
    %655 = arith.mulf %654, %652 : vector<8x896xf32>
    %656 = arith.addf %643, %655 : vector<8x896xf32>
    %c119 = arith.constant 119 : index
    %657 = memref.load %arg4[%c119] : memref<162xf32, #tpu.memory_space<smem>>
    %658 = vector.broadcast %657 : f32 to vector<8x896xf32>
    %659 = arith.mulf %658, %652 : vector<8x896xf32>
    %660 = arith.addf %647, %659 : vector<8x896xf32>
    %c146 = arith.constant 146 : index
    %661 = memref.load %arg4[%c146] : memref<162xf32, #tpu.memory_space<smem>>
    %662 = vector.broadcast %661 : f32 to vector<8x896xf32>
    %663 = arith.mulf %662, %652 : vector<8x896xf32>
    %664 = arith.addf %651, %663 : vector<8x896xf32>
    %c864_i32_92 = arith.constant 864 : i32
    %665 = tpu.dynamic_rotate %126 by %c864_i32_92 dim 1 : vector<8x896xf32>, i32 -> vector<8x896xf32>
    %c93 = arith.constant 93 : index
    %666 = memref.load %arg4[%c93] : memref<162xf32, #tpu.memory_space<smem>>
    %667 = vector.broadcast %666 : f32 to vector<8x896xf32>
    %668 = arith.mulf %667, %665 : vector<8x896xf32>
    %669 = arith.addf %656, %668 : vector<8x896xf32>
    %c120 = arith.constant 120 : index
    %670 = memref.load %arg4[%c120] : memref<162xf32, #tpu.memory_space<smem>>
    %671 = vector.broadcast %670 : f32 to vector<8x896xf32>
    %672 = arith.mulf %671, %665 : vector<8x896xf32>
    %673 = arith.addf %660, %672 : vector<8x896xf32>
    %c147 = arith.constant 147 : index
    %674 = memref.load %arg4[%c147] : memref<162xf32, #tpu.memory_space<smem>>
    %675 = vector.broadcast %674 : f32 to vector<8x896xf32>
    %676 = arith.mulf %675, %665 : vector<8x896xf32>
    %677 = arith.addf %664, %676 : vector<8x896xf32>
    %c863_i32_93 = arith.constant 863 : i32
    %678 = tpu.dynamic_rotate %126 by %c863_i32_93 dim 1 : vector<8x896xf32>, i32 -> vector<8x896xf32>
    %c94 = arith.constant 94 : index
    %679 = memref.load %arg4[%c94] : memref<162xf32, #tpu.memory_space<smem>>
    %680 = vector.broadcast %679 : f32 to vector<8x896xf32>
    %681 = arith.mulf %680, %678 : vector<8x896xf32>
    %682 = arith.addf %669, %681 : vector<8x896xf32>
    %c121 = arith.constant 121 : index
    %683 = memref.load %arg4[%c121] : memref<162xf32, #tpu.memory_space<smem>>
    %684 = vector.broadcast %683 : f32 to vector<8x896xf32>
    %685 = arith.mulf %684, %678 : vector<8x896xf32>
    %686 = arith.addf %673, %685 : vector<8x896xf32>
    %c148 = arith.constant 148 : index
    %687 = memref.load %arg4[%c148] : memref<162xf32, #tpu.memory_space<smem>>
    %688 = vector.broadcast %687 : f32 to vector<8x896xf32>
    %689 = arith.mulf %688, %678 : vector<8x896xf32>
    %690 = arith.addf %677, %689 : vector<8x896xf32>
    %c862_i32_94 = arith.constant 862 : i32
    %691 = tpu.dynamic_rotate %126 by %c862_i32_94 dim 1 : vector<8x896xf32>, i32 -> vector<8x896xf32>
    %c95 = arith.constant 95 : index
    %692 = memref.load %arg4[%c95] : memref<162xf32, #tpu.memory_space<smem>>
    %693 = vector.broadcast %692 : f32 to vector<8x896xf32>
    %694 = arith.mulf %693, %691 : vector<8x896xf32>
    %695 = arith.addf %682, %694 : vector<8x896xf32>
    %c122 = arith.constant 122 : index
    %696 = memref.load %arg4[%c122] : memref<162xf32, #tpu.memory_space<smem>>
    %697 = vector.broadcast %696 : f32 to vector<8x896xf32>
    %698 = arith.mulf %697, %691 : vector<8x896xf32>
    %699 = arith.addf %686, %698 : vector<8x896xf32>
    %c149 = arith.constant 149 : index
    %700 = memref.load %arg4[%c149] : memref<162xf32, #tpu.memory_space<smem>>
    %701 = vector.broadcast %700 : f32 to vector<8x896xf32>
    %702 = arith.mulf %701, %691 : vector<8x896xf32>
    %703 = arith.addf %690, %702 : vector<8x896xf32>
    %c832_i32_95 = arith.constant 832 : i32
    %704 = tpu.dynamic_rotate %126 by %c832_i32_95 dim 1 : vector<8x896xf32>, i32 -> vector<8x896xf32>
    %c96 = arith.constant 96 : index
    %705 = memref.load %arg4[%c96] : memref<162xf32, #tpu.memory_space<smem>>
    %706 = vector.broadcast %705 : f32 to vector<8x896xf32>
    %707 = arith.mulf %706, %704 : vector<8x896xf32>
    %708 = arith.addf %695, %707 : vector<8x896xf32>
    %c123 = arith.constant 123 : index
    %709 = memref.load %arg4[%c123] : memref<162xf32, #tpu.memory_space<smem>>
    %710 = vector.broadcast %709 : f32 to vector<8x896xf32>
    %711 = arith.mulf %710, %704 : vector<8x896xf32>
    %712 = arith.addf %699, %711 : vector<8x896xf32>
    %c150 = arith.constant 150 : index
    %713 = memref.load %arg4[%c150] : memref<162xf32, #tpu.memory_space<smem>>
    %714 = vector.broadcast %713 : f32 to vector<8x896xf32>
    %715 = arith.mulf %714, %704 : vector<8x896xf32>
    %716 = arith.addf %703, %715 : vector<8x896xf32>
    %c831_i32_96 = arith.constant 831 : i32
    %717 = tpu.dynamic_rotate %126 by %c831_i32_96 dim 1 : vector<8x896xf32>, i32 -> vector<8x896xf32>
    %c97 = arith.constant 97 : index
    %718 = memref.load %arg4[%c97] : memref<162xf32, #tpu.memory_space<smem>>
    %719 = vector.broadcast %718 : f32 to vector<8x896xf32>
    %720 = arith.mulf %719, %717 : vector<8x896xf32>
    %721 = arith.addf %708, %720 : vector<8x896xf32>
    %c124 = arith.constant 124 : index
    %722 = memref.load %arg4[%c124] : memref<162xf32, #tpu.memory_space<smem>>
    %723 = vector.broadcast %722 : f32 to vector<8x896xf32>
    %724 = arith.mulf %723, %717 : vector<8x896xf32>
    %725 = arith.addf %712, %724 : vector<8x896xf32>
    %c151 = arith.constant 151 : index
    %726 = memref.load %arg4[%c151] : memref<162xf32, #tpu.memory_space<smem>>
    %727 = vector.broadcast %726 : f32 to vector<8x896xf32>
    %728 = arith.mulf %727, %717 : vector<8x896xf32>
    %729 = arith.addf %716, %728 : vector<8x896xf32>
    %c830_i32_97 = arith.constant 830 : i32
    %730 = tpu.dynamic_rotate %126 by %c830_i32_97 dim 1 : vector<8x896xf32>, i32 -> vector<8x896xf32>
    %c98 = arith.constant 98 : index
    %731 = memref.load %arg4[%c98] : memref<162xf32, #tpu.memory_space<smem>>
    %732 = vector.broadcast %731 : f32 to vector<8x896xf32>
    %733 = arith.mulf %732, %730 : vector<8x896xf32>
    %734 = arith.addf %721, %733 : vector<8x896xf32>
    %c125 = arith.constant 125 : index
    %735 = memref.load %arg4[%c125] : memref<162xf32, #tpu.memory_space<smem>>
    %736 = vector.broadcast %735 : f32 to vector<8x896xf32>
    %737 = arith.mulf %736, %730 : vector<8x896xf32>
    %738 = arith.addf %725, %737 : vector<8x896xf32>
    %c152 = arith.constant 152 : index
    %739 = memref.load %arg4[%c152] : memref<162xf32, #tpu.memory_space<smem>>
    %740 = vector.broadcast %739 : f32 to vector<8x896xf32>
    %741 = arith.mulf %740, %730 : vector<8x896xf32>
    %742 = arith.addf %729, %741 : vector<8x896xf32>
    %c99 = arith.constant 99 : index
    %743 = memref.load %arg4[%c99] : memref<162xf32, #tpu.memory_space<smem>>
    %744 = vector.broadcast %743 : f32 to vector<8x896xf32>
    %745 = arith.mulf %744, %128 : vector<8x896xf32>
    %746 = arith.addf %734, %745 : vector<8x896xf32>
    %c126 = arith.constant 126 : index
    %747 = memref.load %arg4[%c126] : memref<162xf32, #tpu.memory_space<smem>>
    %748 = vector.broadcast %747 : f32 to vector<8x896xf32>
    %749 = arith.mulf %748, %128 : vector<8x896xf32>
    %750 = arith.addf %738, %749 : vector<8x896xf32>
    %c153 = arith.constant 153 : index
    %751 = memref.load %arg4[%c153] : memref<162xf32, #tpu.memory_space<smem>>
    %752 = vector.broadcast %751 : f32 to vector<8x896xf32>
    %753 = arith.mulf %752, %128 : vector<8x896xf32>
    %754 = arith.addf %742, %753 : vector<8x896xf32>
    %c895_i32_98 = arith.constant 895 : i32
    %755 = tpu.dynamic_rotate %128 by %c895_i32_98 dim 1 : vector<8x896xf32>, i32 -> vector<8x896xf32>
    %c100 = arith.constant 100 : index
    %756 = memref.load %arg4[%c100] : memref<162xf32, #tpu.memory_space<smem>>
    %757 = vector.broadcast %756 : f32 to vector<8x896xf32>
    %758 = arith.mulf %757, %755 : vector<8x896xf32>
    %759 = arith.addf %746, %758 : vector<8x896xf32>
    %c127 = arith.constant 127 : index
    %760 = memref.load %arg4[%c127] : memref<162xf32, #tpu.memory_space<smem>>
    %761 = vector.broadcast %760 : f32 to vector<8x896xf32>
    %762 = arith.mulf %761, %755 : vector<8x896xf32>
    %763 = arith.addf %750, %762 : vector<8x896xf32>
    %c154 = arith.constant 154 : index
    %764 = memref.load %arg4[%c154] : memref<162xf32, #tpu.memory_space<smem>>
    %765 = vector.broadcast %764 : f32 to vector<8x896xf32>
    %766 = arith.mulf %765, %755 : vector<8x896xf32>
    %767 = arith.addf %754, %766 : vector<8x896xf32>
    %c894_i32_99 = arith.constant 894 : i32
    %768 = tpu.dynamic_rotate %128 by %c894_i32_99 dim 1 : vector<8x896xf32>, i32 -> vector<8x896xf32>
    %c101 = arith.constant 101 : index
    %769 = memref.load %arg4[%c101] : memref<162xf32, #tpu.memory_space<smem>>
    %770 = vector.broadcast %769 : f32 to vector<8x896xf32>
    %771 = arith.mulf %770, %768 : vector<8x896xf32>
    %772 = arith.addf %759, %771 : vector<8x896xf32>
    %c128 = arith.constant 128 : index
    %773 = memref.load %arg4[%c128] : memref<162xf32, #tpu.memory_space<smem>>
    %774 = vector.broadcast %773 : f32 to vector<8x896xf32>
    %775 = arith.mulf %774, %768 : vector<8x896xf32>
    %776 = arith.addf %763, %775 : vector<8x896xf32>
    %c155 = arith.constant 155 : index
    %777 = memref.load %arg4[%c155] : memref<162xf32, #tpu.memory_space<smem>>
    %778 = vector.broadcast %777 : f32 to vector<8x896xf32>
    %779 = arith.mulf %778, %768 : vector<8x896xf32>
    %780 = arith.addf %767, %779 : vector<8x896xf32>
    %c864_i32_100 = arith.constant 864 : i32
    %781 = tpu.dynamic_rotate %128 by %c864_i32_100 dim 1 : vector<8x896xf32>, i32 -> vector<8x896xf32>
    %c102 = arith.constant 102 : index
    %782 = memref.load %arg4[%c102] : memref<162xf32, #tpu.memory_space<smem>>
    %783 = vector.broadcast %782 : f32 to vector<8x896xf32>
    %784 = arith.mulf %783, %781 : vector<8x896xf32>
    %785 = arith.addf %772, %784 : vector<8x896xf32>
    %c129 = arith.constant 129 : index
    %786 = memref.load %arg4[%c129] : memref<162xf32, #tpu.memory_space<smem>>
    %787 = vector.broadcast %786 : f32 to vector<8x896xf32>
    %788 = arith.mulf %787, %781 : vector<8x896xf32>
    %789 = arith.addf %776, %788 : vector<8x896xf32>
    %c156 = arith.constant 156 : index
    %790 = memref.load %arg4[%c156] : memref<162xf32, #tpu.memory_space<smem>>
    %791 = vector.broadcast %790 : f32 to vector<8x896xf32>
    %792 = arith.mulf %791, %781 : vector<8x896xf32>
    %793 = arith.addf %780, %792 : vector<8x896xf32>
    %c863_i32_101 = arith.constant 863 : i32
    %794 = tpu.dynamic_rotate %128 by %c863_i32_101 dim 1 : vector<8x896xf32>, i32 -> vector<8x896xf32>
    %c103 = arith.constant 103 : index
    %795 = memref.load %arg4[%c103] : memref<162xf32, #tpu.memory_space<smem>>
    %796 = vector.broadcast %795 : f32 to vector<8x896xf32>
    %797 = arith.mulf %796, %794 : vector<8x896xf32>
    %798 = arith.addf %785, %797 : vector<8x896xf32>
    %c130 = arith.constant 130 : index
    %799 = memref.load %arg4[%c130] : memref<162xf32, #tpu.memory_space<smem>>
    %800 = vector.broadcast %799 : f32 to vector<8x896xf32>
    %801 = arith.mulf %800, %794 : vector<8x896xf32>
    %802 = arith.addf %789, %801 : vector<8x896xf32>
    %c157 = arith.constant 157 : index
    %803 = memref.load %arg4[%c157] : memref<162xf32, #tpu.memory_space<smem>>
    %804 = vector.broadcast %803 : f32 to vector<8x896xf32>
    %805 = arith.mulf %804, %794 : vector<8x896xf32>
    %806 = arith.addf %793, %805 : vector<8x896xf32>
    %c862_i32_102 = arith.constant 862 : i32
    %807 = tpu.dynamic_rotate %128 by %c862_i32_102 dim 1 : vector<8x896xf32>, i32 -> vector<8x896xf32>
    %c104 = arith.constant 104 : index
    %808 = memref.load %arg4[%c104] : memref<162xf32, #tpu.memory_space<smem>>
    %809 = vector.broadcast %808 : f32 to vector<8x896xf32>
    %810 = arith.mulf %809, %807 : vector<8x896xf32>
    %811 = arith.addf %798, %810 : vector<8x896xf32>
    %c131 = arith.constant 131 : index
    %812 = memref.load %arg4[%c131] : memref<162xf32, #tpu.memory_space<smem>>
    %813 = vector.broadcast %812 : f32 to vector<8x896xf32>
    %814 = arith.mulf %813, %807 : vector<8x896xf32>
    %815 = arith.addf %802, %814 : vector<8x896xf32>
    %c158 = arith.constant 158 : index
    %816 = memref.load %arg4[%c158] : memref<162xf32, #tpu.memory_space<smem>>
    %817 = vector.broadcast %816 : f32 to vector<8x896xf32>
    %818 = arith.mulf %817, %807 : vector<8x896xf32>
    %819 = arith.addf %806, %818 : vector<8x896xf32>
    %c832_i32_103 = arith.constant 832 : i32
    %820 = tpu.dynamic_rotate %128 by %c832_i32_103 dim 1 : vector<8x896xf32>, i32 -> vector<8x896xf32>
    %c105 = arith.constant 105 : index
    %821 = memref.load %arg4[%c105] : memref<162xf32, #tpu.memory_space<smem>>
    %822 = vector.broadcast %821 : f32 to vector<8x896xf32>
    %823 = arith.mulf %822, %820 : vector<8x896xf32>
    %824 = arith.addf %811, %823 : vector<8x896xf32>
    %c132 = arith.constant 132 : index
    %825 = memref.load %arg4[%c132] : memref<162xf32, #tpu.memory_space<smem>>
    %826 = vector.broadcast %825 : f32 to vector<8x896xf32>
    %827 = arith.mulf %826, %820 : vector<8x896xf32>
    %828 = arith.addf %815, %827 : vector<8x896xf32>
    %c159 = arith.constant 159 : index
    %829 = memref.load %arg4[%c159] : memref<162xf32, #tpu.memory_space<smem>>
    %830 = vector.broadcast %829 : f32 to vector<8x896xf32>
    %831 = arith.mulf %830, %820 : vector<8x896xf32>
    %832 = arith.addf %819, %831 : vector<8x896xf32>
    %c831_i32_104 = arith.constant 831 : i32
    %833 = tpu.dynamic_rotate %128 by %c831_i32_104 dim 1 : vector<8x896xf32>, i32 -> vector<8x896xf32>
    %c106 = arith.constant 106 : index
    %834 = memref.load %arg4[%c106] : memref<162xf32, #tpu.memory_space<smem>>
    %835 = vector.broadcast %834 : f32 to vector<8x896xf32>
    %836 = arith.mulf %835, %833 : vector<8x896xf32>
    %837 = arith.addf %824, %836 : vector<8x896xf32>
    %c133 = arith.constant 133 : index
    %838 = memref.load %arg4[%c133] : memref<162xf32, #tpu.memory_space<smem>>
    %839 = vector.broadcast %838 : f32 to vector<8x896xf32>
    %840 = arith.mulf %839, %833 : vector<8x896xf32>
    %841 = arith.addf %828, %840 : vector<8x896xf32>
    %c160 = arith.constant 160 : index
    %842 = memref.load %arg4[%c160] : memref<162xf32, #tpu.memory_space<smem>>
    %843 = vector.broadcast %842 : f32 to vector<8x896xf32>
    %844 = arith.mulf %843, %833 : vector<8x896xf32>
    %845 = arith.addf %832, %844 : vector<8x896xf32>
    %c830_i32_105 = arith.constant 830 : i32
    %846 = tpu.dynamic_rotate %128 by %c830_i32_105 dim 1 : vector<8x896xf32>, i32 -> vector<8x896xf32>
    %c107 = arith.constant 107 : index
    %847 = memref.load %arg4[%c107] : memref<162xf32, #tpu.memory_space<smem>>
    %848 = vector.broadcast %847 : f32 to vector<8x896xf32>
    %849 = arith.mulf %848, %846 : vector<8x896xf32>
    %850 = arith.addf %837, %849 : vector<8x896xf32>
    %c134 = arith.constant 134 : index
    %851 = memref.load %arg4[%c134] : memref<162xf32, #tpu.memory_space<smem>>
    %852 = vector.broadcast %851 : f32 to vector<8x896xf32>
    %853 = arith.mulf %852, %846 : vector<8x896xf32>
    %854 = arith.addf %841, %853 : vector<8x896xf32>
    %c161 = arith.constant 161 : index
    %855 = memref.load %arg4[%c161] : memref<162xf32, #tpu.memory_space<smem>>
    %856 = vector.broadcast %855 : f32 to vector<8x896xf32>
    %857 = arith.mulf %856, %846 : vector<8x896xf32>
    %858 = arith.addf %845, %857 : vector<8x896xf32>
    %cst_106 = arith.constant 0.000000e+00 : f32
    %859 = vector.broadcast %cst_106 : f32 to vector<8x896xf32>
    %860 = arith.maximumf %850, %859 : vector<8x896xf32>
    %c3_107 = arith.constant 3 : index
    %c0_108 = arith.constant 0 : index
    %c0_109 = arith.constant 0 : index
    %861 = vector.load %arg6[%c3_107, %c0_108, %c0_109] : memref<6x896x256xf32, #tpu.memory_space<vmem>>, vector<1x896x256xf32>
    %862 = vector.shape_cast %861 : vector<1x896x256xf32> to vector<896x256xf32>
    %cst_110 = arith.constant dense<0.000000e+00> : vector<8x256xf32>
    %863 = tpu.matmul %860, %862, %cst_110 {dimension_numbers = #tpu.dot_dimension_numbers<[1], [0], [0], [1], [0, 0, 1, 1], [], []>} : vector<8x896xf32>, vector<896x256xf32>, vector<8x256xf32> -> vector<8x256xf32>
    %864 = arith.addf %504, %863 : vector<8x256xf32>
    %cst_111 = arith.constant 0.000000e+00 : f32
    %865 = vector.broadcast %cst_111 : f32 to vector<8x896xf32>
    %866 = arith.maximumf %854, %865 : vector<8x896xf32>
    %c4_112 = arith.constant 4 : index
    %c0_113 = arith.constant 0 : index
    %c0_114 = arith.constant 0 : index
    %867 = vector.load %arg6[%c4_112, %c0_113, %c0_114] : memref<6x896x256xf32, #tpu.memory_space<vmem>>, vector<1x896x256xf32>
    %868 = vector.shape_cast %867 : vector<1x896x256xf32> to vector<896x256xf32>
    %cst_115 = arith.constant dense<0.000000e+00> : vector<8x256xf32>
    %869 = tpu.matmul %866, %868, %cst_115 {dimension_numbers = #tpu.dot_dimension_numbers<[1], [0], [0], [1], [0, 0, 1, 1], [], []>} : vector<8x896xf32>, vector<896x256xf32>, vector<8x256xf32> -> vector<8x256xf32>
    %870 = arith.addf %864, %869 : vector<8x256xf32>
    %cst_116 = arith.constant 0.000000e+00 : f32
    %871 = vector.broadcast %cst_116 : f32 to vector<8x896xf32>
    %872 = arith.maximumf %858, %871 : vector<8x896xf32>
    %c5_117 = arith.constant 5 : index
    %c0_118 = arith.constant 0 : index
    %c0_119 = arith.constant 0 : index
    %873 = vector.load %arg6[%c5_117, %c0_118, %c0_119] : memref<6x896x256xf32, #tpu.memory_space<vmem>>, vector<1x896x256xf32>
    %874 = vector.shape_cast %873 : vector<1x896x256xf32> to vector<896x256xf32>
    %cst_120 = arith.constant dense<0.000000e+00> : vector<8x256xf32>
    %875 = tpu.matmul %872, %874, %cst_120 {dimension_numbers = #tpu.dot_dimension_numbers<[1], [0], [0], [1], [0, 0, 1, 1], [], []>} : vector<8x896xf32>, vector<896x256xf32>, vector<8x256xf32> -> vector<8x256xf32>
    %876 = arith.addf %870, %875 : vector<8x256xf32>
    %cst_121 = arith.constant 0.000000e+00 : f32
    %877 = vector.broadcast %cst_121 : f32 to vector<8x256xf32>
    %878 = arith.maximumf %876, %877 : vector<8x256xf32>
    %c0_122 = arith.constant 0 : index
    %c0_123 = arith.constant 0 : index
    %879 = vector.load %arg8[%c0_122, %c0_123] : memref<256x128xf32, #tpu.memory_space<vmem>>, vector<256x128xf32>
    %cst_124 = arith.constant dense<0.000000e+00> : vector<8x128xf32>
    %880 = tpu.matmul %878, %879, %cst_124 {dimension_numbers = #tpu.dot_dimension_numbers<[1], [0], [0], [1], [0, 0, 1, 1], [], []>} : vector<8x256xf32>, vector<256x128xf32>, vector<8x128xf32> -> vector<8x128xf32>
    %c0_125 = arith.constant 0 : index
    %c0_126 = arith.constant 0 : index
    %881 = vector.load %arg9[%c0_125, %c0_126] : memref<1x128xf32, #tpu.memory_space<vmem>>, vector<1x128xf32>
    %882 = vector.broadcast %881 : vector<1x128xf32> to vector<8x128xf32>
    %883 = arith.addf %880, %882 : vector<8x128xf32>
    %c0_127 = arith.constant 0 : index
    %c0_128 = arith.constant 0 : index
    %884 = vector.load %arg10[%c0_127, %c0_128] : memref<8x128xf32, #tpu.memory_space<vmem>>, vector<8x128xf32>
    tpu.vector_store %arg10[%c0_127, %c0_128], %883 {strides = array<i32>} : memref<8x128xf32, #tpu.memory_space<vmem>>, vector<8x128xf32>,
    return
  }
  func.func @transform_0(%arg0: i32) -> (i32, i32) {
    %c0_i32 = arith.constant 0 : i32
    %c0_i32_0 = arith.constant 0 : i32
    return %arg0, %c0_i32 : i32, i32
  }
  func.func @transform_1(%arg0: i32) -> i32 {
    %c0_i32 = arith.constant 0 : i32
    %c0_i32_0 = arith.constant 0 : i32
    return %c0_i32 : i32
  }
  func.func @transform_2(%arg0: i32) -> i32 {
    %c0_i32 = arith.constant 0 : i32
    %c0_i32_0 = arith.constant 0 : i32
    return %c0_i32 : i32
  }
  func.func @transform_3(%arg0: i32) -> i32 {
    %c0_i32 = arith.constant 0 : i32
    %c0_i32_0 = arith.constant 0 : i32
    return %c0_i32 : i32
  }
  func.func @transform_4(%arg0: i32) -> i32 {
    %c0_i32 = arith.constant 0 : i32
    %c0_i32_0 = arith.constant 0 : i32
    return %c0_i32 : i32
  }
  func.func @transform_5(%arg0: i32) -> (i32, i32, i32) {
    %c0_i32 = arith.constant 0 : i32
    %c0_i32_0 = arith.constant 0 : i32
    %c0_i32_1 = arith.constant 0 : i32
    %c0_i32_2 = arith.constant 0 : i32
    return %c0_i32, %c0_i32_0, %c0_i32_1 : i32, i32, i32
  }
  func.func @transform_6(%arg0: i32) -> (i32, i32) {
    %c0_i32 = arith.constant 0 : i32
    %c0_i32_0 = arith.constant 0 : i32
    %c0_i32_1 = arith.constant 0 : i32
    return %c0_i32, %c0_i32_0 : i32, i32
  }
  func.func @transform_7(%arg0: i32) -> (i32, i32) {
    %c0_i32 = arith.constant 0 : i32
    %c0_i32_0 = arith.constant 0 : i32
    %c0_i32_1 = arith.constant 0 : i32
    return %c0_i32, %c0_i32_0 : i32, i32
  }
  func.func @transform_8(%arg0: i32) -> (i32, i32) {
    %c0_i32 = arith.constant 0 : i32
    %c0_i32_0 = arith.constant 0 : i32
    %c0_i32_1 = arith.constant 0 : i32
    return %c0_i32, %c0_i32_0 : i32, i32
  }
  func.func @transform_9(%arg0: i32) -> (i32, i32) {
    %c0_i32 = arith.constant 0 : i32
    %c0_i32_0 = arith.constant 0 : i32
    return %arg0, %c0_i32 : i32, i32
  }
}

</mosaic_0001>

<llo_original>
// kernel: net_forward.1
$region0: #{net_forward.1}
  #allocation0 [shape = 'u32[]', space=smem, size = 0x4, offset = 0x4, fixed_abs, tag = 'smem constant byte address 0x4 - core index']
  #allocation1 [shape = 'u32[144,128]{1,0:T(1,128)}', space=vmem, size = 0x12000, scoped, tag = 'internal scratch']
  %s0 = inlined_call_operand.vmem [shape: f32[8,896], index: 0, kind: input, shape index: {}]
  %s1 = inlined_call_operand.vmem [shape: f32[27], index: 1, kind: input, shape index: {}]
  %s2 = inlined_call_operand.vmem [shape: f32[3], index: 2, kind: input, shape index: {}]
  %s3 = inlined_call_operand.vmem [shape: f32[162], index: 3, kind: input, shape index: {}]
  %s4 = inlined_call_operand.vmem [shape: f32[6], index: 4, kind: input, shape index: {}]
  %s5 = inlined_call_operand.vmem [shape: f32[6,896,256], index: 5, kind: input, shape index: {}]
  %s6 = inlined_call_operand.vmem [shape: f32[1,256], index: 6, kind: input, shape index: {}]
  %s7 = inlined_call_operand.vmem [shape: f32[256,128], index: 7, kind: input, shape index: {}]
  %s8 = inlined_call_operand.vmem [shape: f32[1,128], index: 8, kind: input, shape index: {}]
  %s9 = inlined_call_operand.vmem [shape: f32[8,128], index: 9, kind: output, shape index: {}]
  %s10 = sld [smem:[#allocation0]]
  $region62: #{net_forward.1} parent=0
    _
  %s12 = ssub.s32 1, %s10
  %s13 = scalar_select 0, %s12, %s10
  $region1: #{net_forward.1} parent=0
    #allocation2 [shape = 'u8[512]{0}', space=smem, size = 0x200, scoped, tag = 'input window, operand 1, single buffered']
    #allocation3 [shape = 's32[1]{0}', space=sflag, size = 0x4, scoped, tag = 'scoped memory for net_forward.1']
    #allocation4 [shape = 'u8[512]{0}', space=smem, size = 0x200, scoped, tag = 'input window, operand 2, single buffered']
    #allocation5 [shape = 's32[1]{0}', space=sflag, size = 0x4, scoped, tag = 'scoped memory for net_forward.1']
    #allocation6 [shape = 'u8[1024]{0}', space=smem, size = 0x400, scoped, tag = 'input window, operand 3, single buffered']
    #allocation7 [shape = 'u8[512]{0}', space=smem, size = 0x200, scoped, tag = 'input window, operand 4, single buffered']
    #allocation8 [shape = 's32[1]{0}', space=sflag, size = 0x4, scoped, tag = 'scoped memory for net_forward.1']
    %14 = vsyncpa [#allocation3], 0
    %15 = vsyncpa [#allocation5], 0
    %16 = vsyncpa [#allocation8], 0
    // Predicated region
    $region2: #{net_forward.1} parent=1 // pred_check
      _
    $region3: #{net_forward.1} parent=1 // pred_check_branch
      %18 = sbr.rel (0) target = $region5
    $region4: #{net_forward.1} parent=1 // pred_region
      _
    $region5: #{net_forward.1} parent=1 // pred_fallthru
      _
    // Predicated region
    $region6: #{net_forward.1} parent=1 // pred_check
      _
    $region7: #{net_forward.1} parent=1 // pred_check_branch
      %20 = sbr.rel (0) target = $region9
    $region8: #{net_forward.1} parent=1 // pred_region
      %s22 = ssub.s32 16, 16
      %23 = vsyncadd [#allocation3], %s22
      %s25 = sshll.u32 %s1, 4
      %s26 = int_to_ptr.vmem [resolvable:$true] %s25
      %28 = dma.vmem_to_smem %s26, 16, [#allocation2], [#allocation3]
    $region9: #{net_forward.1} parent=1 // pred_fallthru
      _
    // Predicated region
    $region10: #{net_forward.1} parent=1 // pred_check
      _
    $region11: #{net_forward.1} parent=1 // pred_check_branch
      %30 = sbr.rel (0) target = $region13
    $region12: #{net_forward.1} parent=1 // pred_region
      %s32 = ssub.s32 16, 16
      %33 = vsyncadd [#allocation5], %s32
      %s35 = sshll.u32 %s2, 4
      %s36 = int_to_ptr.vmem [resolvable:$true] %s35
      %38 = dma.vmem_to_smem %s36, 16, [#allocation4], [#allocation5]
    $region13: #{net_forward.1} parent=1 // pred_fallthru
      _
    // Predicated region
    $region14: #{net_forward.1} parent=1 // pred_check
      _
    $region15: #{net_forward.1} parent=1 // pred_check_branch
      %40 = sbr.rel (0) target = $region17
    $region16: #{net_forward.1} parent=1 // pred_region
      %s42 = ssub.s32 32, 32
      %43 = vsyncadd [#allocation5], %s42
      %s45 = sshll.u32 %s3, 4
      %s46 = int_to_ptr.vmem [resolvable:$true] %s45
      %48 = dma.vmem_to_smem %s46, 32, [#allocation6], [#allocation5]
    $region17: #{net_forward.1} parent=1 // pred_fallthru
      _
    // Predicated region
    $region18: #{net_forward.1} parent=1 // pred_check
      _
    $region19: #{net_forward.1} parent=1 // pred_check_branch
      %50 = sbr.rel (0) target = $region21
    $region20: #{net_forward.1} parent=1 // pred_region
      %s52 = ssub.s32 16, 16
      %53 = vsyncadd [#allocation8], %s52
      %s55 = sshll.u32 %s4, 4
      %s56 = int_to_ptr.vmem [resolvable:$true] %s55
      %58 = dma.vmem_to_smem %s56, 16, [#allocation7], [#allocation8]
    $region21: #{net_forward.1} parent=1 // pred_fallthru
      _
    // Predicated region
    $region22: #{net_forward.1} parent=1 // pred_check
      _
    $region23: #{net_forward.1} parent=1 // pred_check_branch
      %60 = sbr.rel (0) target = $region25
    $region24: #{net_forward.1} parent=1 // pred_region
      _
    $region25: #{net_forward.1} parent=1 // pred_fallthru
      _
    // Predicated region
    $region26: #{net_forward.1} parent=1 // pred_check
      _
    $region27: #{net_forward.1} parent=1 // pred_check_branch
      %62 = sbr.rel (0) target = $region29
    $region28: #{net_forward.1} parent=1 // pred_region
      _
    $region29: #{net_forward.1} parent=1 // pred_fallthru
      _
    // Predicated region
    $region30: #{net_forward.1} parent=1 // pred_check
      _
    $region31: #{net_forward.1} parent=1 // pred_check_branch
      %64 = sbr.rel (0) target = $region33
    $region32: #{net_forward.1} parent=1 // pred_region
      _
    $region33: #{net_forward.1} parent=1 // pred_fallthru
      _
    // Predicated region
    $region34: #{net_forward.1} parent=1 // pred_check
      _
    $region35: #{net_forward.1} parent=1 // pred_check_branch
      %66 = sbr.rel (0) target = $region37
    $region36: #{net_forward.1} parent=1 // pred_region
      _
    $region37: #{net_forward.1} parent=1 // pred_fallthru
      _
    // Predicated region
    $region38: #{net_forward.1} parent=1 // pred_check
      _
    $region39: #{net_forward.1} parent=1 // pred_check_branch
      %68 = sbr.rel (0) target = $region41
    $region40: #{net_forward.1} parent=1 // pred_region
      %69 = dma.done [#allocation3], 16
    $region41: #{net_forward.1} parent=1 // pred_fallthru
      _
    // Predicated region
    $region42: #{net_forward.1} parent=1 // pred_check
      _
    $region43: #{net_forward.1} parent=1 // pred_check_branch
      %71 = sbr.rel (0) target = $region45
    $region44: #{net_forward.1} parent=1 // pred_region
      %72 = dma.done [#allocation5], 16
    $region45: #{net_forward.1} parent=1 // pred_fallthru
      _
    // Predicated region
    $region46: #{net_forward.1} parent=1 // pred_check
      _
    $region47: #{net_forward.1} parent=1 // pred_check_branch
      %74 = sbr.rel (0) target = $region49
    $region48: #{net_forward.1} parent=1 // pred_region
      %75 = dma.done [#allocation5], 32
    $region49: #{net_forward.1} parent=1 // pred_fallthru
      _
    // Predicated region
    $region50: #{net_forward.1} parent=1 // pred_check
      _
    $region51: #{net_forward.1} parent=1 // pred_check_branch
      %77 = sbr.rel (0) target = $region53
    $region52: #{net_forward.1} parent=1 // pred_region
      %78 = dma.done [#allocation8], 16
    $region53: #{net_forward.1} parent=1 // pred_fallthru
      _
    %79 = sfence
    %v80 = vld [vmem:[%s0] sm:$0xff]
    %v81 = vld [vmem:[%s0 + $0x8] sm:$0xff]
    %v82 = vld [vmem:[%s0 + $0x10] sm:$0xff]
    %v83 = vld [vmem:[%s0 + $0x18] sm:$0xff]
    %v84 = vld [vmem:[%s0 + $0x20] sm:$0xff]
    %v85 = vld [vmem:[%s0 + $0x28] sm:$0xff]
    %v86 = vld [vmem:[%s0 + $0x30] sm:$0xff]
    %s87 = sld [smem:[#allocation4]]
    %v88 = vstv %s87
    %s89 = sld [smem:[#allocation4 + $0x1]]
    %v90 = vstv %s89
    %s91 = sld [smem:[#allocation4 + $0x2]]
    %v92 = vstv %s91
    %s93 = sld [smem:[#allocation2]]
    %v94 = vstv %s93
    %v95 = vmul.f32 %v94, %v80
    %v96 = vmul.f32 %v94, %v81
    %v97 = vmul.f32 %v94, %v82
    %v98 = vmul.f32 %v94, %v83
    %v99 = vmul.f32 %v94, %v84
    %v100 = vmul.f32 %v94, %v85
    %v101 = vmul.f32 %v94, %v86
    %v102 = vadd.f32 %v88, %v95
    %v103 = vadd.f32 %v88, %v96
    %v104 = vadd.f32 %v88, %v97
    %v105 = vadd.f32 %v88, %v98
    %v106 = vadd.f32 %v88, %v99
    %v107 = vadd.f32 %v88, %v100
    %v108 = vadd.f32 %v88, %v101
    %s109 = sld [smem:[#allocation2 + $0x9]]
    %v110 = vstv %s109
    %v111 = vmul.f32 %v110, %v80
    %v112 = vmul.f32 %v110, %v81
    %v113 = vmul.f32 %v110, %v82
    %v114 = vmul.f32 %v110, %v83
    %v115 = vmul.f32 %v110, %v84
    %v116 = vmul.f32 %v110, %v85
    %v117 = vmul.f32 %v110, %v86
    %v118 = vadd.f32 %v90, %v111
    %v119 = vadd.f32 %v90, %v112
    %v120 = vadd.f32 %v90, %v113
    %v121 = vadd.f32 %v90, %v114
    %v122 = vadd.f32 %v90, %v115
    %v123 = vadd.f32 %v90, %v116
    %v124 = vadd.f32 %v90, %v117
    %s125 = sld [smem:[#allocation2 + $0x12]]
    %v126 = vstv %s125
    %v127 = vmul.f32 %v126, %v80
    %v128 = vmul.f32 %v126, %v81
    %v129 = vmul.f32 %v126, %v82
    %v130 = vmul.f32 %v126, %v83
    %v131 = vmul.f32 %v126, %v84
    %v132 = vmul.f32 %v126, %v85
    %v133 = vmul.f32 %v126, %v86
    %v134 = vadd.f32 %v92, %v127
    %v135 = vadd.f32 %v92, %v128
    %v136 = vadd.f32 %v92, %v129
    %v137 = vadd.f32 %v92, %v130
    %v138 = vadd.f32 %v92, %v131
    %v139 = vadd.f32 %v92, %v132
    %v140 = vadd.f32 %v92, %v133
    %141 = vrot.lane.b32.xlu0 %v80, 127
    %v142 = vpop.permute.xlu0 %141
    %143 = vrot.lane.b32.xlu0 %v81, 127
    %v144 = vpop.permute.xlu0 %143
    %145 = vrot.lane.b32.xlu0 %v82, 127
    %v146 = vpop.permute.xlu0 %145
    %147 = vrot.lane.b32.xlu0 %v83, 127
    %v148 = vpop.permute.xlu0 %147
    %149 = vrot.lane.b32.xlu0 %v84, 127
    %v150 = vpop.permute.xlu0 %149
    %151 = vrot.lane.b32.xlu0 %v85, 127
    %v152 = vpop.permute.xlu0 %151
    %153 = vrot.lane.b32.xlu0 %v86, 127
    %v154 = vpop.permute.xlu0 %153
    %v155 = vlaneseq
    %v156 = vand.u32 %v155, 127
    %vm157 = vcmp.lt.s32.totalorder %v156, 127
    %v158 = vsel %vm157, %v152, %v154
    %v159 = vsel %vm157, %v150, %v152
    %v160 = vsel %vm157, %v148, %v150
    %v161 = vsel %vm157, %v146, %v148
    %v162 = vsel %vm157, %v144, %v146
    %v163 = vsel %vm157, %v142, %v144
    %v164 = vsel %vm157, %v154, %v142
    %s165 = sld [smem:[#allocation2 + $0x1]]
    %v166 = vstv %s165
    %v167 = vmul.f32 %v166, %v163
    %v168 = vmul.f32 %v166, %v162
    %v169 = vmul.f32 %v166, %v161
    %v170 = vmul.f32 %v166, %v160
    %v171 = vmul.f32 %v166, %v159
    %v172 = vmul.f32 %v166, %v158
    %v173 = vmul.f32 %v166, %v164
    %v174 = vadd.f32 %v102, %v167
    %v175 = vadd.f32 %v103, %v168
    %v176 = vadd.f32 %v104, %v169
    %v177 = vadd.f32 %v105, %v170
    %v178 = vadd.f32 %v106, %v171
    %v179 = vadd.f32 %v107, %v172
    %v180 = vadd.f32 %v108, %v173
    %s181 = sld [smem:[#allocation2 + $0xa]]
    %v182 = vstv %s181
    %v183 = vmul.f32 %v182, %v163
    %v184 = vmul.f32 %v182, %v162
    %v185 = vmul.f32 %v182, %v161
    %v186 = vmul.f32 %v182, %v160
    %v187 = vmul.f32 %v182, %v159
    %v188 = vmul.f32 %v182, %v158
    %v189 = vmul.f32 %v182, %v164
    %v190 = vadd.f32 %v118, %v183
    %v191 = vadd.f32 %v119, %v184
    %v192 = vadd.f32 %v120, %v185
    %v193 = vadd.f32 %v121, %v186
    %v194 = vadd.f32 %v122, %v187
    %v195 = vadd.f32 %v123, %v188
    %v196 = vadd.f32 %v124, %v189
    %s197 = sld [smem:[#allocation2 + $0x13]]
    %v198 = vstv %s197
    %v199 = vmul.f32 %v198, %v163
    %v200 = vmul.f32 %v198, %v162
    %v201 = vmul.f32 %v198, %v161
    %v202 = vmul.f32 %v198, %v160
    %v203 = vmul.f32 %v198, %v159
    %v204 = vmul.f32 %v198, %v158
    %v205 = vmul.f32 %v198, %v164
    %v206 = vadd.f32 %v134, %v199
    %v207 = vadd.f32 %v135, %v200
    %v208 = vadd.f32 %v136, %v201
    %v209 = vadd.f32 %v137, %v202
    %v210 = vadd.f32 %v138, %v203
    %v211 = vadd.f32 %v139, %v204
    %v212 = vadd.f32 %v140, %v205
    %213 = vrot.lane.b32.xlu0 %v80, 126
    %v214 = vpop.permute.xlu0 %213
    %215 = vrot.lane.b32.xlu0 %v81, 126
    %v216 = vpop.permute.xlu0 %215
    %217 = vrot.lane.b32.xlu0 %v82, 126
    %v218 = vpop.permute.xlu0 %217
    %219 = vrot.lane.b32.xlu0 %v83, 126
    %v220 = vpop.permute.xlu0 %219
    %221 = vrot.lane.b32.xlu0 %v84, 126
    %v222 = vpop.permute.xlu0 %221
    %223 = vrot.lane.b32.xlu0 %v85, 126
    %v224 = vpop.permute.xlu0 %223
    %225 = vrot.lane.b32.xlu0 %v86, 126
    %v226 = vpop.permute.xlu0 %225
    %vm227 = vcmp.lt.s32.totalorder %v156, 126
    %v228 = vsel %vm227, %v224, %v226
    %v229 = vsel %vm227, %v222, %v224
    %v230 = vsel %vm227, %v220, %v222
    %v231 = vsel %vm227, %v218, %v220
    %v232 = vsel %vm227, %v216, %v218
    %v233 = vsel %vm227, %v214, %v216
    %v234 = vsel %vm227, %v226, %v214
    %s235 = sld [smem:[#allocation2 + $0x2]]
    %v236 = vstv %s235
    %v237 = vmul.f32 %v236, %v233
    %v238 = vmul.f32 %v236, %v232
    %v239 = vmul.f32 %v236, %v231
    %v240 = vmul.f32 %v236, %v230
    %v241 = vmul.f32 %v236, %v229
    %v242 = vmul.f32 %v236, %v228
    %v243 = vmul.f32 %v236, %v234
    %v244 = vadd.f32 %v174, %v237
    %v245 = vadd.f32 %v175, %v238
    %v246 = vadd.f32 %v176, %v239
    %v247 = vadd.f32 %v177, %v240
    %v248 = vadd.f32 %v178, %v241
    %v249 = vadd.f32 %v179, %v242
    %v250 = vadd.f32 %v180, %v243
    %s251 = sld [smem:[#allocation2 + $0xb]]
    %v252 = vstv %s251
    %v253 = vmul.f32 %v252, %v233
    %v254 = vmul.f32 %v252, %v232
    %v255 = vmul.f32 %v252, %v231
    %v256 = vmul.f32 %v252, %v230
    %v257 = vmul.f32 %v252, %v229
    %v258 = vmul.f32 %v252, %v228
    %v259 = vmul.f32 %v252, %v234
    %v260 = vadd.f32 %v190, %v253
    %v261 = vadd.f32 %v191, %v254
    %v262 = vadd.f32 %v192, %v255
    %v263 = vadd.f32 %v193, %v256
    %v264 = vadd.f32 %v194, %v257
    %v265 = vadd.f32 %v195, %v258
    %v266 = vadd.f32 %v196, %v259
    %s267 = sld [smem:[#allocation2 + $0x14]]
    %v268 = vstv %s267
    %v269 = vmul.f32 %v268, %v233
    %v270 = vmul.f32 %v268, %v232
    %v271 = vmul.f32 %v268, %v231
    %v272 = vmul.f32 %v268, %v230
    %v273 = vmul.f32 %v268, %v229
    %v274 = vmul.f32 %v268, %v228
    %v275 = vmul.f32 %v268, %v234
    %v276 = vadd.f32 %v206, %v269
    %v277 = vadd.f32 %v207, %v270
    %v278 = vadd.f32 %v208, %v271
    %v279 = vadd.f32 %v209, %v272
    %v280 = vadd.f32 %v210, %v273
    %v281 = vadd.f32 %v211, %v274
    %v282 = vadd.f32 %v212, %v275
    %283 = vrot.lane.b32.xlu0 %v80, 96
    %v284 = vpop.permute.xlu0 %283
    %285 = vrot.lane.b32.xlu0 %v81, 96
    %v286 = vpop.permute.xlu0 %285
    %287 = vrot.lane.b32.xlu0 %v82, 96
    %v288 = vpop.permute.xlu0 %287
    %289 = vrot.lane.b32.xlu0 %v83, 96
    %v290 = vpop.permute.xlu0 %289
    %291 = vrot.lane.b32.xlu0 %v84, 96
    %v292 = vpop.permute.xlu0 %291
    %293 = vrot.lane.b32.xlu0 %v85, 96
    %v294 = vpop.permute.xlu0 %293
    %295 = vrot.lane.b32.xlu0 %v86, 96
    %v296 = vpop.permute.xlu0 %295
    %vm297 = vcmp.lt.s32.totalorder %v156, 96
    %v298 = vsel %vm297, %v294, %v296
    %v299 = vsel %vm297, %v292, %v294
    %v300 = vsel %vm297, %v290, %v292
    %v301 = vsel %vm297, %v288, %v290
    %v302 = vsel %vm297, %v286, %v288
    %v303 = vsel %vm297, %v284, %v286
    %v304 = vsel %vm297, %v296, %v284
    %s305 = sld [smem:[#allocation2 + $0x3]]
    %v306 = vstv %s305
    %v307 = vmul.f32 %v306, %v303
    %v308 = vmul.f32 %v306, %v302
    %v309 = vmul.f32 %v306, %v301
    %v310 = vmul.f32 %v306, %v300
    %v311 = vmul.f32 %v306, %v299
    %v312 = vmul.f32 %v306, %v298
    %v313 = vmul.f32 %v306, %v304
    %v314 = vadd.f32 %v244, %v307
    %v315 = vadd.f32 %v245, %v308
    %v316 = vadd.f32 %v246, %v309
    %v317 = vadd.f32 %v247, %v310
    %v318 = vadd.f32 %v248, %v311
    %v319 = vadd.f32 %v249, %v312
    %v320 = vadd.f32 %v250, %v313
    %s321 = sld [smem:[#allocation2 + $0xc]]
    %v322 = vstv %s321
    %v323 = vmul.f32 %v322, %v303
    %v324 = vmul.f32 %v322, %v302
    %v325 = vmul.f32 %v322, %v301
    %v326 = vmul.f32 %v322, %v300
    %v327 = vmul.f32 %v322, %v299
    %v328 = vmul.f32 %v322, %v298
    %v329 = vmul.f32 %v322, %v304
    %v330 = vadd.f32 %v260, %v323
    %v331 = vadd.f32 %v261, %v324
    %v332 = vadd.f32 %v262, %v325
    %v333 = vadd.f32 %v263, %v326
    %v334 = vadd.f32 %v264, %v327
    %v335 = vadd.f32 %v265, %v328
    %v336 = vadd.f32 %v266, %v329
    %s337 = sld [smem:[#allocation2 + $0x15]]
    %v338 = vstv %s337
    %v339 = vmul.f32 %v338, %v303
    %v340 = vmul.f32 %v338, %v302
    %v341 = vmul.f32 %v338, %v301
    %v342 = vmul.f32 %v338, %v300
    %v343 = vmul.f32 %v338, %v299
    %v344 = vmul.f32 %v338, %v298
    %v345 = vmul.f32 %v338, %v304
    %v346 = vadd.f32 %v276, %v339
    %v347 = vadd.f32 %v277, %v340
    %v348 = vadd.f32 %v278, %v341
    %v349 = vadd.f32 %v279, %v342
    %v350 = vadd.f32 %v280, %v343
    %v351 = vadd.f32 %v281, %v344
    %v352 = vadd.f32 %v282, %v345
    %353 = vrot.lane.b32.xlu0 %v80, 95
    %v354 = vpop.permute.xlu0 %353
    %355 = vrot.lane.b32.xlu0 %v81, 95
    %v356 = vpop.permute.xlu0 %355
    %357 = vrot.lane.b32.xlu0 %v82, 95
    %v358 = vpop.permute.xlu0 %357
    %359 = vrot.lane.b32.xlu0 %v83, 95
    %v360 = vpop.permute.xlu0 %359
    %361 = vrot.lane.b32.xlu0 %v84, 95
    %v362 = vpop.permute.xlu0 %361
    %363 = vrot.lane.b32.xlu0 %v85, 95
    %v364 = vpop.permute.xlu0 %363
    %365 = vrot.lane.b32.xlu0 %v86, 95
    %v366 = vpop.permute.xlu0 %365
    %vm367 = vcmp.lt.s32.totalorder %v156, 95
    %v368 = vsel %vm367, %v364, %v366
    %v369 = vsel %vm367, %v362, %v364
    %v370 = vsel %vm367, %v360, %v362
    %v371 = vsel %vm367, %v358, %v360
    %v372 = vsel %vm367, %v356, %v358
    %v373 = vsel %vm367, %v354, %v356
    %v374 = vsel %vm367, %v366, %v354
    %s375 = sld [smem:[#allocation2 + $0x4]]
    %v376 = vstv %s375
    %v377 = vmul.f32 %v376, %v373
    %v378 = vmul.f32 %v376, %v372
    %v379 = vmul.f32 %v376, %v371
    %v380 = vmul.f32 %v376, %v370
    %v381 = vmul.f32 %v376, %v369
    %v382 = vmul.f32 %v376, %v368
    %v383 = vmul.f32 %v376, %v374
    %v384 = vadd.f32 %v314, %v377
    %v385 = vadd.f32 %v315, %v378
    %v386 = vadd.f32 %v316, %v379
    %v387 = vadd.f32 %v317, %v380
    %v388 = vadd.f32 %v318, %v381
    %v389 = vadd.f32 %v319, %v382
    %v390 = vadd.f32 %v320, %v383
    %s391 = sld [smem:[#allocation2 + $0xd]]
    %v392 = vstv %s391
    %v393 = vmul.f32 %v392, %v373
    %v394 = vmul.f32 %v392, %v372
    %v395 = vmul.f32 %v392, %v371
    %v396 = vmul.f32 %v392, %v370
    %v397 = vmul.f32 %v392, %v369
    %v398 = vmul.f32 %v392, %v368
    %v399 = vmul.f32 %v392, %v374
    %v400 = vadd.f32 %v330, %v393
    %v401 = vadd.f32 %v331, %v394
    %v402 = vadd.f32 %v332, %v395
    %v403 = vadd.f32 %v333, %v396
    %v404 = vadd.f32 %v334, %v397
    %v405 = vadd.f32 %v335, %v398
    %v406 = vadd.f32 %v336, %v399
    %s407 = sld [smem:[#allocation2 + $0x16]]
    %v408 = vstv %s407
    %v409 = vmul.f32 %v408, %v373
    %v410 = vmul.f32 %v408, %v372
    %v411 = vmul.f32 %v408, %v371
    %v412 = vmul.f32 %v408, %v370
    %v413 = vmul.f32 %v408, %v369
    %v414 = vmul.f32 %v408, %v368
    %v415 = vmul.f32 %v408, %v374
    %v416 = vadd.f32 %v346, %v409
    %v417 = vadd.f32 %v347, %v410
    %v418 = vadd.f32 %v348, %v411
    %v419 = vadd.f32 %v349, %v412
    %v420 = vadd.f32 %v350, %v413
    %v421 = vadd.f32 %v351, %v414
    %v422 = vadd.f32 %v352, %v415
    %423 = vrot.lane.b32.xlu0 %v80, 94
    %v424 = vpop.permute.xlu0 %423
    %425 = vrot.lane.b32.xlu0 %v81, 94
    %v426 = vpop.permute.xlu0 %425
    %427 = vrot.lane.b32.xlu0 %v82, 94
    %v428 = vpop.permute.xlu0 %427
    %429 = vrot.lane.b32.xlu0 %v83, 94
    %v430 = vpop.permute.xlu0 %429
    %431 = vrot.lane.b32.xlu0 %v84, 94
    %v432 = vpop.permute.xlu0 %431
    %433 = vrot.lane.b32.xlu0 %v85, 94
    %v434 = vpop.permute.xlu0 %433
    %435 = vrot.lane.b32.xlu0 %v86, 94
    %v436 = vpop.permute.xlu0 %435
    %vm437 = vcmp.lt.s32.totalorder %v156, 94
    %v438 = vsel %vm437, %v434, %v436
    %v439 = vsel %vm437, %v432, %v434
    %v440 = vsel %vm437, %v430, %v432
    %v441 = vsel %vm437, %v428, %v430
    %v442 = vsel %vm437, %v426, %v428
    %v443 = vsel %vm437, %v424, %v426
    %v444 = vsel %vm437, %v436, %v424
    %s445 = sld [smem:[#allocation2 + $0x5]]
    %v446 = vstv %s445
    %v447 = vmul.f32 %v446, %v443
    %v448 = vmul.f32 %v446, %v442
    %v449 = vmul.f32 %v446, %v441
    %v450 = vmul.f32 %v446, %v440
    %v451 = vmul.f32 %v446, %v439
    %v452 = vmul.f32 %v446, %v438
    %v453 = vmul.f32 %v446, %v444
    %v454 = vadd.f32 %v384, %v447
    %v455 = vadd.f32 %v385, %v448
    %v456 = vadd.f32 %v386, %v449
    %v457 = vadd.f32 %v387, %v450
    %v458 = vadd.f32 %v388, %v451
    %v459 = vadd.f32 %v389, %v452
    %v460 = vadd.f32 %v390, %v453
    %s461 = sld [smem:[#allocation2 + $0xe]]
    %v462 = vstv %s461
    %v463 = vmul.f32 %v462, %v443
    %v464 = vmul.f32 %v462, %v442
    %v465 = vmul.f32 %v462, %v441
    %v466 = vmul.f32 %v462, %v440
    %v467 = vmul.f32 %v462, %v439
    %v468 = vmul.f32 %v462, %v438
    %v469 = vmul.f32 %v462, %v444
    %v470 = vadd.f32 %v400, %v463
    %v471 = vadd.f32 %v401, %v464
    %v472 = vadd.f32 %v402, %v465
    %v473 = vadd.f32 %v403, %v466
    %v474 = vadd.f32 %v404, %v467
    %v475 = vadd.f32 %v405, %v468
    %v476 = vadd.f32 %v406, %v469
    %s477 = sld [smem:[#allocation2 + $0x17]]
    %v478 = vstv %s477
    %v479 = vmul.f32 %v478, %v443
    %v480 = vmul.f32 %v478, %v442
    %v481 = vmul.f32 %v478, %v441
    %v482 = vmul.f32 %v478, %v440
    %v483 = vmul.f32 %v478, %v439
    %v484 = vmul.f32 %v478, %v438
    %v485 = vmul.f32 %v478, %v444
    %v486 = vadd.f32 %v416, %v479
    %v487 = vadd.f32 %v417, %v480
    %v488 = vadd.f32 %v418, %v481
    %v489 = vadd.f32 %v419, %v482
    %v490 = vadd.f32 %v420, %v483
    %v491 = vadd.f32 %v421, %v484
    %v492 = vadd.f32 %v422, %v485
    %493 = vrot.lane.b32.xlu0 %v80, 64
    %v494 = vpop.permute.xlu0 %493
    %495 = vrot.lane.b32.xlu0 %v81, 64
    %v496 = vpop.permute.xlu0 %495
    %497 = vrot.lane.b32.xlu0 %v82, 64
    %v498 = vpop.permute.xlu0 %497
    %499 = vrot.lane.b32.xlu0 %v83, 64
    %v500 = vpop.permute.xlu0 %499
    %501 = vrot.lane.b32.xlu0 %v84, 64
    %v502 = vpop.permute.xlu0 %501
    %503 = vrot.lane.b32.xlu0 %v85, 64
    %v504 = vpop.permute.xlu0 %503
    %505 = vrot.lane.b32.xlu0 %v86, 64
    %v506 = vpop.permute.xlu0 %505
    %vm507 = vcmp.lt.s32.totalorder %v156, 64
    %v508 = vsel %vm507, %v504, %v506
    %v509 = vsel %vm507, %v502, %v504
    %v510 = vsel %vm507, %v500, %v502
    %v511 = vsel %vm507, %v498, %v500
    %v512 = vsel %vm507, %v496, %v498
    %v513 = vsel %vm507, %v494, %v496
    %v514 = vsel %vm507, %v506, %v494
    %s515 = sld [smem:[#allocation2 + $0x6]]
    %v516 = vstv %s515
    %v517 = vmul.f32 %v516, %v513
    %v518 = vmul.f32 %v516, %v512
    %v519 = vmul.f32 %v516, %v511
    %v520 = vmul.f32 %v516, %v510
    %v521 = vmul.f32 %v516, %v509
    %v522 = vmul.f32 %v516, %v508
    %v523 = vmul.f32 %v516, %v514
    %v524 = vadd.f32 %v454, %v517
    %v525 = vadd.f32 %v455, %v518
    %v526 = vadd.f32 %v456, %v519
    %v527 = vadd.f32 %v457, %v520
    %v528 = vadd.f32 %v458, %v521
    %v529 = vadd.f32 %v459, %v522
    %v530 = vadd.f32 %v460, %v523
    %s531 = sld [smem:[#allocation2 + $0xf]]
    %v532 = vstv %s531
    %v533 = vmul.f32 %v532, %v513
    %v534 = vmul.f32 %v532, %v512
    %v535 = vmul.f32 %v532, %v511
    %v536 = vmul.f32 %v532, %v510
    %v537 = vmul.f32 %v532, %v509
    %v538 = vmul.f32 %v532, %v508
    %v539 = vmul.f32 %v532, %v514
    %v540 = vadd.f32 %v470, %v533
    %v541 = vadd.f32 %v471, %v534
    %v542 = vadd.f32 %v472, %v535
    %v543 = vadd.f32 %v473, %v536
    %v544 = vadd.f32 %v474, %v537
    %v545 = vadd.f32 %v475, %v538
    %v546 = vadd.f32 %v476, %v539
    %s547 = sld [smem:[#allocation2 + $0x18]]
    %v548 = vstv %s547
    %v549 = vmul.f32 %v548, %v513
    %v550 = vmul.f32 %v548, %v512
    %v551 = vmul.f32 %v548, %v511
    %v552 = vmul.f32 %v548, %v510
    %v553 = vmul.f32 %v548, %v509
    %v554 = vmul.f32 %v548, %v508
    %v555 = vmul.f32 %v548, %v514
    %v556 = vadd.f32 %v486, %v549
    %v557 = vadd.f32 %v487, %v550
    %v558 = vadd.f32 %v488, %v551
    %v559 = vadd.f32 %v489, %v552
    %v560 = vadd.f32 %v490, %v553
    %v561 = vadd.f32 %v491, %v554
    %v562 = vadd.f32 %v492, %v555
    %563 = vrot.lane.b32.xlu0 %v80, 63
    %v564 = vpop.permute.xlu0 %563
    %565 = vrot.lane.b32.xlu0 %v81, 63
    %v566 = vpop.permute.xlu0 %565
    %567 = vrot.lane.b32.xlu0 %v82, 63
    %v568 = vpop.permute.xlu0 %567
    %569 = vrot.lane.b32.xlu0 %v83, 63
    %v570 = vpop.permute.xlu0 %569
    %571 = vrot.lane.b32.xlu0 %v84, 63
    %v572 = vpop.permute.xlu0 %571
    %573 = vrot.lane.b32.xlu0 %v85, 63
    %v574 = vpop.permute.xlu0 %573
    %575 = vrot.lane.b32.xlu0 %v86, 63
    %v576 = vpop.permute.xlu0 %575
    %vm577 = vcmp.lt.s32.totalorder %v156, 63
    %v578 = vsel %vm577, %v574, %v576
    %v579 = vsel %vm577, %v572, %v574
    %v580 = vsel %vm577, %v570, %v572
    %v581 = vsel %vm577, %v568, %v570
    %v582 = vsel %vm577, %v566, %v568
    %v583 = vsel %vm577, %v564, %v566
    %v584 = vsel %vm577, %v576, %v564
    %s585 = sld [smem:[#allocation2 + $0x7]]
    %v586 = vstv %s585
    %v587 = vmul.f32 %v586, %v583
    %v588 = vmul.f32 %v586, %v582
    %v589 = vmul.f32 %v586, %v581
    %v590 = vmul.f32 %v586, %v580
    %v591 = vmul.f32 %v586, %v579
    %v592 = vmul.f32 %v586, %v578
    %v593 = vmul.f32 %v586, %v584
    %v594 = vadd.f32 %v524, %v587
    %v595 = vadd.f32 %v525, %v588
    %v596 = vadd.f32 %v526, %v589
    %v597 = vadd.f32 %v527, %v590
    %v598 = vadd.f32 %v528, %v591
    %v599 = vadd.f32 %v529, %v592
    %v600 = vadd.f32 %v530, %v593
    %s601 = sld [smem:[#allocation2 + $0x10]]
    %v602 = vstv %s601
    %v603 = vmul.f32 %v602, %v583
    %v604 = vmul.f32 %v602, %v582
    %v605 = vmul.f32 %v602, %v581
    %v606 = vmul.f32 %v602, %v580
    %v607 = vmul.f32 %v602, %v579
    %v608 = vmul.f32 %v602, %v578
    %v609 = vmul.f32 %v602, %v584
    %v610 = vadd.f32 %v540, %v603
    %v611 = vadd.f32 %v541, %v604
    %v612 = vadd.f32 %v542, %v605
    %v613 = vadd.f32 %v543, %v606
    %v614 = vadd.f32 %v544, %v607
    %v615 = vadd.f32 %v545, %v608
    %v616 = vadd.f32 %v546, %v609
    %s617 = sld [smem:[#allocation2 + $0x19]]
    %v618 = vstv %s617
    %v619 = vmul.f32 %v618, %v583
    %v620 = vmul.f32 %v618, %v582
    %v621 = vmul.f32 %v618, %v581
    %v622 = vmul.f32 %v618, %v580
    %v623 = vmul.f32 %v618, %v579
    %v624 = vmul.f32 %v618, %v578
    %v625 = vmul.f32 %v618, %v584
    %v626 = vadd.f32 %v556, %v619
    %v627 = vadd.f32 %v557, %v620
    %v628 = vadd.f32 %v558, %v621
    %v629 = vadd.f32 %v559, %v622
    %v630 = vadd.f32 %v560, %v623
    %v631 = vadd.f32 %v561, %v624
    %v632 = vadd.f32 %v562, %v625
    %633 = vrot.lane.b32.xlu0 %v80, 62
    %v634 = vpop.permute.xlu0 %633
    %635 = vrot.lane.b32.xlu0 %v81, 62
    %v636 = vpop.permute.xlu0 %635
    %637 = vrot.lane.b32.xlu0 %v82, 62
    %v638 = vpop.permute.xlu0 %637
    %639 = vrot.lane.b32.xlu0 %v83, 62
    %v640 = vpop.permute.xlu0 %639
    %641 = vrot.lane.b32.xlu0 %v84, 62
    %v642 = vpop.permute.xlu0 %641
    %643 = vrot.lane.b32.xlu0 %v85, 62
    %v644 = vpop.permute.xlu0 %643
    %645 = vrot.lane.b32.xlu0 %v86, 62
    %v646 = vpop.permute.xlu0 %645
    %vm647 = vcmp.lt.s32.totalorder %v156, 62
    %v648 = vsel %vm647, %v644, %v646
    %v649 = vsel %vm647, %v642, %v644
    %v650 = vsel %vm647, %v640, %v642
    %v651 = vsel %vm647, %v638, %v640
    %v652 = vsel %vm647, %v636, %v638
    %v653 = vsel %vm647, %v634, %v636
    %v654 = vsel %vm647, %v646, %v634
    %s655 = sld [smem:[#allocation2 + $0x8]]
    %v656 = vstv %s655
    %v657 = vmul.f32 %v656, %v653
    %v658 = vmul.f32 %v656, %v652
    %v659 = vmul.f32 %v656, %v651
    %v660 = vmul.f32 %v656, %v650
    %v661 = vmul.f32 %v656, %v649
    %v662 = vmul.f32 %v656, %v648
    %v663 = vmul.f32 %v656, %v654
    %v664 = vadd.f32 %v594, %v657
    %v665 = vadd.f32 %v595, %v658
    %v666 = vadd.f32 %v596, %v659
    %v667 = vadd.f32 %v597, %v660
    %v668 = vadd.f32 %v598, %v661
    %v669 = vadd.f32 %v599, %v662
    %v670 = vadd.f32 %v600, %v663
    %s671 = sld [smem:[#allocation2 + $0x11]]
    %v672 = vstv %s671
    %v673 = vmul.f32 %v672, %v653
    %v674 = vmul.f32 %v672, %v652
    %v675 = vmul.f32 %v672, %v651
    %v676 = vmul.f32 %v672, %v650
    %v677 = vmul.f32 %v672, %v649
    %v678 = vmul.f32 %v672, %v648
    %v679 = vmul.f32 %v672, %v654
    %v680 = vadd.f32 %v610, %v673
    %v681 = vadd.f32 %v611, %v674
    %v682 = vadd.f32 %v612, %v675
    %v683 = vadd.f32 %v613, %v676
    %v684 = vadd.f32 %v614, %v677
    %v685 = vadd.f32 %v615, %v678
    %v686 = vadd.f32 %v616, %v679
    %s687 = sld [smem:[#allocation2 + $0x1a]]
    %v688 = vstv %s687
    %v689 = vmul.f32 %v688, %v653
    %v690 = vmul.f32 %v688, %v652
    %v691 = vmul.f32 %v688, %v651
    %v692 = vmul.f32 %v688, %v650
    %v693 = vmul.f32 %v688, %v649
    %v694 = vmul.f32 %v688, %v648
    %v695 = vmul.f32 %v688, %v654
    %v696 = vadd.f32 %v626, %v689
    %v697 = vadd.f32 %v627, %v690
    %v698 = vadd.f32 %v628, %v691
    %v699 = vadd.f32 %v629, %v692
    %v700 = vadd.f32 %v630, %v693
    %v701 = vadd.f32 %v631, %v694
    %v702 = vadd.f32 %v632, %v695
    %v703 = vmax.f32 %v664, 0.0
    %v704 = vmax.f32 %v665, 0.0
    %v705 = vmax.f32 %v666, 0.0
    %v706 = vmax.f32 %v667, 0.0
    %v707 = vmax.f32 %v668, 0.0
    %v708 = vmax.f32 %v669, 0.0
    %v709 = vmax.f32 %v670, 0.0
    %v710 = vmax.f32 %v680, 0.0
    %v711 = vmax.f32 %v681, 0.0
    %v712 = vmax.f32 %v682, 0.0
    %v713 = vmax.f32 %v683, 0.0
    %v714 = vmax.f32 %v684, 0.0
    %v715 = vmax.f32 %v685, 0.0
    %v716 = vmax.f32 %v686, 0.0
    %v717 = vmax.f32 %v696, 0.0
    %v718 = vmax.f32 %v697, 0.0
    %v719 = vmax.f32 %v698, 0.0
    %v720 = vmax.f32 %v699, 0.0
    %v721 = vmax.f32 %v700, 0.0
    %v722 = vmax.f32 %v701, 0.0
    %v723 = vmax.f32 %v702, 0.0
    %v724 = vld [vmem:[%s6] sm:$0x3]
    %v726 = vlaneseq
    %v727 = vshrl.u32 %v726, 7
    %v728 = vsub.s32 0, %v727
    %v729 = vrot.slane %v724, %v728
    %v730 = vlaneseq
    %v731 = vshrl.u32 %v730, 7
    %v732 = vsub.s32 1, %v731
    %v733 = vrot.slane %v724, %v732
    %v736 = vadd.f32 %v729, 0.0
    %v737 = vadd.f32 %v733, 0.0
    %s738 = sld [smem:[#allocation7]]
    %v739 = vstv %s738
    %s740 = sld [smem:[#allocation7 + $0x1]]
    %v741 = vstv %s740
    %s742 = sld [smem:[#allocation7 + $0x2]]
    %v743 = vstv %s742
    %s744 = sld [smem:[#allocation6]]
    %v745 = vstv %s744
    %v746 = vmul.f32 %v745, %v703
    %v747 = vmul.f32 %v745, %v704
    %v748 = vmul.f32 %v745, %v705
    %v749 = vmul.f32 %v745, %v706
    %v750 = vmul.f32 %v745, %v707
    %v751 = vmul.f32 %v745, %v708
    %v752 = vmul.f32 %v745, %v709
    %v753 = vadd.f32 %v739, %v746
    %v754 = vadd.f32 %v739, %v747
    %v755 = vadd.f32 %v739, %v748
    %v756 = vadd.f32 %v739, %v749
    %v757 = vadd.f32 %v739, %v750
    %v758 = vadd.f32 %v739, %v751
    %v759 = vadd.f32 %v739, %v752
    %s760 = sld [smem:[#allocation6 + $0x1b]]
    %v761 = vstv %s760
    %v762 = vmul.f32 %v761, %v703
    %v763 = vmul.f32 %v761, %v704
    %v764 = vmul.f32 %v761, %v705
    %v765 = vmul.f32 %v761, %v706
    %v766 = vmul.f32 %v761, %v707
    %v767 = vmul.f32 %v761, %v708
    %v768 = vmul.f32 %v761, %v709
    %v769 = vadd.f32 %v741, %v762
    %v770 = vadd.f32 %v741, %v763
    %v771 = vadd.f32 %v741, %v764
    %v772 = vadd.f32 %v741, %v765
    %v773 = vadd.f32 %v741, %v766
    %v774 = vadd.f32 %v741, %v767
    %v775 = vadd.f32 %v741, %v768
    %s776 = sld [smem:[#allocation6 + $0x36]]
    %v777 = vstv %s776
    %v778 = vmul.f32 %v777, %v703
    %v779 = vmul.f32 %v777, %v704
    %v780 = vmul.f32 %v777, %v705
    %v781 = vmul.f32 %v777, %v706
    %v782 = vmul.f32 %v777, %v707
    %v783 = vmul.f32 %v777, %v708
    %v784 = vmul.f32 %v777, %v709
    %v785 = vadd.f32 %v743, %v778
    %v786 = vadd.f32 %v743, %v779
    %v787 = vadd.f32 %v743, %v780
    %v788 = vadd.f32 %v743, %v781
    %v789 = vadd.f32 %v743, %v782
    %v790 = vadd.f32 %v743, %v783
    %v791 = vadd.f32 %v743, %v784
    %792 = vrot.lane.b32.xlu0 %v703, 127
    %v793 = vpop.permute.xlu0 %792
    %794 = vrot.lane.b32.xlu0 %v704, 127
    %v795 = vpop.permute.xlu0 %794
    %796 = vrot.lane.b32.xlu0 %v705, 127
    %v797 = vpop.permute.xlu0 %796
    %798 = vrot.lane.b32.xlu0 %v706, 127
    %v799 = vpop.permute.xlu0 %798
    %800 = vrot.lane.b32.xlu0 %v707, 127
    %v801 = vpop.permute.xlu0 %800
    %802 = vrot.lane.b32.xlu0 %v708, 127
    %v803 = vpop.permute.xlu0 %802
    %804 = vrot.lane.b32.xlu0 %v709, 127
    %v805 = vpop.permute.xlu0 %804
    %v806 = vsel %vm157, %v803, %v805
    %v807 = vsel %vm157, %v801, %v803
    %v808 = vsel %vm157, %v799, %v801
    %v809 = vsel %vm157, %v797, %v799
    %v810 = vsel %vm157, %v795, %v797
    %v811 = vsel %vm157, %v793, %v795
    %v812 = vsel %vm157, %v805, %v793
    %s813 = sld [smem:[#allocation6 + $0x1]]
    %v814 = vstv %s813
    %v815 = vmul.f32 %v814, %v811
    %v816 = vmul.f32 %v814, %v810
    %v817 = vmul.f32 %v814, %v809
    %v818 = vmul.f32 %v814, %v808
    %v819 = vmul.f32 %v814, %v807
    %v820 = vmul.f32 %v814, %v806
    %v821 = vmul.f32 %v814, %v812
    %v822 = vadd.f32 %v753, %v815
    %v823 = vadd.f32 %v754, %v816
    %v824 = vadd.f32 %v755, %v817
    %v825 = vadd.f32 %v756, %v818
    %v826 = vadd.f32 %v757, %v819
    %v827 = vadd.f32 %v758, %v820
    %v828 = vadd.f32 %v759, %v821
    %s829 = sld [smem:[#allocation6 + $0x1c]]
    %v830 = vstv %s829
    %v831 = vmul.f32 %v830, %v811
    %v832 = vmul.f32 %v830, %v810
    %v833 = vmul.f32 %v830, %v809
    %v834 = vmul.f32 %v830, %v808
    %v835 = vmul.f32 %v830, %v807
    %v836 = vmul.f32 %v830, %v806
    %v837 = vmul.f32 %v830, %v812
    %v838 = vadd.f32 %v769, %v831
    %v839 = vadd.f32 %v770, %v832
    %v840 = vadd.f32 %v771, %v833
    %v841 = vadd.f32 %v772, %v834
    %v842 = vadd.f32 %v773, %v835
    %v843 = vadd.f32 %v774, %v836
    %v844 = vadd.f32 %v775, %v837
    %s845 = sld [smem:[#allocation6 + $0x37]]
    %v846 = vstv %s845
    %v847 = vmul.f32 %v846, %v811
    %v848 = vmul.f32 %v846, %v810
    %v849 = vmul.f32 %v846, %v809
    %v850 = vmul.f32 %v846, %v808
    %v851 = vmul.f32 %v846, %v807
    %v852 = vmul.f32 %v846, %v806
    %v853 = vmul.f32 %v846, %v812
    %v854 = vadd.f32 %v785, %v847
    %v855 = vadd.f32 %v786, %v848
    %v856 = vadd.f32 %v787, %v849
    %v857 = vadd.f32 %v788, %v850
    %v858 = vadd.f32 %v789, %v851
    %v859 = vadd.f32 %v790, %v852
    %v860 = vadd.f32 %v791, %v853
    %861 = vrot.lane.b32.xlu0 %v703, 126
    %v862 = vpop.permute.xlu0 %861
    %863 = vrot.lane.b32.xlu0 %v704, 126
    %v864 = vpop.permute.xlu0 %863
    %865 = vrot.lane.b32.xlu0 %v705, 126
    %v866 = vpop.permute.xlu0 %865
    %867 = vrot.lane.b32.xlu0 %v706, 126
    %v868 = vpop.permute.xlu0 %867
    %869 = vrot.lane.b32.xlu0 %v707, 126
    %v870 = vpop.permute.xlu0 %869
    %871 = vrot.lane.b32.xlu0 %v708, 126
    %v872 = vpop.permute.xlu0 %871
    %873 = vrot.lane.b32.xlu0 %v709, 126
    %v874 = vpop.permute.xlu0 %873
    %v875 = vsel %vm227, %v872, %v874
    %v876 = vsel %vm227, %v870, %v872
    %v877 = vsel %vm227, %v868, %v870
    %v878 = vsel %vm227, %v866, %v868
    %v879 = vsel %vm227, %v864, %v866
    %v880 = vsel %vm227, %v862, %v864
    %v881 = vsel %vm227, %v874, %v862
    %s882 = sld [smem:[#allocation6 + $0x2]]
    %v883 = vstv %s882
    %v884 = vmul.f32 %v883, %v880
    %v885 = vmul.f32 %v883, %v879
    %v886 = vmul.f32 %v883, %v878
    %v887 = vmul.f32 %v883, %v877
    %v888 = vmul.f32 %v883, %v876
    %v889 = vmul.f32 %v883, %v875
    %v890 = vmul.f32 %v883, %v881
    %v891 = vadd.f32 %v822, %v884
    %v892 = vadd.f32 %v823, %v885
    %v893 = vadd.f32 %v824, %v886
    %v894 = vadd.f32 %v825, %v887
    %v895 = vadd.f32 %v826, %v888
    %v896 = vadd.f32 %v827, %v889
    %v897 = vadd.f32 %v828, %v890
    %s898 = sld [smem:[#allocation6 + $0x1d]]
    %v899 = vstv %s898
    %v900 = vmul.f32 %v899, %v880
    %v901 = vmul.f32 %v899, %v879
    %v902 = vmul.f32 %v899, %v878
    %v903 = vmul.f32 %v899, %v877
    %v904 = vmul.f32 %v899, %v876
    %v905 = vmul.f32 %v899, %v875
    %v906 = vmul.f32 %v899, %v881
    %v907 = vadd.f32 %v838, %v900
    %v908 = vadd.f32 %v839, %v901
    %v909 = vadd.f32 %v840, %v902
    %v910 = vadd.f32 %v841, %v903
    %v911 = vadd.f32 %v842, %v904
    %v912 = vadd.f32 %v843, %v905
    %v913 = vadd.f32 %v844, %v906
    %s914 = sld [smem:[#allocation6 + $0x38]]
    %v915 = vstv %s914
    %v916 = vmul.f32 %v915, %v880
    %v917 = vmul.f32 %v915, %v879
    %v918 = vmul.f32 %v915, %v878
    %v919 = vmul.f32 %v915, %v877
    %v920 = vmul.f32 %v915, %v876
    %v921 = vmul.f32 %v915, %v875
    %v922 = vmul.f32 %v915, %v881
    %v923 = vadd.f32 %v854, %v916
    %v924 = vadd.f32 %v855, %v917
    %v925 = vadd.f32 %v856, %v918
    %v926 = vadd.f32 %v857, %v919
    %v927 = vadd.f32 %v858, %v920
    %v928 = vadd.f32 %v859, %v921
    %v929 = vadd.f32 %v860, %v922
    %930 = vrot.lane.b32.xlu0 %v703, 96
    %v931 = vpop.permute.xlu0 %930
    %932 = vrot.lane.b32.xlu0 %v704, 96
    %v933 = vpop.permute.xlu0 %932
    %934 = vrot.lane.b32.xlu0 %v705, 96
    %v935 = vpop.permute.xlu0 %934
    %936 = vrot.lane.b32.xlu0 %v706, 96
    %v937 = vpop.permute.xlu0 %936
    %938 = vrot.lane.b32.xlu0 %v707, 96
    %v939 = vpop.permute.xlu0 %938
    %940 = vrot.lane.b32.xlu0 %v708, 96
    %v941 = vpop.permute.xlu0 %940
    %942 = vrot.lane.b32.xlu0 %v709, 96
    %v943 = vpop.permute.xlu0 %942
    %v944 = vsel %vm297, %v941, %v943
    %v945 = vsel %vm297, %v939, %v941
    %v946 = vsel %vm297, %v937, %v939
    %v947 = vsel %vm297, %v935, %v937
    %v948 = vsel %vm297, %v933, %v935
    %v949 = vsel %vm297, %v931, %v933
    %v950 = vsel %vm297, %v943, %v931
    %s951 = sld [smem:[#allocation6 + $0x3]]
    %v952 = vstv %s951
    %v953 = vmul.f32 %v952, %v949
    %v954 = vmul.f32 %v952, %v948
    %v955 = vmul.f32 %v952, %v947
    %v956 = vmul.f32 %v952, %v946
    %v957 = vmul.f32 %v952, %v945
    %v958 = vmul.f32 %v952, %v944
    %v959 = vmul.f32 %v952, %v950
    %v960 = vadd.f32 %v891, %v953
    %v961 = vadd.f32 %v892, %v954
    %v962 = vadd.f32 %v893, %v955
    %v963 = vadd.f32 %v894, %v956
    %v964 = vadd.f32 %v895, %v957
    %v965 = vadd.f32 %v896, %v958
    %v966 = vadd.f32 %v897, %v959
    %s967 = sld [smem:[#allocation6 + $0x1e]]
    %v968 = vstv %s967
    %v969 = vmul.f32 %v968, %v949
    %v970 = vmul.f32 %v968, %v948
    %v971 = vmul.f32 %v968, %v947
    %v972 = vmul.f32 %v968, %v946
    %v973 = vmul.f32 %v968, %v945
    %v974 = vmul.f32 %v968, %v944
    %v975 = vmul.f32 %v968, %v950
    %v976 = vadd.f32 %v907, %v969
    %v977 = vadd.f32 %v908, %v970
    %v978 = vadd.f32 %v909, %v971
    %v979 = vadd.f32 %v910, %v972
    %v980 = vadd.f32 %v911, %v973
    %v981 = vadd.f32 %v912, %v974
    %v982 = vadd.f32 %v913, %v975
    %s983 = sld [smem:[#allocation6 + $0x39]]
    %v984 = vstv %s983
    %v985 = vmul.f32 %v984, %v949
    %v986 = vmul.f32 %v984, %v948
    %v987 = vmul.f32 %v984, %v947
    %v988 = vmul.f32 %v984, %v946
    %v989 = vmul.f32 %v984, %v945
    %v990 = vmul.f32 %v984, %v944
    %v991 = vmul.f32 %v984, %v950
    %v992 = vadd.f32 %v923, %v985
    %v993 = vadd.f32 %v924, %v986
    %v994 = vadd.f32 %v925, %v987
    %v995 = vadd.f32 %v926, %v988
    %v996 = vadd.f32 %v927, %v989
    %v997 = vadd.f32 %v928, %v990
    %v998 = vadd.f32 %v929, %v991
    %999 = vrot.lane.b32.xlu0 %v703, 95
    %v1000 = vpop.permute.xlu0 %999
    %1001 = vrot.lane.b32.xlu0 %v704, 95
    %v1002 = vpop.permute.xlu0 %1001
    %1003 = vrot.lane.b32.xlu0 %v705, 95
    %v1004 = vpop.permute.xlu0 %1003
    %1005 = vrot.lane.b32.xlu0 %v706, 95
    %v1006 = vpop.permute.xlu0 %1005
    %1007 = vrot.lane.b32.xlu0 %v707, 95
    %v1008 = vpop.permute.xlu0 %1007
    %1009 = vrot.lane.b32.xlu0 %v708, 95
    %v1010 = vpop.permute.xlu0 %1009
    %1011 = vrot.lane.b32.xlu0 %v709, 95
    %v1012 = vpop.permute.xlu0 %1011
    %v1013 = vsel %vm367, %v1010, %v1012
    %v1014 = vsel %vm367, %v1008, %v1010
    %v1015 = vsel %vm367, %v1006, %v1008
    %v1016 = vsel %vm367, %v1004, %v1006
    %v1017 = vsel %vm367, %v1002, %v1004
    %v1018 = vsel %vm367, %v1000, %v1002
    %v1019 = vsel %vm367, %v1012, %v1000
    %s1020 = sld [smem:[#allocation6 + $0x4]]
    %v1021 = vstv %s1020
    %v1022 = vmul.f32 %v1021, %v1018
    %v1023 = vmul.f32 %v1021, %v1017
    %v1024 = vmul.f32 %v1021, %v1016
    %v1025 = vmul.f32 %v1021, %v1015
    %v1026 = vmul.f32 %v1021, %v1014
    %v1027 = vmul.f32 %v1021, %v1013
    %v1028 = vmul.f32 %v1021, %v1019
    %v1029 = vadd.f32 %v960, %v1022
    %v1030 = vadd.f32 %v961, %v1023
    %v1031 = vadd.f32 %v962, %v1024
    %v1032 = vadd.f32 %v963, %v1025
    %v1033 = vadd.f32 %v964, %v1026
    %v1034 = vadd.f32 %v965, %v1027
    %v1035 = vadd.f32 %v966, %v1028
    %s1036 = sld [smem:[#allocation6 + $0x1f]]
    %v1037 = vstv %s1036
    %v1038 = vmul.f32 %v1037, %v1018
    %v1039 = vmul.f32 %v1037, %v1017
    %v1040 = vmul.f32 %v1037, %v1016
    %v1041 = vmul.f32 %v1037, %v1015
    %v1042 = vmul.f32 %v1037, %v1014
    %v1043 = vmul.f32 %v1037, %v1013
    %v1044 = vmul.f32 %v1037, %v1019
    %v1045 = vadd.f32 %v976, %v1038
    %v1046 = vadd.f32 %v977, %v1039
    %v1047 = vadd.f32 %v978, %v1040
    %v1048 = vadd.f32 %v979, %v1041
    %v1049 = vadd.f32 %v980, %v1042
    %v1050 = vadd.f32 %v981, %v1043
    %v1051 = vadd.f32 %v982, %v1044
    %s1052 = sld [smem:[#allocation6 + $0x3a]]
    %v1053 = vstv %s1052
    %v1054 = vmul.f32 %v1053, %v1018
    %v1055 = vmul.f32 %v1053, %v1017
    %v1056 = vmul.f32 %v1053, %v1016
    %v1057 = vmul.f32 %v1053, %v1015
    %v1058 = vmul.f32 %v1053, %v1014
    %v1059 = vmul.f32 %v1053, %v1013
    %v1060 = vmul.f32 %v1053, %v1019
    %v1061 = vadd.f32 %v992, %v1054
    %v1062 = vadd.f32 %v993, %v1055
    %v1063 = vadd.f32 %v994, %v1056
    %v1064 = vadd.f32 %v995, %v1057
    %v1065 = vadd.f32 %v996, %v1058
    %v1066 = vadd.f32 %v997, %v1059
    %v1067 = vadd.f32 %v998, %v1060
    %1068 = vrot.lane.b32.xlu0 %v703, 94
    %v1069 = vpop.permute.xlu0 %1068
    %1070 = vrot.lane.b32.xlu0 %v704, 94
    %v1071 = vpop.permute.xlu0 %1070
    %1072 = vrot.lane.b32.xlu0 %v705, 94
    %v1073 = vpop.permute.xlu0 %1072
    %1074 = vrot.lane.b32.xlu0 %v706, 94
    %v1075 = vpop.permute.xlu0 %1074
    %1076 = vrot.lane.b32.xlu0 %v707, 94
    %v1077 = vpop.permute.xlu0 %1076
    %1078 = vrot.lane.b32.xlu0 %v708, 94
    %v1079 = vpop.permute.xlu0 %1078
    %1080 = vrot.lane.b32.xlu0 %v709, 94
    %v1081 = vpop.permute.xlu0 %1080
    %v1082 = vsel %vm437, %v1079, %v1081
    %v1083 = vsel %vm437, %v1077, %v1079
    %v1084 = vsel %vm437, %v1075, %v1077
    %v1085 = vsel %vm437, %v1073, %v1075
    %v1086 = vsel %vm437, %v1071, %v1073
    %v1087 = vsel %vm437, %v1069, %v1071
    %v1088 = vsel %vm437, %v1081, %v1069
    %s1089 = sld [smem:[#allocation6 + $0x5]]
    %v1090 = vstv %s1089
    %v1091 = vmul.f32 %v1090, %v1087
    %v1092 = vmul.f32 %v1090, %v1086
    %v1093 = vmul.f32 %v1090, %v1085
    %v1094 = vmul.f32 %v1090, %v1084
    %v1095 = vmul.f32 %v1090, %v1083
    %v1096 = vmul.f32 %v1090, %v1082
    %v1097 = vmul.f32 %v1090, %v1088
    %v1098 = vadd.f32 %v1029, %v1091
    %v1099 = vadd.f32 %v1030, %v1092
    %v1100 = vadd.f32 %v1031, %v1093
    %v1101 = vadd.f32 %v1032, %v1094
    %v1102 = vadd.f32 %v1033, %v1095
    %v1103 = vadd.f32 %v1034, %v1096
    %v1104 = vadd.f32 %v1035, %v1097
    %s1105 = sld [smem:[#allocation6 + $0x20]]
    %v1106 = vstv %s1105
    %v1107 = vmul.f32 %v1106, %v1087
    %v1108 = vmul.f32 %v1106, %v1086
    %v1109 = vmul.f32 %v1106, %v1085
    %v1110 = vmul.f32 %v1106, %v1084
    %v1111 = vmul.f32 %v1106, %v1083
    %v1112 = vmul.f32 %v1106, %v1082
    %v1113 = vmul.f32 %v1106, %v1088
    %v1114 = vadd.f32 %v1045, %v1107
    %v1115 = vadd.f32 %v1046, %v1108
    %v1116 = vadd.f32 %v1047, %v1109
    %v1117 = vadd.f32 %v1048, %v1110
    %v1118 = vadd.f32 %v1049, %v1111
    %v1119 = vadd.f32 %v1050, %v1112
    %v1120 = vadd.f32 %v1051, %v1113
    %s1121 = sld [smem:[#allocation6 + $0x3b]]
    %v1122 = vstv %s1121
    %v1123 = vmul.f32 %v1122, %v1087
    %v1124 = vmul.f32 %v1122, %v1086
    %v1125 = vmul.f32 %v1122, %v1085
    %v1126 = vmul.f32 %v1122, %v1084
    %v1127 = vmul.f32 %v1122, %v1083
    %v1128 = vmul.f32 %v1122, %v1082
    %v1129 = vmul.f32 %v1122, %v1088
    %v1130 = vadd.f32 %v1061, %v1123
    %v1131 = vadd.f32 %v1062, %v1124
    %v1132 = vadd.f32 %v1063, %v1125
    %v1133 = vadd.f32 %v1064, %v1126
    %v1134 = vadd.f32 %v1065, %v1127
    %v1135 = vadd.f32 %v1066, %v1128
    %v1136 = vadd.f32 %v1067, %v1129
    %1137 = vrot.lane.b32.xlu0 %v703, 64
    %v1138 = vpop.permute.xlu0 %1137
    %1139 = vrot.lane.b32.xlu0 %v704, 64
    %v1140 = vpop.permute.xlu0 %1139
    %1141 = vrot.lane.b32.xlu0 %v705, 64
    %v1142 = vpop.permute.xlu0 %1141
    %1143 = vrot.lane.b32.xlu0 %v706, 64
    %v1144 = vpop.permute.xlu0 %1143
    %1145 = vrot.lane.b32.xlu0 %v707, 64
    %v1146 = vpop.permute.xlu0 %1145
    %1147 = vrot.lane.b32.xlu0 %v708, 64
    %v1148 = vpop.permute.xlu0 %1147
    %1149 = vrot.lane.b32.xlu0 %v709, 64
    %v1150 = vpop.permute.xlu0 %1149
    %v1151 = vsel %vm507, %v1148, %v1150
    %v1152 = vsel %vm507, %v1146, %v1148
    %v1153 = vsel %vm507, %v1144, %v1146
    %v1154 = vsel %vm507, %v1142, %v1144
    %v1155 = vsel %vm507, %v1140, %v1142
    %v1156 = vsel %vm507, %v1138, %v1140
    %v1157 = vsel %vm507, %v1150, %v1138
    %s1158 = sld [smem:[#allocation6 + $0x6]]
    %v1159 = vstv %s1158
    %v1160 = vmul.f32 %v1159, %v1156
    %v1161 = vmul.f32 %v1159, %v1155
    %v1162 = vmul.f32 %v1159, %v1154
    %v1163 = vmul.f32 %v1159, %v1153
    %v1164 = vmul.f32 %v1159, %v1152
    %v1165 = vmul.f32 %v1159, %v1151
    %v1166 = vmul.f32 %v1159, %v1157
    %v1167 = vadd.f32 %v1098, %v1160
    %v1168 = vadd.f32 %v1099, %v1161
    %v1169 = vadd.f32 %v1100, %v1162
    %v1170 = vadd.f32 %v1101, %v1163
    %v1171 = vadd.f32 %v1102, %v1164
    %v1172 = vadd.f32 %v1103, %v1165
    %v1173 = vadd.f32 %v1104, %v1166
    %s1174 = sld [smem:[#allocation6 + $0x21]]
    %v1175 = vstv %s1174
    %v1176 = vmul.f32 %v1175, %v1156
    %v1177 = vmul.f32 %v1175, %v1155
    %v1178 = vmul.f32 %v1175, %v1154
    %v1179 = vmul.f32 %v1175, %v1153
    %v1180 = vmul.f32 %v1175, %v1152
    %v1181 = vmul.f32 %v1175, %v1151
    %v1182 = vmul.f32 %v1175, %v1157
    %v1183 = vadd.f32 %v1114, %v1176
    %v1184 = vadd.f32 %v1115, %v1177
    %v1185 = vadd.f32 %v1116, %v1178
    %v1186 = vadd.f32 %v1117, %v1179
    %v1187 = vadd.f32 %v1118, %v1180
    %v1188 = vadd.f32 %v1119, %v1181
    %v1189 = vadd.f32 %v1120, %v1182
    %s1190 = sld [smem:[#allocation6 + $0x3c]]
    %v1191 = vstv %s1190
    %v1192 = vmul.f32 %v1191, %v1156
    %v1193 = vmul.f32 %v1191, %v1155
    %v1194 = vmul.f32 %v1191, %v1154
    %v1195 = vmul.f32 %v1191, %v1153
    %v1196 = vmul.f32 %v1191, %v1152
    %v1197 = vmul.f32 %v1191, %v1151
    %v1198 = vmul.f32 %v1191, %v1157
    %v1199 = vadd.f32 %v1130, %v1192
    %v1200 = vadd.f32 %v1131, %v1193
    %v1201 = vadd.f32 %v1132, %v1194
    %v1202 = vadd.f32 %v1133, %v1195
    %v1203 = vadd.f32 %v1134, %v1196
    %v1204 = vadd.f32 %v1135, %v1197
    %v1205 = vadd.f32 %v1136, %v1198
    %1206 = vrot.lane.b32.xlu0 %v703, 63
    %v1207 = vpop.permute.xlu0 %1206
    %1208 = vrot.lane.b32.xlu0 %v704, 63
    %v1209 = vpop.permute.xlu0 %1208
    %1210 = vrot.lane.b32.xlu0 %v705, 63
    %v1211 = vpop.permute.xlu0 %1210
    %1212 = vrot.lane.b32.xlu0 %v706, 63
    %v1213 = vpop.permute.xlu0 %1212
    %1214 = vrot.lane.b32.xlu0 %v707, 63
    %v1215 = vpop.permute.xlu0 %1214
    %1216 = vrot.lane.b32.xlu0 %v708, 63
    %v1217 = vpop.permute.xlu0 %1216
    %1218 = vrot.lane.b32.xlu0 %v709, 63
    %v1219 = vpop.permute.xlu0 %1218
    %v1220 = vsel %vm577, %v1217, %v1219
    %v1221 = vsel %vm577, %v1215, %v1217
    %v1222 = vsel %vm577, %v1213, %v1215
    %v1223 = vsel %vm577, %v1211, %v1213
    %v1224 = vsel %vm577, %v1209, %v1211
    %v1225 = vsel %vm577, %v1207, %v1209
    %v1226 = vsel %vm577, %v1219, %v1207
    %s1227 = sld [smem:[#allocation6 + $0x7]]
    %v1228 = vstv %s1227
    %v1229 = vmul.f32 %v1228, %v1225
    %v1230 = vmul.f32 %v1228, %v1224
    %v1231 = vmul.f32 %v1228, %v1223
    %v1232 = vmul.f32 %v1228, %v1222
    %v1233 = vmul.f32 %v1228, %v1221
    %v1234 = vmul.f32 %v1228, %v1220
    %v1235 = vmul.f32 %v1228, %v1226
    %v1236 = vadd.f32 %v1167, %v1229
    %v1237 = vadd.f32 %v1168, %v1230
    %v1238 = vadd.f32 %v1169, %v1231
    %v1239 = vadd.f32 %v1170, %v1232
    %v1240 = vadd.f32 %v1171, %v1233
    %v1241 = vadd.f32 %v1172, %v1234
    %v1242 = vadd.f32 %v1173, %v1235
    %s1243 = sld [smem:[#allocation6 + $0x22]]
    %v1244 = vstv %s1243
    %v1245 = vmul.f32 %v1244, %v1225
    %v1246 = vmul.f32 %v1244, %v1224
    %v1247 = vmul.f32 %v1244, %v1223
    %v1248 = vmul.f32 %v1244, %v1222
    %v1249 = vmul.f32 %v1244, %v1221
    %v1250 = vmul.f32 %v1244, %v1220
    %v1251 = vmul.f32 %v1244, %v1226
    %v1252 = vadd.f32 %v1183, %v1245
    %v1253 = vadd.f32 %v1184, %v1246
    %v1254 = vadd.f32 %v1185, %v1247
    %v1255 = vadd.f32 %v1186, %v1248
    %v1256 = vadd.f32 %v1187, %v1249
    %v1257 = vadd.f32 %v1188, %v1250
    %v1258 = vadd.f32 %v1189, %v1251
    %s1259 = sld [smem:[#allocation6 + $0x3d]]
    %v1260 = vstv %s1259
    %v1261 = vmul.f32 %v1260, %v1225
    %v1262 = vmul.f32 %v1260, %v1224
    %v1263 = vmul.f32 %v1260, %v1223
    %v1264 = vmul.f32 %v1260, %v1222
    %v1265 = vmul.f32 %v1260, %v1221
    %v1266 = vmul.f32 %v1260, %v1220
    %v1267 = vmul.f32 %v1260, %v1226
    %v1268 = vadd.f32 %v1199, %v1261
    %v1269 = vadd.f32 %v1200, %v1262
    %v1270 = vadd.f32 %v1201, %v1263
    %v1271 = vadd.f32 %v1202, %v1264
    %v1272 = vadd.f32 %v1203, %v1265
    %v1273 = vadd.f32 %v1204, %v1266
    %v1274 = vadd.f32 %v1205, %v1267
    %1275 = vrot.lane.b32.xlu0 %v703, 62
    %v1276 = vpop.permute.xlu0 %1275
    %1277 = vrot.lane.b32.xlu0 %v704, 62
    %v1278 = vpop.permute.xlu0 %1277
    %1279 = vrot.lane.b32.xlu0 %v705, 62
    %v1280 = vpop.permute.xlu0 %1279
    %1281 = vrot.lane.b32.xlu0 %v706, 62
    %v1282 = vpop.permute.xlu0 %1281
    %1283 = vrot.lane.b32.xlu0 %v707, 62
    %v1284 = vpop.permute.xlu0 %1283
    %1285 = vrot.lane.b32.xlu0 %v708, 62
    %v1286 = vpop.permute.xlu0 %1285
    %1287 = vrot.lane.b32.xlu0 %v709, 62
    %v1288 = vpop.permute.xlu0 %1287
    %v1289 = vsel %vm647, %v1286, %v1288
    %v1290 = vsel %vm647, %v1284, %v1286
    %v1291 = vsel %vm647, %v1282, %v1284
    %v1292 = vsel %vm647, %v1280, %v1282
    %v1293 = vsel %vm647, %v1278, %v1280
    %v1294 = vsel %vm647, %v1276, %v1278
    %v1295 = vsel %vm647, %v1288, %v1276
    %s1296 = sld [smem:[#allocation6 + $0x8]]
    %v1297 = vstv %s1296
    %v1298 = vmul.f32 %v1297, %v1294
    %v1299 = vmul.f32 %v1297, %v1293
    %v1300 = vmul.f32 %v1297, %v1292
    %v1301 = vmul.f32 %v1297, %v1291
    %v1302 = vmul.f32 %v1297, %v1290
    %v1303 = vmul.f32 %v1297, %v1289
    %v1304 = vmul.f32 %v1297, %v1295
    %v1305 = vadd.f32 %v1236, %v1298
    %v1306 = vadd.f32 %v1237, %v1299
    %v1307 = vadd.f32 %v1238, %v1300
    %v1308 = vadd.f32 %v1239, %v1301
    %v1309 = vadd.f32 %v1240, %v1302
    %v1310 = vadd.f32 %v1241, %v1303
    %v1311 = vadd.f32 %v1242, %v1304
    %s1312 = sld [smem:[#allocation6 + $0x23]]
    %v1313 = vstv %s1312
    %v1314 = vmul.f32 %v1313, %v1294
    %v1315 = vmul.f32 %v1313, %v1293
    %v1316 = vmul.f32 %v1313, %v1292
    %v1317 = vmul.f32 %v1313, %v1291
    %v1318 = vmul.f32 %v1313, %v1290
    %v1319 = vmul.f32 %v1313, %v1289
    %v1320 = vmul.f32 %v1313, %v1295
    %v1321 = vadd.f32 %v1252, %v1314
    %v1322 = vadd.f32 %v1253, %v1315
    %v1323 = vadd.f32 %v1254, %v1316
    %v1324 = vadd.f32 %v1255, %v1317
    %v1325 = vadd.f32 %v1256, %v1318
    %v1326 = vadd.f32 %v1257, %v1319
    %v1327 = vadd.f32 %v1258, %v1320
    %s1328 = sld [smem:[#allocation6 + $0x3e]]
    %v1329 = vstv %s1328
    %v1330 = vmul.f32 %v1329, %v1294
    %v1331 = vmul.f32 %v1329, %v1293
    %v1332 = vmul.f32 %v1329, %v1292
    %v1333 = vmul.f32 %v1329, %v1291
    %v1334 = vmul.f32 %v1329, %v1290
    %v1335 = vmul.f32 %v1329, %v1289
    %v1336 = vmul.f32 %v1329, %v1295
    %v1337 = vadd.f32 %v1268, %v1330
    %v1338 = vadd.f32 %v1269, %v1331
    %v1339 = vadd.f32 %v1270, %v1332
    %v1340 = vadd.f32 %v1271, %v1333
    %v1341 = vadd.f32 %v1272, %v1334
    %v1342 = vadd.f32 %v1273, %v1335
    %v1343 = vadd.f32 %v1274, %v1336
    %s1344 = sld [smem:[#allocation6 + $0x9]]
    %v1345 = vstv %s1344
    %v1346 = vmul.f32 %v1345, %v710
    %v1347 = vmul.f32 %v1345, %v711
    %v1348 = vmul.f32 %v1345, %v712
    %v1349 = vmul.f32 %v1345, %v713
    %v1350 = vmul.f32 %v1345, %v714
    %v1351 = vmul.f32 %v1345, %v715
    %v1352 = vmul.f32 %v1345, %v716
    %v1353 = vadd.f32 %v1305, %v1346
    %v1354 = vadd.f32 %v1306, %v1347
    %v1355 = vadd.f32 %v1307, %v1348
    %v1356 = vadd.f32 %v1308, %v1349
    %v1357 = vadd.f32 %v1309, %v1350
    %v1358 = vadd.f32 %v1310, %v1351
    %v1359 = vadd.f32 %v1311, %v1352
    %s1360 = sld [smem:[#allocation6 + $0x24]]
    %v1361 = vstv %s1360
    %v1362 = vmul.f32 %v1361, %v710
    %v1363 = vmul.f32 %v1361, %v711
    %v1364 = vmul.f32 %v1361, %v712
    %v1365 = vmul.f32 %v1361, %v713
    %v1366 = vmul.f32 %v1361, %v714
    %v1367 = vmul.f32 %v1361, %v715
    %v1368 = vmul.f32 %v1361, %v716
    %v1369 = vadd.f32 %v1321, %v1362
    %v1370 = vadd.f32 %v1322, %v1363
    %v1371 = vadd.f32 %v1323, %v1364
    %v1372 = vadd.f32 %v1324, %v1365
    %v1373 = vadd.f32 %v1325, %v1366
    %v1374 = vadd.f32 %v1326, %v1367
    %v1375 = vadd.f32 %v1327, %v1368
    %s1376 = sld [smem:[#allocation6 + $0x3f]]
    %v1377 = vstv %s1376
    %v1378 = vmul.f32 %v1377, %v710
    %v1379 = vmul.f32 %v1377, %v711
    %v1380 = vmul.f32 %v1377, %v712
    %v1381 = vmul.f32 %v1377, %v713
    %v1382 = vmul.f32 %v1377, %v714
    %v1383 = vmul.f32 %v1377, %v715
    %v1384 = vmul.f32 %v1377, %v716
    %v1385 = vadd.f32 %v1337, %v1378
    %v1386 = vadd.f32 %v1338, %v1379
    %v1387 = vadd.f32 %v1339, %v1380
    %v1388 = vadd.f32 %v1340, %v1381
    %v1389 = vadd.f32 %v1341, %v1382
    %v1390 = vadd.f32 %v1342, %v1383
    %v1391 = vadd.f32 %v1343, %v1384
    %1392 = vrot.lane.b32.xlu0 %v710, 127
    %v1393 = vpop.permute.xlu0 %1392
    %1394 = vrot.lane.b32.xlu0 %v711, 127
    %v1395 = vpop.permute.xlu0 %1394
    %1396 = vrot.lane.b32.xlu0 %v712, 127
    %v1397 = vpop.permute.xlu0 %1396
    %1398 = vrot.lane.b32.xlu0 %v713, 127
    %v1399 = vpop.permute.xlu0 %1398
    %1400 = vrot.lane.b32.xlu0 %v714, 127
    %v1401 = vpop.permute.xlu0 %1400
    %1402 = vrot.lane.b32.xlu0 %v715, 127
    %v1403 = vpop.permute.xlu0 %1402
    %1404 = vrot.lane.b32.xlu0 %v716, 127
    %v1405 = vpop.permute.xlu0 %1404
    %v1406 = vsel %vm157, %v1403, %v1405
    %v1407 = vsel %vm157, %v1401, %v1403
    %v1408 = vsel %vm157, %v1399, %v1401
    %v1409 = vsel %vm157, %v1397, %v1399
    %v1410 = vsel %vm157, %v1395, %v1397
    %v1411 = vsel %vm157, %v1393, %v1395
    %v1412 = vsel %vm157, %v1405, %v1393
    %s1413 = sld [smem:[#allocation6 + $0xa]]
    %v1414 = vstv %s1413
    %v1415 = vmul.f32 %v1414, %v1411
    %v1416 = vmul.f32 %v1414, %v1410
    %v1417 = vmul.f32 %v1414, %v1409
    %v1418 = vmul.f32 %v1414, %v1408
    %v1419 = vmul.f32 %v1414, %v1407
    %v1420 = vmul.f32 %v1414, %v1406
    %v1421 = vmul.f32 %v1414, %v1412
    %v1422 = vadd.f32 %v1353, %v1415
    %v1423 = vadd.f32 %v1354, %v1416
    %v1424 = vadd.f32 %v1355, %v1417
    %v1425 = vadd.f32 %v1356, %v1418
    %v1426 = vadd.f32 %v1357, %v1419
    %v1427 = vadd.f32 %v1358, %v1420
    %v1428 = vadd.f32 %v1359, %v1421
    %s1429 = sld [smem:[#allocation6 + $0x25]]
    %v1430 = vstv %s1429
    %v1431 = vmul.f32 %v1430, %v1411
    %v1432 = vmul.f32 %v1430, %v1410
    %v1433 = vmul.f32 %v1430, %v1409
    %v1434 = vmul.f32 %v1430, %v1408
    %v1435 = vmul.f32 %v1430, %v1407
    %v1436 = vmul.f32 %v1430, %v1406
    %v1437 = vmul.f32 %v1430, %v1412
    %v1438 = vadd.f32 %v1369, %v1431
    %v1439 = vadd.f32 %v1370, %v1432
    %v1440 = vadd.f32 %v1371, %v1433
    %v1441 = vadd.f32 %v1372, %v1434
    %v1442 = vadd.f32 %v1373, %v1435
    %v1443 = vadd.f32 %v1374, %v1436
    %v1444 = vadd.f32 %v1375, %v1437
    %s1445 = sld [smem:[#allocation6 + $0x40]]
    %v1446 = vstv %s1445
    %v1447 = vmul.f32 %v1446, %v1411
    %v1448 = vmul.f32 %v1446, %v1410
    %v1449 = vmul.f32 %v1446, %v1409
    %v1450 = vmul.f32 %v1446, %v1408
    %v1451 = vmul.f32 %v1446, %v1407
    %v1452 = vmul.f32 %v1446, %v1406
    %v1453 = vmul.f32 %v1446, %v1412
    %v1454 = vadd.f32 %v1385, %v1447
    %v1455 = vadd.f32 %v1386, %v1448
    %v1456 = vadd.f32 %v1387, %v1449
    %v1457 = vadd.f32 %v1388, %v1450
    %v1458 = vadd.f32 %v1389, %v1451
    %v1459 = vadd.f32 %v1390, %v1452
    %v1460 = vadd.f32 %v1391, %v1453
    %1461 = vrot.lane.b32.xlu0 %v710, 126
    %v1462 = vpop.permute.xlu0 %1461
    %1463 = vrot.lane.b32.xlu0 %v711, 126
    %v1464 = vpop.permute.xlu0 %1463
    %1465 = vrot.lane.b32.xlu0 %v712, 126
    %v1466 = vpop.permute.xlu0 %1465
    %1467 = vrot.lane.b32.xlu0 %v713, 126
    %v1468 = vpop.permute.xlu0 %1467
    %1469 = vrot.lane.b32.xlu0 %v714, 126
    %v1470 = vpop.permute.xlu0 %1469
    %1471 = vrot.lane.b32.xlu0 %v715, 126
    %v1472 = vpop.permute.xlu0 %1471
    %1473 = vrot.lane.b32.xlu0 %v716, 126
    %v1474 = vpop.permute.xlu0 %1473
    %v1475 = vsel %vm227, %v1472, %v1474
    %v1476 = vsel %vm227, %v1470, %v1472
    %v1477 = vsel %vm227, %v1468, %v1470
    %v1478 = vsel %vm227, %v1466, %v1468
    %v1479 = vsel %vm227, %v1464, %v1466
    %v1480 = vsel %vm227, %v1462, %v1464
    %v1481 = vsel %vm227, %v1474, %v1462
    %s1482 = sld [smem:[#allocation6 + $0xb]]
    %v1483 = vstv %s1482
    %v1484 = vmul.f32 %v1483, %v1480
    %v1485 = vmul.f32 %v1483, %v1479
    %v1486 = vmul.f32 %v1483, %v1478
    %v1487 = vmul.f32 %v1483, %v1477
    %v1488 = vmul.f32 %v1483, %v1476
    %v1489 = vmul.f32 %v1483, %v1475
    %v1490 = vmul.f32 %v1483, %v1481
    %v1491 = vadd.f32 %v1422, %v1484
    %v1492 = vadd.f32 %v1423, %v1485
    %v1493 = vadd.f32 %v1424, %v1486
    %v1494 = vadd.f32 %v1425, %v1487
    %v1495 = vadd.f32 %v1426, %v1488
    %v1496 = vadd.f32 %v1427, %v1489
    %v1497 = vadd.f32 %v1428, %v1490
    %s1498 = sld [smem:[#allocation6 + $0x26]]
    %v1499 = vstv %s1498
    %v1500 = vmul.f32 %v1499, %v1480
    %v1501 = vmul.f32 %v1499, %v1479
    %v1502 = vmul.f32 %v1499, %v1478
    %v1503 = vmul.f32 %v1499, %v1477
    %v1504 = vmul.f32 %v1499, %v1476
    %v1505 = vmul.f32 %v1499, %v1475
    %v1506 = vmul.f32 %v1499, %v1481
    %v1507 = vadd.f32 %v1438, %v1500
    %v1508 = vadd.f32 %v1439, %v1501
    %v1509 = vadd.f32 %v1440, %v1502
    %v1510 = vadd.f32 %v1441, %v1503
    %v1511 = vadd.f32 %v1442, %v1504
    %v1512 = vadd.f32 %v1443, %v1505
    %v1513 = vadd.f32 %v1444, %v1506
    %s1514 = sld [smem:[#allocation6 + $0x41]]
    %v1515 = vstv %s1514
    %v1516 = vmul.f32 %v1515, %v1480
    %v1517 = vmul.f32 %v1515, %v1479
    %v1518 = vmul.f32 %v1515, %v1478
    %v1519 = vmul.f32 %v1515, %v1477
    %v1520 = vmul.f32 %v1515, %v1476
    %v1521 = vmul.f32 %v1515, %v1475
    %v1522 = vmul.f32 %v1515, %v1481
    %v1523 = vadd.f32 %v1454, %v1516
    %v1524 = vadd.f32 %v1455, %v1517
    %v1525 = vadd.f32 %v1456, %v1518
    %v1526 = vadd.f32 %v1457, %v1519
    %v1527 = vadd.f32 %v1458, %v1520
    %v1528 = vadd.f32 %v1459, %v1521
    %v1529 = vadd.f32 %v1460, %v1522
    %1530 = vrot.lane.b32.xlu0 %v710, 96
    %v1531 = vpop.permute.xlu0 %1530
    %1532 = vrot.lane.b32.xlu0 %v711, 96
    %v1533 = vpop.permute.xlu0 %1532
    %1534 = vrot.lane.b32.xlu0 %v712, 96
    %v1535 = vpop.permute.xlu0 %1534
    %1536 = vrot.lane.b32.xlu0 %v713, 96
    %v1537 = vpop.permute.xlu0 %1536
    %1538 = vrot.lane.b32.xlu0 %v714, 96
    %v1539 = vpop.permute.xlu0 %1538
    %1540 = vrot.lane.b32.xlu0 %v715, 96
    %v1541 = vpop.permute.xlu0 %1540
    %1542 = vrot.lane.b32.xlu0 %v716, 96
    %v1543 = vpop.permute.xlu0 %1542
    %v1544 = vsel %vm297, %v1541, %v1543
    %v1545 = vsel %vm297, %v1539, %v1541
    %v1546 = vsel %vm297, %v1537, %v1539
    %v1547 = vsel %vm297, %v1535, %v1537
    %v1548 = vsel %vm297, %v1533, %v1535
    %v1549 = vsel %vm297, %v1531, %v1533
    %v1550 = vsel %vm297, %v1543, %v1531
    %s1551 = sld [smem:[#allocation6 + $0xc]]
    %v1552 = vstv %s1551
    %v1553 = vmul.f32 %v1552, %v1549
    %v1554 = vmul.f32 %v1552, %v1548
    %v1555 = vmul.f32 %v1552, %v1547
    %v1556 = vmul.f32 %v1552, %v1546
    %v1557 = vmul.f32 %v1552, %v1545
    %v1558 = vmul.f32 %v1552, %v1544
    %v1559 = vmul.f32 %v1552, %v1550
    %v1560 = vadd.f32 %v1491, %v1553
    %v1561 = vadd.f32 %v1492, %v1554
    %v1562 = vadd.f32 %v1493, %v1555
    %v1563 = vadd.f32 %v1494, %v1556
    %v1564 = vadd.f32 %v1495, %v1557
    %v1565 = vadd.f32 %v1496, %v1558
    %v1566 = vadd.f32 %v1497, %v1559
    %s1567 = sld [smem:[#allocation6 + $0x27]]
    %v1568 = vstv %s1567
    %v1569 = vmul.f32 %v1568, %v1549
    %v1570 = vmul.f32 %v1568, %v1548
    %v1571 = vmul.f32 %v1568, %v1547
    %v1572 = vmul.f32 %v1568, %v1546
    %v1573 = vmul.f32 %v1568, %v1545
    %v1574 = vmul.f32 %v1568, %v1544
    %v1575 = vmul.f32 %v1568, %v1550
    %v1576 = vadd.f32 %v1507, %v1569
    %v1577 = vadd.f32 %v1508, %v1570
    %v1578 = vadd.f32 %v1509, %v1571
    %v1579 = vadd.f32 %v1510, %v1572
    %v1580 = vadd.f32 %v1511, %v1573
    %v1581 = vadd.f32 %v1512, %v1574
    %v1582 = vadd.f32 %v1513, %v1575
    %s1583 = sld [smem:[#allocation6 + $0x42]]
    %v1584 = vstv %s1583
    %v1585 = vmul.f32 %v1584, %v1549
    %v1586 = vmul.f32 %v1584, %v1548
    %v1587 = vmul.f32 %v1584, %v1547
    %v1588 = vmul.f32 %v1584, %v1546
    %v1589 = vmul.f32 %v1584, %v1545
    %v1590 = vmul.f32 %v1584, %v1544
    %v1591 = vmul.f32 %v1584, %v1550
    %v1592 = vadd.f32 %v1523, %v1585
    %v1593 = vadd.f32 %v1524, %v1586
    %v1594 = vadd.f32 %v1525, %v1587
    %v1595 = vadd.f32 %v1526, %v1588
    %v1596 = vadd.f32 %v1527, %v1589
    %v1597 = vadd.f32 %v1528, %v1590
    %v1598 = vadd.f32 %v1529, %v1591
    %1599 = vrot.lane.b32.xlu0 %v710, 95
    %v1600 = vpop.permute.xlu0 %1599
    %1601 = vrot.lane.b32.xlu0 %v711, 95
    %v1602 = vpop.permute.xlu0 %1601
    %1603 = vrot.lane.b32.xlu0 %v712, 95
    %v1604 = vpop.permute.xlu0 %1603
    %1605 = vrot.lane.b32.xlu0 %v713, 95
    %v1606 = vpop.permute.xlu0 %1605
    %1607 = vrot.lane.b32.xlu0 %v714, 95
    %v1608 = vpop.permute.xlu0 %1607
    %1609 = vrot.lane.b32.xlu0 %v715, 95
    %v1610 = vpop.permute.xlu0 %1609
    %1611 = vrot.lane.b32.xlu0 %v716, 95
    %v1612 = vpop.permute.xlu0 %1611
    %v1613 = vsel %vm367, %v1610, %v1612
    %v1614 = vsel %vm367, %v1608, %v1610
    %v1615 = vsel %vm367, %v1606, %v1608
    %v1616 = vsel %vm367, %v1604, %v1606
    %v1617 = vsel %vm367, %v1602, %v1604
    %v1618 = vsel %vm367, %v1600, %v1602
    %v1619 = vsel %vm367, %v1612, %v1600
    %s1620 = sld [smem:[#allocation6 + $0xd]]
    %v1621 = vstv %s1620
    %v1622 = vmul.f32 %v1621, %v1618
    %v1623 = vmul.f32 %v1621, %v1617
    %v1624 = vmul.f32 %v1621, %v1616
    %v1625 = vmul.f32 %v1621, %v1615
    %v1626 = vmul.f32 %v1621, %v1614
    %v1627 = vmul.f32 %v1621, %v1613
    %v1628 = vmul.f32 %v1621, %v1619
    %v1629 = vadd.f32 %v1560, %v1622
    %v1630 = vadd.f32 %v1561, %v1623
    %v1631 = vadd.f32 %v1562, %v1624
    %v1632 = vadd.f32 %v1563, %v1625
    %v1633 = vadd.f32 %v1564, %v1626
    %v1634 = vadd.f32 %v1565, %v1627
    %v1635 = vadd.f32 %v1566, %v1628
    %s1636 = sld [smem:[#allocation6 + $0x28]]
    %v1637 = vstv %s1636
    %v1638 = vmul.f32 %v1637, %v1618
    %v1639 = vmul.f32 %v1637, %v1617
    %v1640 = vmul.f32 %v1637, %v1616
    %v1641 = vmul.f32 %v1637, %v1615
    %v1642 = vmul.f32 %v1637, %v1614
    %v1643 = vmul.f32 %v1637, %v1613
    %v1644 = vmul.f32 %v1637, %v1619
    %v1645 = vadd.f32 %v1576, %v1638
    %v1646 = vadd.f32 %v1577, %v1639
    %v1647 = vadd.f32 %v1578, %v1640
    %v1648 = vadd.f32 %v1579, %v1641
    %v1649 = vadd.f32 %v1580, %v1642
    %v1650 = vadd.f32 %v1581, %v1643
    %v1651 = vadd.f32 %v1582, %v1644
    %s1652 = sld [smem:[#allocation6 + $0x43]]
    %v1653 = vstv %s1652
    %v1654 = vmul.f32 %v1653, %v1618
    %v1655 = vmul.f32 %v1653, %v1617
    %v1656 = vmul.f32 %v1653, %v1616
    %v1657 = vmul.f32 %v1653, %v1615
    %v1658 = vmul.f32 %v1653, %v1614
    %v1659 = vmul.f32 %v1653, %v1613
    %v1660 = vmul.f32 %v1653, %v1619
    %v1661 = vadd.f32 %v1592, %v1654
    %v1662 = vadd.f32 %v1593, %v1655
    %v1663 = vadd.f32 %v1594, %v1656
    %v1664 = vadd.f32 %v1595, %v1657
    %v1665 = vadd.f32 %v1596, %v1658
    %v1666 = vadd.f32 %v1597, %v1659
    %v1667 = vadd.f32 %v1598, %v1660
    %1668 = vrot.lane.b32.xlu0 %v710, 94
    %v1669 = vpop.permute.xlu0 %1668
    %1670 = vrot.lane.b32.xlu0 %v711, 94
    %v1671 = vpop.permute.xlu0 %1670
    %1672 = vrot.lane.b32.xlu0 %v712, 94
    %v1673 = vpop.permute.xlu0 %1672
    %1674 = vrot.lane.b32.xlu0 %v713, 94
    %v1675 = vpop.permute.xlu0 %1674
    %1676 = vrot.lane.b32.xlu0 %v714, 94
    %v1677 = vpop.permute.xlu0 %1676
    %1678 = vrot.lane.b32.xlu0 %v715, 94
    %v1679 = vpop.permute.xlu0 %1678
    %1680 = vrot.lane.b32.xlu0 %v716, 94
    %v1681 = vpop.permute.xlu0 %1680
    %v1682 = vsel %vm437, %v1679, %v1681
    %v1683 = vsel %vm437, %v1677, %v1679
    %v1684 = vsel %vm437, %v1675, %v1677
    %v1685 = vsel %vm437, %v1673, %v1675
    %v1686 = vsel %vm437, %v1671, %v1673
    %v1687 = vsel %vm437, %v1669, %v1671
    %v1688 = vsel %vm437, %v1681, %v1669
    %s1689 = sld [smem:[#allocation6 + $0xe]]
    %v1690 = vstv %s1689
    %v1691 = vmul.f32 %v1690, %v1687
    %v1692 = vmul.f32 %v1690, %v1686
    %v1693 = vmul.f32 %v1690, %v1685
    %v1694 = vmul.f32 %v1690, %v1684
    %v1695 = vmul.f32 %v1690, %v1683
    %v1696 = vmul.f32 %v1690, %v1682
    %v1697 = vmul.f32 %v1690, %v1688
    %v1698 = vadd.f32 %v1629, %v1691
    %v1699 = vadd.f32 %v1630, %v1692
    %v1700 = vadd.f32 %v1631, %v1693
    %v1701 = vadd.f32 %v1632, %v1694
    %v1702 = vadd.f32 %v1633, %v1695
    %v1703 = vadd.f32 %v1634, %v1696
    %v1704 = vadd.f32 %v1635, %v1697
    %s1705 = sld [smem:[#allocation6 + $0x29]]
    %v1706 = vstv %s1705
    %v1707 = vmul.f32 %v1706, %v1687
    %v1708 = vmul.f32 %v1706, %v1686
    %v1709 = vmul.f32 %v1706, %v1685
    %v1710 = vmul.f32 %v1706, %v1684
    %v1711 = vmul.f32 %v1706, %v1683
    %v1712 = vmul.f32 %v1706, %v1682
    %v1713 = vmul.f32 %v1706, %v1688
    %v1714 = vadd.f32 %v1645, %v1707
    %v1715 = vadd.f32 %v1646, %v1708
    %v1716 = vadd.f32 %v1647, %v1709
    %v1717 = vadd.f32 %v1648, %v1710
    %v1718 = vadd.f32 %v1649, %v1711
    %v1719 = vadd.f32 %v1650, %v1712
    %v1720 = vadd.f32 %v1651, %v1713
    %s1721 = sld [smem:[#allocation6 + $0x44]]
    %v1722 = vstv %s1721
    %v1723 = vmul.f32 %v1722, %v1687
    %v1724 = vmul.f32 %v1722, %v1686
    %v1725 = vmul.f32 %v1722, %v1685
    %v1726 = vmul.f32 %v1722, %v1684
    %v1727 = vmul.f32 %v1722, %v1683
    %v1728 = vmul.f32 %v1722, %v1682
    %v1729 = vmul.f32 %v1722, %v1688
    %v1730 = vadd.f32 %v1661, %v1723
    %v1731 = vadd.f32 %v1662, %v1724
    %v1732 = vadd.f32 %v1663, %v1725
    %v1733 = vadd.f32 %v1664, %v1726
    %v1734 = vadd.f32 %v1665, %v1727
    %v1735 = vadd.f32 %v1666, %v1728
    %v1736 = vadd.f32 %v1667, %v1729
    %1737 = vrot.lane.b32.xlu0 %v710, 64
    %v1738 = vpop.permute.xlu0 %1737
    %1739 = vrot.lane.b32.xlu0 %v711, 64
    %v1740 = vpop.permute.xlu0 %1739
    %1741 = vrot.lane.b32.xlu0 %v712, 64
    %v1742 = vpop.permute.xlu0 %1741
    %1743 = vrot.lane.b32.xlu0 %v713, 64
    %v1744 = vpop.permute.xlu0 %1743
    %1745 = vrot.lane.b32.xlu0 %v714, 64
    %v1746 = vpop.permute.xlu0 %1745
    %1747 = vrot.lane.b32.xlu0 %v715, 64
    %v1748 = vpop.permute.xlu0 %1747
    %1749 = vrot.lane.b32.xlu0 %v716, 64
    %v1750 = vpop.permute.xlu0 %1749
    %v1751 = vsel %vm507, %v1748, %v1750
    %v1752 = vsel %vm507, %v1746, %v1748
    %v1753 = vsel %vm507, %v1744, %v1746
    %v1754 = vsel %vm507, %v1742, %v1744
    %v1755 = vsel %vm507, %v1740, %v1742
    %v1756 = vsel %vm507, %v1738, %v1740
    %v1757 = vsel %vm507, %v1750, %v1738
    %s1758 = sld [smem:[#allocation6 + $0xf]]
    %v1759 = vstv %s1758
    %v1760 = vmul.f32 %v1759, %v1756
    %v1761 = vmul.f32 %v1759, %v1755
    %v1762 = vmul.f32 %v1759, %v1754
    %v1763 = vmul.f32 %v1759, %v1753
    %v1764 = vmul.f32 %v1759, %v1752
    %v1765 = vmul.f32 %v1759, %v1751
    %v1766 = vmul.f32 %v1759, %v1757
    %v1767 = vadd.f32 %v1698, %v1760
    %v1768 = vadd.f32 %v1699, %v1761
    %v1769 = vadd.f32 %v1700, %v1762
    %v1770 = vadd.f32 %v1701, %v1763
    %v1771 = vadd.f32 %v1702, %v1764
    %v1772 = vadd.f32 %v1703, %v1765
    %v1773 = vadd.f32 %v1704, %v1766
    %s1774 = sld [smem:[#allocation6 + $0x2a]]
    %v1775 = vstv %s1774
    %v1776 = vmul.f32 %v1775, %v1756
    %v1777 = vmul.f32 %v1775, %v1755
    %v1778 = vmul.f32 %v1775, %v1754
    %v1779 = vmul.f32 %v1775, %v1753
    %v1780 = vmul.f32 %v1775, %v1752
    %v1781 = vmul.f32 %v1775, %v1751
    %v1782 = vmul.f32 %v1775, %v1757
    %v1783 = vadd.f32 %v1714, %v1776
    %v1784 = vadd.f32 %v1715, %v1777
    %v1785 = vadd.f32 %v1716, %v1778
    %v1786 = vadd.f32 %v1717, %v1779
    %v1787 = vadd.f32 %v1718, %v1780
    %v1788 = vadd.f32 %v1719, %v1781
    %v1789 = vadd.f32 %v1720, %v1782
    %s1790 = sld [smem:[#allocation6 + $0x45]]
    %v1791 = vstv %s1790
    %v1792 = vmul.f32 %v1791, %v1756
    %v1793 = vmul.f32 %v1791, %v1755
    %v1794 = vmul.f32 %v1791, %v1754
    %v1795 = vmul.f32 %v1791, %v1753
    %v1796 = vmul.f32 %v1791, %v1752
    %v1797 = vmul.f32 %v1791, %v1751
    %v1798 = vmul.f32 %v1791, %v1757
    %v1799 = vadd.f32 %v1730, %v1792
    %v1800 = vadd.f32 %v1731, %v1793
    %v1801 = vadd.f32 %v1732, %v1794
    %v1802 = vadd.f32 %v1733, %v1795
    %v1803 = vadd.f32 %v1734, %v1796
    %v1804 = vadd.f32 %v1735, %v1797
    %v1805 = vadd.f32 %v1736, %v1798
    %1806 = vrot.lane.b32.xlu0 %v710, 63
    %v1807 = vpop.permute.xlu0 %1806
    %1808 = vrot.lane.b32.xlu0 %v711, 63
    %v1809 = vpop.permute.xlu0 %1808
    %1810 = vrot.lane.b32.xlu0 %v712, 63
    %v1811 = vpop.permute.xlu0 %1810
    %1812 = vrot.lane.b32.xlu0 %v713, 63
    %v1813 = vpop.permute.xlu0 %1812
    %1814 = vrot.lane.b32.xlu0 %v714, 63
    %v1815 = vpop.permute.xlu0 %1814
    %1816 = vrot.lane.b32.xlu0 %v715, 63
    %v1817 = vpop.permute.xlu0 %1816
    %1818 = vrot.lane.b32.xlu0 %v716, 63
    %v1819 = vpop.permute.xlu0 %1818
    %v1820 = vsel %vm577, %v1817, %v1819
    %v1821 = vsel %vm577, %v1815, %v1817
    %v1822 = vsel %vm577, %v1813, %v1815
    %v1823 = vsel %vm577, %v1811, %v1813
    %v1824 = vsel %vm577, %v1809, %v1811
    %v1825 = vsel %vm577, %v1807, %v1809
    %v1826 = vsel %vm577, %v1819, %v1807
    %s1827 = sld [smem:[#allocation6 + $0x10]]
    %v1828 = vstv %s1827
    %v1829 = vmul.f32 %v1828, %v1825
    %v1830 = vmul.f32 %v1828, %v1824
    %v1831 = vmul.f32 %v1828, %v1823
    %v1832 = vmul.f32 %v1828, %v1822
    %v1833 = vmul.f32 %v1828, %v1821
    %v1834 = vmul.f32 %v1828, %v1820
    %v1835 = vmul.f32 %v1828, %v1826
    %v1836 = vadd.f32 %v1767, %v1829
    %v1837 = vadd.f32 %v1768, %v1830
    %v1838 = vadd.f32 %v1769, %v1831
    %v1839 = vadd.f32 %v1770, %v1832
    %v1840 = vadd.f32 %v1771, %v1833
    %v1841 = vadd.f32 %v1772, %v1834
    %v1842 = vadd.f32 %v1773, %v1835
    %s1843 = sld [smem:[#allocation6 + $0x2b]]
    %v1844 = vstv %s1843
    %v1845 = vmul.f32 %v1844, %v1825
    %v1846 = vmul.f32 %v1844, %v1824
    %v1847 = vmul.f32 %v1844, %v1823
    %v1848 = vmul.f32 %v1844, %v1822
    %v1849 = vmul.f32 %v1844, %v1821
    %v1850 = vmul.f32 %v1844, %v1820
    %v1851 = vmul.f32 %v1844, %v1826
    %v1852 = vadd.f32 %v1783, %v1845
    %v1853 = vadd.f32 %v1784, %v1846
    %v1854 = vadd.f32 %v1785, %v1847
    %v1855 = vadd.f32 %v1786, %v1848
    %v1856 = vadd.f32 %v1787, %v1849
    %v1857 = vadd.f32 %v1788, %v1850
    %v1858 = vadd.f32 %v1789, %v1851
    %s1859 = sld [smem:[#allocation6 + $0x46]]
    %v1860 = vstv %s1859
    %v1861 = vmul.f32 %v1860, %v1825
    %v1862 = vmul.f32 %v1860, %v1824
    %v1863 = vmul.f32 %v1860, %v1823
    %v1864 = vmul.f32 %v1860, %v1822
    %v1865 = vmul.f32 %v1860, %v1821
    %v1866 = vmul.f32 %v1860, %v1820
    %v1867 = vmul.f32 %v1860, %v1826
    %v1868 = vadd.f32 %v1799, %v1861
    %v1869 = vadd.f32 %v1800, %v1862
    %v1870 = vadd.f32 %v1801, %v1863
    %v1871 = vadd.f32 %v1802, %v1864
    %v1872 = vadd.f32 %v1803, %v1865
    %v1873 = vadd.f32 %v1804, %v1866
    %v1874 = vadd.f32 %v1805, %v1867
    %1875 = vrot.lane.b32.xlu0 %v710, 62
    %v1876 = vpop.permute.xlu0 %1875
    %1877 = vrot.lane.b32.xlu0 %v711, 62
    %v1878 = vpop.permute.xlu0 %1877
    %1879 = vrot.lane.b32.xlu0 %v712, 62
    %v1880 = vpop.permute.xlu0 %1879
    %1881 = vrot.lane.b32.xlu0 %v713, 62
    %v1882 = vpop.permute.xlu0 %1881
    %1883 = vrot.lane.b32.xlu0 %v714, 62
    %v1884 = vpop.permute.xlu0 %1883
    %1885 = vrot.lane.b32.xlu0 %v715, 62
    %v1886 = vpop.permute.xlu0 %1885
    %1887 = vrot.lane.b32.xlu0 %v716, 62
    %v1888 = vpop.permute.xlu0 %1887
    %v1889 = vsel %vm647, %v1886, %v1888
    %v1890 = vsel %vm647, %v1884, %v1886
    %v1891 = vsel %vm647, %v1882, %v1884
    %v1892 = vsel %vm647, %v1880, %v1882
    %v1893 = vsel %vm647, %v1878, %v1880
    %v1894 = vsel %vm647, %v1876, %v1878
    %v1895 = vsel %vm647, %v1888, %v1876
    %s1896 = sld [smem:[#allocation6 + $0x11]]
    %v1897 = vstv %s1896
    %v1898 = vmul.f32 %v1897, %v1894
    %v1899 = vmul.f32 %v1897, %v1893
    %v1900 = vmul.f32 %v1897, %v1892
    %v1901 = vmul.f32 %v1897, %v1891
    %v1902 = vmul.f32 %v1897, %v1890
    %v1903 = vmul.f32 %v1897, %v1889
    %v1904 = vmul.f32 %v1897, %v1895
    %v1905 = vadd.f32 %v1836, %v1898
    %v1906 = vadd.f32 %v1837, %v1899
    %v1907 = vadd.f32 %v1838, %v1900
    %v1908 = vadd.f32 %v1839, %v1901
    %v1909 = vadd.f32 %v1840, %v1902
    %v1910 = vadd.f32 %v1841, %v1903
    %v1911 = vadd.f32 %v1842, %v1904
    %s1912 = sld [smem:[#allocation6 + $0x2c]]
    %v1913 = vstv %s1912
    %v1914 = vmul.f32 %v1913, %v1894
    %v1915 = vmul.f32 %v1913, %v1893
    %v1916 = vmul.f32 %v1913, %v1892
    %v1917 = vmul.f32 %v1913, %v1891
    %v1918 = vmul.f32 %v1913, %v1890
    %v1919 = vmul.f32 %v1913, %v1889
    %v1920 = vmul.f32 %v1913, %v1895
    %v1921 = vadd.f32 %v1852, %v1914
    %v1922 = vadd.f32 %v1853, %v1915
    %v1923 = vadd.f32 %v1854, %v1916
    %v1924 = vadd.f32 %v1855, %v1917
    %v1925 = vadd.f32 %v1856, %v1918
    %v1926 = vadd.f32 %v1857, %v1919
    %v1927 = vadd.f32 %v1858, %v1920
    %s1928 = sld [smem:[#allocation6 + $0x47]]
    %v1929 = vstv %s1928
    %v1930 = vmul.f32 %v1929, %v1894
    %v1931 = vmul.f32 %v1929, %v1893
    %v1932 = vmul.f32 %v1929, %v1892
    %v1933 = vmul.f32 %v1929, %v1891
    %v1934 = vmul.f32 %v1929, %v1890
    %v1935 = vmul.f32 %v1929, %v1889
    %v1936 = vmul.f32 %v1929, %v1895
    %v1937 = vadd.f32 %v1868, %v1930
    %v1938 = vadd.f32 %v1869, %v1931
    %v1939 = vadd.f32 %v1870, %v1932
    %v1940 = vadd.f32 %v1871, %v1933
    %v1941 = vadd.f32 %v1872, %v1934
    %v1942 = vadd.f32 %v1873, %v1935
    %v1943 = vadd.f32 %v1874, %v1936
    %s1944 = sld [smem:[#allocation6 + $0x12]]
    %v1945 = vstv %s1944
    %v1946 = vmul.f32 %v1945, %v717
    %v1947 = vmul.f32 %v1945, %v718
    %v1948 = vmul.f32 %v1945, %v719
    %v1949 = vmul.f32 %v1945, %v720
    %v1950 = vmul.f32 %v1945, %v721
    %v1951 = vmul.f32 %v1945, %v722
    %v1952 = vmul.f32 %v1945, %v723
    %v1953 = vadd.f32 %v1905, %v1946
    %v1954 = vadd.f32 %v1906, %v1947
    %v1955 = vadd.f32 %v1907, %v1948
    %v1956 = vadd.f32 %v1908, %v1949
    %v1957 = vadd.f32 %v1909, %v1950
    %v1958 = vadd.f32 %v1910, %v1951
    %v1959 = vadd.f32 %v1911, %v1952
    %s1960 = sld [smem:[#allocation6 + $0x2d]]
    %v1961 = vstv %s1960
    %v1962 = vmul.f32 %v1961, %v717
    %v1963 = vmul.f32 %v1961, %v718
    %v1964 = vmul.f32 %v1961, %v719
    %v1965 = vmul.f32 %v1961, %v720
    %v1966 = vmul.f32 %v1961, %v721
    %v1967 = vmul.f32 %v1961, %v722
    %v1968 = vmul.f32 %v1961, %v723
    %v1969 = vadd.f32 %v1921, %v1962
    %v1970 = vadd.f32 %v1922, %v1963
    %v1971 = vadd.f32 %v1923, %v1964
    %v1972 = vadd.f32 %v1924, %v1965
    %v1973 = vadd.f32 %v1925, %v1966
    %v1974 = vadd.f32 %v1926, %v1967
    %v1975 = vadd.f32 %v1927, %v1968
    %s1976 = sld [smem:[#allocation6 + $0x48]]
    %v1977 = vstv %s1976
    %v1978 = vmul.f32 %v1977, %v717
    %v1979 = vmul.f32 %v1977, %v718
    %v1980 = vmul.f32 %v1977, %v719
    %v1981 = vmul.f32 %v1977, %v720
    %v1982 = vmul.f32 %v1977, %v721
    %v1983 = vmul.f32 %v1977, %v722
    %v1984 = vmul.f32 %v1977, %v723
    %v1985 = vadd.f32 %v1937, %v1978
    %v1986 = vadd.f32 %v1938, %v1979
    %v1987 = vadd.f32 %v1939, %v1980
    %v1988 = vadd.f32 %v1940, %v1981
    %v1989 = vadd.f32 %v1941, %v1982
    %v1990 = vadd.f32 %v1942, %v1983
    %v1991 = vadd.f32 %v1943, %v1984
    %1992 = vrot.lane.b32.xlu0 %v717, 127
    %v1993 = vpop.permute.xlu0 %1992
    %1994 = vrot.lane.b32.xlu0 %v718, 127
    %v1995 = vpop.permute.xlu0 %1994
    %1996 = vrot.lane.b32.xlu0 %v719, 127
    %v1997 = vpop.permute.xlu0 %1996
    %1998 = vrot.lane.b32.xlu0 %v720, 127
    %v1999 = vpop.permute.xlu0 %1998
    %2000 = vrot.lane.b32.xlu0 %v721, 127
    %v2001 = vpop.permute.xlu0 %2000
    %2002 = vrot.lane.b32.xlu0 %v722, 127
    %v2003 = vpop.permute.xlu0 %2002
    %2004 = vrot.lane.b32.xlu0 %v723, 127
    %v2005 = vpop.permute.xlu0 %2004
    %v2006 = vsel %vm157, %v2003, %v2005
    %v2007 = vsel %vm157, %v2001, %v2003
    %v2008 = vsel %vm157, %v1999, %v2001
    %v2009 = vsel %vm157, %v1997, %v1999
    %v2010 = vsel %vm157, %v1995, %v1997
    %v2011 = vsel %vm157, %v1993, %v1995
    %v2012 = vsel %vm157, %v2005, %v1993
    %s2013 = sld [smem:[#allocation6 + $0x13]]
    %v2014 = vstv %s2013
    %v2015 = vmul.f32 %v2014, %v2011
    %v2016 = vmul.f32 %v2014, %v2010
    %v2017 = vmul.f32 %v2014, %v2009
    %v2018 = vmul.f32 %v2014, %v2008
    %v2019 = vmul.f32 %v2014, %v2007
    %v2020 = vmul.f32 %v2014, %v2006
    %v2021 = vmul.f32 %v2014, %v2012
    %v2022 = vadd.f32 %v1953, %v2015
    %v2023 = vadd.f32 %v1954, %v2016
    %v2024 = vadd.f32 %v1955, %v2017
    %v2025 = vadd.f32 %v1956, %v2018
    %v2026 = vadd.f32 %v1957, %v2019
    %v2027 = vadd.f32 %v1958, %v2020
    %v2028 = vadd.f32 %v1959, %v2021
    %s2029 = sld [smem:[#allocation6 + $0x2e]]
    %v2030 = vstv %s2029
    %v2031 = vmul.f32 %v2030, %v2011
    %v2032 = vmul.f32 %v2030, %v2010
    %v2033 = vmul.f32 %v2030, %v2009
    %v2034 = vmul.f32 %v2030, %v2008
    %v2035 = vmul.f32 %v2030, %v2007
    %v2036 = vmul.f32 %v2030, %v2006
    %v2037 = vmul.f32 %v2030, %v2012
    %v2038 = vadd.f32 %v1969, %v2031
    %v2039 = vadd.f32 %v1970, %v2032
    %v2040 = vadd.f32 %v1971, %v2033
    %v2041 = vadd.f32 %v1972, %v2034
    %v2042 = vadd.f32 %v1973, %v2035
    %v2043 = vadd.f32 %v1974, %v2036
    %v2044 = vadd.f32 %v1975, %v2037
    %s2045 = sld [smem:[#allocation6 + $0x49]]
    %v2046 = vstv %s2045
    %v2047 = vmul.f32 %v2046, %v2011
    %v2048 = vmul.f32 %v2046, %v2010
    %v2049 = vmul.f32 %v2046, %v2009
    %v2050 = vmul.f32 %v2046, %v2008
    %v2051 = vmul.f32 %v2046, %v2007
    %v2052 = vmul.f32 %v2046, %v2006
    %v2053 = vmul.f32 %v2046, %v2012
    %v2054 = vadd.f32 %v1985, %v2047
    %v2055 = vadd.f32 %v1986, %v2048
    %v2056 = vadd.f32 %v1987, %v2049
    %v2057 = vadd.f32 %v1988, %v2050
    %v2058 = vadd.f32 %v1989, %v2051
    %v2059 = vadd.f32 %v1990, %v2052
    %v2060 = vadd.f32 %v1991, %v2053
    %2061 = vrot.lane.b32.xlu0 %v717, 126
    %v2062 = vpop.permute.xlu0 %2061
    %2063 = vrot.lane.b32.xlu0 %v718, 126
    %v2064 = vpop.permute.xlu0 %2063
    %2065 = vrot.lane.b32.xlu0 %v719, 126
    %v2066 = vpop.permute.xlu0 %2065
    %2067 = vrot.lane.b32.xlu0 %v720, 126
    %v2068 = vpop.permute.xlu0 %2067
    %2069 = vrot.lane.b32.xlu0 %v721, 126
    %v2070 = vpop.permute.xlu0 %2069
    %2071 = vrot.lane.b32.xlu0 %v722, 126
    %v2072 = vpop.permute.xlu0 %2071
    %2073 = vrot.lane.b32.xlu0 %v723, 126
    %v2074 = vpop.permute.xlu0 %2073
    %v2075 = vsel %vm227, %v2072, %v2074
    %v2076 = vsel %vm227, %v2070, %v2072
    %v2077 = vsel %vm227, %v2068, %v2070
    %v2078 = vsel %vm227, %v2066, %v2068
    %v2079 = vsel %vm227, %v2064, %v2066
    %v2080 = vsel %vm227, %v2062, %v2064
    %v2081 = vsel %vm227, %v2074, %v2062
    %s2082 = sld [smem:[#allocation6 + $0x14]]
    %v2083 = vstv %s2082
    %v2084 = vmul.f32 %v2083, %v2080
    %v2085 = vmul.f32 %v2083, %v2079
    %v2086 = vmul.f32 %v2083, %v2078
    %v2087 = vmul.f32 %v2083, %v2077
    %v2088 = vmul.f32 %v2083, %v2076
    %v2089 = vmul.f32 %v2083, %v2075
    %v2090 = vmul.f32 %v2083, %v2081
    %v2091 = vadd.f32 %v2022, %v2084
    %v2092 = vadd.f32 %v2023, %v2085
    %v2093 = vadd.f32 %v2024, %v2086
    %v2094 = vadd.f32 %v2025, %v2087
    %v2095 = vadd.f32 %v2026, %v2088
    %v2096 = vadd.f32 %v2027, %v2089
    %v2097 = vadd.f32 %v2028, %v2090
    %s2098 = sld [smem:[#allocation6 + $0x2f]]
    %v2099 = vstv %s2098
    %v2100 = vmul.f32 %v2099, %v2080
    %v2101 = vmul.f32 %v2099, %v2079
    %v2102 = vmul.f32 %v2099, %v2078
    %v2103 = vmul.f32 %v2099, %v2077
    %v2104 = vmul.f32 %v2099, %v2076
    %v2105 = vmul.f32 %v2099, %v2075
    %v2106 = vmul.f32 %v2099, %v2081
    %v2107 = vadd.f32 %v2038, %v2100
    %v2108 = vadd.f32 %v2039, %v2101
    %v2109 = vadd.f32 %v2040, %v2102
    %v2110 = vadd.f32 %v2041, %v2103
    %v2111 = vadd.f32 %v2042, %v2104
    %v2112 = vadd.f32 %v2043, %v2105
    %v2113 = vadd.f32 %v2044, %v2106
    %s2114 = sld [smem:[#allocation6 + $0x4a]]
    %v2115 = vstv %s2114
    %v2116 = vmul.f32 %v2115, %v2080
    %v2117 = vmul.f32 %v2115, %v2079
    %v2118 = vmul.f32 %v2115, %v2078
    %v2119 = vmul.f32 %v2115, %v2077
    %v2120 = vmul.f32 %v2115, %v2076
    %v2121 = vmul.f32 %v2115, %v2075
    %v2122 = vmul.f32 %v2115, %v2081
    %v2123 = vadd.f32 %v2054, %v2116
    %v2124 = vadd.f32 %v2055, %v2117
    %v2125 = vadd.f32 %v2056, %v2118
    %v2126 = vadd.f32 %v2057, %v2119
    %v2127 = vadd.f32 %v2058, %v2120
    %v2128 = vadd.f32 %v2059, %v2121
    %v2129 = vadd.f32 %v2060, %v2122
    %2130 = vrot.lane.b32.xlu0 %v717, 96
    %v2131 = vpop.permute.xlu0 %2130
    %2132 = vrot.lane.b32.xlu0 %v718, 96
    %v2133 = vpop.permute.xlu0 %2132
    %2134 = vrot.lane.b32.xlu0 %v719, 96
    %v2135 = vpop.permute.xlu0 %2134
    %2136 = vrot.lane.b32.xlu0 %v720, 96
    %v2137 = vpop.permute.xlu0 %2136
    %2138 = vrot.lane.b32.xlu0 %v721, 96
    %v2139 = vpop.permute.xlu0 %2138
    %2140 = vrot.lane.b32.xlu0 %v722, 96
    %v2141 = vpop.permute.xlu0 %2140
    %2142 = vrot.lane.b32.xlu0 %v723, 96
    %v2143 = vpop.permute.xlu0 %2142
    %v2144 = vsel %vm297, %v2141, %v2143
    %v2145 = vsel %vm297, %v2139, %v2141
    %v2146 = vsel %vm297, %v2137, %v2139
    %v2147 = vsel %vm297, %v2135, %v2137
    %v2148 = vsel %vm297, %v2133, %v2135
    %v2149 = vsel %vm297, %v2131, %v2133
    %v2150 = vsel %vm297, %v2143, %v2131
    %s2151 = sld [smem:[#allocation6 + $0x15]]
    %v2152 = vstv %s2151
    %v2153 = vmul.f32 %v2152, %v2149
    %v2154 = vmul.f32 %v2152, %v2148
    %v2155 = vmul.f32 %v2152, %v2147
    %v2156 = vmul.f32 %v2152, %v2146
    %v2157 = vmul.f32 %v2152, %v2145
    %v2158 = vmul.f32 %v2152, %v2144
    %v2159 = vmul.f32 %v2152, %v2150
    %v2160 = vadd.f32 %v2091, %v2153
    %v2161 = vadd.f32 %v2092, %v2154
    %v2162 = vadd.f32 %v2093, %v2155
    %v2163 = vadd.f32 %v2094, %v2156
    %v2164 = vadd.f32 %v2095, %v2157
    %v2165 = vadd.f32 %v2096, %v2158
    %v2166 = vadd.f32 %v2097, %v2159
    %s2167 = sld [smem:[#allocation6 + $0x30]]
    %v2168 = vstv %s2167
    %v2169 = vmul.f32 %v2168, %v2149
    %v2170 = vmul.f32 %v2168, %v2148
    %v2171 = vmul.f32 %v2168, %v2147
    %v2172 = vmul.f32 %v2168, %v2146
    %v2173 = vmul.f32 %v2168, %v2145
    %v2174 = vmul.f32 %v2168, %v2144
    %v2175 = vmul.f32 %v2168, %v2150
    %v2176 = vadd.f32 %v2107, %v2169
    %v2177 = vadd.f32 %v2108, %v2170
    %v2178 = vadd.f32 %v2109, %v2171
    %v2179 = vadd.f32 %v2110, %v2172
    %v2180 = vadd.f32 %v2111, %v2173
    %v2181 = vadd.f32 %v2112, %v2174
    %v2182 = vadd.f32 %v2113, %v2175
    %s2183 = sld [smem:[#allocation6 + $0x4b]]
    %v2184 = vstv %s2183
    %v2185 = vmul.f32 %v2184, %v2149
    %v2186 = vmul.f32 %v2184, %v2148
    %v2187 = vmul.f32 %v2184, %v2147
    %v2188 = vmul.f32 %v2184, %v2146
    %v2189 = vmul.f32 %v2184, %v2145
    %v2190 = vmul.f32 %v2184, %v2144
    %v2191 = vmul.f32 %v2184, %v2150
    %v2192 = vadd.f32 %v2123, %v2185
    %v2193 = vadd.f32 %v2124, %v2186
    %v2194 = vadd.f32 %v2125, %v2187
    %v2195 = vadd.f32 %v2126, %v2188
    %v2196 = vadd.f32 %v2127, %v2189
    %v2197 = vadd.f32 %v2128, %v2190
    %v2198 = vadd.f32 %v2129, %v2191
    %2199 = vrot.lane.b32.xlu0 %v717, 95
    %v2200 = vpop.permute.xlu0 %2199
    %2201 = vrot.lane.b32.xlu0 %v718, 95
    %v2202 = vpop.permute.xlu0 %2201
    %2203 = vrot.lane.b32.xlu0 %v719, 95
    %v2204 = vpop.permute.xlu0 %2203
    %2205 = vrot.lane.b32.xlu0 %v720, 95
    %v2206 = vpop.permute.xlu0 %2205
    %2207 = vrot.lane.b32.xlu0 %v721, 95
    %v2208 = vpop.permute.xlu0 %2207
    %2209 = vrot.lane.b32.xlu0 %v722, 95
    %v2210 = vpop.permute.xlu0 %2209
    %2211 = vrot.lane.b32.xlu0 %v723, 95
    %v2212 = vpop.permute.xlu0 %2211
    %v2213 = vsel %vm367, %v2210, %v2212
    %v2214 = vsel %vm367, %v2208, %v2210
    %v2215 = vsel %vm367, %v2206, %v2208
    %v2216 = vsel %vm367, %v2204, %v2206
    %v2217 = vsel %vm367, %v2202, %v2204
    %v2218 = vsel %vm367, %v2200, %v2202
    %v2219 = vsel %vm367, %v2212, %v2200
    %s2220 = sld [smem:[#allocation6 + $0x16]]
    %v2221 = vstv %s2220
    %v2222 = vmul.f32 %v2221, %v2218
    %v2223 = vmul.f32 %v2221, %v2217
    %v2224 = vmul.f32 %v2221, %v2216
    %v2225 = vmul.f32 %v2221, %v2215
    %v2226 = vmul.f32 %v2221, %v2214
    %v2227 = vmul.f32 %v2221, %v2213
    %v2228 = vmul.f32 %v2221, %v2219
    %v2229 = vadd.f32 %v2160, %v2222
    %v2230 = vadd.f32 %v2161, %v2223
    %v2231 = vadd.f32 %v2162, %v2224
    %v2232 = vadd.f32 %v2163, %v2225
    %v2233 = vadd.f32 %v2164, %v2226
    %v2234 = vadd.f32 %v2165, %v2227
    %v2235 = vadd.f32 %v2166, %v2228
    %s2236 = sld [smem:[#allocation6 + $0x31]]
    %v2237 = vstv %s2236
    %v2238 = vmul.f32 %v2237, %v2218
    %v2239 = vmul.f32 %v2237, %v2217
    %v2240 = vmul.f32 %v2237, %v2216
    %v2241 = vmul.f32 %v2237, %v2215
    %v2242 = vmul.f32 %v2237, %v2214
    %v2243 = vmul.f32 %v2237, %v2213
    %v2244 = vmul.f32 %v2237, %v2219
    %v2245 = vadd.f32 %v2176, %v2238
    %v2246 = vadd.f32 %v2177, %v2239
    %v2247 = vadd.f32 %v2178, %v2240
    %v2248 = vadd.f32 %v2179, %v2241
    %v2249 = vadd.f32 %v2180, %v2242
    %v2250 = vadd.f32 %v2181, %v2243
    %v2251 = vadd.f32 %v2182, %v2244
    %s2252 = sld [smem:[#allocation6 + $0x4c]]
    %v2253 = vstv %s2252
    %v2254 = vmul.f32 %v2253, %v2218
    %v2255 = vmul.f32 %v2253, %v2217
    %v2256 = vmul.f32 %v2253, %v2216
    %v2257 = vmul.f32 %v2253, %v2215
    %v2258 = vmul.f32 %v2253, %v2214
    %v2259 = vmul.f32 %v2253, %v2213
    %v2260 = vmul.f32 %v2253, %v2219
    %v2261 = vadd.f32 %v2192, %v2254
    %v2262 = vadd.f32 %v2193, %v2255
    %v2263 = vadd.f32 %v2194, %v2256
    %v2264 = vadd.f32 %v2195, %v2257
    %v2265 = vadd.f32 %v2196, %v2258
    %v2266 = vadd.f32 %v2197, %v2259
    %v2267 = vadd.f32 %v2198, %v2260
    %2268 = vrot.lane.b32.xlu0 %v717, 94
    %v2269 = vpop.permute.xlu0 %2268
    %2270 = vrot.lane.b32.xlu0 %v718, 94
    %v2271 = vpop.permute.xlu0 %2270
    %2272 = vrot.lane.b32.xlu0 %v719, 94
    %v2273 = vpop.permute.xlu0 %2272
    %2274 = vrot.lane.b32.xlu0 %v720, 94
    %v2275 = vpop.permute.xlu0 %2274
    %2276 = vrot.lane.b32.xlu0 %v721, 94
    %v2277 = vpop.permute.xlu0 %2276
    %2278 = vrot.lane.b32.xlu0 %v722, 94
    %v2279 = vpop.permute.xlu0 %2278
    %2280 = vrot.lane.b32.xlu0 %v723, 94
    %v2281 = vpop.permute.xlu0 %2280
    %v2282 = vsel %vm437, %v2279, %v2281
    %v2283 = vsel %vm437, %v2277, %v2279
    %v2284 = vsel %vm437, %v2275, %v2277
    %v2285 = vsel %vm437, %v2273, %v2275
    %v2286 = vsel %vm437, %v2271, %v2273
    %v2287 = vsel %vm437, %v2269, %v2271
    %v2288 = vsel %vm437, %v2281, %v2269
    %s2289 = sld [smem:[#allocation6 + $0x17]]
    %v2290 = vstv %s2289
    %v2291 = vmul.f32 %v2290, %v2287
    %v2292 = vmul.f32 %v2290, %v2286
    %v2293 = vmul.f32 %v2290, %v2285
    %v2294 = vmul.f32 %v2290, %v2284
    %v2295 = vmul.f32 %v2290, %v2283
    %v2296 = vmul.f32 %v2290, %v2282
    %v2297 = vmul.f32 %v2290, %v2288
    %v2298 = vadd.f32 %v2229, %v2291
    %v2299 = vadd.f32 %v2230, %v2292
    %v2300 = vadd.f32 %v2231, %v2293
    %v2301 = vadd.f32 %v2232, %v2294
    %v2302 = vadd.f32 %v2233, %v2295
    %v2303 = vadd.f32 %v2234, %v2296
    %v2304 = vadd.f32 %v2235, %v2297
    %s2305 = sld [smem:[#allocation6 + $0x32]]
    %v2306 = vstv %s2305
    %v2307 = vmul.f32 %v2306, %v2287
    %v2308 = vmul.f32 %v2306, %v2286
    %v2309 = vmul.f32 %v2306, %v2285
    %v2310 = vmul.f32 %v2306, %v2284
    %v2311 = vmul.f32 %v2306, %v2283
    %v2312 = vmul.f32 %v2306, %v2282
    %v2313 = vmul.f32 %v2306, %v2288
    %v2314 = vadd.f32 %v2245, %v2307
    %v2315 = vadd.f32 %v2246, %v2308
    %v2316 = vadd.f32 %v2247, %v2309
    %v2317 = vadd.f32 %v2248, %v2310
    %v2318 = vadd.f32 %v2249, %v2311
    %v2319 = vadd.f32 %v2250, %v2312
    %v2320 = vadd.f32 %v2251, %v2313
    %s2321 = sld [smem:[#allocation6 + $0x4d]]
    %v2322 = vstv %s2321
    %v2323 = vmul.f32 %v2322, %v2287
    %v2324 = vmul.f32 %v2322, %v2286
    %v2325 = vmul.f32 %v2322, %v2285
    %v2326 = vmul.f32 %v2322, %v2284
    %v2327 = vmul.f32 %v2322, %v2283
    %v2328 = vmul.f32 %v2322, %v2282
    %v2329 = vmul.f32 %v2322, %v2288
    %v2330 = vadd.f32 %v2261, %v2323
    %v2331 = vadd.f32 %v2262, %v2324
    %v2332 = vadd.f32 %v2263, %v2325
    %v2333 = vadd.f32 %v2264, %v2326
    %v2334 = vadd.f32 %v2265, %v2327
    %v2335 = vadd.f32 %v2266, %v2328
    %v2336 = vadd.f32 %v2267, %v2329
    %2337 = vrot.lane.b32.xlu0 %v717, 64
    %v2338 = vpop.permute.xlu0 %2337
    %2339 = vrot.lane.b32.xlu0 %v718, 64
    %v2340 = vpop.permute.xlu0 %2339
    %2341 = vrot.lane.b32.xlu0 %v719, 64
    %v2342 = vpop.permute.xlu0 %2341
    %2343 = vrot.lane.b32.xlu0 %v720, 64
    %v2344 = vpop.permute.xlu0 %2343
    %2345 = vrot.lane.b32.xlu0 %v721, 64
    %v2346 = vpop.permute.xlu0 %2345
    %2347 = vrot.lane.b32.xlu0 %v722, 64
    %v2348 = vpop.permute.xlu0 %2347
    %2349 = vrot.lane.b32.xlu0 %v723, 64
    %v2350 = vpop.permute.xlu0 %2349
    %v2351 = vsel %vm507, %v2348, %v2350
    %v2352 = vsel %vm507, %v2346, %v2348
    %v2353 = vsel %vm507, %v2344, %v2346
    %v2354 = vsel %vm507, %v2342, %v2344
    %v2355 = vsel %vm507, %v2340, %v2342
    %v2356 = vsel %vm507, %v2338, %v2340
    %v2357 = vsel %vm507, %v2350, %v2338
    %s2358 = sld [smem:[#allocation6 + $0x18]]
    %v2359 = vstv %s2358
    %v2360 = vmul.f32 %v2359, %v2356
    %v2361 = vmul.f32 %v2359, %v2355
    %v2362 = vmul.f32 %v2359, %v2354
    %v2363 = vmul.f32 %v2359, %v2353
    %v2364 = vmul.f32 %v2359, %v2352
    %v2365 = vmul.f32 %v2359, %v2351
    %v2366 = vmul.f32 %v2359, %v2357
    %v2367 = vadd.f32 %v2298, %v2360
    %v2368 = vadd.f32 %v2299, %v2361
    %v2369 = vadd.f32 %v2300, %v2362
    %v2370 = vadd.f32 %v2301, %v2363
    %v2371 = vadd.f32 %v2302, %v2364
    %v2372 = vadd.f32 %v2303, %v2365
    %v2373 = vadd.f32 %v2304, %v2366
    %s2374 = sld [smem:[#allocation6 + $0x33]]
    %v2375 = vstv %s2374
    %v2376 = vmul.f32 %v2375, %v2356
    %v2377 = vmul.f32 %v2375, %v2355
    %v2378 = vmul.f32 %v2375, %v2354
    %v2379 = vmul.f32 %v2375, %v2353
    %v2380 = vmul.f32 %v2375, %v2352
    %v2381 = vmul.f32 %v2375, %v2351
    %v2382 = vmul.f32 %v2375, %v2357
    %v2383 = vadd.f32 %v2314, %v2376
    %v2384 = vadd.f32 %v2315, %v2377
    %v2385 = vadd.f32 %v2316, %v2378
    %v2386 = vadd.f32 %v2317, %v2379
    %v2387 = vadd.f32 %v2318, %v2380
    %v2388 = vadd.f32 %v2319, %v2381
    %v2389 = vadd.f32 %v2320, %v2382
    %s2390 = sld [smem:[#allocation6 + $0x4e]]
    %v2391 = vstv %s2390
    %v2392 = vmul.f32 %v2391, %v2356
    %v2393 = vmul.f32 %v2391, %v2355
    %v2394 = vmul.f32 %v2391, %v2354
    %v2395 = vmul.f32 %v2391, %v2353
    %v2396 = vmul.f32 %v2391, %v2352
    %v2397 = vmul.f32 %v2391, %v2351
    %v2398 = vmul.f32 %v2391, %v2357
    %v2399 = vadd.f32 %v2330, %v2392
    %v2400 = vadd.f32 %v2331, %v2393
    %v2401 = vadd.f32 %v2332, %v2394
    %v2402 = vadd.f32 %v2333, %v2395
    %v2403 = vadd.f32 %v2334, %v2396
    %v2404 = vadd.f32 %v2335, %v2397
    %v2405 = vadd.f32 %v2336, %v2398
    %2406 = vrot.lane.b32.xlu0 %v717, 63
    %v2407 = vpop.permute.xlu0 %2406
    %2408 = vrot.lane.b32.xlu0 %v718, 63
    %v2409 = vpop.permute.xlu0 %2408
    %2410 = vrot.lane.b32.xlu0 %v719, 63
    %v2411 = vpop.permute.xlu0 %2410
    %2412 = vrot.lane.b32.xlu0 %v720, 63
    %v2413 = vpop.permute.xlu0 %2412
    %2414 = vrot.lane.b32.xlu0 %v721, 63
    %v2415 = vpop.permute.xlu0 %2414
    %2416 = vrot.lane.b32.xlu0 %v722, 63
    %v2417 = vpop.permute.xlu0 %2416
    %2418 = vrot.lane.b32.xlu0 %v723, 63
    %v2419 = vpop.permute.xlu0 %2418
    %v2420 = vsel %vm577, %v2417, %v2419
    %v2421 = vsel %vm577, %v2415, %v2417
    %v2422 = vsel %vm577, %v2413, %v2415
    %v2423 = vsel %vm577, %v2411, %v2413
    %v2424 = vsel %vm577, %v2409, %v2411
    %v2425 = vsel %vm577, %v2407, %v2409
    %v2426 = vsel %vm577, %v2419, %v2407
    %s2427 = sld [smem:[#allocation6 + $0x19]]
    %v2428 = vstv %s2427
    %v2429 = vmul.f32 %v2428, %v2425
    %v2430 = vmul.f32 %v2428, %v2424
    %v2431 = vmul.f32 %v2428, %v2423
    %v2432 = vmul.f32 %v2428, %v2422
    %v2433 = vmul.f32 %v2428, %v2421
    %v2434 = vmul.f32 %v2428, %v2420
    %v2435 = vmul.f32 %v2428, %v2426
    %v2436 = vadd.f32 %v2367, %v2429
    %v2437 = vadd.f32 %v2368, %v2430
    %v2438 = vadd.f32 %v2369, %v2431
    %v2439 = vadd.f32 %v2370, %v2432
    %v2440 = vadd.f32 %v2371, %v2433
    %v2441 = vadd.f32 %v2372, %v2434
    %v2442 = vadd.f32 %v2373, %v2435
    %s2443 = sld [smem:[#allocation6 + $0x34]]
    %v2444 = vstv %s2443
    %v2445 = vmul.f32 %v2444, %v2425
    %v2446 = vmul.f32 %v2444, %v2424
    %v2447 = vmul.f32 %v2444, %v2423
    %v2448 = vmul.f32 %v2444, %v2422
    %v2449 = vmul.f32 %v2444, %v2421
    %v2450 = vmul.f32 %v2444, %v2420
    %v2451 = vmul.f32 %v2444, %v2426
    %v2452 = vadd.f32 %v2383, %v2445
    %v2453 = vadd.f32 %v2384, %v2446
    %v2454 = vadd.f32 %v2385, %v2447
    %v2455 = vadd.f32 %v2386, %v2448
    %v2456 = vadd.f32 %v2387, %v2449
    %v2457 = vadd.f32 %v2388, %v2450
    %v2458 = vadd.f32 %v2389, %v2451
    %s2459 = sld [smem:[#allocation6 + $0x4f]]
    %v2460 = vstv %s2459
    %v2461 = vmul.f32 %v2460, %v2425
    %v2462 = vmul.f32 %v2460, %v2424
    %v2463 = vmul.f32 %v2460, %v2423
    %v2464 = vmul.f32 %v2460, %v2422
    %v2465 = vmul.f32 %v2460, %v2421
    %v2466 = vmul.f32 %v2460, %v2420
    %v2467 = vmul.f32 %v2460, %v2426
    %v2468 = vadd.f32 %v2399, %v2461
    %v2469 = vadd.f32 %v2400, %v2462
    %v2470 = vadd.f32 %v2401, %v2463
    %v2471 = vadd.f32 %v2402, %v2464
    %v2472 = vadd.f32 %v2403, %v2465
    %v2473 = vadd.f32 %v2404, %v2466
    %v2474 = vadd.f32 %v2405, %v2467
    %2475 = vrot.lane.b32.xlu0 %v717, 62
    %v2476 = vpop.permute.xlu0 %2475
    %2477 = vrot.lane.b32.xlu0 %v718, 62
    %v2478 = vpop.permute.xlu0 %2477
    %2479 = vrot.lane.b32.xlu0 %v719, 62
    %v2480 = vpop.permute.xlu0 %2479
    %2481 = vrot.lane.b32.xlu0 %v720, 62
    %v2482 = vpop.permute.xlu0 %2481
    %2483 = vrot.lane.b32.xlu0 %v721, 62
    %v2484 = vpop.permute.xlu0 %2483
    %2485 = vrot.lane.b32.xlu0 %v722, 62
    %v2486 = vpop.permute.xlu0 %2485
    %2487 = vrot.lane.b32.xlu0 %v723, 62
    %v2488 = vpop.permute.xlu0 %2487
    %v2489 = vsel %vm647, %v2486, %v2488
    %v2490 = vsel %vm647, %v2484, %v2486
    %v2491 = vsel %vm647, %v2482, %v2484
    %v2492 = vsel %vm647, %v2480, %v2482
    %v2493 = vsel %vm647, %v2478, %v2480
    %v2494 = vsel %vm647, %v2476, %v2478
    %v2495 = vsel %vm647, %v2488, %v2476
    %s2496 = sld [smem:[#allocation6 + $0x1a]]
    %v2497 = vstv %s2496
    %v2498 = vmul.f32 %v2497, %v2494
    %v2499 = vmul.f32 %v2497, %v2493
    %v2500 = vmul.f32 %v2497, %v2492
    %v2501 = vmul.f32 %v2497, %v2491
    %v2502 = vmul.f32 %v2497, %v2490
    %v2503 = vmul.f32 %v2497, %v2489
    %v2504 = vmul.f32 %v2497, %v2495
    %v2505 = vadd.f32 %v2436, %v2498
    %v2506 = vadd.f32 %v2437, %v2499
    %v2507 = vadd.f32 %v2438, %v2500
    %v2508 = vadd.f32 %v2439, %v2501
    %v2509 = vadd.f32 %v2440, %v2502
    %v2510 = vadd.f32 %v2441, %v2503
    %v2511 = vadd.f32 %v2442, %v2504
    %s2512 = sld [smem:[#allocation6 + $0x35]]
    %v2513 = vstv %s2512
    %v2514 = vmul.f32 %v2513, %v2494
    %v2515 = vmul.f32 %v2513, %v2493
    %v2516 = vmul.f32 %v2513, %v2492
    %v2517 = vmul.f32 %v2513, %v2491
    %v2518 = vmul.f32 %v2513, %v2490
    %v2519 = vmul.f32 %v2513, %v2489
    %v2520 = vmul.f32 %v2513, %v2495
    %v2521 = vadd.f32 %v2452, %v2514
    %v2522 = vadd.f32 %v2453, %v2515
    %v2523 = vadd.f32 %v2454, %v2516
    %v2524 = vadd.f32 %v2455, %v2517
    %v2525 = vadd.f32 %v2456, %v2518
    %v2526 = vadd.f32 %v2457, %v2519
    %v2527 = vadd.f32 %v2458, %v2520
    %s2528 = sld [smem:[#allocation6 + $0x50]]
    %v2529 = vstv %s2528
    %v2530 = vmul.f32 %v2529, %v2494
    %v2531 = vmul.f32 %v2529, %v2493
    %v2532 = vmul.f32 %v2529, %v2492
    %v2533 = vmul.f32 %v2529, %v2491
    %v2534 = vmul.f32 %v2529, %v2490
    %v2535 = vmul.f32 %v2529, %v2489
    %v2536 = vmul.f32 %v2529, %v2495
    %v2537 = vadd.f32 %v2468, %v2530
    %v2538 = vadd.f32 %v2469, %v2531
    %v2539 = vadd.f32 %v2470, %v2532
    %v2540 = vadd.f32 %v2471, %v2533
    %v2541 = vadd.f32 %v2472, %v2534
    %v2542 = vadd.f32 %v2473, %v2535
    %v2543 = vadd.f32 %v2474, %v2536
    %v2544 = vmax.f32 %v2505, 0.0
    %v2545 = vmax.f32 %v2506, 0.0
    %v2546 = vmax.f32 %v2507, 0.0
    %v2547 = vmax.f32 %v2508, 0.0
    %v2548 = vmax.f32 %v2509, 0.0
    %v2549 = vmax.f32 %v2510, 0.0
    %v2550 = vmax.f32 %v2511, 0.0
    %v2551 = vld [vmem:[%s5] sm:$0xff]
    %v2552 = vld [vmem:[%s5 + $0x8] sm:$0xff]
    %v2553 = vld [vmem:[%s5 + $0x10] sm:$0xff]
    %v2554 = vld [vmem:[%s5 + $0x18] sm:$0xff]
    %v2555 = vld [vmem:[%s5 + $0x20] sm:$0xff]
    %v2556 = vld [vmem:[%s5 + $0x28] sm:$0xff]
    %v2557 = vld [vmem:[%s5 + $0x30] sm:$0xff]
    %v2558 = vld [vmem:[%s5 + $0x38] sm:$0xff]
    %v2559 = vld [vmem:[%s5 + $0x40] sm:$0xff]
    %v2560 = vld [vmem:[%s5 + $0x48] sm:$0xff]
    %v2561 = vld [vmem:[%s5 + $0x50] sm:$0xff]
    %v2562 = vld [vmem:[%s5 + $0x58] sm:$0xff]
    %v2563 = vld [vmem:[%s5 + $0x60] sm:$0xff]
    %v2564 = vld [vmem:[%s5 + $0x68] sm:$0xff]
    %v2565 = vld [vmem:[%s5 + $0x70] sm:$0xff]
    %v2566 = vld [vmem:[%s5 + $0x78] sm:$0xff]
    %v2567 = vld [vmem:[%s5 + $0x80] sm:$0xff]
    %v2568 = vld [vmem:[%s5 + $0x88] sm:$0xff]
    %v2569 = vld [vmem:[%s5 + $0x90] sm:$0xff]
    %v2570 = vld [vmem:[%s5 + $0x98] sm:$0xff]
    %v2571 = vld [vmem:[%s5 + $0xa0] sm:$0xff]
    %v2572 = vld [vmem:[%s5 + $0xa8] sm:$0xff]
    %v2573 = vld [vmem:[%s5 + $0xb0] sm:$0xff]
    %v2574 = vld [vmem:[%s5 + $0xb8] sm:$0xff]
    %v2575 = vld [vmem:[%s5 + $0xc0] sm:$0xff]
    %v2576 = vld [vmem:[%s5 + $0xc8] sm:$0xff]
    %v2577 = vld [vmem:[%s5 + $0xd0] sm:$0xff]
    %v2578 = vld [vmem:[%s5 + $0xd8] sm:$0xff]
    %v2579 = vld [vmem:[%s5 + $0xe0] sm:$0xff]
    %v2580 = vld [vmem:[%s5 + $0xe8] sm:$0xff]
    %v2581 = vld [vmem:[%s5 + $0xf0] sm:$0xff]
    %v2582 = vld [vmem:[%s5 + $0xf8] sm:$0xff]
    %v2583 = vld [vmem:[%s5 + $0x100] sm:$0xff]
    %v2584 = vld [vmem:[%s5 + $0x108] sm:$0xff]
    %v2585 = vld [vmem:[%s5 + $0x110] sm:$0xff]
    %v2586 = vld [vmem:[%s5 + $0x118] sm:$0xff]
    %v2587 = vld [vmem:[%s5 + $0x120] sm:$0xff]
    %v2588 = vld [vmem:[%s5 + $0x128] sm:$0xff]
    %v2589 = vld [vmem:[%s5 + $0x130] sm:$0xff]
    %v2590 = vld [vmem:[%s5 + $0x138] sm:$0xff]
    %v2591 = vld [vmem:[%s5 + $0x140] sm:$0xff]
    %v2592 = vld [vmem:[%s5 + $0x148] sm:$0xff]
    %v2593 = vld [vmem:[%s5 + $0x150] sm:$0xff]
    %v2594 = vld [vmem:[%s5 + $0x158] sm:$0xff]
    %v2595 = vld [vmem:[%s5 + $0x160] sm:$0xff]
    %v2596 = vld [vmem:[%s5 + $0x168] sm:$0xff]
    %v2597 = vld [vmem:[%s5 + $0x170] sm:$0xff]
    %v2598 = vld [vmem:[%s5 + $0x178] sm:$0xff]
    %v2599 = vld [vmem:[%s5 + $0x180] sm:$0xff]
    %v2600 = vld [vmem:[%s5 + $0x188] sm:$0xff]
    %v2601 = vld [vmem:[%s5 + $0x190] sm:$0xff]
    %v2602 = vld [vmem:[%s5 + $0x198] sm:$0xff]
    %v2603 = vld [vmem:[%s5 + $0x1a0] sm:$0xff]
    %v2604 = vld [vmem:[%s5 + $0x1a8] sm:$0xff]
    %v2605 = vld [vmem:[%s5 + $0x1b0] sm:$0xff]
    %v2606 = vld [vmem:[%s5 + $0x1b8] sm:$0xff]
    %v2607 = vld [vmem:[%s5 + $0x1c0] sm:$0xff]
    %v2608 = vld [vmem:[%s5 + $0x1c8] sm:$0xff]
    %v2609 = vld [vmem:[%s5 + $0x1d0] sm:$0xff]
    %v2610 = vld [vmem:[%s5 + $0x1d8] sm:$0xff]
    %v2611 = vld [vmem:[%s5 + $0x1e0] sm:$0xff]
    %v2612 = vld [vmem:[%s5 + $0x1e8] sm:$0xff]
    %v2613 = vld [vmem:[%s5 + $0x1f0] sm:$0xff]
    %v2614 = vld [vmem:[%s5 + $0x1f8] sm:$0xff]
    %v2615 = vld [vmem:[%s5 + $0x200] sm:$0xff]
    %v2616 = vld [vmem:[%s5 + $0x208] sm:$0xff]
    %v2617 = vld [vmem:[%s5 + $0x210] sm:$0xff]
    %v2618 = vld [vmem:[%s5 + $0x218] sm:$0xff]
    %v2619 = vld [vmem:[%s5 + $0x220] sm:$0xff]
    %v2620 = vld [vmem:[%s5 + $0x228] sm:$0xff]
    %v2621 = vld [vmem:[%s5 + $0x230] sm:$0xff]
    %v2622 = vld [vmem:[%s5 + $0x238] sm:$0xff]
    %v2623 = vld [vmem:[%s5 + $0x240] sm:$0xff]
    %v2624 = vld [vmem:[%s5 + $0x248] sm:$0xff]
    %v2625 = vld [vmem:[%s5 + $0x250] sm:$0xff]
    %v2626 = vld [vmem:[%s5 + $0x258] sm:$0xff]
    %v2627 = vld [vmem:[%s5 + $0x260] sm:$0xff]
    %v2628 = vld [vmem:[%s5 + $0x268] sm:$0xff]
    %v2629 = vld [vmem:[%s5 + $0x270] sm:$0xff]
    %v2630 = vld [vmem:[%s5 + $0x278] sm:$0xff]
    %v2631 = vld [vmem:[%s5 + $0x280] sm:$0xff]
    %v2632 = vld [vmem:[%s5 + $0x288] sm:$0xff]
    %v2633 = vld [vmem:[%s5 + $0x290] sm:$0xff]
    %v2634 = vld [vmem:[%s5 + $0x298] sm:$0xff]
    %v2635 = vld [vmem:[%s5 + $0x2a0] sm:$0xff]
    %v2636 = vld [vmem:[%s5 + $0x2a8] sm:$0xff]
    %v2637 = vld [vmem:[%s5 + $0x2b0] sm:$0xff]
    %v2638 = vld [vmem:[%s5 + $0x2b8] sm:$0xff]
    %v2639 = vld [vmem:[%s5 + $0x2c0] sm:$0xff]
    %v2640 = vld [vmem:[%s5 + $0x2c8] sm:$0xff]
    %v2641 = vld [vmem:[%s5 + $0x2d0] sm:$0xff]
    %v2642 = vld [vmem:[%s5 + $0x2d8] sm:$0xff]
    %v2643 = vld [vmem:[%s5 + $0x2e0] sm:$0xff]
    %v2644 = vld [vmem:[%s5 + $0x2e8] sm:$0xff]
    %v2645 = vld [vmem:[%s5 + $0x2f0] sm:$0xff]
    %v2646 = vld [vmem:[%s5 + $0x2f8] sm:$0xff]
    %v2647 = vld [vmem:[%s5 + $0x300] sm:$0xff]
    %v2648 = vld [vmem:[%s5 + $0x308] sm:$0xff]
    %v2649 = vld [vmem:[%s5 + $0x310] sm:$0xff]
    %v2650 = vld [vmem:[%s5 + $0x318] sm:$0xff]
    %v2651 = vld [vmem:[%s5 + $0x320] sm:$0xff]
    %v2652 = vld [vmem:[%s5 + $0x328] sm:$0xff]
    %v2653 = vld [vmem:[%s5 + $0x330] sm:$0xff]
    %v2654 = vld [vmem:[%s5 + $0x338] sm:$0xff]
    %v2655 = vld [vmem:[%s5 + $0x340] sm:$0xff]
    %v2656 = vld [vmem:[%s5 + $0x348] sm:$0xff]
    %v2657 = vld [vmem:[%s5 + $0x350] sm:$0xff]
    %v2658 = vld [vmem:[%s5 + $0x358] sm:$0xff]
    %v2659 = vld [vmem:[%s5 + $0x360] sm:$0xff]
    %v2660 = vld [vmem:[%s5 + $0x368] sm:$0xff]
    %v2661 = vld [vmem:[%s5 + $0x370] sm:$0xff]
    %v2662 = vld [vmem:[%s5 + $0x378] sm:$0xff]
    %v2663 = vld [vmem:[%s5 + $0x380] sm:$0xff]
    %v2664 = vld [vmem:[%s5 + $0x388] sm:$0xff]
    %v2665 = vld [vmem:[%s5 + $0x390] sm:$0xff]
    %v2666 = vld [vmem:[%s5 + $0x398] sm:$0xff]
    %v2667 = vld [vmem:[%s5 + $0x3a0] sm:$0xff]
    %v2668 = vld [vmem:[%s5 + $0x3a8] sm:$0xff]
    %v2669 = vld [vmem:[%s5 + $0x3b0] sm:$0xff]
    %v2670 = vld [vmem:[%s5 + $0x3b8] sm:$0xff]
    %v2671 = vld [vmem:[%s5 + $0x3c0] sm:$0xff]
    %v2672 = vld [vmem:[%s5 + $0x3c8] sm:$0xff]
    %v2673 = vld [vmem:[%s5 + $0x3d0] sm:$0xff]
    %v2674 = vld [vmem:[%s5 + $0x3d8] sm:$0xff]
    %v2675 = vld [vmem:[%s5 + $0x3e0] sm:$0xff]
    %v2676 = vld [vmem:[%s5 + $0x3e8] sm:$0xff]
    %v2677 = vld [vmem:[%s5 + $0x3f0] sm:$0xff]
    %v2678 = vld [vmem:[%s5 + $0x3f8] sm:$0xff]
    %v2679 = vld [vmem:[%s5 + $0x400] sm:$0xff]
    %v2680 = vld [vmem:[%s5 + $0x408] sm:$0xff]
    %v2681 = vld [vmem:[%s5 + $0x410] sm:$0xff]
    %v2682 = vld [vmem:[%s5 + $0x418] sm:$0xff]
    %v2683 = vld [vmem:[%s5 + $0x420] sm:$0xff]
    %v2684 = vld [vmem:[%s5 + $0x428] sm:$0xff]
    %v2685 = vld [vmem:[%s5 + $0x430] sm:$0xff]
    %v2686 = vld [vmem:[%s5 + $0x438] sm:$0xff]
    %v2687 = vld [vmem:[%s5 + $0x440] sm:$0xff]
    %v2688 = vld [vmem:[%s5 + $0x448] sm:$0xff]
    %v2689 = vld [vmem:[%s5 + $0x450] sm:$0xff]
    %v2690 = vld [vmem:[%s5 + $0x458] sm:$0xff]
    %v2691 = vld [vmem:[%s5 + $0x460] sm:$0xff]
    %v2692 = vld [vmem:[%s5 + $0x468] sm:$0xff]
    %v2693 = vld [vmem:[%s5 + $0x470] sm:$0xff]
    %v2694 = vld [vmem:[%s5 + $0x478] sm:$0xff]
    %v2695 = vld [vmem:[%s5 + $0x480] sm:$0xff]
    %v2696 = vld [vmem:[%s5 + $0x488] sm:$0xff]
    %v2697 = vld [vmem:[%s5 + $0x490] sm:$0xff]
    %v2698 = vld [vmem:[%s5 + $0x498] sm:$0xff]
    %v2699 = vld [vmem:[%s5 + $0x4a0] sm:$0xff]
    %v2700 = vld [vmem:[%s5 + $0x4a8] sm:$0xff]
    %v2701 = vld [vmem:[%s5 + $0x4b0] sm:$0xff]
    %v2702 = vld [vmem:[%s5 + $0x4b8] sm:$0xff]
    %v2703 = vld [vmem:[%s5 + $0x4c0] sm:$0xff]
    %v2704 = vld [vmem:[%s5 + $0x4c8] sm:$0xff]
    %v2705 = vld [vmem:[%s5 + $0x4d0] sm:$0xff]
    %v2706 = vld [vmem:[%s5 + $0x4d8] sm:$0xff]
    %v2707 = vld [vmem:[%s5 + $0x4e0] sm:$0xff]
    %v2708 = vld [vmem:[%s5 + $0x4e8] sm:$0xff]
    %v2709 = vld [vmem:[%s5 + $0x4f0] sm:$0xff]
    %v2710 = vld [vmem:[%s5 + $0x4f8] sm:$0xff]
    %v2711 = vld [vmem:[%s5 + $0x500] sm:$0xff]
    %v2712 = vld [vmem:[%s5 + $0x508] sm:$0xff]
    %v2713 = vld [vmem:[%s5 + $0x510] sm:$0xff]
    %v2714 = vld [vmem:[%s5 + $0x518] sm:$0xff]
    %v2715 = vld [vmem:[%s5 + $0x520] sm:$0xff]
    %v2716 = vld [vmem:[%s5 + $0x528] sm:$0xff]
    %v2717 = vld [vmem:[%s5 + $0x530] sm:$0xff]
    %v2718 = vld [vmem:[%s5 + $0x538] sm:$0xff]
    %v2719 = vld [vmem:[%s5 + $0x540] sm:$0xff]
    %v2720 = vld [vmem:[%s5 + $0x548] sm:$0xff]
    %v2721 = vld [vmem:[%s5 + $0x550] sm:$0xff]
    %v2722 = vld [vmem:[%s5 + $0x558] sm:$0xff]
    %v2723 = vld [vmem:[%s5 + $0x560] sm:$0xff]
    %v2724 = vld [vmem:[%s5 + $0x568] sm:$0xff]
    %v2725 = vld [vmem:[%s5 + $0x570] sm:$0xff]
    %v2726 = vld [vmem:[%s5 + $0x578] sm:$0xff]
    %v2727 = vld [vmem:[%s5 + $0x580] sm:$0xff]
    %v2728 = vld [vmem:[%s5 + $0x588] sm:$0xff]
    %v2729 = vld [vmem:[%s5 + $0x590] sm:$0xff]
    %v2730 = vld [vmem:[%s5 + $0x598] sm:$0xff]
    %v2731 = vld [vmem:[%s5 + $0x5a0] sm:$0xff]
    %v2732 = vld [vmem:[%s5 + $0x5a8] sm:$0xff]
    %v2733 = vld [vmem:[%s5 + $0x5b0] sm:$0xff]
    %v2734 = vld [vmem:[%s5 + $0x5b8] sm:$0xff]
    %v2735 = vld [vmem:[%s5 + $0x5c0] sm:$0xff]
    %v2736 = vld [vmem:[%s5 + $0x5c8] sm:$0xff]
    %v2737 = vld [vmem:[%s5 + $0x5d0] sm:$0xff]
    %v2738 = vld [vmem:[%s5 + $0x5d8] sm:$0xff]
    %v2739 = vld [vmem:[%s5 + $0x5e0] sm:$0xff]
    %v2740 = vld [vmem:[%s5 + $0x5e8] sm:$0xff]
    %v2741 = vld [vmem:[%s5 + $0x5f0] sm:$0xff]
    %v2742 = vld [vmem:[%s5 + $0x5f8] sm:$0xff]
    %v2743 = vld [vmem:[%s5 + $0x600] sm:$0xff]
    %v2744 = vld [vmem:[%s5 + $0x608] sm:$0xff]
    %v2745 = vld [vmem:[%s5 + $0x610] sm:$0xff]
    %v2746 = vld [vmem:[%s5 + $0x618] sm:$0xff]
    %v2747 = vld [vmem:[%s5 + $0x620] sm:$0xff]
    %v2748 = vld [vmem:[%s5 + $0x628] sm:$0xff]
    %v2749 = vld [vmem:[%s5 + $0x630] sm:$0xff]
    %v2750 = vld [vmem:[%s5 + $0x638] sm:$0xff]
    %v2751 = vld [vmem:[%s5 + $0x640] sm:$0xff]
    %v2752 = vld [vmem:[%s5 + $0x648] sm:$0xff]
    %v2753 = vld [vmem:[%s5 + $0x650] sm:$0xff]
    %v2754 = vld [vmem:[%s5 + $0x658] sm:$0xff]
    %v2755 = vld [vmem:[%s5 + $0x660] sm:$0xff]
    %v2756 = vld [vmem:[%s5 + $0x668] sm:$0xff]
    %v2757 = vld [vmem:[%s5 + $0x670] sm:$0xff]
    %v2758 = vld [vmem:[%s5 + $0x678] sm:$0xff]
    %v2759 = vld [vmem:[%s5 + $0x680] sm:$0xff]
    %v2760 = vld [vmem:[%s5 + $0x688] sm:$0xff]
    %v2761 = vld [vmem:[%s5 + $0x690] sm:$0xff]
    %v2762 = vld [vmem:[%s5 + $0x698] sm:$0xff]
    %v2763 = vld [vmem:[%s5 + $0x6a0] sm:$0xff]
    %v2764 = vld [vmem:[%s5 + $0x6a8] sm:$0xff]
    %v2765 = vld [vmem:[%s5 + $0x6b0] sm:$0xff]
    %v2766 = vld [vmem:[%s5 + $0x6b8] sm:$0xff]
    %v2767 = vld [vmem:[%s5 + $0x6c0] sm:$0xff]
    %v2768 = vld [vmem:[%s5 + $0x6c8] sm:$0xff]
    %v2769 = vld [vmem:[%s5 + $0x6d0] sm:$0xff]
    %v2770 = vld [vmem:[%s5 + $0x6d8] sm:$0xff]
    %v2771 = vld [vmem:[%s5 + $0x6e0] sm:$0xff]
    %v2772 = vld [vmem:[%s5 + $0x6e8] sm:$0xff]
    %v2773 = vld [vmem:[%s5 + $0x6f0] sm:$0xff]
    %v2774 = vld [vmem:[%s5 + $0x6f8] sm:$0xff]
    %2775 = vmatprep.subr.mxu0 %v2582
    %2776 = vmatpush1.msra.mxu0 %v2581
    %2777 = vmatprep.subr.mxu0 %v2580
    %2778 = vmatpush1.msra.mxu0 %v2579
    %2779 = vmatprep.subr.mxu0 %v2578
    %2780 = vmatpush1.msra.mxu0 %v2577
    %2781 = vmatprep.subr.mxu0 %v2576
    %2782 = vmatpush1.msra.mxu0 %v2575
    %2783 = vmatprep.subr.mxu0 %v2574
    %2784 = vmatpush1.msra.mxu0 %v2573
    %2785 = vmatprep.subr.mxu0 %v2572
    %2786 = vmatpush1.msra.mxu0 %v2571
    %2787 = vmatprep.subr.mxu0 %v2570
    %2788 = vmatpush1.msra.mxu0 %v2569
    %2789 = vmatprep.subr.mxu0 %v2568
    %2790 = vmatpush1.msra.mxu0 %v2567
    %2791 = vmatprep.subr.mxu0 %v2566
    %2792 = vmatpush1.msra.mxu0 %v2565
    %2793 = vmatprep.subr.mxu0 %v2564
    %2794 = vmatpush1.msra.mxu0 %v2563
    %2795 = vmatprep.subr.mxu0 %v2562
    %2796 = vmatpush1.msra.mxu0 %v2561
    %2797 = vmatprep.subr.mxu0 %v2560
    %2798 = vmatpush1.msra.mxu0 %v2559
    %2799 = vmatprep.subr.mxu0 %v2558
    %2800 = vmatpush1.msra.mxu0 %v2557
    %2801 = vmatprep.subr.mxu0 %v2556
    %2802 = vmatpush1.msra.mxu0 %v2555
    %2803 = vmatprep.subr.mxu0 %v2554
    %2804 = vmatpush1.msra.mxu0 %v2553
    %2805 = vmatprep.subr.mxu0 %v2552
    %2806 = vmatpush1.msra.mxu0 %v2551
    %2807 = vmatprep.subr.mxu0 %v2614
    %2808 = vmatpush2.msra.mxu0 %v2613
    %2809 = vmatprep.subr.mxu0 %v2612
    %2810 = vmatpush2.msra.mxu0 %v2611
    %2811 = vmatprep.subr.mxu0 %v2610
    %2812 = vmatpush2.msra.mxu0 %v2609
    %2813 = vmatprep.subr.mxu0 %v2608
    %2814 = vmatpush2.msra.mxu0 %v2607
    %2815 = vmatprep.subr.mxu0 %v2606
    %2816 = vmatpush2.msra.mxu0 %v2605
    %2817 = vmatprep.subr.mxu0 %v2604
    %2818 = vmatpush2.msra.mxu0 %v2603
    %2819 = vmatprep.subr.mxu0 %v2602
    %2820 = vmatpush2.msra.mxu0 %v2601
    %2821 = vmatprep.subr.mxu0 %v2600
    %2822 = vmatpush2.msra.mxu0 %v2599
    %2823 = vmatprep.subr.mxu0 %v2598
    %2824 = vmatpush2.msra.mxu0 %v2597
    %2825 = vmatprep.subr.mxu0 %v2596
    %2826 = vmatpush2.msra.mxu0 %v2595
    %2827 = vmatprep.subr.mxu0 %v2594
    %2828 = vmatpush2.msra.mxu0 %v2593
    %2829 = vmatprep.subr.mxu0 %v2592
    %2830 = vmatpush2.msra.mxu0 %v2591
    %2831 = vmatprep.subr.mxu0 %v2590
    %2832 = vmatpush2.msra.mxu0 %v2589
    %2833 = vmatprep.subr.mxu0 %v2588
    %2834 = vmatpush2.msra.mxu0 %v2587
    %2835 = vmatprep.subr.mxu0 %v2586
    %2836 = vmatpush2.msra.mxu0 %v2585
    %2837 = vmatprep.subr.mxu0 %v2584
    %2838 = vmatpush2.msra.mxu0 %v2583
    %2839 = vmatprep.mubr.f32.mxu0 %v2545
    %2840 = vmatmul.mubr.f32.gmra.mxu0 %v2544
    %v2841 = vpop.f32.mrf.mxu0
    %v2842 = vadd.f32 0.0, %v2841
    %v2843 = vpop.f32.mrf.mxu0
    %v2844 = vadd.f32 0.0, %v2843
    %2845 = vdwg.mxu0
    %2846 = vmatprep.subr.mxu0 %v2646
    %2847 = vmatpush1.msra.mxu0 %v2645
    %2848 = vmatprep.subr.mxu0 %v2644
    %2849 = vmatpush1.msra.mxu0 %v2643
    %2850 = vmatprep.subr.mxu0 %v2642
    %2851 = vmatpush1.msra.mxu0 %v2641
    %2852 = vmatprep.subr.mxu0 %v2640
    %2853 = vmatpush1.msra.mxu0 %v2639
    %2854 = vmatprep.subr.mxu0 %v2638
    %2855 = vmatpush1.msra.mxu0 %v2637
    %2856 = vmatprep.subr.mxu0 %v2636
    %2857 = vmatpush1.msra.mxu0 %v2635
    %2858 = vmatprep.subr.mxu0 %v2634
    %2859 = vmatpush1.msra.mxu0 %v2633
    %2860 = vmatprep.subr.mxu0 %v2632
    %2861 = vmatpush1.msra.mxu0 %v2631
    %2862 = vmatprep.subr.mxu0 %v2630
    %2863 = vmatpush1.msra.mxu0 %v2629
    %2864 = vmatprep.subr.mxu0 %v2628
    %2865 = vmatpush1.msra.mxu0 %v2627
    %2866 = vmatprep.subr.mxu0 %v2626
    %2867 = vmatpush1.msra.mxu0 %v2625
    %2868 = vmatprep.subr.mxu0 %v2624
    %2869 = vmatpush1.msra.mxu0 %v2623
    %2870 = vmatprep.subr.mxu0 %v2622
    %2871 = vmatpush1.msra.mxu0 %v2621
    %2872 = vmatprep.subr.mxu0 %v2620
    %2873 = vmatpush1.msra.mxu0 %v2619
    %2874 = vmatprep.subr.mxu0 %v2618
    %2875 = vmatpush1.msra.mxu0 %v2617
    %2876 = vmatprep.subr.mxu0 %v2616
    %2877 = vmatpush1.msra.mxu0 %v2615
    %2878 = vmatprep.subr.mxu0 %v2678
    %2879 = vmatpush2.msra.mxu0 %v2677
    %2880 = vmatprep.subr.mxu0 %v2676
    %2881 = vmatpush2.msra.mxu0 %v2675
    %2882 = vmatprep.subr.mxu0 %v2674
    %2883 = vmatpush2.msra.mxu0 %v2673
    %2884 = vmatprep.subr.mxu0 %v2672
    %2885 = vmatpush2.msra.mxu0 %v2671
    %2886 = vmatprep.subr.mxu0 %v2670
    %2887 = vmatpush2.msra.mxu0 %v2669
    %2888 = vmatprep.subr.mxu0 %v2668
    %2889 = vmatpush2.msra.mxu0 %v2667
    %2890 = vmatprep.subr.mxu0 %v2666
    %2891 = vmatpush2.msra.mxu0 %v2665
    %2892 = vmatprep.subr.mxu0 %v2664
    %2893 = vmatpush2.msra.mxu0 %v2663
    %2894 = vmatprep.subr.mxu0 %v2662
    %2895 = vmatpush2.msra.mxu0 %v2661
    %2896 = vmatprep.subr.mxu0 %v2660
    %2897 = vmatpush2.msra.mxu0 %v2659
    %2898 = vmatprep.subr.mxu0 %v2658
    %2899 = vmatpush2.msra.mxu0 %v2657
    %2900 = vmatprep.subr.mxu0 %v2656
    %2901 = vmatpush2.msra.mxu0 %v2655
    %2902 = vmatprep.subr.mxu0 %v2654
    %2903 = vmatpush2.msra.mxu0 %v2653
    %2904 = vmatprep.subr.mxu0 %v2652
    %2905 = vmatpush2.msra.mxu0 %v2651
    %2906 = vmatprep.subr.mxu0 %v2650
    %2907 = vmatpush2.msra.mxu0 %v2649
    %2908 = vmatprep.subr.mxu0 %v2648
    %2909 = vmatpush2.msra.mxu0 %v2647
    %2910 = vmatprep.mubr.f32.mxu0 %v2547
    %2911 = vmatmul.mubr.f32.gmra.mxu0 %v2546
    %v2912 = vpop.f32.mrf.mxu0
    %v2913 = vadd.f32 %v2842, %v2912
    %v2914 = vpop.f32.mrf.mxu0
    %v2915 = vadd.f32 %v2844, %v2914
    %2916 = vdwg.mxu0
    %2917 = vmatprep.subr.mxu0 %v2710
    %2918 = vmatpush1.msra.mxu0 %v2709
    %2919 = vmatprep.subr.mxu0 %v2708
    %2920 = vmatpush1.msra.mxu0 %v2707
    %2921 = vmatprep.subr.mxu0 %v2706
    %2922 = vmatpush1.msra.mxu0 %v2705
    %2923 = vmatprep.subr.mxu0 %v2704
    %2924 = vmatpush1.msra.mxu0 %v2703
    %2925 = vmatprep.subr.mxu0 %v2702
    %2926 = vmatpush1.msra.mxu0 %v2701
    %2927 = vmatprep.subr.mxu0 %v2700
    %2928 = vmatpush1.msra.mxu0 %v2699
    %2929 = vmatprep.subr.mxu0 %v2698
    %2930 = vmatpush1.msra.mxu0 %v2697
    %2931 = vmatprep.subr.mxu0 %v2696
    %2932 = vmatpush1.msra.mxu0 %v2695
    %2933 = vmatprep.subr.mxu0 %v2694
    %2934 = vmatpush1.msra.mxu0 %v2693
    %2935 = vmatprep.subr.mxu0 %v2692
    %2936 = vmatpush1.msra.mxu0 %v2691
    %2937 = vmatprep.subr.mxu0 %v2690
    %2938 = vmatpush1.msra.mxu0 %v2689
    %2939 = vmatprep.subr.mxu0 %v2688
    %2940 = vmatpush1.msra.mxu0 %v2687
    %2941 = vmatprep.subr.mxu0 %v2686
    %2942 = vmatpush1.msra.mxu0 %v2685
    %2943 = vmatprep.subr.mxu0 %v2684
    %2944 = vmatpush1.msra.mxu0 %v2683
    %2945 = vmatprep.subr.mxu0 %v2682
    %2946 = vmatpush1.msra.mxu0 %v2681
    %2947 = vmatprep.subr.mxu0 %v2680
    %2948 = vmatpush1.msra.mxu0 %v2679
    %2949 = vmatprep.subr.mxu0 %v2742
    %2950 = vmatpush2.msra.mxu0 %v2741
    %2951 = vmatprep.subr.mxu0 %v2740
    %2952 = vmatpush2.msra.mxu0 %v2739
    %2953 = vmatprep.subr.mxu0 %v2738
    %2954 = vmatpush2.msra.mxu0 %v2737
    %2955 = vmatprep.subr.mxu0 %v2736
    %2956 = vmatpush2.msra.mxu0 %v2735
    %2957 = vmatprep.subr.mxu0 %v2734
    %2958 = vmatpush2.msra.mxu0 %v2733
    %2959 = vmatprep.subr.mxu0 %v2732
    %2960 = vmatpush2.msra.mxu0 %v2731
    %2961 = vmatprep.subr.mxu0 %v2730
    %2962 = vmatpush2.msra.mxu0 %v2729
    %2963 = vmatprep.subr.mxu0 %v2728
    %2964 = vmatpush2.msra.mxu0 %v2727
    %2965 = vmatprep.subr.mxu0 %v2726
    %2966 = vmatpush2.msra.mxu0 %v2725
    %2967 = vmatprep.subr.mxu0 %v2724
    %2968 = vmatpush2.msra.mxu0 %v2723
    %2969 = vmatprep.subr.mxu0 %v2722
    %2970 = vmatpush2.msra.mxu0 %v2721
    %2971 = vmatprep.subr.mxu0 %v2720
    %2972 = vmatpush2.msra.mxu0 %v2719
    %2973 = vmatprep.subr.mxu0 %v2718
    %2974 = vmatpush2.msra.mxu0 %v2717
    %2975 = vmatprep.subr.mxu0 %v2716
    %2976 = vmatpush2.msra.mxu0 %v2715
    %2977 = vmatprep.subr.mxu0 %v2714
    %2978 = vmatpush2.msra.mxu0 %v2713
    %2979 = vmatprep.subr.mxu0 %v2712
    %2980 = vmatpush2.msra.mxu0 %v2711
    %2981 = vmatprep.mubr.f32.mxu0 %v2549
    %2982 = vmatmul.mubr.f32.gmra.mxu0 %v2548
    %v2983 = vpop.f32.mrf.mxu0
    %v2984 = vadd.f32 %v2913, %v2983
    %v2985 = vpop.f32.mrf.mxu0
    %v2986 = vadd.f32 %v2915, %v2985
    %2987 = vdwg.mxu0
    %2988 = vmatprep.subr.mxu0 %v2774
    %2989 = vmatpush1.msra.mxu0 %v2773
    %2990 = vmatprep.subr.mxu0 %v2772
    %2991 = vmatpush1.msra.mxu0 %v2771
    %2992 = vmatprep.subr.mxu0 %v2770
    %2993 = vmatpush1.msra.mxu0 %v2769
    %2994 = vmatprep.subr.mxu0 %v2768
    %2995 = vmatpush1.msra.mxu0 %v2767
    %2996 = vmatprep.subr.mxu0 %v2766
    %2997 = vmatpush1.msra.mxu0 %v2765
    %2998 = vmatprep.subr.mxu0 %v2764
    %2999 = vmatpush1.msra.mxu0 %v2763
    %3000 = vmatprep.subr.mxu0 %v2762
    %3001 = vmatpush1.msra.mxu0 %v2761
    %3002 = vmatprep.subr.mxu0 %v2760
    %3003 = vmatpush1.msra.mxu0 %v2759
    %3004 = vmatprep.subr.mxu0 %v2758
    %3005 = vmatpush1.msra.mxu0 %v2757
    %3006 = vmatprep.subr.mxu0 %v2756
    %3007 = vmatpush1.msra.mxu0 %v2755
    %3008 = vmatprep.subr.mxu0 %v2754
    %3009 = vmatpush1.msra.mxu0 %v2753
    %3010 = vmatprep.subr.mxu0 %v2752
    %3011 = vmatpush1.msra.mxu0 %v2751
    %3012 = vmatprep.subr.mxu0 %v2750
    %3013 = vmatpush1.msra.mxu0 %v2749
    %3014 = vmatprep.subr.mxu0 %v2748
    %3015 = vmatpush1.msra.mxu0 %v2747
    %3016 = vmatprep.subr.mxu0 %v2746
    %3017 = vmatpush1.msra.mxu0 %v2745
    %3018 = vmatprep.subr.mxu0 %v2744
    %3019 = vmatpush1.msra.mxu0 %v2743
    %3020 = vmatprep.subr.mxu0 0.0
    %3021 = vmatpush2.msra.mxu0 0.0
    %3022 = vmatprep.subr.mxu0 0.0
    %3023 = vmatpush2.msra.mxu0 0.0
    %3024 = vmatprep.subr.mxu0 0.0
    %3025 = vmatpush2.msra.mxu0 0.0
    %3026 = vmatprep.subr.mxu0 0.0
    %3027 = vmatpush2.msra.mxu0 0.0
    %3028 = vmatprep.subr.mxu0 0.0
    %3029 = vmatpush2.msra.mxu0 0.0
    %3030 = vmatprep.subr.mxu0 0.0
    %3031 = vmatpush2.msra.mxu0 0.0
    %3032 = vmatprep.subr.mxu0 0.0
    %3033 = vmatpush2.msra.mxu0 0.0
    %3034 = vmatprep.subr.mxu0 0.0
    %3035 = vmatpush2.msra.mxu0 0.0
    %3036 = vmatprep.subr.mxu0 0.0
    %3037 = vmatpush2.msra.mxu0 0.0
    %3038 = vmatprep.subr.mxu0 0.0
    %3039 = vmatpush2.msra.mxu0 0.0
    %3040 = vmatprep.subr.mxu0 0.0
    %3041 = vmatpush2.msra.mxu0 0.0
    %3042 = vmatprep.subr.mxu0 0.0
    %3043 = vmatpush2.msra.mxu0 0.0
    %3044 = vmatprep.subr.mxu0 0.0
    %3045 = vmatpush2.msra.mxu0 0.0
    %3046 = vmatprep.subr.mxu0 0.0
    %3047 = vmatpush2.msra.mxu0 0.0
    %3048 = vmatprep.subr.mxu0 0.0
    %3049 = vmatpush2.msra.mxu0 0.0
    %3050 = vmatprep.subr.mxu0 0.0
    %3051 = vmatpush2.msra.mxu0 0.0
    %3052 = vmatprep.mubr.f32.mxu0 0.0
    %3053 = vmatmul.mubr.f32.gmra.mxu0 %v2550
    %v3054 = vpop.f32.mrf.mxu0
    %v3055 = vadd.f32 %v2984, %v3054
    %v3056 = vpop.f32.mrf.mxu0
    %v3057 = vadd.f32 %v2986, %v3056
    %3058 = vdwg.mxu0
    %v3059 = vadd.f32 %v736, %v3055
    %v3060 = vadd.f32 %v737, %v3057
    %v3061 = vmax.f32 %v2521, 0.0
    %v3062 = vmax.f32 %v2522, 0.0
    %v3063 = vmax.f32 %v2523, 0.0
    %v3064 = vmax.f32 %v2524, 0.0
    %v3065 = vmax.f32 %v2525, 0.0
    %v3066 = vmax.f32 %v2526, 0.0
    %v3067 = vmax.f32 %v2527, 0.0
    %s3068 = scalar_lea.vmem %s5, 1792
    %v3069 = vld [vmem:[%s3068] sm:$0xff]
    %v3070 = vld [vmem:[%s3068 + $0x8] sm:$0xff]
    %v3071 = vld [vmem:[%s3068 + $0x10] sm:$0xff]
    %v3072 = vld [vmem:[%s3068 + $0x18] sm:$0xff]
    %v3073 = vld [vmem:[%s3068 + $0x20] sm:$0xff]
    %v3074 = vld [vmem:[%s3068 + $0x28] sm:$0xff]
    %v3075 = vld [vmem:[%s3068 + $0x30] sm:$0xff]
    %v3076 = vld [vmem:[%s3068 + $0x38] sm:$0xff]
    %v3077 = vld [vmem:[%s3068 + $0x40] sm:$0xff]
    %v3078 = vld [vmem:[%s3068 + $0x48] sm:$0xff]
    %v3079 = vld [vmem:[%s3068 + $0x50] sm:$0xff]
    %v3080 = vld [vmem:[%s3068 + $0x58] sm:$0xff]
    %v3081 = vld [vmem:[%s3068 + $0x60] sm:$0xff]
    %v3082 = vld [vmem:[%s3068 + $0x68] sm:$0xff]
    %v3083 = vld [vmem:[%s3068 + $0x70] sm:$0xff]
    %v3084 = vld [vmem:[%s3068 + $0x78] sm:$0xff]
    %v3085 = vld [vmem:[%s3068 + $0x80] sm:$0xff]
    %v3086 = vld [vmem:[%s3068 + $0x88] sm:$0xff]
    %v3087 = vld [vmem:[%s3068 + $0x90] sm:$0xff]
    %v3088 = vld [vmem:[%s3068 + $0x98] sm:$0xff]
    %v3089 = vld [vmem:[%s3068 + $0xa0] sm:$0xff]
    %v3090 = vld [vmem:[%s3068 + $0xa8] sm:$0xff]
    %v3091 = vld [vmem:[%s3068 + $0xb0] sm:$0xff]
    %v3092 = vld [vmem:[%s3068 + $0xb8] sm:$0xff]
    %v3093 = vld [vmem:[%s3068 + $0xc0] sm:$0xff]
    %v3094 = vld [vmem:[%s3068 + $0xc8] sm:$0xff]
    %v3095 = vld [vmem:[%s3068 + $0xd0] sm:$0xff]
    %v3096 = vld [vmem:[%s3068 + $0xd8] sm:$0xff]
    %v3097 = vld [vmem:[%s3068 + $0xe0] sm:$0xff]
    %v3098 = vld [vmem:[%s3068 + $0xe8] sm:$0xff]
    %v3099 = vld [vmem:[%s3068 + $0xf0] sm:$0xff]
    %v3100 = vld [vmem:[%s3068 + $0xf8] sm:$0xff]
    %v3101 = vld [vmem:[%s3068 + $0x100] sm:$0xff]
    %v3102 = vld [vmem:[%s3068 + $0x108] sm:$0xff]
    %v3103 = vld [vmem:[%s3068 + $0x110] sm:$0xff]
    %v3104 = vld [vmem:[%s3068 + $0x118] sm:$0xff]
    %v3105 = vld [vmem:[%s3068 + $0x120] sm:$0xff]
    %v3106 = vld [vmem:[%s3068 + $0x128] sm:$0xff]
    %v3107 = vld [vmem:[%s3068 + $0x130] sm:$0xff]
    %v3108 = vld [vmem:[%s3068 + $0x138] sm:$0xff]
    %v3109 = vld [vmem:[%s3068 + $0x140] sm:$0xff]
    %v3110 = vld [vmem:[%s3068 + $0x148] sm:$0xff]
    %v3111 = vld [vmem:[%s3068 + $0x150] sm:$0xff]
    %v3112 = vld [vmem:[%s3068 + $0x158] sm:$0xff]
    %v3113 = vld [vmem:[%s3068 + $0x160] sm:$0xff]
    %v3114 = vld [vmem:[%s3068 + $0x168] sm:$0xff]
    %v3115 = vld [vmem:[%s3068 + $0x170] sm:$0xff]
    %v3116 = vld [vmem:[%s3068 + $0x178] sm:$0xff]
    %v3117 = vld [vmem:[%s3068 + $0x180] sm:$0xff]
    %v3118 = vld [vmem:[%s3068 + $0x188] sm:$0xff]
    %v3119 = vld [vmem:[%s3068 + $0x190] sm:$0xff]
    %v3120 = vld [vmem:[%s3068 + $0x198] sm:$0xff]
    %v3121 = vld [vmem:[%s3068 + $0x1a0] sm:$0xff]
    %v3122 = vld [vmem:[%s3068 + $0x1a8] sm:$0xff]
    %v3123 = vld [vmem:[%s3068 + $0x1b0] sm:$0xff]
    %v3124 = vld [vmem:[%s3068 + $0x1b8] sm:$0xff]
    %v3125 = vld [vmem:[%s3068 + $0x1c0] sm:$0xff]
    %v3126 = vld [vmem:[%s3068 + $0x1c8] sm:$0xff]
    %v3127 = vld [vmem:[%s3068 + $0x1d0] sm:$0xff]
    %v3128 = vld [vmem:[%s3068 + $0x1d8] sm:$0xff]
    %v3129 = vld [vmem:[%s3068 + $0x1e0] sm:$0xff]
    %v3130 = vld [vmem:[%s3068 + $0x1e8] sm:$0xff]
    %v3131 = vld [vmem:[%s3068 + $0x1f0] sm:$0xff]
    %v3132 = vld [vmem:[%s3068 + $0x1f8] sm:$0xff]
    %v3133 = vld [vmem:[%s3068 + $0x200] sm:$0xff]
    %v3134 = vld [vmem:[%s3068 + $0x208] sm:$0xff]
    %v3135 = vld [vmem:[%s3068 + $0x210] sm:$0xff]
    %v3136 = vld [vmem:[%s3068 + $0x218] sm:$0xff]
    %v3137 = vld [vmem:[%s3068 + $0x220] sm:$0xff]
    %v3138 = vld [vmem:[%s3068 + $0x228] sm:$0xff]
    %v3139 = vld [vmem:[%s3068 + $0x230] sm:$0xff]
    %v3140 = vld [vmem:[%s3068 + $0x238] sm:$0xff]
    %v3141 = vld [vmem:[%s3068 + $0x240] sm:$0xff]
    %v3142 = vld [vmem:[%s3068 + $0x248] sm:$0xff]
    %v3143 = vld [vmem:[%s3068 + $0x250] sm:$0xff]
    %v3144 = vld [vmem:[%s3068 + $0x258] sm:$0xff]
    %v3145 = vld [vmem:[%s3068 + $0x260] sm:$0xff]
    %v3146 = vld [vmem:[%s3068 + $0x268] sm:$0xff]
    %v3147 = vld [vmem:[%s3068 + $0x270] sm:$0xff]
    %v3148 = vld [vmem:[%s3068 + $0x278] sm:$0xff]
    %v3149 = vld [vmem:[%s3068 + $0x280] sm:$0xff]
    %v3150 = vld [vmem:[%s3068 + $0x288] sm:$0xff]
    %v3151 = vld [vmem:[%s3068 + $0x290] sm:$0xff]
    %v3152 = vld [vmem:[%s3068 + $0x298] sm:$0xff]
    %v3153 = vld [vmem:[%s3068 + $0x2a0] sm:$0xff]
    %v3154 = vld [vmem:[%s3068 + $0x2a8] sm:$0xff]
    %v3155 = vld [vmem:[%s3068 + $0x2b0] sm:$0xff]
    %v3156 = vld [vmem:[%s3068 + $0x2b8] sm:$0xff]
    %v3157 = vld [vmem:[%s3068 + $0x2c0] sm:$0xff]
    %v3158 = vld [vmem:[%s3068 + $0x2c8] sm:$0xff]
    %v3159 = vld [vmem:[%s3068 + $0x2d0] sm:$0xff]
    %v3160 = vld [vmem:[%s3068 + $0x2d8] sm:$0xff]
    %v3161 = vld [vmem:[%s3068 + $0x2e0] sm:$0xff]
    %v3162 = vld [vmem:[%s3068 + $0x2e8] sm:$0xff]
    %v3163 = vld [vmem:[%s3068 + $0x2f0] sm:$0xff]
    %v3164 = vld [vmem:[%s3068 + $0x2f8] sm:$0xff]
    %v3165 = vld [vmem:[%s3068 + $0x300] sm:$0xff]
    %v3166 = vld [vmem:[%s3068 + $0x308] sm:$0xff]
    %v3167 = vld [vmem:[%s3068 + $0x310] sm:$0xff]
    %v3168 = vld [vmem:[%s3068 + $0x318] sm:$0xff]
    %v3169 = vld [vmem:[%s3068 + $0x320] sm:$0xff]
    %v3170 = vld [vmem:[%s3068 + $0x328] sm:$0xff]
    %v3171 = vld [vmem:[%s3068 + $0x330] sm:$0xff]
    %v3172 = vld [vmem:[%s3068 + $0x338] sm:$0xff]
    %v3173 = vld [vmem:[%s3068 + $0x340] sm:$0xff]
    %v3174 = vld [vmem:[%s3068 + $0x348] sm:$0xff]
    %v3175 = vld [vmem:[%s3068 + $0x350] sm:$0xff]
    %v3176 = vld [vmem:[%s3068 + $0x358] sm:$0xff]
    %v3177 = vld [vmem:[%s3068 + $0x360] sm:$0xff]
    %v3178 = vld [vmem:[%s3068 + $0x368] sm:$0xff]
    %v3179 = vld [vmem:[%s3068 + $0x370] sm:$0xff]
    %v3180 = vld [vmem:[%s3068 + $0x378] sm:$0xff]
    %v3181 = vld [vmem:[%s3068 + $0x380] sm:$0xff]
    %v3182 = vld [vmem:[%s3068 + $0x388] sm:$0xff]
    %v3183 = vld [vmem:[%s3068 + $0x390] sm:$0xff]
    %v3184 = vld [vmem:[%s3068 + $0x398] sm:$0xff]
    %v3185 = vld [vmem:[%s3068 + $0x3a0] sm:$0xff]
    %v3186 = vld [vmem:[%s3068 + $0x3a8] sm:$0xff]
    %v3187 = vld [vmem:[%s3068 + $0x3b0] sm:$0xff]
    %v3188 = vld [vmem:[%s3068 + $0x3b8] sm:$0xff]
    %v3189 = vld [vmem:[%s3068 + $0x3c0] sm:$0xff]
    %v3190 = vld [vmem:[%s3068 + $0x3c8] sm:$0xff]
    %v3191 = vld [vmem:[%s3068 + $0x3d0] sm:$0xff]
    %v3192 = vld [vmem:[%s3068 + $0x3d8] sm:$0xff]
    %v3193 = vld [vmem:[%s3068 + $0x3e0] sm:$0xff]
    %v3194 = vld [vmem:[%s3068 + $0x3e8] sm:$0xff]
    %v3195 = vld [vmem:[%s3068 + $0x3f0] sm:$0xff]
    %v3196 = vld [vmem:[%s3068 + $0x3f8] sm:$0xff]
    %v3197 = vld [vmem:[%s3068 + $0x400] sm:$0xff]
    %v3198 = vld [vmem:[%s3068 + $0x408] sm:$0xff]
    %v3199 = vld [vmem:[%s3068 + $0x410] sm:$0xff]
    %v3200 = vld [vmem:[%s3068 + $0x418] sm:$0xff]
    %v3201 = vld [vmem:[%s3068 + $0x420] sm:$0xff]
    %v3202 = vld [vmem:[%s3068 + $0x428] sm:$0xff]
    %v3203 = vld [vmem:[%s3068 + $0x430] sm:$0xff]
    %v3204 = vld [vmem:[%s3068 + $0x438] sm:$0xff]
    %v3205 = vld [vmem:[%s3068 + $0x440] sm:$0xff]
    %v3206 = vld [vmem:[%s3068 + $0x448] sm:$0xff]
    %v3207 = vld [vmem:[%s3068 + $0x450] sm:$0xff]
    %v3208 = vld [vmem:[%s3068 + $0x458] sm:$0xff]
    %v3209 = vld [vmem:[%s3068 + $0x460] sm:$0xff]
    %v3210 = vld [vmem:[%s3068 + $0x468] sm:$0xff]
    %v3211 = vld [vmem:[%s3068 + $0x470] sm:$0xff]
    %v3212 = vld [vmem:[%s3068 + $0x478] sm:$0xff]
    %v3213 = vld [vmem:[%s3068 + $0x480] sm:$0xff]
    %v3214 = vld [vmem:[%s3068 + $0x488] sm:$0xff]
    %v3215 = vld [vmem:[%s3068 + $0x490] sm:$0xff]
    %v3216 = vld [vmem:[%s3068 + $0x498] sm:$0xff]
    %v3217 = vld [vmem:[%s3068 + $0x4a0] sm:$0xff]
    %v3218 = vld [vmem:[%s3068 + $0x4a8] sm:$0xff]
    %v3219 = vld [vmem:[%s3068 + $0x4b0] sm:$0xff]
    %v3220 = vld [vmem:[%s3068 + $0x4b8] sm:$0xff]
    %v3221 = vld [vmem:[%s3068 + $0x4c0] sm:$0xff]
    %v3222 = vld [vmem:[%s3068 + $0x4c8] sm:$0xff]
    %v3223 = vld [vmem:[%s3068 + $0x4d0] sm:$0xff]
    %v3224 = vld [vmem:[%s3068 + $0x4d8] sm:$0xff]
    %v3225 = vld [vmem:[%s3068 + $0x4e0] sm:$0xff]
    %v3226 = vld [vmem:[%s3068 + $0x4e8] sm:$0xff]
    %v3227 = vld [vmem:[%s3068 + $0x4f0] sm:$0xff]
    %v3228 = vld [vmem:[%s3068 + $0x4f8] sm:$0xff]
    %v3229 = vld [vmem:[%s3068 + $0x500] sm:$0xff]
    %v3230 = vld [vmem:[%s3068 + $0x508] sm:$0xff]
    %v3231 = vld [vmem:[%s3068 + $0x510] sm:$0xff]
    %v3232 = vld [vmem:[%s3068 + $0x518] sm:$0xff]
    %v3233 = vld [vmem:[%s3068 + $0x520] sm:$0xff]
    %v3234 = vld [vmem:[%s3068 + $0x528] sm:$0xff]
    %v3235 = vld [vmem:[%s3068 + $0x530] sm:$0xff]
    %v3236 = vld [vmem:[%s3068 + $0x538] sm:$0xff]
    %v3237 = vld [vmem:[%s3068 + $0x540] sm:$0xff]
    %v3238 = vld [vmem:[%s3068 + $0x548] sm:$0xff]
    %v3239 = vld [vmem:[%s3068 + $0x550] sm:$0xff]
    %v3240 = vld [vmem:[%s3068 + $0x558] sm:$0xff]
    %v3241 = vld [vmem:[%s3068 + $0x560] sm:$0xff]
    %v3242 = vld [vmem:[%s3068 + $0x568] sm:$0xff]
    %v3243 = vld [vmem:[%s3068 + $0x570] sm:$0xff]
    %v3244 = vld [vmem:[%s3068 + $0x578] sm:$0xff]
    %v3245 = vld [vmem:[%s3068 + $0x580] sm:$0xff]
    %v3246 = vld [vmem:[%s3068 + $0x588] sm:$0xff]
    %v3247 = vld [vmem:[%s3068 + $0x590] sm:$0xff]
    %v3248 = vld [vmem:[%s3068 + $0x598] sm:$0xff]
    %v3249 = vld [vmem:[%s3068 + $0x5a0] sm:$0xff]
    %v3250 = vld [vmem:[%s3068 + $0x5a8] sm:$0xff]
    %v3251 = vld [vmem:[%s3068 + $0x5b0] sm:$0xff]
    %v3252 = vld [vmem:[%s3068 + $0x5b8] sm:$0xff]
    %v3253 = vld [vmem:[%s3068 + $0x5c0] sm:$0xff]
    %v3254 = vld [vmem:[%s3068 + $0x5c8] sm:$0xff]
    %v3255 = vld [vmem:[%s3068 + $0x5d0] sm:$0xff]
    %v3256 = vld [vmem:[%s3068 + $0x5d8] sm:$0xff]
    %v3257 = vld [vmem:[%s3068 + $0x5e0] sm:$0xff]
    %v3258 = vld [vmem:[%s3068 + $0x5e8] sm:$0xff]
    %v3259 = vld [vmem:[%s3068 + $0x5f0] sm:$0xff]
    %v3260 = vld [vmem:[%s3068 + $0x5f8] sm:$0xff]
    %v3261 = vld [vmem:[%s3068 + $0x600] sm:$0xff]
    %v3262 = vld [vmem:[%s3068 + $0x608] sm:$0xff]
    %v3263 = vld [vmem:[%s3068 + $0x610] sm:$0xff]
    %v3264 = vld [vmem:[%s3068 + $0x618] sm:$0xff]
    %v3265 = vld [vmem:[%s3068 + $0x620] sm:$0xff]
    %v3266 = vld [vmem:[%s3068 + $0x628] sm:$0xff]
    %v3267 = vld [vmem:[%s3068 + $0x630] sm:$0xff]
    %v3268 = vld [vmem:[%s3068 + $0x638] sm:$0xff]
    %v3269 = vld [vmem:[%s3068 + $0x640] sm:$0xff]
    %v3270 = vld [vmem:[%s3068 + $0x648] sm:$0xff]
    %v3271 = vld [vmem:[%s3068 + $0x650] sm:$0xff]
    %v3272 = vld [vmem:[%s3068 + $0x658] sm:$0xff]
    %v3273 = vld [vmem:[%s3068 + $0x660] sm:$0xff]
    %v3274 = vld [vmem:[%s3068 + $0x668] sm:$0xff]
    %v3275 = vld [vmem:[%s3068 + $0x670] sm:$0xff]
    %v3276 = vld [vmem:[%s3068 + $0x678] sm:$0xff]
    %v3277 = vld [vmem:[%s3068 + $0x680] sm:$0xff]
    %v3278 = vld [vmem:[%s3068 + $0x688] sm:$0xff]
    %v3279 = vld [vmem:[%s3068 + $0x690] sm:$0xff]
    %v3280 = vld [vmem:[%s3068 + $0x698] sm:$0xff]
    %v3281 = vld [vmem:[%s3068 + $0x6a0] sm:$0xff]
    %v3282 = vld [vmem:[%s3068 + $0x6a8] sm:$0xff]
    %v3283 = vld [vmem:[%s3068 + $0x6b0] sm:$0xff]
    %v3284 = vld [vmem:[%s3068 + $0x6b8] sm:$0xff]
    %v3285 = vld [vmem:[%s3068 + $0x6c0] sm:$0xff]
    %v3286 = vld [vmem:[%s3068 + $0x6c8] sm:$0xff]
    %v3287 = vld [vmem:[%s3068 + $0x6d0] sm:$0xff]
    %v3288 = vld [vmem:[%s3068 + $0x6d8] sm:$0xff]
    %v3289 = vld [vmem:[%s3068 + $0x6e0] sm:$0xff]
    %v3290 = vld [vmem:[%s3068 + $0x6e8] sm:$0xff]
    %v3291 = vld [vmem:[%s3068 + $0x6f0] sm:$0xff]
    %v3292 = vld [vmem:[%s3068 + $0x6f8] sm:$0xff]
    %3293 = vmatprep.subr.mxu0 %v3100
    %3294 = vmatpush1.msra.mxu0 %v3099
    %3295 = vmatprep.subr.mxu0 %v3098
    %3296 = vmatpush1.msra.mxu0 %v3097
    %3297 = vmatprep.subr.mxu0 %v3096
    %3298 = vmatpush1.msra.mxu0 %v3095
    %3299 = vmatprep.subr.mxu0 %v3094
    %3300 = vmatpush1.msra.mxu0 %v3093
    %3301 = vmatprep.subr.mxu0 %v3092
    %3302 = vmatpush1.msra.mxu0 %v3091
    %3303 = vmatprep.subr.mxu0 %v3090
    %3304 = vmatpush1.msra.mxu0 %v3089
    %3305 = vmatprep.subr.mxu0 %v3088
    %3306 = vmatpush1.msra.mxu0 %v3087
    %3307 = vmatprep.subr.mxu0 %v3086
    %3308 = vmatpush1.msra.mxu0 %v3085
    %3309 = vmatprep.subr.mxu0 %v3084
    %3310 = vmatpush1.msra.mxu0 %v3083
    %3311 = vmatprep.subr.mxu0 %v3082
    %3312 = vmatpush1.msra.mxu0 %v3081
    %3313 = vmatprep.subr.mxu0 %v3080
    %3314 = vmatpush1.msra.mxu0 %v3079
    %3315 = vmatprep.subr.mxu0 %v3078
    %3316 = vmatpush1.msra.mxu0 %v3077
    %3317 = vmatprep.subr.mxu0 %v3076
    %3318 = vmatpush1.msra.mxu0 %v3075
    %3319 = vmatprep.subr.mxu0 %v3074
    %3320 = vmatpush1.msra.mxu0 %v3073
    %3321 = vmatprep.subr.mxu0 %v3072
    %3322 = vmatpush1.msra.mxu0 %v3071
    %3323 = vmatprep.subr.mxu0 %v3070
    %3324 = vmatpush1.msra.mxu0 %v3069
    %3325 = vmatprep.subr.mxu0 %v3132
    %3326 = vmatpush2.msra.mxu0 %v3131
    %3327 = vmatprep.subr.mxu0 %v3130
    %3328 = vmatpush2.msra.mxu0 %v3129
    %3329 = vmatprep.subr.mxu0 %v3128
    %3330 = vmatpush2.msra.mxu0 %v3127
    %3331 = vmatprep.subr.mxu0 %v3126
    %3332 = vmatpush2.msra.mxu0 %v3125
    %3333 = vmatprep.subr.mxu0 %v3124
    %3334 = vmatpush2.msra.mxu0 %v3123
    %3335 = vmatprep.subr.mxu0 %v3122
    %3336 = vmatpush2.msra.mxu0 %v3121
    %3337 = vmatprep.subr.mxu0 %v3120
    %3338 = vmatpush2.msra.mxu0 %v3119
    %3339 = vmatprep.subr.mxu0 %v3118
    %3340 = vmatpush2.msra.mxu0 %v3117
    %3341 = vmatprep.subr.mxu0 %v3116
    %3342 = vmatpush2.msra.mxu0 %v3115
    %3343 = vmatprep.subr.mxu0 %v3114
    %3344 = vmatpush2.msra.mxu0 %v3113
    %3345 = vmatprep.subr.mxu0 %v3112
    %3346 = vmatpush2.msra.mxu0 %v3111
    %3347 = vmatprep.subr.mxu0 %v3110
    %3348 = vmatpush2.msra.mxu0 %v3109
    %3349 = vmatprep.subr.mxu0 %v3108
    %3350 = vmatpush2.msra.mxu0 %v3107
    %3351 = vmatprep.subr.mxu0 %v3106
    %3352 = vmatpush2.msra.mxu0 %v3105
    %3353 = vmatprep.subr.mxu0 %v3104
    %3354 = vmatpush2.msra.mxu0 %v3103
    %3355 = vmatprep.subr.mxu0 %v3102
    %3356 = vmatpush2.msra.mxu0 %v3101
    %3357 = vmatprep.mubr.f32.mxu0 %v3062
    %3358 = vmatmul.mubr.f32.gmra.mxu0 %v3061
    %v3359 = vpop.f32.mrf.mxu0
    %v3360 = vadd.f32 0.0, %v3359
    %v3361 = vpop.f32.mrf.mxu0
    %v3362 = vadd.f32 0.0, %v3361
    %3363 = vdwg.mxu0
    %3364 = vmatprep.subr.mxu0 %v3164
    %3365 = vmatpush1.msra.mxu0 %v3163
    %3366 = vmatprep.subr.mxu0 %v3162
    %3367 = vmatpush1.msra.mxu0 %v3161
    %3368 = vmatprep.subr.mxu0 %v3160
    %3369 = vmatpush1.msra.mxu0 %v3159
    %3370 = vmatprep.subr.mxu0 %v3158
    %3371 = vmatpush1.msra.mxu0 %v3157
    %3372 = vmatprep.subr.mxu0 %v3156
    %3373 = vmatpush1.msra.mxu0 %v3155
    %3374 = vmatprep.subr.mxu0 %v3154
    %3375 = vmatpush1.msra.mxu0 %v3153
    %3376 = vmatprep.subr.mxu0 %v3152
    %3377 = vmatpush1.msra.mxu0 %v3151
    %3378 = vmatprep.subr.mxu0 %v3150
    %3379 = vmatpush1.msra.mxu0 %v3149
    %3380 = vmatprep.subr.mxu0 %v3148
    %3381 = vmatpush1.msra.mxu0 %v3147
    %3382 = vmatprep.subr.mxu0 %v3146
    %3383 = vmatpush1.msra.mxu0 %v3145
    %3384 = vmatprep.subr.mxu0 %v3144
    %3385 = vmatpush1.msra.mxu0 %v3143
    %3386 = vmatprep.subr.mxu0 %v3142
    %3387 = vmatpush1.msra.mxu0 %v3141
    %3388 = vmatprep.subr.mxu0 %v3140
    %3389 = vmatpush1.msra.mxu0 %v3139
    %3390 = vmatprep.subr.mxu0 %v3138
    %3391 = vmatpush1.msra.mxu0 %v3137
    %3392 = vmatprep.subr.mxu0 %v3136
    %3393 = vmatpush1.msra.mxu0 %v3135
    %3394 = vmatprep.subr.mxu0 %v3134
    %3395 = vmatpush1.msra.mxu0 %v3133
    %3396 = vmatprep.subr.mxu0 %v3196
    %3397 = vmatpush2.msra.mxu0 %v3195
    %3398 = vmatprep.subr.mxu0 %v3194
    %3399 = vmatpush2.msra.mxu0 %v3193
    %3400 = vmatprep.subr.mxu0 %v3192
    %3401 = vmatpush2.msra.mxu0 %v3191
    %3402 = vmatprep.subr.mxu0 %v3190
    %3403 = vmatpush2.msra.mxu0 %v3189
    %3404 = vmatprep.subr.mxu0 %v3188
    %3405 = vmatpush2.msra.mxu0 %v3187
    %3406 = vmatprep.subr.mxu0 %v3186
    %3407 = vmatpush2.msra.mxu0 %v3185
    %3408 = vmatprep.subr.mxu0 %v3184
    %3409 = vmatpush2.msra.mxu0 %v3183
    %3410 = vmatprep.subr.mxu0 %v3182
    %3411 = vmatpush2.msra.mxu0 %v3181
    %3412 = vmatprep.subr.mxu0 %v3180
    %3413 = vmatpush2.msra.mxu0 %v3179
    %3414 = vmatprep.subr.mxu0 %v3178
    %3415 = vmatpush2.msra.mxu0 %v3177
    %3416 = vmatprep.subr.mxu0 %v3176
    %3417 = vmatpush2.msra.mxu0 %v3175
    %3418 = vmatprep.subr.mxu0 %v3174
    %3419 = vmatpush2.msra.mxu0 %v3173
    %3420 = vmatprep.subr.mxu0 %v3172
    %3421 = vmatpush2.msra.mxu0 %v3171
    %3422 = vmatprep.subr.mxu0 %v3170
    %3423 = vmatpush2.msra.mxu0 %v3169
    %3424 = vmatprep.subr.mxu0 %v3168
    %3425 = vmatpush2.msra.mxu0 %v3167
    %3426 = vmatprep.subr.mxu0 %v3166
    %3427 = vmatpush2.msra.mxu0 %v3165
    %3428 = vmatprep.mubr.f32.mxu0 %v3064
    %3429 = vmatmul.mubr.f32.gmra.mxu0 %v3063
    %v3430 = vpop.f32.mrf.mxu0
    %v3431 = vadd.f32 %v3360, %v3430
    %v3432 = vpop.f32.mrf.mxu0
    %v3433 = vadd.f32 %v3362, %v3432
    %3434 = vdwg.mxu0
    %3435 = vmatprep.subr.mxu0 %v3228
    %3436 = vmatpush1.msra.mxu0 %v3227
    %3437 = vmatprep.subr.mxu0 %v3226
    %3438 = vmatpush1.msra.mxu0 %v3225
    %3439 = vmatprep.subr.mxu0 %v3224
    %3440 = vmatpush1.msra.mxu0 %v3223
    %3441 = vmatprep.subr.mxu0 %v3222
    %3442 = vmatpush1.msra.mxu0 %v3221
    %3443 = vmatprep.subr.mxu0 %v3220
    %3444 = vmatpush1.msra.mxu0 %v3219
    %3445 = vmatprep.subr.mxu0 %v3218
    %3446 = vmatpush1.msra.mxu0 %v3217
    %3447 = vmatprep.subr.mxu0 %v3216
    %3448 = vmatpush1.msra.mxu0 %v3215
    %3449 = vmatprep.subr.mxu0 %v3214
    %3450 = vmatpush1.msra.mxu0 %v3213
    %3451 = vmatprep.subr.mxu0 %v3212
    %3452 = vmatpush1.msra.mxu0 %v3211
    %3453 = vmatprep.subr.mxu0 %v3210
    %3454 = vmatpush1.msra.mxu0 %v3209
    %3455 = vmatprep.subr.mxu0 %v3208
    %3456 = vmatpush1.msra.mxu0 %v3207
    %3457 = vmatprep.subr.mxu0 %v3206
    %3458 = vmatpush1.msra.mxu0 %v3205
    %3459 = vmatprep.subr.mxu0 %v3204
    %3460 = vmatpush1.msra.mxu0 %v3203
    %3461 = vmatprep.subr.mxu0 %v3202
    %3462 = vmatpush1.msra.mxu0 %v3201
    %3463 = vmatprep.subr.mxu0 %v3200
    %3464 = vmatpush1.msra.mxu0 %v3199
    %3465 = vmatprep.subr.mxu0 %v3198
    %3466 = vmatpush1.msra.mxu0 %v3197
    %3467 = vmatprep.subr.mxu0 %v3260
    %3468 = vmatpush2.msra.mxu0 %v3259
    %3469 = vmatprep.subr.mxu0 %v3258
    %3470 = vmatpush2.msra.mxu0 %v3257
    %3471 = vmatprep.subr.mxu0 %v3256
    %3472 = vmatpush2.msra.mxu0 %v3255
    %3473 = vmatprep.subr.mxu0 %v3254
    %3474 = vmatpush2.msra.mxu0 %v3253
    %3475 = vmatprep.subr.mxu0 %v3252
    %3476 = vmatpush2.msra.mxu0 %v3251
    %3477 = vmatprep.subr.mxu0 %v3250
    %3478 = vmatpush2.msra.mxu0 %v3249
    %3479 = vmatprep.subr.mxu0 %v3248
    %3480 = vmatpush2.msra.mxu0 %v3247
    %3481 = vmatprep.subr.mxu0 %v3246
    %3482 = vmatpush2.msra.mxu0 %v3245
    %3483 = vmatprep.subr.mxu0 %v3244
    %3484 = vmatpush2.msra.mxu0 %v3243
    %3485 = vmatprep.subr.mxu0 %v3242
    %3486 = vmatpush2.msra.mxu0 %v3241
    %3487 = vmatprep.subr.mxu0 %v3240
    %3488 = vmatpush2.msra.mxu0 %v3239
    %3489 = vmatprep.subr.mxu0 %v3238
    %3490 = vmatpush2.msra.mxu0 %v3237
    %3491 = vmatprep.subr.mxu0 %v3236
    %3492 = vmatpush2.msra.mxu0 %v3235
    %3493 = vmatprep.subr.mxu0 %v3234
    %3494 = vmatpush2.msra.mxu0 %v3233
    %3495 = vmatprep.subr.mxu0 %v3232
    %3496 = vmatpush2.msra.mxu0 %v3231
    %3497 = vmatprep.subr.mxu0 %v3230
    %3498 = vmatpush2.msra.mxu0 %v3229
    %3499 = vmatprep.mubr.f32.mxu0 %v3066
    %3500 = vmatmul.mubr.f32.gmra.mxu0 %v3065
    %v3501 = vpop.f32.mrf.mxu0
    %v3502 = vadd.f32 %v3431, %v3501
    %v3503 = vpop.f32.mrf.mxu0
    %v3504 = vadd.f32 %v3433, %v3503
    %3505 = vdwg.mxu0
    %3506 = vmatprep.subr.mxu0 %v3292
    %3507 = vmatpush1.msra.mxu0 %v3291
    %3508 = vmatprep.subr.mxu0 %v3290
    %3509 = vmatpush1.msra.mxu0 %v3289
    %3510 = vmatprep.subr.mxu0 %v3288
    %3511 = vmatpush1.msra.mxu0 %v3287
    %3512 = vmatprep.subr.mxu0 %v3286
    %3513 = vmatpush1.msra.mxu0 %v3285
    %3514 = vmatprep.subr.mxu0 %v3284
    %3515 = vmatpush1.msra.mxu0 %v3283
    %3516 = vmatprep.subr.mxu0 %v3282
    %3517 = vmatpush1.msra.mxu0 %v3281
    %3518 = vmatprep.subr.mxu0 %v3280
    %3519 = vmatpush1.msra.mxu0 %v3279
    %3520 = vmatprep.subr.mxu0 %v3278
    %3521 = vmatpush1.msra.mxu0 %v3277
    %3522 = vmatprep.subr.mxu0 %v3276
    %3523 = vmatpush1.msra.mxu0 %v3275
    %3524 = vmatprep.subr.mxu0 %v3274
    %3525 = vmatpush1.msra.mxu0 %v3273
    %3526 = vmatprep.subr.mxu0 %v3272
    %3527 = vmatpush1.msra.mxu0 %v3271
    %3528 = vmatprep.subr.mxu0 %v3270
    %3529 = vmatpush1.msra.mxu0 %v3269
    %3530 = vmatprep.subr.mxu0 %v3268
    %3531 = vmatpush1.msra.mxu0 %v3267
    %3532 = vmatprep.subr.mxu0 %v3266
    %3533 = vmatpush1.msra.mxu0 %v3265
    %3534 = vmatprep.subr.mxu0 %v3264
    %3535 = vmatpush1.msra.mxu0 %v3263
    %3536 = vmatprep.subr.mxu0 %v3262
    %3537 = vmatpush1.msra.mxu0 %v3261
    %3538 = vmatprep.subr.mxu0 0.0
    %3539 = vmatpush2.msra.mxu0 0.0
    %3540 = vmatprep.subr.mxu0 0.0
    %3541 = vmatpush2.msra.mxu0 0.0
    %3542 = vmatprep.subr.mxu0 0.0
    %3543 = vmatpush2.msra.mxu0 0.0
    %3544 = vmatprep.subr.mxu0 0.0
    %3545 = vmatpush2.msra.mxu0 0.0
    %3546 = vmatprep.subr.mxu0 0.0
    %3547 = vmatpush2.msra.mxu0 0.0
    %3548 = vmatprep.subr.mxu0 0.0
    %3549 = vmatpush2.msra.mxu0 0.0
    %3550 = vmatprep.subr.mxu0 0.0
    %3551 = vmatpush2.msra.mxu0 0.0
    %3552 = vmatprep.subr.mxu0 0.0
    %3553 = vmatpush2.msra.mxu0 0.0
    %3554 = vmatprep.subr.mxu0 0.0
    %3555 = vmatpush2.msra.mxu0 0.0
    %3556 = vmatprep.subr.mxu0 0.0
    %3557 = vmatpush2.msra.mxu0 0.0
    %3558 = vmatprep.subr.mxu0 0.0
    %3559 = vmatpush2.msra.mxu0 0.0
    %3560 = vmatprep.subr.mxu0 0.0
    %3561 = vmatpush2.msra.mxu0 0.0
    %3562 = vmatprep.subr.mxu0 0.0
    %3563 = vmatpush2.msra.mxu0 0.0
    %3564 = vmatprep.subr.mxu0 0.0
    %3565 = vmatpush2.msra.mxu0 0.0
    %3566 = vmatprep.subr.mxu0 0.0
    %3567 = vmatpush2.msra.mxu0 0.0
    %3568 = vmatprep.subr.mxu0 0.0
    %3569 = vmatpush2.msra.mxu0 0.0
    %3570 = vmatprep.mubr.f32.mxu0 0.0
    %3571 = vmatmul.mubr.f32.gmra.mxu0 %v3067
    %v3572 = vpop.f32.mrf.mxu0
    %v3573 = vadd.f32 %v3502, %v3572
    %v3574 = vpop.f32.mrf.mxu0
    %v3575 = vadd.f32 %v3504, %v3574
    %3576 = vdwg.mxu0
    %v3577 = vadd.f32 %v3059, %v3573
    %v3578 = vadd.f32 %v3060, %v3575
    %v3579 = vmax.f32 %v2537, 0.0
    %v3580 = vmax.f32 %v2538, 0.0
    %v3581 = vmax.f32 %v2539, 0.0
    %v3582 = vmax.f32 %v2540, 0.0
    %v3583 = vmax.f32 %v2541, 0.0
    %v3584 = vmax.f32 %v2542, 0.0
    %v3585 = vmax.f32 %v2543, 0.0
    %s3586 = scalar_lea.vmem %s5, 3584
    %v3587 = vld [vmem:[%s3586] sm:$0xff]
    %v3588 = vld [vmem:[%s3586 + $0x8] sm:$0xff]
    %v3589 = vld [vmem:[%s3586 + $0x10] sm:$0xff]
    %v3590 = vld [vmem:[%s3586 + $0x18] sm:$0xff]
    %v3591 = vld [vmem:[%s3586 + $0x20] sm:$0xff]
    %v3592 = vld [vmem:[%s3586 + $0x28] sm:$0xff]
    %v3593 = vld [vmem:[%s3586 + $0x30] sm:$0xff]
    %v3594 = vld [vmem:[%s3586 + $0x38] sm:$0xff]
    %v3595 = vld [vmem:[%s3586 + $0x40] sm:$0xff]
    %v3596 = vld [vmem:[%s3586 + $0x48] sm:$0xff]
    %v3597 = vld [vmem:[%s3586 + $0x50] sm:$0xff]
    %v3598 = vld [vmem:[%s3586 + $0x58] sm:$0xff]
    %v3599 = vld [vmem:[%s3586 + $0x60] sm:$0xff]
    %v3600 = vld [vmem:[%s3586 + $0x68] sm:$0xff]
    %v3601 = vld [vmem:[%s3586 + $0x70] sm:$0xff]
    %v3602 = vld [vmem:[%s3586 + $0x78] sm:$0xff]
    %v3603 = vld [vmem:[%s3586 + $0x80] sm:$0xff]
    %v3604 = vld [vmem:[%s3586 + $0x88] sm:$0xff]
    %v3605 = vld [vmem:[%s3586 + $0x90] sm:$0xff]
    %v3606 = vld [vmem:[%s3586 + $0x98] sm:$0xff]
    %v3607 = vld [vmem:[%s3586 + $0xa0] sm:$0xff]
    %v3608 = vld [vmem:[%s3586 + $0xa8] sm:$0xff]
    %v3609 = vld [vmem:[%s3586 + $0xb0] sm:$0xff]
    %v3610 = vld [vmem:[%s3586 + $0xb8] sm:$0xff]
    %v3611 = vld [vmem:[%s3586 + $0xc0] sm:$0xff]
    %v3612 = vld [vmem:[%s3586 + $0xc8] sm:$0xff]
    %v3613 = vld [vmem:[%s3586 + $0xd0] sm:$0xff]
    %v3614 = vld [vmem:[%s3586 + $0xd8] sm:$0xff]
    %v3615 = vld [vmem:[%s3586 + $0xe0] sm:$0xff]
    %v3616 = vld [vmem:[%s3586 + $0xe8] sm:$0xff]
    %v3617 = vld [vmem:[%s3586 + $0xf0] sm:$0xff]
    %v3618 = vld [vmem:[%s3586 + $0xf8] sm:$0xff]
    %v3619 = vld [vmem:[%s3586 + $0x100] sm:$0xff]
    %v3620 = vld [vmem:[%s3586 + $0x108] sm:$0xff]
    %v3621 = vld [vmem:[%s3586 + $0x110] sm:$0xff]
    %v3622 = vld [vmem:[%s3586 + $0x118] sm:$0xff]
    %v3623 = vld [vmem:[%s3586 + $0x120] sm:$0xff]
    %v3624 = vld [vmem:[%s3586 + $0x128] sm:$0xff]
    %v3625 = vld [vmem:[%s3586 + $0x130] sm:$0xff]
    %v3626 = vld [vmem:[%s3586 + $0x138] sm:$0xff]
    %v3627 = vld [vmem:[%s3586 + $0x140] sm:$0xff]
    %v3628 = vld [vmem:[%s3586 + $0x148] sm:$0xff]
    %v3629 = vld [vmem:[%s3586 + $0x150] sm:$0xff]
    %v3630 = vld [vmem:[%s3586 + $0x158] sm:$0xff]
    %v3631 = vld [vmem:[%s3586 + $0x160] sm:$0xff]
    %v3632 = vld [vmem:[%s3586 + $0x168] sm:$0xff]
    %v3633 = vld [vmem:[%s3586 + $0x170] sm:$0xff]
    %v3634 = vld [vmem:[%s3586 + $0x178] sm:$0xff]
    %v3635 = vld [vmem:[%s3586 + $0x180] sm:$0xff]
    %v3636 = vld [vmem:[%s3586 + $0x188] sm:$0xff]
    %v3637 = vld [vmem:[%s3586 + $0x190] sm:$0xff]
    %v3638 = vld [vmem:[%s3586 + $0x198] sm:$0xff]
    %v3639 = vld [vmem:[%s3586 + $0x1a0] sm:$0xff]
    %v3640 = vld [vmem:[%s3586 + $0x1a8] sm:$0xff]
    %v3641 = vld [vmem:[%s3586 + $0x1b0] sm:$0xff]
    %v3642 = vld [vmem:[%s3586 + $0x1b8] sm:$0xff]
    %v3643 = vld [vmem:[%s3586 + $0x1c0] sm:$0xff]
    %v3644 = vld [vmem:[%s3586 + $0x1c8] sm:$0xff]
    %v3645 = vld [vmem:[%s3586 + $0x1d0] sm:$0xff]
    %v3646 = vld [vmem:[%s3586 + $0x1d8] sm:$0xff]
    %v3647 = vld [vmem:[%s3586 + $0x1e0] sm:$0xff]
    %v3648 = vld [vmem:[%s3586 + $0x1e8] sm:$0xff]
    %v3649 = vld [vmem:[%s3586 + $0x1f0] sm:$0xff]
    %v3650 = vld [vmem:[%s3586 + $0x1f8] sm:$0xff]
    %v3651 = vld [vmem:[%s3586 + $0x200] sm:$0xff]
    %v3652 = vld [vmem:[%s3586 + $0x208] sm:$0xff]
    %v3653 = vld [vmem:[%s3586 + $0x210] sm:$0xff]
    %v3654 = vld [vmem:[%s3586 + $0x218] sm:$0xff]
    %v3655 = vld [vmem:[%s3586 + $0x220] sm:$0xff]
    %v3656 = vld [vmem:[%s3586 + $0x228] sm:$0xff]
    %v3657 = vld [vmem:[%s3586 + $0x230] sm:$0xff]
    %v3658 = vld [vmem:[%s3586 + $0x238] sm:$0xff]
    %v3659 = vld [vmem:[%s3586 + $0x240] sm:$0xff]
    %v3660 = vld [vmem:[%s3586 + $0x248] sm:$0xff]
    %v3661 = vld [vmem:[%s3586 + $0x250] sm:$0xff]
    %v3662 = vld [vmem:[%s3586 + $0x258] sm:$0xff]
    %v3663 = vld [vmem:[%s3586 + $0x260] sm:$0xff]
    %v3664 = vld [vmem:[%s3586 + $0x268] sm:$0xff]
    %v3665 = vld [vmem:[%s3586 + $0x270] sm:$0xff]
    %v3666 = vld [vmem:[%s3586 + $0x278] sm:$0xff]
    %v3667 = vld [vmem:[%s3586 + $0x280] sm:$0xff]
    %v3668 = vld [vmem:[%s3586 + $0x288] sm:$0xff]
    %v3669 = vld [vmem:[%s3586 + $0x290] sm:$0xff]
    %v3670 = vld [vmem:[%s3586 + $0x298] sm:$0xff]
    %v3671 = vld [vmem:[%s3586 + $0x2a0] sm:$0xff]
    %v3672 = vld [vmem:[%s3586 + $0x2a8] sm:$0xff]
    %v3673 = vld [vmem:[%s3586 + $0x2b0] sm:$0xff]
    %v3674 = vld [vmem:[%s3586 + $0x2b8] sm:$0xff]
    %v3675 = vld [vmem:[%s3586 + $0x2c0] sm:$0xff]
    %v3676 = vld [vmem:[%s3586 + $0x2c8] sm:$0xff]
    %v3677 = vld [vmem:[%s3586 + $0x2d0] sm:$0xff]
    %v3678 = vld [vmem:[%s3586 + $0x2d8] sm:$0xff]
    %v3679 = vld [vmem:[%s3586 + $0x2e0] sm:$0xff]
    %v3680 = vld [vmem:[%s3586 + $0x2e8] sm:$0xff]
    %v3681 = vld [vmem:[%s3586 + $0x2f0] sm:$0xff]
    %v3682 = vld [vmem:[%s3586 + $0x2f8] sm:$0xff]
    %v3683 = vld [vmem:[%s3586 + $0x300] sm:$0xff]
    %v3684 = vld [vmem:[%s3586 + $0x308] sm:$0xff]
    %v3685 = vld [vmem:[%s3586 + $0x310] sm:$0xff]
    %v3686 = vld [vmem:[%s3586 + $0x318] sm:$0xff]
    %v3687 = vld [vmem:[%s3586 + $0x320] sm:$0xff]
    %v3688 = vld [vmem:[%s3586 + $0x328] sm:$0xff]
    %v3689 = vld [vmem:[%s3586 + $0x330] sm:$0xff]
    %v3690 = vld [vmem:[%s3586 + $0x338] sm:$0xff]
    %v3691 = vld [vmem:[%s3586 + $0x340] sm:$0xff]
    %v3692 = vld [vmem:[%s3586 + $0x348] sm:$0xff]
    %v3693 = vld [vmem:[%s3586 + $0x350] sm:$0xff]
    %v3694 = vld [vmem:[%s3586 + $0x358] sm:$0xff]
    %v3695 = vld [vmem:[%s3586 + $0x360] sm:$0xff]
    %v3696 = vld [vmem:[%s3586 + $0x368] sm:$0xff]
    %v3697 = vld [vmem:[%s3586 + $0x370] sm:$0xff]
    %v3698 = vld [vmem:[%s3586 + $0x378] sm:$0xff]
    %v3699 = vld [vmem:[%s3586 + $0x380] sm:$0xff]
    %v3700 = vld [vmem:[%s3586 + $0x388] sm:$0xff]
    %v3701 = vld [vmem:[%s3586 + $0x390] sm:$0xff]
    %v3702 = vld [vmem:[%s3586 + $0x398] sm:$0xff]
    %v3703 = vld [vmem:[%s3586 + $0x3a0] sm:$0xff]
    %v3704 = vld [vmem:[%s3586 + $0x3a8] sm:$0xff]
    %v3705 = vld [vmem:[%s3586 + $0x3b0] sm:$0xff]
    %v3706 = vld [vmem:[%s3586 + $0x3b8] sm:$0xff]
    %v3707 = vld [vmem:[%s3586 + $0x3c0] sm:$0xff]
    %v3708 = vld [vmem:[%s3586 + $0x3c8] sm:$0xff]
    %v3709 = vld [vmem:[%s3586 + $0x3d0] sm:$0xff]
    %v3710 = vld [vmem:[%s3586 + $0x3d8] sm:$0xff]
    %v3711 = vld [vmem:[%s3586 + $0x3e0] sm:$0xff]
    %v3712 = vld [vmem:[%s3586 + $0x3e8] sm:$0xff]
    %v3713 = vld [vmem:[%s3586 + $0x3f0] sm:$0xff]
    %v3714 = vld [vmem:[%s3586 + $0x3f8] sm:$0xff]
    %v3715 = vld [vmem:[%s3586 + $0x400] sm:$0xff]
    %v3716 = vld [vmem:[%s3586 + $0x408] sm:$0xff]
    %v3717 = vld [vmem:[%s3586 + $0x410] sm:$0xff]
    %v3718 = vld [vmem:[%s3586 + $0x418] sm:$0xff]
    %v3719 = vld [vmem:[%s3586 + $0x420] sm:$0xff]
    %v3720 = vld [vmem:[%s3586 + $0x428] sm:$0xff]
    %v3721 = vld [vmem:[%s3586 + $0x430] sm:$0xff]
    %v3722 = vld [vmem:[%s3586 + $0x438] sm:$0xff]
    %v3723 = vld [vmem:[%s3586 + $0x440] sm:$0xff]
    %v3724 = vld [vmem:[%s3586 + $0x448] sm:$0xff]
    %v3725 = vld [vmem:[%s3586 + $0x450] sm:$0xff]
    %v3726 = vld [vmem:[%s3586 + $0x458] sm:$0xff]
    %v3727 = vld [vmem:[%s3586 + $0x460] sm:$0xff]
    %v3728 = vld [vmem:[%s3586 + $0x468] sm:$0xff]
    %v3729 = vld [vmem:[%s3586 + $0x470] sm:$0xff]
    %v3730 = vld [vmem:[%s3586 + $0x478] sm:$0xff]
    %v3731 = vld [vmem:[%s3586 + $0x480] sm:$0xff]
    %v3732 = vld [vmem:[%s3586 + $0x488] sm:$0xff]
    %v3733 = vld [vmem:[%s3586 + $0x490] sm:$0xff]
    %v3734 = vld [vmem:[%s3586 + $0x498] sm:$0xff]
    %v3735 = vld [vmem:[%s3586 + $0x4a0] sm:$0xff]
    %v3736 = vld [vmem:[%s3586 + $0x4a8] sm:$0xff]
    %v3737 = vld [vmem:[%s3586 + $0x4b0] sm:$0xff]
    %v3738 = vld [vmem:[%s3586 + $0x4b8] sm:$0xff]
    %v3739 = vld [vmem:[%s3586 + $0x4c0] sm:$0xff]
    %v3740 = vld [vmem:[%s3586 + $0x4c8] sm:$0xff]
    %v3741 = vld [vmem:[%s3586 + $0x4d0] sm:$0xff]
    %v3742 = vld [vmem:[%s3586 + $0x4d8] sm:$0xff]
    %v3743 = vld [vmem:[%s3586 + $0x4e0] sm:$0xff]
    %v3744 = vld [vmem:[%s3586 + $0x4e8] sm:$0xff]
    %v3745 = vld [vmem:[%s3586 + $0x4f0] sm:$0xff]
    %v3746 = vld [vmem:[%s3586 + $0x4f8] sm:$0xff]
    %v3747 = vld [vmem:[%s3586 + $0x500] sm:$0xff]
    %v3748 = vld [vmem:[%s3586 + $0x508] sm:$0xff]
    %v3749 = vld [vmem:[%s3586 + $0x510] sm:$0xff]
    %v3750 = vld [vmem:[%s3586 + $0x518] sm:$0xff]
    %v3751 = vld [vmem:[%s3586 + $0x520] sm:$0xff]
    %v3752 = vld [vmem:[%s3586 + $0x528] sm:$0xff]
    %v3753 = vld [vmem:[%s3586 + $0x530] sm:$0xff]
    %v3754 = vld [vmem:[%s3586 + $0x538] sm:$0xff]
    %v3755 = vld [vmem:[%s3586 + $0x540] sm:$0xff]
    %v3756 = vld [vmem:[%s3586 + $0x548] sm:$0xff]
    %v3757 = vld [vmem:[%s3586 + $0x550] sm:$0xff]
    %v3758 = vld [vmem:[%s3586 + $0x558] sm:$0xff]
    %v3759 = vld [vmem:[%s3586 + $0x560] sm:$0xff]
    %v3760 = vld [vmem:[%s3586 + $0x568] sm:$0xff]
    %v3761 = vld [vmem:[%s3586 + $0x570] sm:$0xff]
    %v3762 = vld [vmem:[%s3586 + $0x578] sm:$0xff]
    %v3763 = vld [vmem:[%s3586 + $0x580] sm:$0xff]
    %v3764 = vld [vmem:[%s3586 + $0x588] sm:$0xff]
    %v3765 = vld [vmem:[%s3586 + $0x590] sm:$0xff]
    %v3766 = vld [vmem:[%s3586 + $0x598] sm:$0xff]
    %v3767 = vld [vmem:[%s3586 + $0x5a0] sm:$0xff]
    %v3768 = vld [vmem:[%s3586 + $0x5a8] sm:$0xff]
    %v3769 = vld [vmem:[%s3586 + $0x5b0] sm:$0xff]
    %v3770 = vld [vmem:[%s3586 + $0x5b8] sm:$0xff]
    %v3771 = vld [vmem:[%s3586 + $0x5c0] sm:$0xff]
    %v3772 = vld [vmem:[%s3586 + $0x5c8] sm:$0xff]
    %v3773 = vld [vmem:[%s3586 + $0x5d0] sm:$0xff]
    %v3774 = vld [vmem:[%s3586 + $0x5d8] sm:$0xff]
    %v3775 = vld [vmem:[%s3586 + $0x5e0] sm:$0xff]
    %v3776 = vld [vmem:[%s3586 + $0x5e8] sm:$0xff]
    %v3777 = vld [vmem:[%s3586 + $0x5f0] sm:$0xff]
    %v3778 = vld [vmem:[%s3586 + $0x5f8] sm:$0xff]
    %v3779 = vld [vmem:[%s3586 + $0x600] sm:$0xff]
    %v3780 = vld [vmem:[%s3586 + $0x608] sm:$0xff]
    %v3781 = vld [vmem:[%s3586 + $0x610] sm:$0xff]
    %v3782 = vld [vmem:[%s3586 + $0x618] sm:$0xff]
    %v3783 = vld [vmem:[%s3586 + $0x620] sm:$0xff]
    %v3784 = vld [vmem:[%s3586 + $0x628] sm:$0xff]
    %v3785 = vld [vmem:[%s3586 + $0x630] sm:$0xff]
    %v3786 = vld [vmem:[%s3586 + $0x638] sm:$0xff]
    %v3787 = vld [vmem:[%s3586 + $0x640] sm:$0xff]
    %v3788 = vld [vmem:[%s3586 + $0x648] sm:$0xff]
    %v3789 = vld [vmem:[%s3586 + $0x650] sm:$0xff]
    %v3790 = vld [vmem:[%s3586 + $0x658] sm:$0xff]
    %v3791 = vld [vmem:[%s3586 + $0x660] sm:$0xff]
    %v3792 = vld [vmem:[%s3586 + $0x668] sm:$0xff]
    %v3793 = vld [vmem:[%s3586 + $0x670] sm:$0xff]
    %v3794 = vld [vmem:[%s3586 + $0x678] sm:$0xff]
    %v3795 = vld [vmem:[%s3586 + $0x680] sm:$0xff]
    %v3796 = vld [vmem:[%s3586 + $0x688] sm:$0xff]
    %v3797 = vld [vmem:[%s3586 + $0x690] sm:$0xff]
    %v3798 = vld [vmem:[%s3586 + $0x698] sm:$0xff]
    %v3799 = vld [vmem:[%s3586 + $0x6a0] sm:$0xff]
    %v3800 = vld [vmem:[%s3586 + $0x6a8] sm:$0xff]
    %v3801 = vld [vmem:[%s3586 + $0x6b0] sm:$0xff]
    %v3802 = vld [vmem:[%s3586 + $0x6b8] sm:$0xff]
    %v3803 = vld [vmem:[%s3586 + $0x6c0] sm:$0xff]
    %v3804 = vld [vmem:[%s3586 + $0x6c8] sm:$0xff]
    %v3805 = vld [vmem:[%s3586 + $0x6d0] sm:$0xff]
    %v3806 = vld [vmem:[%s3586 + $0x6d8] sm:$0xff]
    %v3807 = vld [vmem:[%s3586 + $0x6e0] sm:$0xff]
    %v3808 = vld [vmem:[%s3586 + $0x6e8] sm:$0xff]
    %v3809 = vld [vmem:[%s3586 + $0x6f0] sm:$0xff]
    %v3810 = vld [vmem:[%s3586 + $0x6f8] sm:$0xff]
    %3811 = vmatprep.subr.mxu0 %v3618
    %3812 = vmatpush1.msra.mxu0 %v3617
    %3813 = vmatprep.subr.mxu0 %v3616
    %3814 = vmatpush1.msra.mxu0 %v3615
    %3815 = vmatprep.subr.mxu0 %v3614
    %3816 = vmatpush1.msra.mxu0 %v3613
    %3817 = vmatprep.subr.mxu0 %v3612
    %3818 = vmatpush1.msra.mxu0 %v3611
    %3819 = vmatprep.subr.mxu0 %v3610
    %3820 = vmatpush1.msra.mxu0 %v3609
    %3821 = vmatprep.subr.mxu0 %v3608
    %3822 = vmatpush1.msra.mxu0 %v3607
    %3823 = vmatprep.subr.mxu0 %v3606
    %3824 = vmatpush1.msra.mxu0 %v3605
    %3825 = vmatprep.subr.mxu0 %v3604
    %3826 = vmatpush1.msra.mxu0 %v3603
    %3827 = vmatprep.subr.mxu0 %v3602
    %3828 = vmatpush1.msra.mxu0 %v3601
    %3829 = vmatprep.subr.mxu0 %v3600
    %3830 = vmatpush1.msra.mxu0 %v3599
    %3831 = vmatprep.subr.mxu0 %v3598
    %3832 = vmatpush1.msra.mxu0 %v3597
    %3833 = vmatprep.subr.mxu0 %v3596
    %3834 = vmatpush1.msra.mxu0 %v3595
    %3835 = vmatprep.subr.mxu0 %v3594
    %3836 = vmatpush1.msra.mxu0 %v3593
    %3837 = vmatprep.subr.mxu0 %v3592
    %3838 = vmatpush1.msra.mxu0 %v3591
    %3839 = vmatprep.subr.mxu0 %v3590
    %3840 = vmatpush1.msra.mxu0 %v3589
    %3841 = vmatprep.subr.mxu0 %v3588
    %3842 = vmatpush1.msra.mxu0 %v3587
    %3843 = vmatprep.subr.mxu0 %v3650
    %3844 = vmatpush2.msra.mxu0 %v3649
    %3845 = vmatprep.subr.mxu0 %v3648
    %3846 = vmatpush2.msra.mxu0 %v3647
    %3847 = vmatprep.subr.mxu0 %v3646
    %3848 = vmatpush2.msra.mxu0 %v3645
    %3849 = vmatprep.subr.mxu0 %v3644
    %3850 = vmatpush2.msra.mxu0 %v3643
    %3851 = vmatprep.subr.mxu0 %v3642
    %3852 = vmatpush2.msra.mxu0 %v3641
    %3853 = vmatprep.subr.mxu0 %v3640
    %3854 = vmatpush2.msra.mxu0 %v3639
    %3855 = vmatprep.subr.mxu0 %v3638
    %3856 = vmatpush2.msra.mxu0 %v3637
    %3857 = vmatprep.subr.mxu0 %v3636
    %3858 = vmatpush2.msra.mxu0 %v3635
    %3859 = vmatprep.subr.mxu0 %v3634
    %3860 = vmatpush2.msra.mxu0 %v3633
    %3861 = vmatprep.subr.mxu0 %v3632
    %3862 = vmatpush2.msra.mxu0 %v3631
    %3863 = vmatprep.subr.mxu0 %v3630
    %3864 = vmatpush2.msra.mxu0 %v3629
    %3865 = vmatprep.subr.mxu0 %v3628
    %3866 = vmatpush2.msra.mxu0 %v3627
    %3867 = vmatprep.subr.mxu0 %v3626
    %3868 = vmatpush2.msra.mxu0 %v3625
    %3869 = vmatprep.subr.mxu0 %v3624
    %3870 = vmatpush2.msra.mxu0 %v3623
    %3871 = vmatprep.subr.mxu0 %v3622
    %3872 = vmatpush2.msra.mxu0 %v3621
    %3873 = vmatprep.subr.mxu0 %v3620
    %3874 = vmatpush2.msra.mxu0 %v3619
    %3875 = vmatprep.mubr.f32.mxu0 %v3580
    %3876 = vmatmul.mubr.f32.gmra.mxu0 %v3579
    %v3877 = vpop.f32.mrf.mxu0
    %v3878 = vadd.f32 0.0, %v3877
    %v3879 = vpop.f32.mrf.mxu0
    %v3880 = vadd.f32 0.0, %v3879
    %3881 = vdwg.mxu0
    %3882 = vmatprep.subr.mxu0 %v3682
    %3883 = vmatpush1.msra.mxu0 %v3681
    %3884 = vmatprep.subr.mxu0 %v3680
    %3885 = vmatpush1.msra.mxu0 %v3679
    %3886 = vmatprep.subr.mxu0 %v3678
    %3887 = vmatpush1.msra.mxu0 %v3677
    %3888 = vmatprep.subr.mxu0 %v3676
    %3889 = vmatpush1.msra.mxu0 %v3675
    %3890 = vmatprep.subr.mxu0 %v3674
    %3891 = vmatpush1.msra.mxu0 %v3673
    %3892 = vmatprep.subr.mxu0 %v3672
    %3893 = vmatpush1.msra.mxu0 %v3671
    %3894 = vmatprep.subr.mxu0 %v3670
    %3895 = vmatpush1.msra.mxu0 %v3669
    %3896 = vmatprep.subr.mxu0 %v3668
    %3897 = vmatpush1.msra.mxu0 %v3667
    %3898 = vmatprep.subr.mxu0 %v3666
    %3899 = vmatpush1.msra.mxu0 %v3665
    %3900 = vmatprep.subr.mxu0 %v3664
    %3901 = vmatpush1.msra.mxu0 %v3663
    %3902 = vmatprep.subr.mxu0 %v3662
    %3903 = vmatpush1.msra.mxu0 %v3661
    %3904 = vmatprep.subr.mxu0 %v3660
    %3905 = vmatpush1.msra.mxu0 %v3659
    %3906 = vmatprep.subr.mxu0 %v3658
    %3907 = vmatpush1.msra.mxu0 %v3657
    %3908 = vmatprep.subr.mxu0 %v3656
    %3909 = vmatpush1.msra.mxu0 %v3655
    %3910 = vmatprep.subr.mxu0 %v3654
    %3911 = vmatpush1.msra.mxu0 %v3653
    %3912 = vmatprep.subr.mxu0 %v3652
    %3913 = vmatpush1.msra.mxu0 %v3651
    %3914 = vmatprep.subr.mxu0 %v3714
    %3915 = vmatpush2.msra.mxu0 %v3713
    %3916 = vmatprep.subr.mxu0 %v3712
    %3917 = vmatpush2.msra.mxu0 %v3711
    %3918 = vmatprep.subr.mxu0 %v3710
    %3919 = vmatpush2.msra.mxu0 %v3709
    %3920 = vmatprep.subr.mxu0 %v3708
    %3921 = vmatpush2.msra.mxu0 %v3707
    %3922 = vmatprep.subr.mxu0 %v3706
    %3923 = vmatpush2.msra.mxu0 %v3705
    %3924 = vmatprep.subr.mxu0 %v3704
    %3925 = vmatpush2.msra.mxu0 %v3703
    %3926 = vmatprep.subr.mxu0 %v3702
    %3927 = vmatpush2.msra.mxu0 %v3701
    %3928 = vmatprep.subr.mxu0 %v3700
    %3929 = vmatpush2.msra.mxu0 %v3699
    %3930 = vmatprep.subr.mxu0 %v3698
    %3931 = vmatpush2.msra.mxu0 %v3697
    %3932 = vmatprep.subr.mxu0 %v3696
    %3933 = vmatpush2.msra.mxu0 %v3695
    %3934 = vmatprep.subr.mxu0 %v3694
    %3935 = vmatpush2.msra.mxu0 %v3693
    %3936 = vmatprep.subr.mxu0 %v3692
    %3937 = vmatpush2.msra.mxu0 %v3691
    %3938 = vmatprep.subr.mxu0 %v3690
    %3939 = vmatpush2.msra.mxu0 %v3689
    %3940 = vmatprep.subr.mxu0 %v3688
    %3941 = vmatpush2.msra.mxu0 %v3687
    %3942 = vmatprep.subr.mxu0 %v3686
    %3943 = vmatpush2.msra.mxu0 %v3685
    %3944 = vmatprep.subr.mxu0 %v3684
    %3945 = vmatpush2.msra.mxu0 %v3683
    %3946 = vmatprep.mubr.f32.mxu0 %v3582
    %3947 = vmatmul.mubr.f32.gmra.mxu0 %v3581
    %v3948 = vpop.f32.mrf.mxu0
    %v3949 = vadd.f32 %v3878, %v3948
    %v3950 = vpop.f32.mrf.mxu0
    %v3951 = vadd.f32 %v3880, %v3950
    %3952 = vdwg.mxu0
    %3953 = vmatprep.subr.mxu0 %v3746
    %3954 = vmatpush1.msra.mxu0 %v3745
    %3955 = vmatprep.subr.mxu0 %v3744
    %3956 = vmatpush1.msra.mxu0 %v3743
    %3957 = vmatprep.subr.mxu0 %v3742
    %3958 = vmatpush1.msra.mxu0 %v3741
    %3959 = vmatprep.subr.mxu0 %v3740
    %3960 = vmatpush1.msra.mxu0 %v3739
    %3961 = vmatprep.subr.mxu0 %v3738
    %3962 = vmatpush1.msra.mxu0 %v3737
    %3963 = vmatprep.subr.mxu0 %v3736
    %3964 = vmatpush1.msra.mxu0 %v3735
    %3965 = vmatprep.subr.mxu0 %v3734
    %3966 = vmatpush1.msra.mxu0 %v3733
    %3967 = vmatprep.subr.mxu0 %v3732
    %3968 = vmatpush1.msra.mxu0 %v3731
    %3969 = vmatprep.subr.mxu0 %v3730
    %3970 = vmatpush1.msra.mxu0 %v3729
    %3971 = vmatprep.subr.mxu0 %v3728
    %3972 = vmatpush1.msra.mxu0 %v3727
    %3973 = vmatprep.subr.mxu0 %v3726
    %3974 = vmatpush1.msra.mxu0 %v3725
    %3975 = vmatprep.subr.mxu0 %v3724
    %3976 = vmatpush1.msra.mxu0 %v3723
    %3977 = vmatprep.subr.mxu0 %v3722
    %3978 = vmatpush1.msra.mxu0 %v3721
    %3979 = vmatprep.subr.mxu0 %v3720
    %3980 = vmatpush1.msra.mxu0 %v3719
    %3981 = vmatprep.subr.mxu0 %v3718
    %3982 = vmatpush1.msra.mxu0 %v3717
    %3983 = vmatprep.subr.mxu0 %v3716
    %3984 = vmatpush1.msra.mxu0 %v3715
    %3985 = vmatprep.subr.mxu0 %v3778
    %3986 = vmatpush2.msra.mxu0 %v3777
    %3987 = vmatprep.subr.mxu0 %v3776
    %3988 = vmatpush2.msra.mxu0 %v3775
    %3989 = vmatprep.subr.mxu0 %v3774
    %3990 = vmatpush2.msra.mxu0 %v3773
    %3991 = vmatprep.subr.mxu0 %v3772
    %3992 = vmatpush2.msra.mxu0 %v3771
    %3993 = vmatprep.subr.mxu0 %v3770
    %3994 = vmatpush2.msra.mxu0 %v3769
    %3995 = vmatprep.subr.mxu0 %v3768
    %3996 = vmatpush2.msra.mxu0 %v3767
    %3997 = vmatprep.subr.mxu0 %v3766
    %3998 = vmatpush2.msra.mxu0 %v3765
    %3999 = vmatprep.subr.mxu0 %v3764
    %4000 = vmatpush2.msra.mxu0 %v3763
    %4001 = vmatprep.subr.mxu0 %v3762
    %4002 = vmatpush2.msra.mxu0 %v3761
    %4003 = vmatprep.subr.mxu0 %v3760
    %4004 = vmatpush2.msra.mxu0 %v3759
    %4005 = vmatprep.subr.mxu0 %v3758
    %4006 = vmatpush2.msra.mxu0 %v3757
    %4007 = vmatprep.subr.mxu0 %v3756
    %4008 = vmatpush2.msra.mxu0 %v3755
    %4009 = vmatprep.subr.mxu0 %v3754
    %4010 = vmatpush2.msra.mxu0 %v3753
    %4011 = vmatprep.subr.mxu0 %v3752
    %4012 = vmatpush2.msra.mxu0 %v3751
    %4013 = vmatprep.subr.mxu0 %v3750
    %4014 = vmatpush2.msra.mxu0 %v3749
    %4015 = vmatprep.subr.mxu0 %v3748
    %4016 = vmatpush2.msra.mxu0 %v3747
    %4017 = vmatprep.mubr.f32.mxu0 %v3584
    %4018 = vmatmul.mubr.f32.gmra.mxu0 %v3583
    %v4019 = vpop.f32.mrf.mxu0
    %v4020 = vadd.f32 %v3949, %v4019
    %v4021 = vpop.f32.mrf.mxu0
    %v4022 = vadd.f32 %v3951, %v4021
    %4023 = vdwg.mxu0
    %4024 = vmatprep.subr.mxu0 %v3810
    %4025 = vmatpush1.msra.mxu0 %v3809
    %4026 = vmatprep.subr.mxu0 %v3808
    %4027 = vmatpush1.msra.mxu0 %v3807
    %4028 = vmatprep.subr.mxu0 %v3806
    %4029 = vmatpush1.msra.mxu0 %v3805
    %4030 = vmatprep.subr.mxu0 %v3804
    %4031 = vmatpush1.msra.mxu0 %v3803
    %4032 = vmatprep.subr.mxu0 %v3802
    %4033 = vmatpush1.msra.mxu0 %v3801
    %4034 = vmatprep.subr.mxu0 %v3800
    %4035 = vmatpush1.msra.mxu0 %v3799
    %4036 = vmatprep.subr.mxu0 %v3798
    %4037 = vmatpush1.msra.mxu0 %v3797
    %4038 = vmatprep.subr.mxu0 %v3796
    %4039 = vmatpush1.msra.mxu0 %v3795
    %4040 = vmatprep.subr.mxu0 %v3794
    %4041 = vmatpush1.msra.mxu0 %v3793
    %4042 = vmatprep.subr.mxu0 %v3792
    %4043 = vmatpush1.msra.mxu0 %v3791
    %4044 = vmatprep.subr.mxu0 %v3790
    %4045 = vmatpush1.msra.mxu0 %v3789
    %4046 = vmatprep.subr.mxu0 %v3788
    %4047 = vmatpush1.msra.mxu0 %v3787
    %4048 = vmatprep.subr.mxu0 %v3786
    %4049 = vmatpush1.msra.mxu0 %v3785
    %4050 = vmatprep.subr.mxu0 %v3784
    %4051 = vmatpush1.msra.mxu0 %v3783
    %4052 = vmatprep.subr.mxu0 %v3782
    %4053 = vmatpush1.msra.mxu0 %v3781
    %4054 = vmatprep.subr.mxu0 %v3780
    %4055 = vmatpush1.msra.mxu0 %v3779
    %4056 = vmatprep.subr.mxu0 0.0
    %4057 = vmatpush2.msra.mxu0 0.0
    %4058 = vmatprep.subr.mxu0 0.0
    %4059 = vmatpush2.msra.mxu0 0.0
    %4060 = vmatprep.subr.mxu0 0.0
    %4061 = vmatpush2.msra.mxu0 0.0
    %4062 = vmatprep.subr.mxu0 0.0
    %4063 = vmatpush2.msra.mxu0 0.0
    %4064 = vmatprep.subr.mxu0 0.0
    %4065 = vmatpush2.msra.mxu0 0.0
    %4066 = vmatprep.subr.mxu0 0.0
    %4067 = vmatpush2.msra.mxu0 0.0
    %4068 = vmatprep.subr.mxu0 0.0
    %4069 = vmatpush2.msra.mxu0 0.0
    %4070 = vmatprep.subr.mxu0 0.0
    %4071 = vmatpush2.msra.mxu0 0.0
    %4072 = vmatprep.subr.mxu0 0.0
    %4073 = vmatpush2.msra.mxu0 0.0
    %4074 = vmatprep.subr.mxu0 0.0
    %4075 = vmatpush2.msra.mxu0 0.0
    %4076 = vmatprep.subr.mxu0 0.0
    %4077 = vmatpush2.msra.mxu0 0.0
    %4078 = vmatprep.subr.mxu0 0.0
    %4079 = vmatpush2.msra.mxu0 0.0
    %4080 = vmatprep.subr.mxu0 0.0
    %4081 = vmatpush2.msra.mxu0 0.0
    %4082 = vmatprep.subr.mxu0 0.0
    %4083 = vmatpush2.msra.mxu0 0.0
    %4084 = vmatprep.subr.mxu0 0.0
    %4085 = vmatpush2.msra.mxu0 0.0
    %4086 = vmatprep.subr.mxu0 0.0
    %4087 = vmatpush2.msra.mxu0 0.0
    %4088 = vmatprep.mubr.f32.mxu0 0.0
    %4089 = vmatmul.mubr.f32.gmra.mxu0 %v3585
    %v4090 = vpop.f32.mrf.mxu0
    %v4091 = vadd.f32 %v4020, %v4090
    %v4092 = vpop.f32.mrf.mxu0
    %v4093 = vadd.f32 %v4022, %v4092
    %4094 = vdwg.mxu0
    %v4095 = vadd.f32 %v3577, %v4091
    %v4096 = vadd.f32 %v3578, %v4093
    %s4097 = sld [smem:[#allocation7 + $0x3]]
    %v4098 = vstv %s4097
    %s4099 = sld [smem:[#allocation7 + $0x4]]
    %v4100 = vstv %s4099
    %s4101 = sld [smem:[#allocation7 + $0x5]]
    %v4102 = vstv %s4101
    %s4103 = sld [smem:[#allocation6 + $0x51]]
    %v4104 = vstv %s4103
    %v4105 = vmul.f32 %v4104, %v703
    %v4106 = vmul.f32 %v4104, %v704
    %v4107 = vmul.f32 %v4104, %v705
    %v4108 = vmul.f32 %v4104, %v706
    %v4109 = vmul.f32 %v4104, %v707
    %v4110 = vmul.f32 %v4104, %v708
    %v4111 = vmul.f32 %v4104, %v709
    %v4112 = vadd.f32 %v4098, %v4105
    %v4113 = vadd.f32 %v4098, %v4106
    %v4114 = vadd.f32 %v4098, %v4107
    %v4115 = vadd.f32 %v4098, %v4108
    %v4116 = vadd.f32 %v4098, %v4109
    %v4117 = vadd.f32 %v4098, %v4110
    %v4118 = vadd.f32 %v4098, %v4111
    %s4119 = sld [smem:[#allocation6 + $0x6c]]
    %v4120 = vstv %s4119
    %v4121 = vmul.f32 %v4120, %v703
    %v4122 = vmul.f32 %v4120, %v704
    %v4123 = vmul.f32 %v4120, %v705
    %v4124 = vmul.f32 %v4120, %v706
    %v4125 = vmul.f32 %v4120, %v707
    %v4126 = vmul.f32 %v4120, %v708
    %v4127 = vmul.f32 %v4120, %v709
    %v4128 = vadd.f32 %v4100, %v4121
    %v4129 = vadd.f32 %v4100, %v4122
    %v4130 = vadd.f32 %v4100, %v4123
    %v4131 = vadd.f32 %v4100, %v4124
    %v4132 = vadd.f32 %v4100, %v4125
    %v4133 = vadd.f32 %v4100, %v4126
    %v4134 = vadd.f32 %v4100, %v4127
    %s4135 = sld [smem:[#allocation6 + $0x87]]
    %v4136 = vstv %s4135
    %v4137 = vmul.f32 %v4136, %v703
    %v4138 = vmul.f32 %v4136, %v704
    %v4139 = vmul.f32 %v4136, %v705
    %v4140 = vmul.f32 %v4136, %v706
    %v4141 = vmul.f32 %v4136, %v707
    %v4142 = vmul.f32 %v4136, %v708
    %v4143 = vmul.f32 %v4136, %v709
    %v4144 = vadd.f32 %v4102, %v4137
    %v4145 = vadd.f32 %v4102, %v4138
    %v4146 = vadd.f32 %v4102, %v4139
    %v4147 = vadd.f32 %v4102, %v4140
    %v4148 = vadd.f32 %v4102, %v4141
    %v4149 = vadd.f32 %v4102, %v4142
    %v4150 = vadd.f32 %v4102, %v4143
    %s4151 = sld [smem:[#allocation6 + $0x52]]
    %v4152 = vstv %s4151
    %v4153 = vmul.f32 %v4152, %v811
    %v4154 = vmul.f32 %v4152, %v810
    %v4155 = vmul.f32 %v4152, %v809
    %v4156 = vmul.f32 %v4152, %v808
    %v4157 = vmul.f32 %v4152, %v807
    %v4158 = vmul.f32 %v4152, %v806
    %v4159 = vmul.f32 %v4152, %v812
    %v4160 = vadd.f32 %v4112, %v4153
    %v4161 = vadd.f32 %v4113, %v4154
    %v4162 = vadd.f32 %v4114, %v4155
    %v4163 = vadd.f32 %v4115, %v4156
    %v4164 = vadd.f32 %v4116, %v4157
    %v4165 = vadd.f32 %v4117, %v4158
    %v4166 = vadd.f32 %v4118, %v4159
    %s4167 = sld [smem:[#allocation6 + $0x6d]]
    %v4168 = vstv %s4167
    %v4169 = vmul.f32 %v4168, %v811
    %v4170 = vmul.f32 %v4168, %v810
    %v4171 = vmul.f32 %v4168, %v809
    %v4172 = vmul.f32 %v4168, %v808
    %v4173 = vmul.f32 %v4168, %v807
    %v4174 = vmul.f32 %v4168, %v806
    %v4175 = vmul.f32 %v4168, %v812
    %v4176 = vadd.f32 %v4128, %v4169
    %v4177 = vadd.f32 %v4129, %v4170
    %v4178 = vadd.f32 %v4130, %v4171
    %v4179 = vadd.f32 %v4131, %v4172
    %v4180 = vadd.f32 %v4132, %v4173
    %v4181 = vadd.f32 %v4133, %v4174
    %v4182 = vadd.f32 %v4134, %v4175
    %s4183 = sld [smem:[#allocation6 + $0x88]]
    %v4184 = vstv %s4183
    %v4185 = vmul.f32 %v4184, %v811
    %v4186 = vmul.f32 %v4184, %v810
    %v4187 = vmul.f32 %v4184, %v809
    %v4188 = vmul.f32 %v4184, %v808
    %v4189 = vmul.f32 %v4184, %v807
    %v4190 = vmul.f32 %v4184, %v806
    %v4191 = vmul.f32 %v4184, %v812
    %v4192 = vadd.f32 %v4144, %v4185
    %v4193 = vadd.f32 %v4145, %v4186
    %v4194 = vadd.f32 %v4146, %v4187
    %v4195 = vadd.f32 %v4147, %v4188
    %v4196 = vadd.f32 %v4148, %v4189
    %v4197 = vadd.f32 %v4149, %v4190
    %v4198 = vadd.f32 %v4150, %v4191
    %s4199 = sld [smem:[#allocation6 + $0x53]]
    %v4200 = vstv %s4199
    %v4201 = vmul.f32 %v4200, %v880
    %v4202 = vmul.f32 %v4200, %v879
    %v4203 = vmul.f32 %v4200, %v878
    %v4204 = vmul.f32 %v4200, %v877
    %v4205 = vmul.f32 %v4200, %v876
    %v4206 = vmul.f32 %v4200, %v875
    %v4207 = vmul.f32 %v4200, %v881
    %v4208 = vadd.f32 %v4160, %v4201
    %v4209 = vadd.f32 %v4161, %v4202
    %v4210 = vadd.f32 %v4162, %v4203
    %v4211 = vadd.f32 %v4163, %v4204
    %v4212 = vadd.f32 %v4164, %v4205
    %v4213 = vadd.f32 %v4165, %v4206
    %v4214 = vadd.f32 %v4166, %v4207
    %s4215 = sld [smem:[#allocation6 + $0x6e]]
    %v4216 = vstv %s4215
    %v4217 = vmul.f32 %v4216, %v880
    %v4218 = vmul.f32 %v4216, %v879
    %v4219 = vmul.f32 %v4216, %v878
    %v4220 = vmul.f32 %v4216, %v877
    %v4221 = vmul.f32 %v4216, %v876
    %v4222 = vmul.f32 %v4216, %v875
    %v4223 = vmul.f32 %v4216, %v881
    %v4224 = vadd.f32 %v4176, %v4217
    %v4225 = vadd.f32 %v4177, %v4218
    %v4226 = vadd.f32 %v4178, %v4219
    %v4227 = vadd.f32 %v4179, %v4220
    %v4228 = vadd.f32 %v4180, %v4221
    %v4229 = vadd.f32 %v4181, %v4222
    %v4230 = vadd.f32 %v4182, %v4223
    %s4231 = sld [smem:[#allocation6 + $0x89]]
    %v4232 = vstv %s4231
    %v4233 = vmul.f32 %v4232, %v880
    %v4234 = vmul.f32 %v4232, %v879
    %v4235 = vmul.f32 %v4232, %v878
    %v4236 = vmul.f32 %v4232, %v877
    %v4237 = vmul.f32 %v4232, %v876
    %v4238 = vmul.f32 %v4232, %v875
    %v4239 = vmul.f32 %v4232, %v881
    %v4240 = vadd.f32 %v4192, %v4233
    %v4241 = vadd.f32 %v4193, %v4234
    %v4242 = vadd.f32 %v4194, %v4235
    %v4243 = vadd.f32 %v4195, %v4236
    %v4244 = vadd.f32 %v4196, %v4237
    %v4245 = vadd.f32 %v4197, %v4238
    %v4246 = vadd.f32 %v4198, %v4239
    %s4247 = sld [smem:[#allocation6 + $0x54]]
    %v4248 = vstv %s4247
    %v4249 = vmul.f32 %v4248, %v949
    %v4250 = vmul.f32 %v4248, %v948
    %v4251 = vmul.f32 %v4248, %v947
    %v4252 = vmul.f32 %v4248, %v946
    %v4253 = vmul.f32 %v4248, %v945
    %v4254 = vmul.f32 %v4248, %v944
    %v4255 = vmul.f32 %v4248, %v950
    %v4256 = vadd.f32 %v4208, %v4249
    %v4257 = vadd.f32 %v4209, %v4250
    %v4258 = vadd.f32 %v4210, %v4251
    %v4259 = vadd.f32 %v4211, %v4252
    %v4260 = vadd.f32 %v4212, %v4253
    %v4261 = vadd.f32 %v4213, %v4254
    %v4262 = vadd.f32 %v4214, %v4255
    %s4263 = sld [smem:[#allocation6 + $0x6f]]
    %v4264 = vstv %s4263
    %v4265 = vmul.f32 %v4264, %v949
    %v4266 = vmul.f32 %v4264, %v948
    %v4267 = vmul.f32 %v4264, %v947
    %v4268 = vmul.f32 %v4264, %v946
    %v4269 = vmul.f32 %v4264, %v945
    %v4270 = vmul.f32 %v4264, %v944
    %v4271 = vmul.f32 %v4264, %v950
    %v4272 = vadd.f32 %v4224, %v4265
    %v4273 = vadd.f32 %v4225, %v4266
    %v4274 = vadd.f32 %v4226, %v4267
    %v4275 = vadd.f32 %v4227, %v4268
    %v4276 = vadd.f32 %v4228, %v4269
    %v4277 = vadd.f32 %v4229, %v4270
    %v4278 = vadd.f32 %v4230, %v4271
    %s4279 = sld [smem:[#allocation6 + $0x8a]]
    %v4280 = vstv %s4279
    %v4281 = vmul.f32 %v4280, %v949
    %v4282 = vmul.f32 %v4280, %v948
    %v4283 = vmul.f32 %v4280, %v947
    %v4284 = vmul.f32 %v4280, %v946
    %v4285 = vmul.f32 %v4280, %v945
    %v4286 = vmul.f32 %v4280, %v944
    %v4287 = vmul.f32 %v4280, %v950
    %v4288 = vadd.f32 %v4240, %v4281
    %v4289 = vadd.f32 %v4241, %v4282
    %v4290 = vadd.f32 %v4242, %v4283
    %v4291 = vadd.f32 %v4243, %v4284
    %v4292 = vadd.f32 %v4244, %v4285
    %v4293 = vadd.f32 %v4245, %v4286
    %v4294 = vadd.f32 %v4246, %v4287
    %s4295 = sld [smem:[#allocation6 + $0x55]]
    %v4296 = vstv %s4295
    %v4297 = vmul.f32 %v4296, %v1018
    %v4298 = vmul.f32 %v4296, %v1017
    %v4299 = vmul.f32 %v4296, %v1016
    %v4300 = vmul.f32 %v4296, %v1015
    %v4301 = vmul.f32 %v4296, %v1014
    %v4302 = vmul.f32 %v4296, %v1013
    %v4303 = vmul.f32 %v4296, %v1019
    %v4304 = vadd.f32 %v4256, %v4297
    %v4305 = vadd.f32 %v4257, %v4298
    %v4306 = vadd.f32 %v4258, %v4299
    %v4307 = vadd.f32 %v4259, %v4300
    %v4308 = vadd.f32 %v4260, %v4301
    %v4309 = vadd.f32 %v4261, %v4302
    %v4310 = vadd.f32 %v4262, %v4303
    %s4311 = sld [smem:[#allocation6 + $0x70]]
    %v4312 = vstv %s4311
    %v4313 = vmul.f32 %v4312, %v1018
    %v4314 = vmul.f32 %v4312, %v1017
    %v4315 = vmul.f32 %v4312, %v1016
    %v4316 = vmul.f32 %v4312, %v1015
    %v4317 = vmul.f32 %v4312, %v1014
    %v4318 = vmul.f32 %v4312, %v1013
    %v4319 = vmul.f32 %v4312, %v1019
    %v4320 = vadd.f32 %v4272, %v4313
    %v4321 = vadd.f32 %v4273, %v4314
    %v4322 = vadd.f32 %v4274, %v4315
    %v4323 = vadd.f32 %v4275, %v4316
    %v4324 = vadd.f32 %v4276, %v4317
    %v4325 = vadd.f32 %v4277, %v4318
    %v4326 = vadd.f32 %v4278, %v4319
    %s4327 = sld [smem:[#allocation6 + $0x8b]]
    %v4328 = vstv %s4327
    %v4329 = vmul.f32 %v4328, %v1018
    %v4330 = vmul.f32 %v4328, %v1017
    %v4331 = vmul.f32 %v4328, %v1016
    %v4332 = vmul.f32 %v4328, %v1015
    %v4333 = vmul.f32 %v4328, %v1014
    %v4334 = vmul.f32 %v4328, %v1013
    %v4335 = vmul.f32 %v4328, %v1019
    %v4336 = vadd.f32 %v4288, %v4329
    %v4337 = vadd.f32 %v4289, %v4330
    %v4338 = vadd.f32 %v4290, %v4331
    %v4339 = vadd.f32 %v4291, %v4332
    %v4340 = vadd.f32 %v4292, %v4333
    %v4341 = vadd.f32 %v4293, %v4334
    %v4342 = vadd.f32 %v4294, %v4335
    %s4343 = sld [smem:[#allocation6 + $0x56]]
    %v4344 = vstv %s4343
    %v4345 = vmul.f32 %v4344, %v1087
    %v4346 = vmul.f32 %v4344, %v1086
    %v4347 = vmul.f32 %v4344, %v1085
    %v4348 = vmul.f32 %v4344, %v1084
    %v4349 = vmul.f32 %v4344, %v1083
    %v4350 = vmul.f32 %v4344, %v1082
    %v4351 = vmul.f32 %v4344, %v1088
    %v4352 = vadd.f32 %v4304, %v4345
    %v4353 = vadd.f32 %v4305, %v4346
    %v4354 = vadd.f32 %v4306, %v4347
    %v4355 = vadd.f32 %v4307, %v4348
    %v4356 = vadd.f32 %v4308, %v4349
    %v4357 = vadd.f32 %v4309, %v4350
    %v4358 = vadd.f32 %v4310, %v4351
    %s4359 = sld [smem:[#allocation6 + $0x71]]
    %v4360 = vstv %s4359
    %v4361 = vmul.f32 %v4360, %v1087
    %v4362 = vmul.f32 %v4360, %v1086
    %v4363 = vmul.f32 %v4360, %v1085
    %v4364 = vmul.f32 %v4360, %v1084
    %v4365 = vmul.f32 %v4360, %v1083
    %v4366 = vmul.f32 %v4360, %v1082
    %v4367 = vmul.f32 %v4360, %v1088
    %v4368 = vadd.f32 %v4320, %v4361
    %v4369 = vadd.f32 %v4321, %v4362
    %v4370 = vadd.f32 %v4322, %v4363
    %v4371 = vadd.f32 %v4323, %v4364
    %v4372 = vadd.f32 %v4324, %v4365
    %v4373 = vadd.f32 %v4325, %v4366
    %v4374 = vadd.f32 %v4326, %v4367
    %s4375 = sld [smem:[#allocation6 + $0x8c]]
    %v4376 = vstv %s4375
    %v4377 = vmul.f32 %v4376, %v1087
    %v4378 = vmul.f32 %v4376, %v1086
    %v4379 = vmul.f32 %v4376, %v1085
    %v4380 = vmul.f32 %v4376, %v1084
    %v4381 = vmul.f32 %v4376, %v1083
    %v4382 = vmul.f32 %v4376, %v1082
    %v4383 = vmul.f32 %v4376, %v1088
    %v4384 = vadd.f32 %v4336, %v4377
    %v4385 = vadd.f32 %v4337, %v4378
    %v4386 = vadd.f32 %v4338, %v4379
    %v4387 = vadd.f32 %v4339, %v4380
    %v4388 = vadd.f32 %v4340, %v4381
    %v4389 = vadd.f32 %v4341, %v4382
    %v4390 = vadd.f32 %v4342, %v4383
    %s4391 = sld [smem:[#allocation6 + $0x57]]
    %v4392 = vstv %s4391
    %v4393 = vmul.f32 %v4392, %v1156
    %v4394 = vmul.f32 %v4392, %v1155
    %v4395 = vmul.f32 %v4392, %v1154
    %v4396 = vmul.f32 %v4392, %v1153
    %v4397 = vmul.f32 %v4392, %v1152
    %v4398 = vmul.f32 %v4392, %v1151
    %v4399 = vmul.f32 %v4392, %v1157
    %v4400 = vadd.f32 %v4352, %v4393
    %v4401 = vadd.f32 %v4353, %v4394
    %v4402 = vadd.f32 %v4354, %v4395
    %v4403 = vadd.f32 %v4355, %v4396
    %v4404 = vadd.f32 %v4356, %v4397
    %v4405 = vadd.f32 %v4357, %v4398
    %v4406 = vadd.f32 %v4358, %v4399
    %s4407 = sld [smem:[#allocation6 + $0x72]]
    %v4408 = vstv %s4407
    %v4409 = vmul.f32 %v4408, %v1156
    %v4410 = vmul.f32 %v4408, %v1155
    %v4411 = vmul.f32 %v4408, %v1154
    %v4412 = vmul.f32 %v4408, %v1153
    %v4413 = vmul.f32 %v4408, %v1152
    %v4414 = vmul.f32 %v4408, %v1151
    %v4415 = vmul.f32 %v4408, %v1157
    %v4416 = vadd.f32 %v4368, %v4409
    %v4417 = vadd.f32 %v4369, %v4410
    %v4418 = vadd.f32 %v4370, %v4411
    %v4419 = vadd.f32 %v4371, %v4412
    %v4420 = vadd.f32 %v4372, %v4413
    %v4421 = vadd.f32 %v4373, %v4414
    %v4422 = vadd.f32 %v4374, %v4415
    %s4423 = sld [smem:[#allocation6 + $0x8d]]
    %v4424 = vstv %s4423
    %v4425 = vmul.f32 %v4424, %v1156
    %v4426 = vmul.f32 %v4424, %v1155
    %v4427 = vmul.f32 %v4424, %v1154
    %v4428 = vmul.f32 %v4424, %v1153
    %v4429 = vmul.f32 %v4424, %v1152
    %v4430 = vmul.f32 %v4424, %v1151
    %v4431 = vmul.f32 %v4424, %v1157
    %v4432 = vadd.f32 %v4384, %v4425
    %v4433 = vadd.f32 %v4385, %v4426
    %v4434 = vadd.f32 %v4386, %v4427
    %v4435 = vadd.f32 %v4387, %v4428
    %v4436 = vadd.f32 %v4388, %v4429
    %v4437 = vadd.f32 %v4389, %v4430
    %v4438 = vadd.f32 %v4390, %v4431
    %s4439 = sld [smem:[#allocation6 + $0x58]]
    %v4440 = vstv %s4439
    %v4441 = vmul.f32 %v4440, %v1225
    %v4442 = vmul.f32 %v4440, %v1224
    %v4443 = vmul.f32 %v4440, %v1223
    %v4444 = vmul.f32 %v4440, %v1222
    %v4445 = vmul.f32 %v4440, %v1221
    %v4446 = vmul.f32 %v4440, %v1220
    %v4447 = vmul.f32 %v4440, %v1226
    %v4448 = vadd.f32 %v4400, %v4441
    %v4449 = vadd.f32 %v4401, %v4442
    %v4450 = vadd.f32 %v4402, %v4443
    %v4451 = vadd.f32 %v4403, %v4444
    %v4452 = vadd.f32 %v4404, %v4445
    %v4453 = vadd.f32 %v4405, %v4446
    %v4454 = vadd.f32 %v4406, %v4447
    %s4455 = sld [smem:[#allocation6 + $0x73]]
    %v4456 = vstv %s4455
    %v4457 = vmul.f32 %v4456, %v1225
    %v4458 = vmul.f32 %v4456, %v1224
    %v4459 = vmul.f32 %v4456, %v1223
    %v4460 = vmul.f32 %v4456, %v1222
    %v4461 = vmul.f32 %v4456, %v1221
    %v4462 = vmul.f32 %v4456, %v1220
    %v4463 = vmul.f32 %v4456, %v1226
    %v4464 = vadd.f32 %v4416, %v4457
    %v4465 = vadd.f32 %v4417, %v4458
    %v4466 = vadd.f32 %v4418, %v4459
    %v4467 = vadd.f32 %v4419, %v4460
    %v4468 = vadd.f32 %v4420, %v4461
    %v4469 = vadd.f32 %v4421, %v4462
    %v4470 = vadd.f32 %v4422, %v4463
    %s4471 = sld [smem:[#allocation6 + $0x8e]]
    %v4472 = vstv %s4471
    %v4473 = vmul.f32 %v4472, %v1225
    %v4474 = vmul.f32 %v4472, %v1224
    %v4475 = vmul.f32 %v4472, %v1223
    %v4476 = vmul.f32 %v4472, %v1222
    %v4477 = vmul.f32 %v4472, %v1221
    %v4478 = vmul.f32 %v4472, %v1220
    %v4479 = vmul.f32 %v4472, %v1226
    %v4480 = vadd.f32 %v4432, %v4473
    %v4481 = vadd.f32 %v4433, %v4474
    %v4482 = vadd.f32 %v4434, %v4475
    %v4483 = vadd.f32 %v4435, %v4476
    %v4484 = vadd.f32 %v4436, %v4477
    %v4485 = vadd.f32 %v4437, %v4478
    %v4486 = vadd.f32 %v4438, %v4479
    %s4487 = sld [smem:[#allocation6 + $0x59]]
    %v4488 = vstv %s4487
    %v4489 = vmul.f32 %v4488, %v1294
    %v4490 = vmul.f32 %v4488, %v1293
    %v4491 = vmul.f32 %v4488, %v1292
    %v4492 = vmul.f32 %v4488, %v1291
    %v4493 = vmul.f32 %v4488, %v1290
    %v4494 = vmul.f32 %v4488, %v1289
    %v4495 = vmul.f32 %v4488, %v1295
    %v4496 = vadd.f32 %v4448, %v4489
    %v4497 = vadd.f32 %v4449, %v4490
    %v4498 = vadd.f32 %v4450, %v4491
    %v4499 = vadd.f32 %v4451, %v4492
    %v4500 = vadd.f32 %v4452, %v4493
    %v4501 = vadd.f32 %v4453, %v4494
    %v4502 = vadd.f32 %v4454, %v4495
    %s4503 = sld [smem:[#allocation6 + $0x74]]
    %v4504 = vstv %s4503
    %v4505 = vmul.f32 %v4504, %v1294
    %v4506 = vmul.f32 %v4504, %v1293
    %v4507 = vmul.f32 %v4504, %v1292
    %v4508 = vmul.f32 %v4504, %v1291
    %v4509 = vmul.f32 %v4504, %v1290
    %v4510 = vmul.f32 %v4504, %v1289
    %v4511 = vmul.f32 %v4504, %v1295
    %v4512 = vadd.f32 %v4464, %v4505
    %v4513 = vadd.f32 %v4465, %v4506
    %v4514 = vadd.f32 %v4466, %v4507
    %v4515 = vadd.f32 %v4467, %v4508
    %v4516 = vadd.f32 %v4468, %v4509
    %v4517 = vadd.f32 %v4469, %v4510
    %v4518 = vadd.f32 %v4470, %v4511
    %s4519 = sld [smem:[#allocation6 + $0x8f]]
    %v4520 = vstv %s4519
    %v4521 = vmul.f32 %v4520, %v1294
    %v4522 = vmul.f32 %v4520, %v1293
    %v4523 = vmul.f32 %v4520, %v1292
    %v4524 = vmul.f32 %v4520, %v1291
    %v4525 = vmul.f32 %v4520, %v1290
    %v4526 = vmul.f32 %v4520, %v1289
    %v4527 = vmul.f32 %v4520, %v1295
    %v4528 = vadd.f32 %v4480, %v4521
    %v4529 = vadd.f32 %v4481, %v4522
    %v4530 = vadd.f32 %v4482, %v4523
    %v4531 = vadd.f32 %v4483, %v4524
    %v4532 = vadd.f32 %v4484, %v4525
    %v4533 = vadd.f32 %v4485, %v4526
    %v4534 = vadd.f32 %v4486, %v4527
    %s4535 = sld [smem:[#allocation6 + $0x5a]]
    %v4536 = vstv %s4535
    %v4537 = vmul.f32 %v4536, %v710
    %v4538 = vmul.f32 %v4536, %v711
    %v4539 = vmul.f32 %v4536, %v712
    %v4540 = vmul.f32 %v4536, %v713
    %v4541 = vmul.f32 %v4536, %v714
    %v4542 = vmul.f32 %v4536, %v715
    %v4543 = vmul.f32 %v4536, %v716
    %v4544 = vadd.f32 %v4496, %v4537
    %v4545 = vadd.f32 %v4497, %v4538
    %v4546 = vadd.f32 %v4498, %v4539
    %v4547 = vadd.f32 %v4499, %v4540
    %v4548 = vadd.f32 %v4500, %v4541
    %v4549 = vadd.f32 %v4501, %v4542
    %v4550 = vadd.f32 %v4502, %v4543
    %s4551 = sld [smem:[#allocation6 + $0x75]]
    %v4552 = vstv %s4551
    %v4553 = vmul.f32 %v4552, %v710
    %v4554 = vmul.f32 %v4552, %v711
    %v4555 = vmul.f32 %v4552, %v712
    %v4556 = vmul.f32 %v4552, %v713
    %v4557 = vmul.f32 %v4552, %v714
    %v4558 = vmul.f32 %v4552, %v715
    %v4559 = vmul.f32 %v4552, %v716
    %v4560 = vadd.f32 %v4512, %v4553
    %v4561 = vadd.f32 %v4513, %v4554
    %v4562 = vadd.f32 %v4514, %v4555
    %v4563 = vadd.f32 %v4515, %v4556
    %v4564 = vadd.f32 %v4516, %v4557
    %v4565 = vadd.f32 %v4517, %v4558
    %v4566 = vadd.f32 %v4518, %v4559
    %s4567 = sld [smem:[#allocation6 + $0x90]]
    %v4568 = vstv %s4567
    %v4569 = vmul.f32 %v4568, %v710
    %v4570 = vmul.f32 %v4568, %v711
    %v4571 = vmul.f32 %v4568, %v712
    %v4572 = vmul.f32 %v4568, %v713
    %v4573 = vmul.f32 %v4568, %v714
    %v4574 = vmul.f32 %v4568, %v715
    %v4575 = vmul.f32 %v4568, %v716
    %v4576 = vadd.f32 %v4528, %v4569
    %v4577 = vadd.f32 %v4529, %v4570
    %v4578 = vadd.f32 %v4530, %v4571
    %v4579 = vadd.f32 %v4531, %v4572
    %v4580 = vadd.f32 %v4532, %v4573
    %v4581 = vadd.f32 %v4533, %v4574
    %v4582 = vadd.f32 %v4534, %v4575
    %s4583 = sld [smem:[#allocation6 + $0x5b]]
    %v4584 = vstv %s4583
    %v4585 = vmul.f32 %v4584, %v1411
    %v4586 = vmul.f32 %v4584, %v1410
    %v4587 = vmul.f32 %v4584, %v1409
    %v4588 = vmul.f32 %v4584, %v1408
    %v4589 = vmul.f32 %v4584, %v1407
    %v4590 = vmul.f32 %v4584, %v1406
    %v4591 = vmul.f32 %v4584, %v1412
    %v4592 = vadd.f32 %v4544, %v4585
    %v4593 = vadd.f32 %v4545, %v4586
    %v4594 = vadd.f32 %v4546, %v4587
    %v4595 = vadd.f32 %v4547, %v4588
    %v4596 = vadd.f32 %v4548, %v4589
    %v4597 = vadd.f32 %v4549, %v4590
    %v4598 = vadd.f32 %v4550, %v4591
    %s4599 = sld [smem:[#allocation6 + $0x76]]
    %v4600 = vstv %s4599
    %v4601 = vmul.f32 %v4600, %v1411
    %v4602 = vmul.f32 %v4600, %v1410
    %v4603 = vmul.f32 %v4600, %v1409
    %v4604 = vmul.f32 %v4600, %v1408
    %v4605 = vmul.f32 %v4600, %v1407
    %v4606 = vmul.f32 %v4600, %v1406
    %v4607 = vmul.f32 %v4600, %v1412
    %v4608 = vadd.f32 %v4560, %v4601
    %v4609 = vadd.f32 %v4561, %v4602
    %v4610 = vadd.f32 %v4562, %v4603
    %v4611 = vadd.f32 %v4563, %v4604
    %v4612 = vadd.f32 %v4564, %v4605
    %v4613 = vadd.f32 %v4565, %v4606
    %v4614 = vadd.f32 %v4566, %v4607
    %s4615 = sld [smem:[#allocation6 + $0x91]]
    %v4616 = vstv %s4615
    %v4617 = vmul.f32 %v4616, %v1411
    %v4618 = vmul.f32 %v4616, %v1410
    %v4619 = vmul.f32 %v4616, %v1409
    %v4620 = vmul.f32 %v4616, %v1408
    %v4621 = vmul.f32 %v4616, %v1407
    %v4622 = vmul.f32 %v4616, %v1406
    %v4623 = vmul.f32 %v4616, %v1412
    %v4624 = vadd.f32 %v4576, %v4617
    %v4625 = vadd.f32 %v4577, %v4618
    %v4626 = vadd.f32 %v4578, %v4619
    %v4627 = vadd.f32 %v4579, %v4620
    %v4628 = vadd.f32 %v4580, %v4621
    %v4629 = vadd.f32 %v4581, %v4622
    %v4630 = vadd.f32 %v4582, %v4623
    %s4631 = sld [smem:[#allocation6 + $0x5c]]
    %v4632 = vstv %s4631
    %v4633 = vmul.f32 %v4632, %v1480
    %v4634 = vmul.f32 %v4632, %v1479
    %v4635 = vmul.f32 %v4632, %v1478
    %v4636 = vmul.f32 %v4632, %v1477
    %v4637 = vmul.f32 %v4632, %v1476
    %v4638 = vmul.f32 %v4632, %v1475
    %v4639 = vmul.f32 %v4632, %v1481
    %v4640 = vadd.f32 %v4592, %v4633
    %v4641 = vadd.f32 %v4593, %v4634
    %v4642 = vadd.f32 %v4594, %v4635
    %v4643 = vadd.f32 %v4595, %v4636
    %v4644 = vadd.f32 %v4596, %v4637
    %v4645 = vadd.f32 %v4597, %v4638
    %v4646 = vadd.f32 %v4598, %v4639
    %s4647 = sld [smem:[#allocation6 + $0x77]]
    %v4648 = vstv %s4647
    %v4649 = vmul.f32 %v4648, %v1480
    %v4650 = vmul.f32 %v4648, %v1479
    %v4651 = vmul.f32 %v4648, %v1478
    %v4652 = vmul.f32 %v4648, %v1477
    %v4653 = vmul.f32 %v4648, %v1476
    %v4654 = vmul.f32 %v4648, %v1475
    %v4655 = vmul.f32 %v4648, %v1481
    %v4656 = vadd.f32 %v4608, %v4649
    %v4657 = vadd.f32 %v4609, %v4650
    %v4658 = vadd.f32 %v4610, %v4651
    %v4659 = vadd.f32 %v4611, %v4652
    %v4660 = vadd.f32 %v4612, %v4653
    %v4661 = vadd.f32 %v4613, %v4654
    %v4662 = vadd.f32 %v4614, %v4655
    %s4663 = sld [smem:[#allocation6 + $0x92]]
    %v4664 = vstv %s4663
    %v4665 = vmul.f32 %v4664, %v1480
    %v4666 = vmul.f32 %v4664, %v1479
    %v4667 = vmul.f32 %v4664, %v1478
    %v4668 = vmul.f32 %v4664, %v1477
    %v4669 = vmul.f32 %v4664, %v1476
    %v4670 = vmul.f32 %v4664, %v1475
    %v4671 = vmul.f32 %v4664, %v1481
    %v4672 = vadd.f32 %v4624, %v4665
    %v4673 = vadd.f32 %v4625, %v4666
    %v4674 = vadd.f32 %v4626, %v4667
    %v4675 = vadd.f32 %v4627, %v4668
    %v4676 = vadd.f32 %v4628, %v4669
    %v4677 = vadd.f32 %v4629, %v4670
    %v4678 = vadd.f32 %v4630, %v4671
    %s4679 = sld [smem:[#allocation6 + $0x5d]]
    %v4680 = vstv %s4679
    %v4681 = vmul.f32 %v4680, %v1549
    %v4682 = vmul.f32 %v4680, %v1548
    %v4683 = vmul.f32 %v4680, %v1547
    %v4684 = vmul.f32 %v4680, %v1546
    %v4685 = vmul.f32 %v4680, %v1545
    %v4686 = vmul.f32 %v4680, %v1544
    %v4687 = vmul.f32 %v4680, %v1550
    %v4688 = vadd.f32 %v4640, %v4681
    %v4689 = vadd.f32 %v4641, %v4682
    %v4690 = vadd.f32 %v4642, %v4683
    %v4691 = vadd.f32 %v4643, %v4684
    %v4692 = vadd.f32 %v4644, %v4685
    %v4693 = vadd.f32 %v4645, %v4686
    %v4694 = vadd.f32 %v4646, %v4687
    %s4695 = sld [smem:[#allocation6 + $0x78]]
    %v4696 = vstv %s4695
    %v4697 = vmul.f32 %v4696, %v1549
    %v4698 = vmul.f32 %v4696, %v1548
    %v4699 = vmul.f32 %v4696, %v1547
    %v4700 = vmul.f32 %v4696, %v1546
    %v4701 = vmul.f32 %v4696, %v1545
    %v4702 = vmul.f32 %v4696, %v1544
    %v4703 = vmul.f32 %v4696, %v1550
    %v4704 = vadd.f32 %v4656, %v4697
    %v4705 = vadd.f32 %v4657, %v4698
    %v4706 = vadd.f32 %v4658, %v4699
    %v4707 = vadd.f32 %v4659, %v4700
    %v4708 = vadd.f32 %v4660, %v4701
    %v4709 = vadd.f32 %v4661, %v4702
    %v4710 = vadd.f32 %v4662, %v4703
    %s4711 = sld [smem:[#allocation6 + $0x93]]
    %v4712 = vstv %s4711
    %v4713 = vmul.f32 %v4712, %v1549
    %v4714 = vmul.f32 %v4712, %v1548
    %v4715 = vmul.f32 %v4712, %v1547
    %v4716 = vmul.f32 %v4712, %v1546
    %v4717 = vmul.f32 %v4712, %v1545
    %v4718 = vmul.f32 %v4712, %v1544
    %v4719 = vmul.f32 %v4712, %v1550
    %v4720 = vadd.f32 %v4672, %v4713
    %v4721 = vadd.f32 %v4673, %v4714
    %v4722 = vadd.f32 %v4674, %v4715
    %v4723 = vadd.f32 %v4675, %v4716
    %v4724 = vadd.f32 %v4676, %v4717
    %v4725 = vadd.f32 %v4677, %v4718
    %v4726 = vadd.f32 %v4678, %v4719
    %s4727 = sld [smem:[#allocation6 + $0x5e]]
    %v4728 = vstv %s4727
    %v4729 = vmul.f32 %v4728, %v1618
    %v4730 = vmul.f32 %v4728, %v1617
    %v4731 = vmul.f32 %v4728, %v1616
    %v4732 = vmul.f32 %v4728, %v1615
    %v4733 = vmul.f32 %v4728, %v1614
    %v4734 = vmul.f32 %v4728, %v1613
    %v4735 = vmul.f32 %v4728, %v1619
    %v4736 = vadd.f32 %v4688, %v4729
    %v4737 = vadd.f32 %v4689, %v4730
    %v4738 = vadd.f32 %v4690, %v4731
    %v4739 = vadd.f32 %v4691, %v4732
    %v4740 = vadd.f32 %v4692, %v4733
    %v4741 = vadd.f32 %v4693, %v4734
    %v4742 = vadd.f32 %v4694, %v4735
    %s4743 = sld [smem:[#allocation6 + $0x79]]
    %v4744 = vstv %s4743
    %v4745 = vmul.f32 %v4744, %v1618
    %v4746 = vmul.f32 %v4744, %v1617
    %v4747 = vmul.f32 %v4744, %v1616
    %v4748 = vmul.f32 %v4744, %v1615
    %v4749 = vmul.f32 %v4744, %v1614
    %v4750 = vmul.f32 %v4744, %v1613
    %v4751 = vmul.f32 %v4744, %v1619
    %v4752 = vadd.f32 %v4704, %v4745
    %v4753 = vadd.f32 %v4705, %v4746
    %v4754 = vadd.f32 %v4706, %v4747
    %v4755 = vadd.f32 %v4707, %v4748
    %v4756 = vadd.f32 %v4708, %v4749
    %v4757 = vadd.f32 %v4709, %v4750
    %v4758 = vadd.f32 %v4710, %v4751
    %s4759 = sld [smem:[#allocation6 + $0x94]]
    %v4760 = vstv %s4759
    %v4761 = vmul.f32 %v4760, %v1618
    %v4762 = vmul.f32 %v4760, %v1617
    %v4763 = vmul.f32 %v4760, %v1616
    %v4764 = vmul.f32 %v4760, %v1615
    %v4765 = vmul.f32 %v4760, %v1614
    %v4766 = vmul.f32 %v4760, %v1613
    %v4767 = vmul.f32 %v4760, %v1619
    %v4768 = vadd.f32 %v4720, %v4761
    %v4769 = vadd.f32 %v4721, %v4762
    %v4770 = vadd.f32 %v4722, %v4763
    %v4771 = vadd.f32 %v4723, %v4764
    %v4772 = vadd.f32 %v4724, %v4765
    %v4773 = vadd.f32 %v4725, %v4766
    %v4774 = vadd.f32 %v4726, %v4767
    %s4775 = sld [smem:[#allocation6 + $0x5f]]
    %v4776 = vstv %s4775
    %v4777 = vmul.f32 %v4776, %v1687
    %v4778 = vmul.f32 %v4776, %v1686
    %v4779 = vmul.f32 %v4776, %v1685
    %v4780 = vmul.f32 %v4776, %v1684
    %v4781 = vmul.f32 %v4776, %v1683
    %v4782 = vmul.f32 %v4776, %v1682
    %v4783 = vmul.f32 %v4776, %v1688
    %v4784 = vadd.f32 %v4736, %v4777
    %v4785 = vadd.f32 %v4737, %v4778
    %v4786 = vadd.f32 %v4738, %v4779
    %v4787 = vadd.f32 %v4739, %v4780
    %v4788 = vadd.f32 %v4740, %v4781
    %v4789 = vadd.f32 %v4741, %v4782
    %v4790 = vadd.f32 %v4742, %v4783
    %s4791 = sld [smem:[#allocation6 + $0x7a]]
    %v4792 = vstv %s4791
    %v4793 = vmul.f32 %v4792, %v1687
    %v4794 = vmul.f32 %v4792, %v1686
    %v4795 = vmul.f32 %v4792, %v1685
    %v4796 = vmul.f32 %v4792, %v1684
    %v4797 = vmul.f32 %v4792, %v1683
    %v4798 = vmul.f32 %v4792, %v1682
    %v4799 = vmul.f32 %v4792, %v1688
    %v4800 = vadd.f32 %v4752, %v4793
    %v4801 = vadd.f32 %v4753, %v4794
    %v4802 = vadd.f32 %v4754, %v4795
    %v4803 = vadd.f32 %v4755, %v4796
    %v4804 = vadd.f32 %v4756, %v4797
    %v4805 = vadd.f32 %v4757, %v4798
    %v4806 = vadd.f32 %v4758, %v4799
    %s4807 = sld [smem:[#allocation6 + $0x95]]
    %v4808 = vstv %s4807
    %v4809 = vmul.f32 %v4808, %v1687
    %v4810 = vmul.f32 %v4808, %v1686
    %v4811 = vmul.f32 %v4808, %v1685
    %v4812 = vmul.f32 %v4808, %v1684
    %v4813 = vmul.f32 %v4808, %v1683
    %v4814 = vmul.f32 %v4808, %v1682
    %v4815 = vmul.f32 %v4808, %v1688
    %v4816 = vadd.f32 %v4768, %v4809
    %v4817 = vadd.f32 %v4769, %v4810
    %v4818 = vadd.f32 %v4770, %v4811
    %v4819 = vadd.f32 %v4771, %v4812
    %v4820 = vadd.f32 %v4772, %v4813
    %v4821 = vadd.f32 %v4773, %v4814
    %v4822 = vadd.f32 %v4774, %v4815
    %s4823 = sld [smem:[#allocation6 + $0x60]]
    %v4824 = vstv %s4823
    %v4825 = vmul.f32 %v4824, %v1756
    %v4826 = vmul.f32 %v4824, %v1755
    %v4827 = vmul.f32 %v4824, %v1754
    %v4828 = vmul.f32 %v4824, %v1753
    %v4829 = vmul.f32 %v4824, %v1752
    %v4830 = vmul.f32 %v4824, %v1751
    %v4831 = vmul.f32 %v4824, %v1757
    %v4832 = vadd.f32 %v4784, %v4825
    %v4833 = vadd.f32 %v4785, %v4826
    %v4834 = vadd.f32 %v4786, %v4827
    %v4835 = vadd.f32 %v4787, %v4828
    %v4836 = vadd.f32 %v4788, %v4829
    %v4837 = vadd.f32 %v4789, %v4830
    %v4838 = vadd.f32 %v4790, %v4831
    %s4839 = sld [smem:[#allocation6 + $0x7b]]
    %v4840 = vstv %s4839
    %v4841 = vmul.f32 %v4840, %v1756
    %v4842 = vmul.f32 %v4840, %v1755
    %v4843 = vmul.f32 %v4840, %v1754
    %v4844 = vmul.f32 %v4840, %v1753
    %v4845 = vmul.f32 %v4840, %v1752
    %v4846 = vmul.f32 %v4840, %v1751
    %v4847 = vmul.f32 %v4840, %v1757
    %v4848 = vadd.f32 %v4800, %v4841
    %v4849 = vadd.f32 %v4801, %v4842
    %v4850 = vadd.f32 %v4802, %v4843
    %v4851 = vadd.f32 %v4803, %v4844
    %v4852 = vadd.f32 %v4804, %v4845
    %v4853 = vadd.f32 %v4805, %v4846
    %v4854 = vadd.f32 %v4806, %v4847
    %s4855 = sld [smem:[#allocation6 + $0x96]]
    %v4856 = vstv %s4855
    %v4857 = vmul.f32 %v4856, %v1756
    %v4858 = vmul.f32 %v4856, %v1755
    %v4859 = vmul.f32 %v4856, %v1754
    %v4860 = vmul.f32 %v4856, %v1753
    %v4861 = vmul.f32 %v4856, %v1752
    %v4862 = vmul.f32 %v4856, %v1751
    %v4863 = vmul.f32 %v4856, %v1757
    %v4864 = vadd.f32 %v4816, %v4857
    %v4865 = vadd.f32 %v4817, %v4858
    %v4866 = vadd.f32 %v4818, %v4859
    %v4867 = vadd.f32 %v4819, %v4860
    %v4868 = vadd.f32 %v4820, %v4861
    %v4869 = vadd.f32 %v4821, %v4862
    %v4870 = vadd.f32 %v4822, %v4863
    %s4871 = sld [smem:[#allocation6 + $0x61]]
    %v4872 = vstv %s4871
    %v4873 = vmul.f32 %v4872, %v1825
    %v4874 = vmul.f32 %v4872, %v1824
    %v4875 = vmul.f32 %v4872, %v1823
    %v4876 = vmul.f32 %v4872, %v1822
    %v4877 = vmul.f32 %v4872, %v1821
    %v4878 = vmul.f32 %v4872, %v1820
    %v4879 = vmul.f32 %v4872, %v1826
    %v4880 = vadd.f32 %v4832, %v4873
    %v4881 = vadd.f32 %v4833, %v4874
    %v4882 = vadd.f32 %v4834, %v4875
    %v4883 = vadd.f32 %v4835, %v4876
    %v4884 = vadd.f32 %v4836, %v4877
    %v4885 = vadd.f32 %v4837, %v4878
    %v4886 = vadd.f32 %v4838, %v4879
    %s4887 = sld [smem:[#allocation6 + $0x7c]]
    %v4888 = vstv %s4887
    %v4889 = vmul.f32 %v4888, %v1825
    %v4890 = vmul.f32 %v4888, %v1824
    %v4891 = vmul.f32 %v4888, %v1823
    %v4892 = vmul.f32 %v4888, %v1822
    %v4893 = vmul.f32 %v4888, %v1821
    %v4894 = vmul.f32 %v4888, %v1820
    %v4895 = vmul.f32 %v4888, %v1826
    %v4896 = vadd.f32 %v4848, %v4889
    %v4897 = vadd.f32 %v4849, %v4890
    %v4898 = vadd.f32 %v4850, %v4891
    %v4899 = vadd.f32 %v4851, %v4892
    %v4900 = vadd.f32 %v4852, %v4893
    %v4901 = vadd.f32 %v4853, %v4894
    %v4902 = vadd.f32 %v4854, %v4895
    %s4903 = sld [smem:[#allocation6 + $0x97]]
    %v4904 = vstv %s4903
    %v4905 = vmul.f32 %v4904, %v1825
    %v4906 = vmul.f32 %v4904, %v1824
    %v4907 = vmul.f32 %v4904, %v1823
    %v4908 = vmul.f32 %v4904, %v1822
    %v4909 = vmul.f32 %v4904, %v1821
    %v4910 = vmul.f32 %v4904, %v1820
    %v4911 = vmul.f32 %v4904, %v1826
    %v4912 = vadd.f32 %v4864, %v4905
    %v4913 = vadd.f32 %v4865, %v4906
    %v4914 = vadd.f32 %v4866, %v4907
    %v4915 = vadd.f32 %v4867, %v4908
    %v4916 = vadd.f32 %v4868, %v4909
    %v4917 = vadd.f32 %v4869, %v4910
    %v4918 = vadd.f32 %v4870, %v4911
    %s4919 = sld [smem:[#allocation6 + $0x62]]
    %v4920 = vstv %s4919
    %v4921 = vmul.f32 %v4920, %v1894
    %v4922 = vmul.f32 %v4920, %v1893
    %v4923 = vmul.f32 %v4920, %v1892
    %v4924 = vmul.f32 %v4920, %v1891
    %v4925 = vmul.f32 %v4920, %v1890
    %v4926 = vmul.f32 %v4920, %v1889
    %v4927 = vmul.f32 %v4920, %v1895
    %v4928 = vadd.f32 %v4880, %v4921
    %v4929 = vadd.f32 %v4881, %v4922
    %v4930 = vadd.f32 %v4882, %v4923
    %v4931 = vadd.f32 %v4883, %v4924
    %v4932 = vadd.f32 %v4884, %v4925
    %v4933 = vadd.f32 %v4885, %v4926
    %v4934 = vadd.f32 %v4886, %v4927
    %s4935 = sld [smem:[#allocation6 + $0x7d]]
    %v4936 = vstv %s4935
    %v4937 = vmul.f32 %v4936, %v1894
    %v4938 = vmul.f32 %v4936, %v1893
    %v4939 = vmul.f32 %v4936, %v1892
    %v4940 = vmul.f32 %v4936, %v1891
    %v4941 = vmul.f32 %v4936, %v1890
    %v4942 = vmul.f32 %v4936, %v1889
    %v4943 = vmul.f32 %v4936, %v1895
    %v4944 = vadd.f32 %v4896, %v4937
    %v4945 = vadd.f32 %v4897, %v4938
    %v4946 = vadd.f32 %v4898, %v4939
    %v4947 = vadd.f32 %v4899, %v4940
    %v4948 = vadd.f32 %v4900, %v4941
    %v4949 = vadd.f32 %v4901, %v4942
    %v4950 = vadd.f32 %v4902, %v4943
    %s4951 = sld [smem:[#allocation6 + $0x98]]
    %v4952 = vstv %s4951
    %v4953 = vmul.f32 %v4952, %v1894
    %v4954 = vmul.f32 %v4952, %v1893
    %v4955 = vmul.f32 %v4952, %v1892
    %v4956 = vmul.f32 %v4952, %v1891
    %v4957 = vmul.f32 %v4952, %v1890
    %v4958 = vmul.f32 %v4952, %v1889
    %v4959 = vmul.f32 %v4952, %v1895
    %v4960 = vadd.f32 %v4912, %v4953
    %v4961 = vadd.f32 %v4913, %v4954
    %v4962 = vadd.f32 %v4914, %v4955
    %v4963 = vadd.f32 %v4915, %v4956
    %v4964 = vadd.f32 %v4916, %v4957
    %v4965 = vadd.f32 %v4917, %v4958
    %v4966 = vadd.f32 %v4918, %v4959
    %s4967 = sld [smem:[#allocation6 + $0x63]]
    %v4968 = vstv %s4967
    %v4969 = vmul.f32 %v4968, %v717
    %v4970 = vmul.f32 %v4968, %v718
    %v4971 = vmul.f32 %v4968, %v719
    %v4972 = vmul.f32 %v4968, %v720
    %v4973 = vmul.f32 %v4968, %v721
    %v4974 = vmul.f32 %v4968, %v722
    %v4975 = vmul.f32 %v4968, %v723
    %v4976 = vadd.f32 %v4928, %v4969
    %v4977 = vadd.f32 %v4929, %v4970
    %v4978 = vadd.f32 %v4930, %v4971
    %v4979 = vadd.f32 %v4931, %v4972
    %v4980 = vadd.f32 %v4932, %v4973
    %v4981 = vadd.f32 %v4933, %v4974
    %v4982 = vadd.f32 %v4934, %v4975
    %s4983 = sld [smem:[#allocation6 + $0x7e]]
    %v4984 = vstv %s4983
    %v4985 = vmul.f32 %v4984, %v717
    %v4986 = vmul.f32 %v4984, %v718
    %v4987 = vmul.f32 %v4984, %v719
    %v4988 = vmul.f32 %v4984, %v720
    %v4989 = vmul.f32 %v4984, %v721
    %v4990 = vmul.f32 %v4984, %v722
    %v4991 = vmul.f32 %v4984, %v723
    %v4992 = vadd.f32 %v4944, %v4985
    %v4993 = vadd.f32 %v4945, %v4986
    %v4994 = vadd.f32 %v4946, %v4987
    %v4995 = vadd.f32 %v4947, %v4988
    %v4996 = vadd.f32 %v4948, %v4989
    %v4997 = vadd.f32 %v4949, %v4990
    %v4998 = vadd.f32 %v4950, %v4991
    %s4999 = sld [smem:[#allocation6 + $0x99]]
    %v5000 = vstv %s4999
    %v5001 = vmul.f32 %v5000, %v717
    %v5002 = vmul.f32 %v5000, %v718
    %v5003 = vmul.f32 %v5000, %v719
    %v5004 = vmul.f32 %v5000, %v720
    %v5005 = vmul.f32 %v5000, %v721
    %v5006 = vmul.f32 %v5000, %v722
    %v5007 = vmul.f32 %v5000, %v723
    %v5008 = vadd.f32 %v4960, %v5001
    %v5009 = vadd.f32 %v4961, %v5002
    %v5010 = vadd.f32 %v4962, %v5003
    %v5011 = vadd.f32 %v4963, %v5004
    %v5012 = vadd.f32 %v4964, %v5005
    %v5013 = vadd.f32 %v4965, %v5006
    %v5014 = vadd.f32 %v4966, %v5007
    %s5015 = sld [smem:[#allocation6 + $0x64]]
    %v5016 = vstv %s5015
    %v5017 = vmul.f32 %v5016, %v2011
    %v5018 = vmul.f32 %v5016, %v2010
    %v5019 = vmul.f32 %v5016, %v2009
    %v5020 = vmul.f32 %v5016, %v2008
    %v5021 = vmul.f32 %v5016, %v2007
    %v5022 = vmul.f32 %v5016, %v2006
    %v5023 = vmul.f32 %v5016, %v2012
    %v5024 = vadd.f32 %v4976, %v5017
    %v5025 = vadd.f32 %v4977, %v5018
    %v5026 = vadd.f32 %v4978, %v5019
    %v5027 = vadd.f32 %v4979, %v5020
    %v5028 = vadd.f32 %v4980, %v5021
    %v5029 = vadd.f32 %v4981, %v5022
    %v5030 = vadd.f32 %v4982, %v5023
    %s5031 = sld [smem:[#allocation6 + $0x7f]]
    %v5032 = vstv %s5031
    %v5033 = vmul.f32 %v5032, %v2011
    %v5034 = vmul.f32 %v5032, %v2010
    %v5035 = vmul.f32 %v5032, %v2009
    %v5036 = vmul.f32 %v5032, %v2008
    %v5037 = vmul.f32 %v5032, %v2007
    %v5038 = vmul.f32 %v5032, %v2006
    %v5039 = vmul.f32 %v5032, %v2012
    %v5040 = vadd.f32 %v4992, %v5033
    %v5041 = vadd.f32 %v4993, %v5034
    %v5042 = vadd.f32 %v4994, %v5035
    %v5043 = vadd.f32 %v4995, %v5036
    %v5044 = vadd.f32 %v4996, %v5037
    %v5045 = vadd.f32 %v4997, %v5038
    %v5046 = vadd.f32 %v4998, %v5039
    %s5047 = sld [smem:[#allocation6 + $0x9a]]
    %v5048 = vstv %s5047
    %v5049 = vmul.f32 %v5048, %v2011
    %v5050 = vmul.f32 %v5048, %v2010
    %v5051 = vmul.f32 %v5048, %v2009
    %v5052 = vmul.f32 %v5048, %v2008
    %v5053 = vmul.f32 %v5048, %v2007
    %v5054 = vmul.f32 %v5048, %v2006
    %v5055 = vmul.f32 %v5048, %v2012
    %v5056 = vadd.f32 %v5008, %v5049
    %v5057 = vadd.f32 %v5009, %v5050
    %v5058 = vadd.f32 %v5010, %v5051
    %v5059 = vadd.f32 %v5011, %v5052
    %v5060 = vadd.f32 %v5012, %v5053
    %v5061 = vadd.f32 %v5013, %v5054
    %v5062 = vadd.f32 %v5014, %v5055
    %s5063 = sld [smem:[#allocation6 + $0x65]]
    %v5064 = vstv %s5063
    %v5065 = vmul.f32 %v5064, %v2080
    %v5066 = vmul.f32 %v5064, %v2079
    %v5067 = vmul.f32 %v5064, %v2078
    %v5068 = vmul.f32 %v5064, %v2077
    %v5069 = vmul.f32 %v5064, %v2076
    %v5070 = vmul.f32 %v5064, %v2075
    %v5071 = vmul.f32 %v5064, %v2081
    %v5072 = vadd.f32 %v5024, %v5065
    %v5073 = vadd.f32 %v5025, %v5066
    %v5074 = vadd.f32 %v5026, %v5067
    %v5075 = vadd.f32 %v5027, %v5068
    %v5076 = vadd.f32 %v5028, %v5069
    %v5077 = vadd.f32 %v5029, %v5070
    %v5078 = vadd.f32 %v5030, %v5071
    %s5079 = sld [smem:[#allocation6 + $0x80]]
    %v5080 = vstv %s5079
    %v5081 = vmul.f32 %v5080, %v2080
    %v5082 = vmul.f32 %v5080, %v2079
    %v5083 = vmul.f32 %v5080, %v2078
    %v5084 = vmul.f32 %v5080, %v2077
    %v5085 = vmul.f32 %v5080, %v2076
    %v5086 = vmul.f32 %v5080, %v2075
    %v5087 = vmul.f32 %v5080, %v2081
    %v5088 = vadd.f32 %v5040, %v5081
    %v5089 = vadd.f32 %v5041, %v5082
    %v5090 = vadd.f32 %v5042, %v5083
    %v5091 = vadd.f32 %v5043, %v5084
    %v5092 = vadd.f32 %v5044, %v5085
    %v5093 = vadd.f32 %v5045, %v5086
    %v5094 = vadd.f32 %v5046, %v5087
    %s5095 = sld [smem:[#allocation6 + $0x9b]]
    %v5096 = vstv %s5095
    %v5097 = vmul.f32 %v5096, %v2080
    %v5098 = vmul.f32 %v5096, %v2079
    %v5099 = vmul.f32 %v5096, %v2078
    %v5100 = vmul.f32 %v5096, %v2077
    %v5101 = vmul.f32 %v5096, %v2076
    %v5102 = vmul.f32 %v5096, %v2075
    %v5103 = vmul.f32 %v5096, %v2081
    %v5104 = vadd.f32 %v5056, %v5097
    %v5105 = vadd.f32 %v5057, %v5098
    %v5106 = vadd.f32 %v5058, %v5099
    %v5107 = vadd.f32 %v5059, %v5100
    %v5108 = vadd.f32 %v5060, %v5101
    %v5109 = vadd.f32 %v5061, %v5102
    %v5110 = vadd.f32 %v5062, %v5103
    %s5111 = sld [smem:[#allocation6 + $0x66]]
    %v5112 = vstv %s5111
    %v5113 = vmul.f32 %v5112, %v2149
    %v5114 = vmul.f32 %v5112, %v2148
    %v5115 = vmul.f32 %v5112, %v2147
    %v5116 = vmul.f32 %v5112, %v2146
    %v5117 = vmul.f32 %v5112, %v2145
    %v5118 = vmul.f32 %v5112, %v2144
    %v5119 = vmul.f32 %v5112, %v2150
    %v5120 = vadd.f32 %v5072, %v5113
    %v5121 = vadd.f32 %v5073, %v5114
    %v5122 = vadd.f32 %v5074, %v5115
    %v5123 = vadd.f32 %v5075, %v5116
    %v5124 = vadd.f32 %v5076, %v5117
    %v5125 = vadd.f32 %v5077, %v5118
    %v5126 = vadd.f32 %v5078, %v5119
    %s5127 = sld [smem:[#allocation6 + $0x81]]
    %v5128 = vstv %s5127
    %v5129 = vmul.f32 %v5128, %v2149
    %v5130 = vmul.f32 %v5128, %v2148
    %v5131 = vmul.f32 %v5128, %v2147
    %v5132 = vmul.f32 %v5128, %v2146
    %v5133 = vmul.f32 %v5128, %v2145
    %v5134 = vmul.f32 %v5128, %v2144
    %v5135 = vmul.f32 %v5128, %v2150
    %v5136 = vadd.f32 %v5088, %v5129
    %v5137 = vadd.f32 %v5089, %v5130
    %v5138 = vadd.f32 %v5090, %v5131
    %v5139 = vadd.f32 %v5091, %v5132
    %v5140 = vadd.f32 %v5092, %v5133
    %v5141 = vadd.f32 %v5093, %v5134
    %v5142 = vadd.f32 %v5094, %v5135
    %s5143 = sld [smem:[#allocation6 + $0x9c]]
    %v5144 = vstv %s5143
    %v5145 = vmul.f32 %v5144, %v2149
    %v5146 = vmul.f32 %v5144, %v2148
    %v5147 = vmul.f32 %v5144, %v2147
    %v5148 = vmul.f32 %v5144, %v2146
    %v5149 = vmul.f32 %v5144, %v2145
    %v5150 = vmul.f32 %v5144, %v2144
    %v5151 = vmul.f32 %v5144, %v2150
    %v5152 = vadd.f32 %v5104, %v5145
    %v5153 = vadd.f32 %v5105, %v5146
    %v5154 = vadd.f32 %v5106, %v5147
    %v5155 = vadd.f32 %v5107, %v5148
    %v5156 = vadd.f32 %v5108, %v5149
    %v5157 = vadd.f32 %v5109, %v5150
    %v5158 = vadd.f32 %v5110, %v5151
    %s5159 = sld [smem:[#allocation6 + $0x67]]
    %v5160 = vstv %s5159
    %v5161 = vmul.f32 %v5160, %v2218
    %v5162 = vmul.f32 %v5160, %v2217
    %v5163 = vmul.f32 %v5160, %v2216
    %v5164 = vmul.f32 %v5160, %v2215
    %v5165 = vmul.f32 %v5160, %v2214
    %v5166 = vmul.f32 %v5160, %v2213
    %v5167 = vmul.f32 %v5160, %v2219
    %v5168 = vadd.f32 %v5120, %v5161
    %v5169 = vadd.f32 %v5121, %v5162
    %v5170 = vadd.f32 %v5122, %v5163
    %v5171 = vadd.f32 %v5123, %v5164
    %v5172 = vadd.f32 %v5124, %v5165
    %v5173 = vadd.f32 %v5125, %v5166
    %v5174 = vadd.f32 %v5126, %v5167
    %s5175 = sld [smem:[#allocation6 + $0x82]]
    %v5176 = vstv %s5175
    %v5177 = vmul.f32 %v5176, %v2218
    %v5178 = vmul.f32 %v5176, %v2217
    %v5179 = vmul.f32 %v5176, %v2216
    %v5180 = vmul.f32 %v5176, %v2215
    %v5181 = vmul.f32 %v5176, %v2214
    %v5182 = vmul.f32 %v5176, %v2213
    %v5183 = vmul.f32 %v5176, %v2219
    %v5184 = vadd.f32 %v5136, %v5177
    %v5185 = vadd.f32 %v5137, %v5178
    %v5186 = vadd.f32 %v5138, %v5179
    %v5187 = vadd.f32 %v5139, %v5180
    %v5188 = vadd.f32 %v5140, %v5181
    %v5189 = vadd.f32 %v5141, %v5182
    %v5190 = vadd.f32 %v5142, %v5183
    %s5191 = sld [smem:[#allocation6 + $0x9d]]
    %v5192 = vstv %s5191
    %v5193 = vmul.f32 %v5192, %v2218
    %v5194 = vmul.f32 %v5192, %v2217
    %v5195 = vmul.f32 %v5192, %v2216
    %v5196 = vmul.f32 %v5192, %v2215
    %v5197 = vmul.f32 %v5192, %v2214
    %v5198 = vmul.f32 %v5192, %v2213
    %v5199 = vmul.f32 %v5192, %v2219
    %v5200 = vadd.f32 %v5152, %v5193
    %v5201 = vadd.f32 %v5153, %v5194
    %v5202 = vadd.f32 %v5154, %v5195
    %v5203 = vadd.f32 %v5155, %v5196
    %v5204 = vadd.f32 %v5156, %v5197
    %v5205 = vadd.f32 %v5157, %v5198
    %v5206 = vadd.f32 %v5158, %v5199
    %s5207 = sld [smem:[#allocation6 + $0x68]]
    %v5208 = vstv %s5207
    %v5209 = vmul.f32 %v5208, %v2287
    %v5210 = vmul.f32 %v5208, %v2286
    %v5211 = vmul.f32 %v5208, %v2285
    %v5212 = vmul.f32 %v5208, %v2284
    %v5213 = vmul.f32 %v5208, %v2283
    %v5214 = vmul.f32 %v5208, %v2282
    %v5215 = vmul.f32 %v5208, %v2288
    %v5216 = vadd.f32 %v5168, %v5209
    %v5217 = vadd.f32 %v5169, %v5210
    %v5218 = vadd.f32 %v5170, %v5211
    %v5219 = vadd.f32 %v5171, %v5212
    %v5220 = vadd.f32 %v5172, %v5213
    %v5221 = vadd.f32 %v5173, %v5214
    %v5222 = vadd.f32 %v5174, %v5215
    %s5223 = sld [smem:[#allocation6 + $0x83]]
    %v5224 = vstv %s5223
    %v5225 = vmul.f32 %v5224, %v2287
    %v5226 = vmul.f32 %v5224, %v2286
    %v5227 = vmul.f32 %v5224, %v2285
    %v5228 = vmul.f32 %v5224, %v2284
    %v5229 = vmul.f32 %v5224, %v2283
    %v5230 = vmul.f32 %v5224, %v2282
    %v5231 = vmul.f32 %v5224, %v2288
    %v5232 = vadd.f32 %v5184, %v5225
    %v5233 = vadd.f32 %v5185, %v5226
    %v5234 = vadd.f32 %v5186, %v5227
    %v5235 = vadd.f32 %v5187, %v5228
    %v5236 = vadd.f32 %v5188, %v5229
    %v5237 = vadd.f32 %v5189, %v5230
    %v5238 = vadd.f32 %v5190, %v5231
    %s5239 = sld [smem:[#allocation6 + $0x9e]]
    %v5240 = vstv %s5239
    %v5241 = vmul.f32 %v5240, %v2287
    %v5242 = vmul.f32 %v5240, %v2286
    %v5243 = vmul.f32 %v5240, %v2285
    %v5244 = vmul.f32 %v5240, %v2284
    %v5245 = vmul.f32 %v5240, %v2283
    %v5246 = vmul.f32 %v5240, %v2282
    %v5247 = vmul.f32 %v5240, %v2288
    %v5248 = vadd.f32 %v5200, %v5241
    %v5249 = vadd.f32 %v5201, %v5242
    %v5250 = vadd.f32 %v5202, %v5243
    %v5251 = vadd.f32 %v5203, %v5244
    %v5252 = vadd.f32 %v5204, %v5245
    %v5253 = vadd.f32 %v5205, %v5246
    %v5254 = vadd.f32 %v5206, %v5247
    %s5255 = sld [smem:[#allocation6 + $0x69]]
    %v5256 = vstv %s5255
    %v5257 = vmul.f32 %v5256, %v2356
    %v5258 = vmul.f32 %v5256, %v2355
    %v5259 = vmul.f32 %v5256, %v2354
    %v5260 = vmul.f32 %v5256, %v2353
    %v5261 = vmul.f32 %v5256, %v2352
    %v5262 = vmul.f32 %v5256, %v2351
    %v5263 = vmul.f32 %v5256, %v2357
    %v5264 = vadd.f32 %v5216, %v5257
    %v5265 = vadd.f32 %v5217, %v5258
    %v5266 = vadd.f32 %v5218, %v5259
    %v5267 = vadd.f32 %v5219, %v5260
    %v5268 = vadd.f32 %v5220, %v5261
    %v5269 = vadd.f32 %v5221, %v5262
    %v5270 = vadd.f32 %v5222, %v5263
    %s5271 = sld [smem:[#allocation6 + $0x84]]
    %v5272 = vstv %s5271
    %v5273 = vmul.f32 %v5272, %v2356
    %v5274 = vmul.f32 %v5272, %v2355
    %v5275 = vmul.f32 %v5272, %v2354
    %v5276 = vmul.f32 %v5272, %v2353
    %v5277 = vmul.f32 %v5272, %v2352
    %v5278 = vmul.f32 %v5272, %v2351
    %v5279 = vmul.f32 %v5272, %v2357
    %v5280 = vadd.f32 %v5232, %v5273
    %v5281 = vadd.f32 %v5233, %v5274
    %v5282 = vadd.f32 %v5234, %v5275
    %v5283 = vadd.f32 %v5235, %v5276
    %v5284 = vadd.f32 %v5236, %v5277
    %v5285 = vadd.f32 %v5237, %v5278
    %v5286 = vadd.f32 %v5238, %v5279
    %s5287 = sld [smem:[#allocation6 + $0x9f]]
    %v5288 = vstv %s5287
    %v5289 = vmul.f32 %v5288, %v2356
    %v5290 = vmul.f32 %v5288, %v2355
    %v5291 = vmul.f32 %v5288, %v2354
    %v5292 = vmul.f32 %v5288, %v2353
    %v5293 = vmul.f32 %v5288, %v2352
    %v5294 = vmul.f32 %v5288, %v2351
    %v5295 = vmul.f32 %v5288, %v2357
    %v5296 = vadd.f32 %v5248, %v5289
    %v5297 = vadd.f32 %v5249, %v5290
    %v5298 = vadd.f32 %v5250, %v5291
    %v5299 = vadd.f32 %v5251, %v5292
    %v5300 = vadd.f32 %v5252, %v5293
    %v5301 = vadd.f32 %v5253, %v5294
    %v5302 = vadd.f32 %v5254, %v5295
    %s5303 = sld [smem:[#allocation6 + $0x6a]]
    %v5304 = vstv %s5303
    %v5305 = vmul.f32 %v5304, %v2425
    %v5306 = vmul.f32 %v5304, %v2424
    %v5307 = vmul.f32 %v5304, %v2423
    %v5308 = vmul.f32 %v5304, %v2422
    %v5309 = vmul.f32 %v5304, %v2421
    %v5310 = vmul.f32 %v5304, %v2420
    %v5311 = vmul.f32 %v5304, %v2426
    %v5312 = vadd.f32 %v5264, %v5305
    %v5313 = vadd.f32 %v5265, %v5306
    %v5314 = vadd.f32 %v5266, %v5307
    %v5315 = vadd.f32 %v5267, %v5308
    %v5316 = vadd.f32 %v5268, %v5309
    %v5317 = vadd.f32 %v5269, %v5310
    %v5318 = vadd.f32 %v5270, %v5311
    %s5319 = sld [smem:[#allocation6 + $0x85]]
    %v5320 = vstv %s5319
    %v5321 = vmul.f32 %v5320, %v2425
    %v5322 = vmul.f32 %v5320, %v2424
    %v5323 = vmul.f32 %v5320, %v2423
    %v5324 = vmul.f32 %v5320, %v2422
    %v5325 = vmul.f32 %v5320, %v2421
    %v5326 = vmul.f32 %v5320, %v2420
    %v5327 = vmul.f32 %v5320, %v2426
    %v5328 = vadd.f32 %v5280, %v5321
    %v5329 = vadd.f32 %v5281, %v5322
    %v5330 = vadd.f32 %v5282, %v5323
    %v5331 = vadd.f32 %v5283, %v5324
    %v5332 = vadd.f32 %v5284, %v5325
    %v5333 = vadd.f32 %v5285, %v5326
    %v5334 = vadd.f32 %v5286, %v5327
    %s5335 = sld [smem:[#allocation6 + $0xa0]]
    %v5336 = vstv %s5335
    %v5337 = vmul.f32 %v5336, %v2425
    %v5338 = vmul.f32 %v5336, %v2424
    %v5339 = vmul.f32 %v5336, %v2423
    %v5340 = vmul.f32 %v5336, %v2422
    %v5341 = vmul.f32 %v5336, %v2421
    %v5342 = vmul.f32 %v5336, %v2420
    %v5343 = vmul.f32 %v5336, %v2426
    %v5344 = vadd.f32 %v5296, %v5337
    %v5345 = vadd.f32 %v5297, %v5338
    %v5346 = vadd.f32 %v5298, %v5339
    %v5347 = vadd.f32 %v5299, %v5340
    %v5348 = vadd.f32 %v5300, %v5341
    %v5349 = vadd.f32 %v5301, %v5342
    %v5350 = vadd.f32 %v5302, %v5343
    %s5351 = sld [smem:[#allocation6 + $0x6b]]
    %v5352 = vstv %s5351
    %v5353 = vmul.f32 %v5352, %v2494
    %v5354 = vmul.f32 %v5352, %v2493
    %v5355 = vmul.f32 %v5352, %v2492
    %v5356 = vmul.f32 %v5352, %v2491
    %v5357 = vmul.f32 %v5352, %v2490
    %v5358 = vmul.f32 %v5352, %v2489
    %v5359 = vmul.f32 %v5352, %v2495
    %v5360 = vadd.f32 %v5312, %v5353
    %v5361 = vadd.f32 %v5313, %v5354
    %v5362 = vadd.f32 %v5314, %v5355
    %v5363 = vadd.f32 %v5315, %v5356
    %v5364 = vadd.f32 %v5316, %v5357
    %v5365 = vadd.f32 %v5317, %v5358
    %v5366 = vadd.f32 %v5318, %v5359
    %s5367 = sld [smem:[#allocation6 + $0x86]]
    %v5368 = vstv %s5367
    %v5369 = vmul.f32 %v5368, %v2494
    %v5370 = vmul.f32 %v5368, %v2493
    %v5371 = vmul.f32 %v5368, %v2492
    %v5372 = vmul.f32 %v5368, %v2491
    %v5373 = vmul.f32 %v5368, %v2490
    %v5374 = vmul.f32 %v5368, %v2489
    %v5375 = vmul.f32 %v5368, %v2495
    %v5376 = vadd.f32 %v5328, %v5369
    %v5377 = vadd.f32 %v5329, %v5370
    %v5378 = vadd.f32 %v5330, %v5371
    %v5379 = vadd.f32 %v5331, %v5372
    %v5380 = vadd.f32 %v5332, %v5373
    %v5381 = vadd.f32 %v5333, %v5374
    %v5382 = vadd.f32 %v5334, %v5375
    %s5383 = sld [smem:[#allocation6 + $0xa1]]
    %v5384 = vstv %s5383
    %v5385 = vmul.f32 %v5384, %v2494
    %v5386 = vmul.f32 %v5384, %v2493
    %v5387 = vmul.f32 %v5384, %v2492
    %v5388 = vmul.f32 %v5384, %v2491
    %v5389 = vmul.f32 %v5384, %v2490
    %v5390 = vmul.f32 %v5384, %v2489
    %v5391 = vmul.f32 %v5384, %v2495
    %v5392 = vadd.f32 %v5344, %v5385
    %v5393 = vadd.f32 %v5345, %v5386
    %v5394 = vadd.f32 %v5346, %v5387
    %v5395 = vadd.f32 %v5347, %v5388
    %v5396 = vadd.f32 %v5348, %v5389
    %v5397 = vadd.f32 %v5349, %v5390
    %v5398 = vadd.f32 %v5350, %v5391
    %v5399 = vmax.f32 %v5360, 0.0
    %v5400 = vmax.f32 %v5361, 0.0
    %v5401 = vmax.f32 %v5362, 0.0
    %v5402 = vmax.f32 %v5363, 0.0
    %v5403 = vmax.f32 %v5364, 0.0
    %v5404 = vmax.f32 %v5365, 0.0
    %v5405 = vmax.f32 %v5366, 0.0
    %s5406 = scalar_lea.vmem %s5, 5376
    %v5407 = vld [vmem:[%s5406] sm:$0xff]
    %v5408 = vld [vmem:[%s5406 + $0x8] sm:$0xff]
    %v5409 = vld [vmem:[%s5406 + $0x10] sm:$0xff]
    %v5410 = vld [vmem:[%s5406 + $0x18] sm:$0xff]
    %v5411 = vld [vmem:[%s5406 + $0x20] sm:$0xff]
    %v5412 = vld [vmem:[%s5406 + $0x28] sm:$0xff]
    %v5413 = vld [vmem:[%s5406 + $0x30] sm:$0xff]
    %v5414 = vld [vmem:[%s5406 + $0x38] sm:$0xff]
    %v5415 = vld [vmem:[%s5406 + $0x40] sm:$0xff]
    %v5416 = vld [vmem:[%s5406 + $0x48] sm:$0xff]
    %v5417 = vld [vmem:[%s5406 + $0x50] sm:$0xff]
    %v5418 = vld [vmem:[%s5406 + $0x58] sm:$0xff]
    %v5419 = vld [vmem:[%s5406 + $0x60] sm:$0xff]
    %v5420 = vld [vmem:[%s5406 + $0x68] sm:$0xff]
    %v5421 = vld [vmem:[%s5406 + $0x70] sm:$0xff]
    %v5422 = vld [vmem:[%s5406 + $0x78] sm:$0xff]
    %v5423 = vld [vmem:[%s5406 + $0x80] sm:$0xff]
    %v5424 = vld [vmem:[%s5406 + $0x88] sm:$0xff]
    %v5425 = vld [vmem:[%s5406 + $0x90] sm:$0xff]
    %v5426 = vld [vmem:[%s5406 + $0x98] sm:$0xff]
    %v5427 = vld [vmem:[%s5406 + $0xa0] sm:$0xff]
    %v5428 = vld [vmem:[%s5406 + $0xa8] sm:$0xff]
    %v5429 = vld [vmem:[%s5406 + $0xb0] sm:$0xff]
    %v5430 = vld [vmem:[%s5406 + $0xb8] sm:$0xff]
    %v5431 = vld [vmem:[%s5406 + $0xc0] sm:$0xff]
    %v5432 = vld [vmem:[%s5406 + $0xc8] sm:$0xff]
    %v5433 = vld [vmem:[%s5406 + $0xd0] sm:$0xff]
    %v5434 = vld [vmem:[%s5406 + $0xd8] sm:$0xff]
    %v5435 = vld [vmem:[%s5406 + $0xe0] sm:$0xff]
    %v5436 = vld [vmem:[%s5406 + $0xe8] sm:$0xff]
    %v5437 = vld [vmem:[%s5406 + $0xf0] sm:$0xff]
    %v5438 = vld [vmem:[%s5406 + $0xf8] sm:$0xff]
    %v5439 = vld [vmem:[%s5406 + $0x100] sm:$0xff]
    %v5440 = vld [vmem:[%s5406 + $0x108] sm:$0xff]
    %v5441 = vld [vmem:[%s5406 + $0x110] sm:$0xff]
    %v5442 = vld [vmem:[%s5406 + $0x118] sm:$0xff]
    %v5443 = vld [vmem:[%s5406 + $0x120] sm:$0xff]
    %v5444 = vld [vmem:[%s5406 + $0x128] sm:$0xff]
    %v5445 = vld [vmem:[%s5406 + $0x130] sm:$0xff]
    %v5446 = vld [vmem:[%s5406 + $0x138] sm:$0xff]
    %v5447 = vld [vmem:[%s5406 + $0x140] sm:$0xff]
    %v5448 = vld [vmem:[%s5406 + $0x148] sm:$0xff]
    %v5449 = vld [vmem:[%s5406 + $0x150] sm:$0xff]
    %v5450 = vld [vmem:[%s5406 + $0x158] sm:$0xff]
    %v5451 = vld [vmem:[%s5406 + $0x160] sm:$0xff]
    %v5452 = vld [vmem:[%s5406 + $0x168] sm:$0xff]
    %v5453 = vld [vmem:[%s5406 + $0x170] sm:$0xff]
    %v5454 = vld [vmem:[%s5406 + $0x178] sm:$0xff]
    %v5455 = vld [vmem:[%s5406 + $0x180] sm:$0xff]
    %v5456 = vld [vmem:[%s5406 + $0x188] sm:$0xff]
    %v5457 = vld [vmem:[%s5406 + $0x190] sm:$0xff]
    %v5458 = vld [vmem:[%s5406 + $0x198] sm:$0xff]
    %v5459 = vld [vmem:[%s5406 + $0x1a0] sm:$0xff]
    %v5460 = vld [vmem:[%s5406 + $0x1a8] sm:$0xff]
    %v5461 = vld [vmem:[%s5406 + $0x1b0] sm:$0xff]
    %v5462 = vld [vmem:[%s5406 + $0x1b8] sm:$0xff]
    %v5463 = vld [vmem:[%s5406 + $0x1c0] sm:$0xff]
    %v5464 = vld [vmem:[%s5406 + $0x1c8] sm:$0xff]
    %v5465 = vld [vmem:[%s5406 + $0x1d0] sm:$0xff]
    %v5466 = vld [vmem:[%s5406 + $0x1d8] sm:$0xff]
    %v5467 = vld [vmem:[%s5406 + $0x1e0] sm:$0xff]
    %v5468 = vld [vmem:[%s5406 + $0x1e8] sm:$0xff]
    %v5469 = vld [vmem:[%s5406 + $0x1f0] sm:$0xff]
    %v5470 = vld [vmem:[%s5406 + $0x1f8] sm:$0xff]
    %v5471 = vld [vmem:[%s5406 + $0x200] sm:$0xff]
    %v5472 = vld [vmem:[%s5406 + $0x208] sm:$0xff]
    %v5473 = vld [vmem:[%s5406 + $0x210] sm:$0xff]
    %v5474 = vld [vmem:[%s5406 + $0x218] sm:$0xff]
    %v5475 = vld [vmem:[%s5406 + $0x220] sm:$0xff]
    %v5476 = vld [vmem:[%s5406 + $0x228] sm:$0xff]
    %v5477 = vld [vmem:[%s5406 + $0x230] sm:$0xff]
    %v5478 = vld [vmem:[%s5406 + $0x238] sm:$0xff]
    %v5479 = vld [vmem:[%s5406 + $0x240] sm:$0xff]
    %v5480 = vld [vmem:[%s5406 + $0x248] sm:$0xff]
    %v5481 = vld [vmem:[%s5406 + $0x250] sm:$0xff]
    %v5482 = vld [vmem:[%s5406 + $0x258] sm:$0xff]
    %v5483 = vld [vmem:[%s5406 + $0x260] sm:$0xff]
    %v5484 = vld [vmem:[%s5406 + $0x268] sm:$0xff]
    %v5485 = vld [vmem:[%s5406 + $0x270] sm:$0xff]
    %v5486 = vld [vmem:[%s5406 + $0x278] sm:$0xff]
    %v5487 = vld [vmem:[%s5406 + $0x280] sm:$0xff]
    %v5488 = vld [vmem:[%s5406 + $0x288] sm:$0xff]
    %v5489 = vld [vmem:[%s5406 + $0x290] sm:$0xff]
    %v5490 = vld [vmem:[%s5406 + $0x298] sm:$0xff]
    %v5491 = vld [vmem:[%s5406 + $0x2a0] sm:$0xff]
    %v5492 = vld [vmem:[%s5406 + $0x2a8] sm:$0xff]
    %v5493 = vld [vmem:[%s5406 + $0x2b0] sm:$0xff]
    %v5494 = vld [vmem:[%s5406 + $0x2b8] sm:$0xff]
    %v5495 = vld [vmem:[%s5406 + $0x2c0] sm:$0xff]
    %v5496 = vld [vmem:[%s5406 + $0x2c8] sm:$0xff]
    %v5497 = vld [vmem:[%s5406 + $0x2d0] sm:$0xff]
    %v5498 = vld [vmem:[%s5406 + $0x2d8] sm:$0xff]
    %v5499 = vld [vmem:[%s5406 + $0x2e0] sm:$0xff]
    %v5500 = vld [vmem:[%s5406 + $0x2e8] sm:$0xff]
    %v5501 = vld [vmem:[%s5406 + $0x2f0] sm:$0xff]
    %v5502 = vld [vmem:[%s5406 + $0x2f8] sm:$0xff]
    %v5503 = vld [vmem:[%s5406 + $0x300] sm:$0xff]
    %v5504 = vld [vmem:[%s5406 + $0x308] sm:$0xff]
    %v5505 = vld [vmem:[%s5406 + $0x310] sm:$0xff]
    %v5506 = vld [vmem:[%s5406 + $0x318] sm:$0xff]
    %v5507 = vld [vmem:[%s5406 + $0x320] sm:$0xff]
    %v5508 = vld [vmem:[%s5406 + $0x328] sm:$0xff]
    %v5509 = vld [vmem:[%s5406 + $0x330] sm:$0xff]
    %v5510 = vld [vmem:[%s5406 + $0x338] sm:$0xff]
    %v5511 = vld [vmem:[%s5406 + $0x340] sm:$0xff]
    %v5512 = vld [vmem:[%s5406 + $0x348] sm:$0xff]
    %v5513 = vld [vmem:[%s5406 + $0x350] sm:$0xff]
    %v5514 = vld [vmem:[%s5406 + $0x358] sm:$0xff]
    %v5515 = vld [vmem:[%s5406 + $0x360] sm:$0xff]
    %v5516 = vld [vmem:[%s5406 + $0x368] sm:$0xff]
    %v5517 = vld [vmem:[%s5406 + $0x370] sm:$0xff]
    %v5518 = vld [vmem:[%s5406 + $0x378] sm:$0xff]
    %v5519 = vld [vmem:[%s5406 + $0x380] sm:$0xff]
    %v5520 = vld [vmem:[%s5406 + $0x388] sm:$0xff]
    %v5521 = vld [vmem:[%s5406 + $0x390] sm:$0xff]
    %v5522 = vld [vmem:[%s5406 + $0x398] sm:$0xff]
    %v5523 = vld [vmem:[%s5406 + $0x3a0] sm:$0xff]
    %v5524 = vld [vmem:[%s5406 + $0x3a8] sm:$0xff]
    %v5525 = vld [vmem:[%s5406 + $0x3b0] sm:$0xff]
    %v5526 = vld [vmem:[%s5406 + $0x3b8] sm:$0xff]
    %v5527 = vld [vmem:[%s5406 + $0x3c0] sm:$0xff]
    %v5528 = vld [vmem:[%s5406 + $0x3c8] sm:$0xff]
    %v5529 = vld [vmem:[%s5406 + $0x3d0] sm:$0xff]
    %v5530 = vld [vmem:[%s5406 + $0x3d8] sm:$0xff]
    %v5531 = vld [vmem:[%s5406 + $0x3e0] sm:$0xff]
    %v5532 = vld [vmem:[%s5406 + $0x3e8] sm:$0xff]
    %v5533 = vld [vmem:[%s5406 + $0x3f0] sm:$0xff]
    %v5534 = vld [vmem:[%s5406 + $0x3f8] sm:$0xff]
    %v5535 = vld [vmem:[%s5406 + $0x400] sm:$0xff]
    %v5536 = vld [vmem:[%s5406 + $0x408] sm:$0xff]
    %v5537 = vld [vmem:[%s5406 + $0x410] sm:$0xff]
    %v5538 = vld [vmem:[%s5406 + $0x418] sm:$0xff]
    %v5539 = vld [vmem:[%s5406 + $0x420] sm:$0xff]
    %v5540 = vld [vmem:[%s5406 + $0x428] sm:$0xff]
    %v5541 = vld [vmem:[%s5406 + $0x430] sm:$0xff]
    %v5542 = vld [vmem:[%s5406 + $0x438] sm:$0xff]
    %v5543 = vld [vmem:[%s5406 + $0x440] sm:$0xff]
    %v5544 = vld [vmem:[%s5406 + $0x448] sm:$0xff]
    %v5545 = vld [vmem:[%s5406 + $0x450] sm:$0xff]
    %v5546 = vld [vmem:[%s5406 + $0x458] sm:$0xff]
    %v5547 = vld [vmem:[%s5406 + $0x460] sm:$0xff]
    %v5548 = vld [vmem:[%s5406 + $0x468] sm:$0xff]
    %v5549 = vld [vmem:[%s5406 + $0x470] sm:$0xff]
    %v5550 = vld [vmem:[%s5406 + $0x478] sm:$0xff]
    %v5551 = vld [vmem:[%s5406 + $0x480] sm:$0xff]
    %v5552 = vld [vmem:[%s5406 + $0x488] sm:$0xff]
    %v5553 = vld [vmem:[%s5406 + $0x490] sm:$0xff]
    %v5554 = vld [vmem:[%s5406 + $0x498] sm:$0xff]
    %v5555 = vld [vmem:[%s5406 + $0x4a0] sm:$0xff]
    %v5556 = vld [vmem:[%s5406 + $0x4a8] sm:$0xff]
    %v5557 = vld [vmem:[%s5406 + $0x4b0] sm:$0xff]
    %v5558 = vld [vmem:[%s5406 + $0x4b8] sm:$0xff]
    %v5559 = vld [vmem:[%s5406 + $0x4c0] sm:$0xff]
    %v5560 = vld [vmem:[%s5406 + $0x4c8] sm:$0xff]
    %v5561 = vld [vmem:[%s5406 + $0x4d0] sm:$0xff]
    %v5562 = vld [vmem:[%s5406 + $0x4d8] sm:$0xff]
    %v5563 = vld [vmem:[%s5406 + $0x4e0] sm:$0xff]
    %v5564 = vld [vmem:[%s5406 + $0x4e8] sm:$0xff]
    %v5565 = vld [vmem:[%s5406 + $0x4f0] sm:$0xff]
    %v5566 = vld [vmem:[%s5406 + $0x4f8] sm:$0xff]
    %v5567 = vld [vmem:[%s5406 + $0x500] sm:$0xff]
    %v5568 = vld [vmem:[%s5406 + $0x508] sm:$0xff]
    %v5569 = vld [vmem:[%s5406 + $0x510] sm:$0xff]
    %v5570 = vld [vmem:[%s5406 + $0x518] sm:$0xff]
    %v5571 = vld [vmem:[%s5406 + $0x520] sm:$0xff]
    %v5572 = vld [vmem:[%s5406 + $0x528] sm:$0xff]
    %v5573 = vld [vmem:[%s5406 + $0x530] sm:$0xff]
    %v5574 = vld [vmem:[%s5406 + $0x538] sm:$0xff]
    %v5575 = vld [vmem:[%s5406 + $0x540] sm:$0xff]
    %v5576 = vld [vmem:[%s5406 + $0x548] sm:$0xff]
    %v5577 = vld [vmem:[%s5406 + $0x550] sm:$0xff]
    %v5578 = vld [vmem:[%s5406 + $0x558] sm:$0xff]
    %v5579 = vld [vmem:[%s5406 + $0x560] sm:$0xff]
    %v5580 = vld [vmem:[%s5406 + $0x568] sm:$0xff]
    %v5581 = vld [vmem:[%s5406 + $0x570] sm:$0xff]
    %v5582 = vld [vmem:[%s5406 + $0x578] sm:$0xff]
    %v5583 = vld [vmem:[%s5406 + $0x580] sm:$0xff]
    %v5584 = vld [vmem:[%s5406 + $0x588] sm:$0xff]
    %v5585 = vld [vmem:[%s5406 + $0x590] sm:$0xff]
    %v5586 = vld [vmem:[%s5406 + $0x598] sm:$0xff]
    %v5587 = vld [vmem:[%s5406 + $0x5a0] sm:$0xff]
    %v5588 = vld [vmem:[%s5406 + $0x5a8] sm:$0xff]
    %v5589 = vld [vmem:[%s5406 + $0x5b0] sm:$0xff]
    %v5590 = vld [vmem:[%s5406 + $0x5b8] sm:$0xff]
    %v5591 = vld [vmem:[%s5406 + $0x5c0] sm:$0xff]
    %v5592 = vld [vmem:[%s5406 + $0x5c8] sm:$0xff]
    %v5593 = vld [vmem:[%s5406 + $0x5d0] sm:$0xff]
    %v5594 = vld [vmem:[%s5406 + $0x5d8] sm:$0xff]
    %v5595 = vld [vmem:[%s5406 + $0x5e0] sm:$0xff]
    %v5596 = vld [vmem:[%s5406 + $0x5e8] sm:$0xff]
    %v5597 = vld [vmem:[%s5406 + $0x5f0] sm:$0xff]
    %v5598 = vld [vmem:[%s5406 + $0x5f8] sm:$0xff]
    %v5599 = vld [vmem:[%s5406 + $0x600] sm:$0xff]
    %v5600 = vld [vmem:[%s5406 + $0x608] sm:$0xff]
    %v5601 = vld [vmem:[%s5406 + $0x610] sm:$0xff]
    %v5602 = vld [vmem:[%s5406 + $0x618] sm:$0xff]
    %v5603 = vld [vmem:[%s5406 + $0x620] sm:$0xff]
    %v5604 = vld [vmem:[%s5406 + $0x628] sm:$0xff]
    %v5605 = vld [vmem:[%s5406 + $0x630] sm:$0xff]
    %v5606 = vld [vmem:[%s5406 + $0x638] sm:$0xff]
    %v5607 = vld [vmem:[%s5406 + $0x640] sm:$0xff]
    %v5608 = vld [vmem:[%s5406 + $0x648] sm:$0xff]
    %v5609 = vld [vmem:[%s5406 + $0x650] sm:$0xff]
    %v5610 = vld [vmem:[%s5406 + $0x658] sm:$0xff]
    %v5611 = vld [vmem:[%s5406 + $0x660] sm:$0xff]
    %v5612 = vld [vmem:[%s5406 + $0x668] sm:$0xff]
    %v5613 = vld [vmem:[%s5406 + $0x670] sm:$0xff]
    %v5614 = vld [vmem:[%s5406 + $0x678] sm:$0xff]
    %v5615 = vld [vmem:[%s5406 + $0x680] sm:$0xff]
    %v5616 = vld [vmem:[%s5406 + $0x688] sm:$0xff]
    %v5617 = vld [vmem:[%s5406 + $0x690] sm:$0xff]
    %v5618 = vld [vmem:[%s5406 + $0x698] sm:$0xff]
    %v5619 = vld [vmem:[%s5406 + $0x6a0] sm:$0xff]
    %v5620 = vld [vmem:[%s5406 + $0x6a8] sm:$0xff]
    %v5621 = vld [vmem:[%s5406 + $0x6b0] sm:$0xff]
    %v5622 = vld [vmem:[%s5406 + $0x6b8] sm:$0xff]
    %v5623 = vld [vmem:[%s5406 + $0x6c0] sm:$0xff]
    %v5624 = vld [vmem:[%s5406 + $0x6c8] sm:$0xff]
    %v5625 = vld [vmem:[%s5406 + $0x6d0] sm:$0xff]
    %v5626 = vld [vmem:[%s5406 + $0x6d8] sm:$0xff]
    %v5627 = vld [vmem:[%s5406 + $0x6e0] sm:$0xff]
    %v5628 = vld [vmem:[%s5406 + $0x6e8] sm:$0xff]
    %v5629 = vld [vmem:[%s5406 + $0x6f0] sm:$0xff]
    %v5630 = vld [vmem:[%s5406 + $0x6f8] sm:$0xff]
    %5631 = vmatprep.subr.mxu0 %v5438
    %5632 = vmatpush1.msra.mxu0 %v5437
    %5633 = vmatprep.subr.mxu0 %v5436
    %5634 = vmatpush1.msra.mxu0 %v5435
    %5635 = vmatprep.subr.mxu0 %v5434
    %5636 = vmatpush1.msra.mxu0 %v5433
    %5637 = vmatprep.subr.mxu0 %v5432
    %5638 = vmatpush1.msra.mxu0 %v5431
    %5639 = vmatprep.subr.mxu0 %v5430
    %5640 = vmatpush1.msra.mxu0 %v5429
    %5641 = vmatprep.subr.mxu0 %v5428
    %5642 = vmatpush1.msra.mxu0 %v5427
    %5643 = vmatprep.subr.mxu0 %v5426
    %5644 = vmatpush1.msra.mxu0 %v5425
    %5645 = vmatprep.subr.mxu0 %v5424
    %5646 = vmatpush1.msra.mxu0 %v5423
    %5647 = vmatprep.subr.mxu0 %v5422
    %5648 = vmatpush1.msra.mxu0 %v5421
    %5649 = vmatprep.subr.mxu0 %v5420
    %5650 = vmatpush1.msra.mxu0 %v5419
    %5651 = vmatprep.subr.mxu0 %v5418
    %5652 = vmatpush1.msra.mxu0 %v5417
    %5653 = vmatprep.subr.mxu0 %v5416
    %5654 = vmatpush1.msra.mxu0 %v5415
    %5655 = vmatprep.subr.mxu0 %v5414
    %5656 = vmatpush1.msra.mxu0 %v5413
    %5657 = vmatprep.subr.mxu0 %v5412
    %5658 = vmatpush1.msra.mxu0 %v5411
    %5659 = vmatprep.subr.mxu0 %v5410
    %5660 = vmatpush1.msra.mxu0 %v5409
    %5661 = vmatprep.subr.mxu0 %v5408
    %5662 = vmatpush1.msra.mxu0 %v5407
    %5663 = vmatprep.subr.mxu0 %v5470
    %5664 = vmatpush2.msra.mxu0 %v5469
    %5665 = vmatprep.subr.mxu0 %v5468
    %5666 = vmatpush2.msra.mxu0 %v5467
    %5667 = vmatprep.subr.mxu0 %v5466
    %5668 = vmatpush2.msra.mxu0 %v5465
    %5669 = vmatprep.subr.mxu0 %v5464
    %5670 = vmatpush2.msra.mxu0 %v5463
    %5671 = vmatprep.subr.mxu0 %v5462
    %5672 = vmatpush2.msra.mxu0 %v5461
    %5673 = vmatprep.subr.mxu0 %v5460
    %5674 = vmatpush2.msra.mxu0 %v5459
    %5675 = vmatprep.subr.mxu0 %v5458
    %5676 = vmatpush2.msra.mxu0 %v5457
    %5677 = vmatprep.subr.mxu0 %v5456
    %5678 = vmatpush2.msra.mxu0 %v5455
    %5679 = vmatprep.subr.mxu0 %v5454
    %5680 = vmatpush2.msra.mxu0 %v5453
    %5681 = vmatprep.subr.mxu0 %v5452
    %5682 = vmatpush2.msra.mxu0 %v5451
    %5683 = vmatprep.subr.mxu0 %v5450
    %5684 = vmatpush2.msra.mxu0 %v5449
    %5685 = vmatprep.subr.mxu0 %v5448
    %5686 = vmatpush2.msra.mxu0 %v5447
    %5687 = vmatprep.subr.mxu0 %v5446
    %5688 = vmatpush2.msra.mxu0 %v5445
    %5689 = vmatprep.subr.mxu0 %v5444
    %5690 = vmatpush2.msra.mxu0 %v5443
    %5691 = vmatprep.subr.mxu0 %v5442
    %5692 = vmatpush2.msra.mxu0 %v5441
    %5693 = vmatprep.subr.mxu0 %v5440
    %5694 = vmatpush2.msra.mxu0 %v5439
    %5695 = vmatprep.mubr.f32.mxu0 %v5400
    %5696 = vmatmul.mubr.f32.gmra.mxu0 %v5399
    %v5697 = vpop.f32.mrf.mxu0
    %v5698 = vadd.f32 0.0, %v5697
    %v5699 = vpop.f32.mrf.mxu0
    %v5700 = vadd.f32 0.0, %v5699
    %5701 = vdwg.mxu0
    %5702 = vmatprep.subr.mxu0 %v5502
    %5703 = vmatpush1.msra.mxu0 %v5501
    %5704 = vmatprep.subr.mxu0 %v5500
    %5705 = vmatpush1.msra.mxu0 %v5499
    %5706 = vmatprep.subr.mxu0 %v5498
    %5707 = vmatpush1.msra.mxu0 %v5497
    %5708 = vmatprep.subr.mxu0 %v5496
    %5709 = vmatpush1.msra.mxu0 %v5495
    %5710 = vmatprep.subr.mxu0 %v5494
    %5711 = vmatpush1.msra.mxu0 %v5493
    %5712 = vmatprep.subr.mxu0 %v5492
    %5713 = vmatpush1.msra.mxu0 %v5491
    %5714 = vmatprep.subr.mxu0 %v5490
    %5715 = vmatpush1.msra.mxu0 %v5489
    %5716 = vmatprep.subr.mxu0 %v5488
    %5717 = vmatpush1.msra.mxu0 %v5487
    %5718 = vmatprep.subr.mxu0 %v5486
    %5719 = vmatpush1.msra.mxu0 %v5485
    %5720 = vmatprep.subr.mxu0 %v5484
    %5721 = vmatpush1.msra.mxu0 %v5483
    %5722 = vmatprep.subr.mxu0 %v5482
    %5723 = vmatpush1.msra.mxu0 %v5481
    %5724 = vmatprep.subr.mxu0 %v5480
    %5725 = vmatpush1.msra.mxu0 %v5479
    %5726 = vmatprep.subr.mxu0 %v5478
    %5727 = vmatpush1.msra.mxu0 %v5477
    %5728 = vmatprep.subr.mxu0 %v5476
    %5729 = vmatpush1.msra.mxu0 %v5475
    %5730 = vmatprep.subr.mxu0 %v5474
    %5731 = vmatpush1.msra.mxu0 %v5473
    %5732 = vmatprep.subr.mxu0 %v5472
    %5733 = vmatpush1.msra.mxu0 %v5471
    %5734 = vmatprep.subr.mxu0 %v5534
    %5735 = vmatpush2.msra.mxu0 %v5533
    %5736 = vmatprep.subr.mxu0 %v5532
    %5737 = vmatpush2.msra.mxu0 %v5531
    %5738 = vmatprep.subr.mxu0 %v5530
    %5739 = vmatpush2.msra.mxu0 %v5529
    %5740 = vmatprep.subr.mxu0 %v5528
    %5741 = vmatpush2.msra.mxu0 %v5527
    %5742 = vmatprep.subr.mxu0 %v5526
    %5743 = vmatpush2.msra.mxu0 %v5525
    %5744 = vmatprep.subr.mxu0 %v5524
    %5745 = vmatpush2.msra.mxu0 %v5523
    %5746 = vmatprep.subr.mxu0 %v5522
    %5747 = vmatpush2.msra.mxu0 %v5521
    %5748 = vmatprep.subr.mxu0 %v5520
    %5749 = vmatpush2.msra.mxu0 %v5519
    %5750 = vmatprep.subr.mxu0 %v5518
    %5751 = vmatpush2.msra.mxu0 %v5517
    %5752 = vmatprep.subr.mxu0 %v5516
    %5753 = vmatpush2.msra.mxu0 %v5515
    %5754 = vmatprep.subr.mxu0 %v5514
    %5755 = vmatpush2.msra.mxu0 %v5513
    %5756 = vmatprep.subr.mxu0 %v5512
    %5757 = vmatpush2.msra.mxu0 %v5511
    %5758 = vmatprep.subr.mxu0 %v5510
    %5759 = vmatpush2.msra.mxu0 %v5509
    %5760 = vmatprep.subr.mxu0 %v5508
    %5761 = vmatpush2.msra.mxu0 %v5507
    %5762 = vmatprep.subr.mxu0 %v5506
    %5763 = vmatpush2.msra.mxu0 %v5505
    %5764 = vmatprep.subr.mxu0 %v5504
    %5765 = vmatpush2.msra.mxu0 %v5503
    %5766 = vmatprep.mubr.f32.mxu0 %v5402
    %5767 = vmatmul.mubr.f32.gmra.mxu0 %v5401
    %v5768 = vpop.f32.mrf.mxu0
    %v5769 = vadd.f32 %v5698, %v5768
    %v5770 = vpop.f32.mrf.mxu0
    %v5771 = vadd.f32 %v5700, %v5770
    %5772 = vdwg.mxu0
    %5773 = vmatprep.subr.mxu0 %v5566
    %5774 = vmatpush1.msra.mxu0 %v5565
    %5775 = vmatprep.subr.mxu0 %v5564
    %5776 = vmatpush1.msra.mxu0 %v5563
    %5777 = vmatprep.subr.mxu0 %v5562
    %5778 = vmatpush1.msra.mxu0 %v5561
    %5779 = vmatprep.subr.mxu0 %v5560
    %5780 = vmatpush1.msra.mxu0 %v5559
    %5781 = vmatprep.subr.mxu0 %v5558
    %5782 = vmatpush1.msra.mxu0 %v5557
    %5783 = vmatprep.subr.mxu0 %v5556
    %5784 = vmatpush1.msra.mxu0 %v5555
    %5785 = vmatprep.subr.mxu0 %v5554
    %5786 = vmatpush1.msra.mxu0 %v5553
    %5787 = vmatprep.subr.mxu0 %v5552
    %5788 = vmatpush1.msra.mxu0 %v5551
    %5789 = vmatprep.subr.mxu0 %v5550
    %5790 = vmatpush1.msra.mxu0 %v5549
    %5791 = vmatprep.subr.mxu0 %v5548
    %5792 = vmatpush1.msra.mxu0 %v5547
    %5793 = vmatprep.subr.mxu0 %v5546
    %5794 = vmatpush1.msra.mxu0 %v5545
    %5795 = vmatprep.subr.mxu0 %v5544
    %5796 = vmatpush1.msra.mxu0 %v5543
    %5797 = vmatprep.subr.mxu0 %v5542
    %5798 = vmatpush1.msra.mxu0 %v5541
    %5799 = vmatprep.subr.mxu0 %v5540
    %5800 = vmatpush1.msra.mxu0 %v5539
    %5801 = vmatprep.subr.mxu0 %v5538
    %5802 = vmatpush1.msra.mxu0 %v5537
    %5803 = vmatprep.subr.mxu0 %v5536
    %5804 = vmatpush1.msra.mxu0 %v5535
    %5805 = vmatprep.subr.mxu0 %v5598
    %5806 = vmatpush2.msra.mxu0 %v5597
    %5807 = vmatprep.subr.mxu0 %v5596
    %5808 = vmatpush2.msra.mxu0 %v5595
    %5809 = vmatprep.subr.mxu0 %v5594
    %5810 = vmatpush2.msra.mxu0 %v5593
    %5811 = vmatprep.subr.mxu0 %v5592
    %5812 = vmatpush2.msra.mxu0 %v5591
    %5813 = vmatprep.subr.mxu0 %v5590
    %5814 = vmatpush2.msra.mxu0 %v5589
    %5815 = vmatprep.subr.mxu0 %v5588
    %5816 = vmatpush2.msra.mxu0 %v5587
    %5817 = vmatprep.subr.mxu0 %v5586
    %5818 = vmatpush2.msra.mxu0 %v5585
    %5819 = vmatprep.subr.mxu0 %v5584
    %5820 = vmatpush2.msra.mxu0 %v5583
    %5821 = vmatprep.subr.mxu0 %v5582
    %5822 = vmatpush2.msra.mxu0 %v5581
    %5823 = vmatprep.subr.mxu0 %v5580
    %5824 = vmatpush2.msra.mxu0 %v5579
    %5825 = vmatprep.subr.mxu0 %v5578
    %5826 = vmatpush2.msra.mxu0 %v5577
    %5827 = vmatprep.subr.mxu0 %v5576
    %5828 = vmatpush2.msra.mxu0 %v5575
    %5829 = vmatprep.subr.mxu0 %v5574
    %5830 = vmatpush2.msra.mxu0 %v5573
    %5831 = vmatprep.subr.mxu0 %v5572
    %5832 = vmatpush2.msra.mxu0 %v5571
    %5833 = vmatprep.subr.mxu0 %v5570
    %5834 = vmatpush2.msra.mxu0 %v5569
    %5835 = vmatprep.subr.mxu0 %v5568
    %5836 = vmatpush2.msra.mxu0 %v5567
    %5837 = vmatprep.mubr.f32.mxu0 %v5404
    %5838 = vmatmul.mubr.f32.gmra.mxu0 %v5403
    %v5839 = vpop.f32.mrf.mxu0
    %v5840 = vadd.f32 %v5769, %v5839
    %v5841 = vpop.f32.mrf.mxu0
    %v5842 = vadd.f32 %v5771, %v5841
    %5843 = vdwg.mxu0
    %5844 = vmatprep.subr.mxu0 %v5630
    %5845 = vmatpush1.msra.mxu0 %v5629
    %5846 = vmatprep.subr.mxu0 %v5628
    %5847 = vmatpush1.msra.mxu0 %v5627
    %5848 = vmatprep.subr.mxu0 %v5626
    %5849 = vmatpush1.msra.mxu0 %v5625
    %5850 = vmatprep.subr.mxu0 %v5624
    %5851 = vmatpush1.msra.mxu0 %v5623
    %5852 = vmatprep.subr.mxu0 %v5622
    %5853 = vmatpush1.msra.mxu0 %v5621
    %5854 = vmatprep.subr.mxu0 %v5620
    %5855 = vmatpush1.msra.mxu0 %v5619
    %5856 = vmatprep.subr.mxu0 %v5618
    %5857 = vmatpush1.msra.mxu0 %v5617
    %5858 = vmatprep.subr.mxu0 %v5616
    %5859 = vmatpush1.msra.mxu0 %v5615
    %5860 = vmatprep.subr.mxu0 %v5614
    %5861 = vmatpush1.msra.mxu0 %v5613
    %5862 = vmatprep.subr.mxu0 %v5612
    %5863 = vmatpush1.msra.mxu0 %v5611
    %5864 = vmatprep.subr.mxu0 %v5610
    %5865 = vmatpush1.msra.mxu0 %v5609
    %5866 = vmatprep.subr.mxu0 %v5608
    %5867 = vmatpush1.msra.mxu0 %v5607
    %5868 = vmatprep.subr.mxu0 %v5606
    %5869 = vmatpush1.msra.mxu0 %v5605
    %5870 = vmatprep.subr.mxu0 %v5604
    %5871 = vmatpush1.msra.mxu0 %v5603
    %5872 = vmatprep.subr.mxu0 %v5602
    %5873 = vmatpush1.msra.mxu0 %v5601
    %5874 = vmatprep.subr.mxu0 %v5600
    %5875 = vmatpush1.msra.mxu0 %v5599
    %5876 = vmatprep.subr.mxu0 0.0
    %5877 = vmatpush2.msra.mxu0 0.0
    %5878 = vmatprep.subr.mxu0 0.0
    %5879 = vmatpush2.msra.mxu0 0.0
    %5880 = vmatprep.subr.mxu0 0.0
    %5881 = vmatpush2.msra.mxu0 0.0
    %5882 = vmatprep.subr.mxu0 0.0
    %5883 = vmatpush2.msra.mxu0 0.0
    %5884 = vmatprep.subr.mxu0 0.0
    %5885 = vmatpush2.msra.mxu0 0.0
    %5886 = vmatprep.subr.mxu0 0.0
    %5887 = vmatpush2.msra.mxu0 0.0
    %5888 = vmatprep.subr.mxu0 0.0
    %5889 = vmatpush2.msra.mxu0 0.0
    %5890 = vmatprep.subr.mxu0 0.0
    %5891 = vmatpush2.msra.mxu0 0.0
    %5892 = vmatprep.subr.mxu0 0.0
    %5893 = vmatpush2.msra.mxu0 0.0
    %5894 = vmatprep.subr.mxu0 0.0
    %5895 = vmatpush2.msra.mxu0 0.0
    %5896 = vmatprep.subr.mxu0 0.0
    %5897 = vmatpush2.msra.mxu0 0.0
    %5898 = vmatprep.subr.mxu0 0.0
    %5899 = vmatpush2.msra.mxu0 0.0
    %5900 = vmatprep.subr.mxu0 0.0
    %5901 = vmatpush2.msra.mxu0 0.0
    %5902 = vmatprep.subr.mxu0 0.0
    %5903 = vmatpush2.msra.mxu0 0.0
    %5904 = vmatprep.subr.mxu0 0.0
    %5905 = vmatpush2.msra.mxu0 0.0
    %5906 = vmatprep.subr.mxu0 0.0
    %5907 = vmatpush2.msra.mxu0 0.0
    %5908 = vmatprep.mubr.f32.mxu0 0.0
    %5909 = vmatmul.mubr.f32.gmra.mxu0 %v5405
    %v5910 = vpop.f32.mrf.mxu0
    %v5911 = vadd.f32 %v5840, %v5910
    %v5912 = vpop.f32.mrf.mxu0
    %v5913 = vadd.f32 %v5842, %v5912
    %5914 = vdwg.mxu0
    %v5915 = vadd.f32 %v4095, %v5911
    %v5916 = vadd.f32 %v4096, %v5913
    %v5917 = vmax.f32 %v5376, 0.0
    %v5918 = vmax.f32 %v5377, 0.0
    %v5919 = vmax.f32 %v5378, 0.0
    %v5920 = vmax.f32 %v5379, 0.0
    %v5921 = vmax.f32 %v5380, 0.0
    %v5922 = vmax.f32 %v5381, 0.0
    %v5923 = vmax.f32 %v5382, 0.0
    %s5924 = scalar_lea.vmem %s5, 7168
    %v5925 = vld [vmem:[%s5924] sm:$0xff]
    %v5926 = vld [vmem:[%s5924 + $0x8] sm:$0xff]
    %v5927 = vld [vmem:[%s5924 + $0x10] sm:$0xff]
    %v5928 = vld [vmem:[%s5924 + $0x18] sm:$0xff]
    %v5929 = vld [vmem:[%s5924 + $0x20] sm:$0xff]
    %v5930 = vld [vmem:[%s5924 + $0x28] sm:$0xff]
    %v5931 = vld [vmem:[%s5924 + $0x30] sm:$0xff]
    %v5932 = vld [vmem:[%s5924 + $0x38] sm:$0xff]
    %v5933 = vld [vmem:[%s5924 + $0x40] sm:$0xff]
    %v5934 = vld [vmem:[%s5924 + $0x48] sm:$0xff]
    %v5935 = vld [vmem:[%s5924 + $0x50] sm:$0xff]
    %v5936 = vld [vmem:[%s5924 + $0x58] sm:$0xff]
    %v5937 = vld [vmem:[%s5924 + $0x60] sm:$0xff]
    %v5938 = vld [vmem:[%s5924 + $0x68] sm:$0xff]
    %v5939 = vld [vmem:[%s5924 + $0x70] sm:$0xff]
    %v5940 = vld [vmem:[%s5924 + $0x78] sm:$0xff]
    %v5941 = vld [vmem:[%s5924 + $0x80] sm:$0xff]
    %v5942 = vld [vmem:[%s5924 + $0x88] sm:$0xff]
    %v5943 = vld [vmem:[%s5924 + $0x90] sm:$0xff]
    %v5944 = vld [vmem:[%s5924 + $0x98] sm:$0xff]
    %v5945 = vld [vmem:[%s5924 + $0xa0] sm:$0xff]
    %v5946 = vld [vmem:[%s5924 + $0xa8] sm:$0xff]
    %v5947 = vld [vmem:[%s5924 + $0xb0] sm:$0xff]
    %v5948 = vld [vmem:[%s5924 + $0xb8] sm:$0xff]
    %v5949 = vld [vmem:[%s5924 + $0xc0] sm:$0xff]
    %v5950 = vld [vmem:[%s5924 + $0xc8] sm:$0xff]
    %v5951 = vld [vmem:[%s5924 + $0xd0] sm:$0xff]
    %v5952 = vld [vmem:[%s5924 + $0xd8] sm:$0xff]
    %v5953 = vld [vmem:[%s5924 + $0xe0] sm:$0xff]
    %v5954 = vld [vmem:[%s5924 + $0xe8] sm:$0xff]
    %v5955 = vld [vmem:[%s5924 + $0xf0] sm:$0xff]
    %v5956 = vld [vmem:[%s5924 + $0xf8] sm:$0xff]
    %v5957 = vld [vmem:[%s5924 + $0x100] sm:$0xff]
    %v5958 = vld [vmem:[%s5924 + $0x108] sm:$0xff]
    %v5959 = vld [vmem:[%s5924 + $0x110] sm:$0xff]
    %v5960 = vld [vmem:[%s5924 + $0x118] sm:$0xff]
    %v5961 = vld [vmem:[%s5924 + $0x120] sm:$0xff]
    %v5962 = vld [vmem:[%s5924 + $0x128] sm:$0xff]
    %v5963 = vld [vmem:[%s5924 + $0x130] sm:$0xff]
    %v5964 = vld [vmem:[%s5924 + $0x138] sm:$0xff]
    %v5965 = vld [vmem:[%s5924 + $0x140] sm:$0xff]
    %v5966 = vld [vmem:[%s5924 + $0x148] sm:$0xff]
    %v5967 = vld [vmem:[%s5924 + $0x150] sm:$0xff]
    %v5968 = vld [vmem:[%s5924 + $0x158] sm:$0xff]
    %v5969 = vld [vmem:[%s5924 + $0x160] sm:$0xff]
    %v5970 = vld [vmem:[%s5924 + $0x168] sm:$0xff]
    %v5971 = vld [vmem:[%s5924 + $0x170] sm:$0xff]
    %v5972 = vld [vmem:[%s5924 + $0x178] sm:$0xff]
    %v5973 = vld [vmem:[%s5924 + $0x180] sm:$0xff]
    %v5974 = vld [vmem:[%s5924 + $0x188] sm:$0xff]
    %v5975 = vld [vmem:[%s5924 + $0x190] sm:$0xff]
    %v5976 = vld [vmem:[%s5924 + $0x198] sm:$0xff]
    %v5977 = vld [vmem:[%s5924 + $0x1a0] sm:$0xff]
    %v5978 = vld [vmem:[%s5924 + $0x1a8] sm:$0xff]
    %v5979 = vld [vmem:[%s5924 + $0x1b0] sm:$0xff]
    %v5980 = vld [vmem:[%s5924 + $0x1b8] sm:$0xff]
    %v5981 = vld [vmem:[%s5924 + $0x1c0] sm:$0xff]
    %v5982 = vld [vmem:[%s5924 + $0x1c8] sm:$0xff]
    %v5983 = vld [vmem:[%s5924 + $0x1d0] sm:$0xff]
    %v5984 = vld [vmem:[%s5924 + $0x1d8] sm:$0xff]
    %v5985 = vld [vmem:[%s5924 + $0x1e0] sm:$0xff]
    %v5986 = vld [vmem:[%s5924 + $0x1e8] sm:$0xff]
    %v5987 = vld [vmem:[%s5924 + $0x1f0] sm:$0xff]
    %v5988 = vld [vmem:[%s5924 + $0x1f8] sm:$0xff]
    %v5989 = vld [vmem:[%s5924 + $0x200] sm:$0xff]
    %v5990 = vld [vmem:[%s5924 + $0x208] sm:$0xff]
    %v5991 = vld [vmem:[%s5924 + $0x210] sm:$0xff]
    %v5992 = vld [vmem:[%s5924 + $0x218] sm:$0xff]
    %v5993 = vld [vmem:[%s5924 + $0x220] sm:$0xff]
    %v5994 = vld [vmem:[%s5924 + $0x228] sm:$0xff]
    %v5995 = vld [vmem:[%s5924 + $0x230] sm:$0xff]
    %v5996 = vld [vmem:[%s5924 + $0x238] sm:$0xff]
    %v5997 = vld [vmem:[%s5924 + $0x240] sm:$0xff]
    %v5998 = vld [vmem:[%s5924 + $0x248] sm:$0xff]
    %v5999 = vld [vmem:[%s5924 + $0x250] sm:$0xff]
    %v6000 = vld [vmem:[%s5924 + $0x258] sm:$0xff]
    %v6001 = vld [vmem:[%s5924 + $0x260] sm:$0xff]
    %v6002 = vld [vmem:[%s5924 + $0x268] sm:$0xff]
    %v6003 = vld [vmem:[%s5924 + $0x270] sm:$0xff]
    %v6004 = vld [vmem:[%s5924 + $0x278] sm:$0xff]
    %v6005 = vld [vmem:[%s5924 + $0x280] sm:$0xff]
    %v6006 = vld [vmem:[%s5924 + $0x288] sm:$0xff]
    %v6007 = vld [vmem:[%s5924 + $0x290] sm:$0xff]
    %v6008 = vld [vmem:[%s5924 + $0x298] sm:$0xff]
    %v6009 = vld [vmem:[%s5924 + $0x2a0] sm:$0xff]
    %v6010 = vld [vmem:[%s5924 + $0x2a8] sm:$0xff]
    %v6011 = vld [vmem:[%s5924 + $0x2b0] sm:$0xff]
    %v6012 = vld [vmem:[%s5924 + $0x2b8] sm:$0xff]
    %v6013 = vld [vmem:[%s5924 + $0x2c0] sm:$0xff]
    %v6014 = vld [vmem:[%s5924 + $0x2c8] sm:$0xff]
    %v6015 = vld [vmem:[%s5924 + $0x2d0] sm:$0xff]
    %v6016 = vld [vmem:[%s5924 + $0x2d8] sm:$0xff]
    %v6017 = vld [vmem:[%s5924 + $0x2e0] sm:$0xff]
    %v6018 = vld [vmem:[%s5924 + $0x2e8] sm:$0xff]
    %v6019 = vld [vmem:[%s5924 + $0x2f0] sm:$0xff]
    %v6020 = vld [vmem:[%s5924 + $0x2f8] sm:$0xff]
    %v6021 = vld [vmem:[%s5924 + $0x300] sm:$0xff]
    %v6022 = vld [vmem:[%s5924 + $0x308] sm:$0xff]
    %v6023 = vld [vmem:[%s5924 + $0x310] sm:$0xff]
    %v6024 = vld [vmem:[%s5924 + $0x318] sm:$0xff]
    %v6025 = vld [vmem:[%s5924 + $0x320] sm:$0xff]
    %v6026 = vld [vmem:[%s5924 + $0x328] sm:$0xff]
    %v6027 = vld [vmem:[%s5924 + $0x330] sm:$0xff]
    %v6028 = vld [vmem:[%s5924 + $0x338] sm:$0xff]
    %v6029 = vld [vmem:[%s5924 + $0x340] sm:$0xff]
    %v6030 = vld [vmem:[%s5924 + $0x348] sm:$0xff]
    %v6031 = vld [vmem:[%s5924 + $0x350] sm:$0xff]
    %v6032 = vld [vmem:[%s5924 + $0x358] sm:$0xff]
    %v6033 = vld [vmem:[%s5924 + $0x360] sm:$0xff]
    %v6034 = vld [vmem:[%s5924 + $0x368] sm:$0xff]
    %v6035 = vld [vmem:[%s5924 + $0x370] sm:$0xff]
    %v6036 = vld [vmem:[%s5924 + $0x378] sm:$0xff]
    %v6037 = vld [vmem:[%s5924 + $0x380] sm:$0xff]
    %v6038 = vld [vmem:[%s5924 + $0x388] sm:$0xff]
    %v6039 = vld [vmem:[%s5924 + $0x390] sm:$0xff]
    %v6040 = vld [vmem:[%s5924 + $0x398] sm:$0xff]
    %v6041 = vld [vmem:[%s5924 + $0x3a0] sm:$0xff]
    %v6042 = vld [vmem:[%s5924 + $0x3a8] sm:$0xff]
    %v6043 = vld [vmem:[%s5924 + $0x3b0] sm:$0xff]
    %v6044 = vld [vmem:[%s5924 + $0x3b8] sm:$0xff]
    %v6045 = vld [vmem:[%s5924 + $0x3c0] sm:$0xff]
    %v6046 = vld [vmem:[%s5924 + $0x3c8] sm:$0xff]
    %v6047 = vld [vmem:[%s5924 + $0x3d0] sm:$0xff]
    %v6048 = vld [vmem:[%s5924 + $0x3d8] sm:$0xff]
    %v6049 = vld [vmem:[%s5924 + $0x3e0] sm:$0xff]
    %v6050 = vld [vmem:[%s5924 + $0x3e8] sm:$0xff]
    %v6051 = vld [vmem:[%s5924 + $0x3f0] sm:$0xff]
    %v6052 = vld [vmem:[%s5924 + $0x3f8] sm:$0xff]
    %v6053 = vld [vmem:[%s5924 + $0x400] sm:$0xff]
    %v6054 = vld [vmem:[%s5924 + $0x408] sm:$0xff]
    %v6055 = vld [vmem:[%s5924 + $0x410] sm:$0xff]
    %v6056 = vld [vmem:[%s5924 + $0x418] sm:$0xff]
    %v6057 = vld [vmem:[%s5924 + $0x420] sm:$0xff]
    %v6058 = vld [vmem:[%s5924 + $0x428] sm:$0xff]
    %v6059 = vld [vmem:[%s5924 + $0x430] sm:$0xff]
    %v6060 = vld [vmem:[%s5924 + $0x438] sm:$0xff]
    %v6061 = vld [vmem:[%s5924 + $0x440] sm:$0xff]
    %v6062 = vld [vmem:[%s5924 + $0x448] sm:$0xff]
    %v6063 = vld [vmem:[%s5924 + $0x450] sm:$0xff]
    %v6064 = vld [vmem:[%s5924 + $0x458] sm:$0xff]
    %v6065 = vld [vmem:[%s5924 + $0x460] sm:$0xff]
    %v6066 = vld [vmem:[%s5924 + $0x468] sm:$0xff]
    %v6067 = vld [vmem:[%s5924 + $0x470] sm:$0xff]
    %v6068 = vld [vmem:[%s5924 + $0x478] sm:$0xff]
    %v6069 = vld [vmem:[%s5924 + $0x480] sm:$0xff]
    %v6070 = vld [vmem:[%s5924 + $0x488] sm:$0xff]
    %v6071 = vld [vmem:[%s5924 + $0x490] sm:$0xff]
    %v6072 = vld [vmem:[%s5924 + $0x498] sm:$0xff]
    %v6073 = vld [vmem:[%s5924 + $0x4a0] sm:$0xff]
    %v6074 = vld [vmem:[%s5924 + $0x4a8] sm:$0xff]
    %v6075 = vld [vmem:[%s5924 + $0x4b0] sm:$0xff]
    %v6076 = vld [vmem:[%s5924 + $0x4b8] sm:$0xff]
    %v6077 = vld [vmem:[%s5924 + $0x4c0] sm:$0xff]
    %v6078 = vld [vmem:[%s5924 + $0x4c8] sm:$0xff]
    %v6079 = vld [vmem:[%s5924 + $0x4d0] sm:$0xff]
    %v6080 = vld [vmem:[%s5924 + $0x4d8] sm:$0xff]
    %v6081 = vld [vmem:[%s5924 + $0x4e0] sm:$0xff]
    %v6082 = vld [vmem:[%s5924 + $0x4e8] sm:$0xff]
    %v6083 = vld [vmem:[%s5924 + $0x4f0] sm:$0xff]
    %v6084 = vld [vmem:[%s5924 + $0x4f8] sm:$0xff]
    %v6085 = vld [vmem:[%s5924 + $0x500] sm:$0xff]
    %v6086 = vld [vmem:[%s5924 + $0x508] sm:$0xff]
    %v6087 = vld [vmem:[%s5924 + $0x510] sm:$0xff]
    %v6088 = vld [vmem:[%s5924 + $0x518] sm:$0xff]
    %v6089 = vld [vmem:[%s5924 + $0x520] sm:$0xff]
    %v6090 = vld [vmem:[%s5924 + $0x528] sm:$0xff]
    %v6091 = vld [vmem:[%s5924 + $0x530] sm:$0xff]
    %v6092 = vld [vmem:[%s5924 + $0x538] sm:$0xff]
    %v6093 = vld [vmem:[%s5924 + $0x540] sm:$0xff]
    %v6094 = vld [vmem:[%s5924 + $0x548] sm:$0xff]
    %v6095 = vld [vmem:[%s5924 + $0x550] sm:$0xff]
    %v6096 = vld [vmem:[%s5924 + $0x558] sm:$0xff]
    %v6097 = vld [vmem:[%s5924 + $0x560] sm:$0xff]
    %v6098 = vld [vmem:[%s5924 + $0x568] sm:$0xff]
    %v6099 = vld [vmem:[%s5924 + $0x570] sm:$0xff]
    %v6100 = vld [vmem:[%s5924 + $0x578] sm:$0xff]
    %v6101 = vld [vmem:[%s5924 + $0x580] sm:$0xff]
    %v6102 = vld [vmem:[%s5924 + $0x588] sm:$0xff]
    %v6103 = vld [vmem:[%s5924 + $0x590] sm:$0xff]
    %v6104 = vld [vmem:[%s5924 + $0x598] sm:$0xff]
    %v6105 = vld [vmem:[%s5924 + $0x5a0] sm:$0xff]
    %v6106 = vld [vmem:[%s5924 + $0x5a8] sm:$0xff]
    %v6107 = vld [vmem:[%s5924 + $0x5b0] sm:$0xff]
    %v6108 = vld [vmem:[%s5924 + $0x5b8] sm:$0xff]
    %v6109 = vld [vmem:[%s5924 + $0x5c0] sm:$0xff]
    %v6110 = vld [vmem:[%s5924 + $0x5c8] sm:$0xff]
    %v6111 = vld [vmem:[%s5924 + $0x5d0] sm:$0xff]
    %v6112 = vld [vmem:[%s5924 + $0x5d8] sm:$0xff]
    %v6113 = vld [vmem:[%s5924 + $0x5e0] sm:$0xff]
    %v6114 = vld [vmem:[%s5924 + $0x5e8] sm:$0xff]
    %v6115 = vld [vmem:[%s5924 + $0x5f0] sm:$0xff]
    %v6116 = vld [vmem:[%s5924 + $0x5f8] sm:$0xff]
    %v6117 = vld [vmem:[%s5924 + $0x600] sm:$0xff]
    %v6118 = vld [vmem:[%s5924 + $0x608] sm:$0xff]
    %v6119 = vld [vmem:[%s5924 + $0x610] sm:$0xff]
    %v6120 = vld [vmem:[%s5924 + $0x618] sm:$0xff]
    %v6121 = vld [vmem:[%s5924 + $0x620] sm:$0xff]
    %v6122 = vld [vmem:[%s5924 + $0x628] sm:$0xff]
    %v6123 = vld [vmem:[%s5924 + $0x630] sm:$0xff]
    %v6124 = vld [vmem:[%s5924 + $0x638] sm:$0xff]
    %v6125 = vld [vmem:[%s5924 + $0x640] sm:$0xff]
    %v6126 = vld [vmem:[%s5924 + $0x648] sm:$0xff]
    %v6127 = vld [vmem:[%s5924 + $0x650] sm:$0xff]
    %v6128 = vld [vmem:[%s5924 + $0x658] sm:$0xff]
    %v6129 = vld [vmem:[%s5924 + $0x660] sm:$0xff]
    %v6130 = vld [vmem:[%s5924 + $0x668] sm:$0xff]
    %v6131 = vld [vmem:[%s5924 + $0x670] sm:$0xff]
    %v6132 = vld [vmem:[%s5924 + $0x678] sm:$0xff]
    %v6133 = vld [vmem:[%s5924 + $0x680] sm:$0xff]
    %v6134 = vld [vmem:[%s5924 + $0x688] sm:$0xff]
    %v6135 = vld [vmem:[%s5924 + $0x690] sm:$0xff]
    %v6136 = vld [vmem:[%s5924 + $0x698] sm:$0xff]
    %v6137 = vld [vmem:[%s5924 + $0x6a0] sm:$0xff]
    %v6138 = vld [vmem:[%s5924 + $0x6a8] sm:$0xff]
    %v6139 = vld [vmem:[%s5924 + $0x6b0] sm:$0xff]
    %v6140 = vld [vmem:[%s5924 + $0x6b8] sm:$0xff]
    %v6141 = vld [vmem:[%s5924 + $0x6c0] sm:$0xff]
    %v6142 = vld [vmem:[%s5924 + $0x6c8] sm:$0xff]
    %v6143 = vld [vmem:[%s5924 + $0x6d0] sm:$0xff]
    %v6144 = vld [vmem:[%s5924 + $0x6d8] sm:$0xff]
    %v6145 = vld [vmem:[%s5924 + $0x6e0] sm:$0xff]
    %v6146 = vld [vmem:[%s5924 + $0x6e8] sm:$0xff]
    %v6147 = vld [vmem:[%s5924 + $0x6f0] sm:$0xff]
    %v6148 = vld [vmem:[%s5924 + $0x6f8] sm:$0xff]
    %6149 = vmatprep.subr.mxu0 %v5956
    %6150 = vmatpush1.msra.mxu0 %v5955
    %6151 = vmatprep.subr.mxu0 %v5954
    %6152 = vmatpush1.msra.mxu0 %v5953
    %6153 = vmatprep.subr.mxu0 %v5952
    %6154 = vmatpush1.msra.mxu0 %v5951
    %6155 = vmatprep.subr.mxu0 %v5950
    %6156 = vmatpush1.msra.mxu0 %v5949
    %6157 = vmatprep.subr.mxu0 %v5948
    %6158 = vmatpush1.msra.mxu0 %v5947
    %6159 = vmatprep.subr.mxu0 %v5946
    %6160 = vmatpush1.msra.mxu0 %v5945
    %6161 = vmatprep.subr.mxu0 %v5944
    %6162 = vmatpush1.msra.mxu0 %v5943
    %6163 = vmatprep.subr.mxu0 %v5942
    %6164 = vmatpush1.msra.mxu0 %v5941
    %6165 = vmatprep.subr.mxu0 %v5940
    %6166 = vmatpush1.msra.mxu0 %v5939
    %6167 = vmatprep.subr.mxu0 %v5938
    %6168 = vmatpush1.msra.mxu0 %v5937
    %6169 = vmatprep.subr.mxu0 %v5936
    %6170 = vmatpush1.msra.mxu0 %v5935
    %6171 = vmatprep.subr.mxu0 %v5934
    %6172 = vmatpush1.msra.mxu0 %v5933
    %6173 = vmatprep.subr.mxu0 %v5932
    %6174 = vmatpush1.msra.mxu0 %v5931
    %6175 = vmatprep.subr.mxu0 %v5930
    %6176 = vmatpush1.msra.mxu0 %v5929
    %6177 = vmatprep.subr.mxu0 %v5928
    %6178 = vmatpush1.msra.mxu0 %v5927
    %6179 = vmatprep.subr.mxu0 %v5926
    %6180 = vmatpush1.msra.mxu0 %v5925
    %6181 = vmatprep.subr.mxu0 %v5988
    %6182 = vmatpush2.msra.mxu0 %v5987
    %6183 = vmatprep.subr.mxu0 %v5986
    %6184 = vmatpush2.msra.mxu0 %v5985
    %6185 = vmatprep.subr.mxu0 %v5984
    %6186 = vmatpush2.msra.mxu0 %v5983
    %6187 = vmatprep.subr.mxu0 %v5982
    %6188 = vmatpush2.msra.mxu0 %v5981
    %6189 = vmatprep.subr.mxu0 %v5980
    %6190 = vmatpush2.msra.mxu0 %v5979
    %6191 = vmatprep.subr.mxu0 %v5978
    %6192 = vmatpush2.msra.mxu0 %v5977
    %6193 = vmatprep.subr.mxu0 %v5976
    %6194 = vmatpush2.msra.mxu0 %v5975
    %6195 = vmatprep.subr.mxu0 %v5974
    %6196 = vmatpush2.msra.mxu0 %v5973
    %6197 = vmatprep.subr.mxu0 %v5972
    %6198 = vmatpush2.msra.mxu0 %v5971
    %6199 = vmatprep.subr.mxu0 %v5970
    %6200 = vmatpush2.msra.mxu0 %v5969
    %6201 = vmatprep.subr.mxu0 %v5968
    %6202 = vmatpush2.msra.mxu0 %v5967
    %6203 = vmatprep.subr.mxu0 %v5966
    %6204 = vmatpush2.msra.mxu0 %v5965
    %6205 = vmatprep.subr.mxu0 %v5964
    %6206 = vmatpush2.msra.mxu0 %v5963
    %6207 = vmatprep.subr.mxu0 %v5962
    %6208 = vmatpush2.msra.mxu0 %v5961
    %6209 = vmatprep.subr.mxu0 %v5960
    %6210 = vmatpush2.msra.mxu0 %v5959
    %6211 = vmatprep.subr.mxu0 %v5958
    %6212 = vmatpush2.msra.mxu0 %v5957
    %6213 = vmatprep.mubr.f32.mxu0 %v5918
    %6214 = vmatmul.mubr.f32.gmra.mxu0 %v5917
    %v6215 = vpop.f32.mrf.mxu0
    %v6216 = vadd.f32 0.0, %v6215
    %v6217 = vpop.f32.mrf.mxu0
    %v6218 = vadd.f32 0.0, %v6217
    %6219 = vdwg.mxu0
    %6220 = vmatprep.subr.mxu0 %v6020
    %6221 = vmatpush1.msra.mxu0 %v6019
    %6222 = vmatprep.subr.mxu0 %v6018
    %6223 = vmatpush1.msra.mxu0 %v6017
    %6224 = vmatprep.subr.mxu0 %v6016
    %6225 = vmatpush1.msra.mxu0 %v6015
    %6226 = vmatprep.subr.mxu0 %v6014
    %6227 = vmatpush1.msra.mxu0 %v6013
    %6228 = vmatprep.subr.mxu0 %v6012
    %6229 = vmatpush1.msra.mxu0 %v6011
    %6230 = vmatprep.subr.mxu0 %v6010
    %6231 = vmatpush1.msra.mxu0 %v6009
    %6232 = vmatprep.subr.mxu0 %v6008
    %6233 = vmatpush1.msra.mxu0 %v6007
    %6234 = vmatprep.subr.mxu0 %v6006
    %6235 = vmatpush1.msra.mxu0 %v6005
    %6236 = vmatprep.subr.mxu0 %v6004
    %6237 = vmatpush1.msra.mxu0 %v6003
    %6238 = vmatprep.subr.mxu0 %v6002
    %6239 = vmatpush1.msra.mxu0 %v6001
    %6240 = vmatprep.subr.mxu0 %v6000
    %6241 = vmatpush1.msra.mxu0 %v5999
    %6242 = vmatprep.subr.mxu0 %v5998
    %6243 = vmatpush1.msra.mxu0 %v5997
    %6244 = vmatprep.subr.mxu0 %v5996
    %6245 = vmatpush1.msra.mxu0 %v5995
    %6246 = vmatprep.subr.mxu0 %v5994
    %6247 = vmatpush1.msra.mxu0 %v5993
    %6248 = vmatprep.subr.mxu0 %v5992
    %6249 = vmatpush1.msra.mxu0 %v5991
    %6250 = vmatprep.subr.mxu0 %v5990
    %6251 = vmatpush1.msra.mxu0 %v5989
    %6252 = vmatprep.subr.mxu0 %v6052
    %6253 = vmatpush2.msra.mxu0 %v6051
    %6254 = vmatprep.subr.mxu0 %v6050
    %6255 = vmatpush2.msra.mxu0 %v6049
    %6256 = vmatprep.subr.mxu0 %v6048
    %6257 = vmatpush2.msra.mxu0 %v6047
    %6258 = vmatprep.subr.mxu0 %v6046
    %6259 = vmatpush2.msra.mxu0 %v6045
    %6260 = vmatprep.subr.mxu0 %v6044
    %6261 = vmatpush2.msra.mxu0 %v6043
    %6262 = vmatprep.subr.mxu0 %v6042
    %6263 = vmatpush2.msra.mxu0 %v6041
    %6264 = vmatprep.subr.mxu0 %v6040
    %6265 = vmatpush2.msra.mxu0 %v6039
    %6266 = vmatprep.subr.mxu0 %v6038
    %6267 = vmatpush2.msra.mxu0 %v6037
    %6268 = vmatprep.subr.mxu0 %v6036
    %6269 = vmatpush2.msra.mxu0 %v6035
    %6270 = vmatprep.subr.mxu0 %v6034
    %6271 = vmatpush2.msra.mxu0 %v6033
    %6272 = vmatprep.subr.mxu0 %v6032
    %6273 = vmatpush2.msra.mxu0 %v6031
    %6274 = vmatprep.subr.mxu0 %v6030
    %6275 = vmatpush2.msra.mxu0 %v6029
    %6276 = vmatprep.subr.mxu0 %v6028
    %6277 = vmatpush2.msra.mxu0 %v6027
    %6278 = vmatprep.subr.mxu0 %v6026
    %6279 = vmatpush2.msra.mxu0 %v6025
    %6280 = vmatprep.subr.mxu0 %v6024
    %6281 = vmatpush2.msra.mxu0 %v6023
    %6282 = vmatprep.subr.mxu0 %v6022
    %6283 = vmatpush2.msra.mxu0 %v6021
    %6284 = vmatprep.mubr.f32.mxu0 %v5920
    %6285 = vmatmul.mubr.f32.gmra.mxu0 %v5919
    %v6286 = vpop.f32.mrf.mxu0
    %v6287 = vadd.f32 %v6216, %v6286
    %v6288 = vpop.f32.mrf.mxu0
    %v6289 = vadd.f32 %v6218, %v6288
    %6290 = vdwg.mxu0
    %6291 = vmatprep.subr.mxu0 %v6084
    %6292 = vmatpush1.msra.mxu0 %v6083
    %6293 = vmatprep.subr.mxu0 %v6082
    %6294 = vmatpush1.msra.mxu0 %v6081
    %6295 = vmatprep.subr.mxu0 %v6080
    %6296 = vmatpush1.msra.mxu0 %v6079
    %6297 = vmatprep.subr.mxu0 %v6078
    %6298 = vmatpush1.msra.mxu0 %v6077
    %6299 = vmatprep.subr.mxu0 %v6076
    %6300 = vmatpush1.msra.mxu0 %v6075
    %6301 = vmatprep.subr.mxu0 %v6074
    %6302 = vmatpush1.msra.mxu0 %v6073
    %6303 = vmatprep.subr.mxu0 %v6072
    %6304 = vmatpush1.msra.mxu0 %v6071
    %6305 = vmatprep.subr.mxu0 %v6070
    %6306 = vmatpush1.msra.mxu0 %v6069
    %6307 = vmatprep.subr.mxu0 %v6068
    %6308 = vmatpush1.msra.mxu0 %v6067
    %6309 = vmatprep.subr.mxu0 %v6066
    %6310 = vmatpush1.msra.mxu0 %v6065
    %6311 = vmatprep.subr.mxu0 %v6064
    %6312 = vmatpush1.msra.mxu0 %v6063
    %6313 = vmatprep.subr.mxu0 %v6062
    %6314 = vmatpush1.msra.mxu0 %v6061
    %6315 = vmatprep.subr.mxu0 %v6060
    %6316 = vmatpush1.msra.mxu0 %v6059
    %6317 = vmatprep.subr.mxu0 %v6058
    %6318 = vmatpush1.msra.mxu0 %v6057
    %6319 = vmatprep.subr.mxu0 %v6056
    %6320 = vmatpush1.msra.mxu0 %v6055
    %6321 = vmatprep.subr.mxu0 %v6054
    %6322 = vmatpush1.msra.mxu0 %v6053
    %6323 = vmatprep.subr.mxu0 %v6116
    %6324 = vmatpush2.msra.mxu0 %v6115
    %6325 = vmatprep.subr.mxu0 %v6114
    %6326 = vmatpush2.msra.mxu0 %v6113
    %6327 = vmatprep.subr.mxu0 %v6112
    %6328 = vmatpush2.msra.mxu0 %v6111
    %6329 = vmatprep.subr.mxu0 %v6110
    %6330 = vmatpush2.msra.mxu0 %v6109
    %6331 = vmatprep.subr.mxu0 %v6108
    %6332 = vmatpush2.msra.mxu0 %v6107
    %6333 = vmatprep.subr.mxu0 %v6106
    %6334 = vmatpush2.msra.mxu0 %v6105
    %6335 = vmatprep.subr.mxu0 %v6104
    %6336 = vmatpush2.msra.mxu0 %v6103
    %6337 = vmatprep.subr.mxu0 %v6102
    %6338 = vmatpush2.msra.mxu0 %v6101
    %6339 = vmatprep.subr.mxu0 %v6100
    %6340 = vmatpush2.msra.mxu0 %v6099
    %6341 = vmatprep.subr.mxu0 %v6098
    %6342 = vmatpush2.msra.mxu0 %v6097
    %6343 = vmatprep.subr.mxu0 %v6096
    %6344 = vmatpush2.msra.mxu0 %v6095
    %6345 = vmatprep.subr.mxu0 %v6094
    %6346 = vmatpush2.msra.mxu0 %v6093
    %6347 = vmatprep.subr.mxu0 %v6092
    %6348 = vmatpush2.msra.mxu0 %v6091
    %6349 = vmatprep.subr.mxu0 %v6090
    %6350 = vmatpush2.msra.mxu0 %v6089
    %6351 = vmatprep.subr.mxu0 %v6088
    %6352 = vmatpush2.msra.mxu0 %v6087
    %6353 = vmatprep.subr.mxu0 %v6086
    %6354 = vmatpush2.msra.mxu0 %v6085
    %6355 = vmatprep.mubr.f32.mxu0 %v5922
    %6356 = vmatmul.mubr.f32.gmra.mxu0 %v5921
    %v6357 = vpop.f32.mrf.mxu0
    %v6358 = vadd.f32 %v6287, %v6357
    %v6359 = vpop.f32.mrf.mxu0
    %v6360 = vadd.f32 %v6289, %v6359
    %6361 = vdwg.mxu0
    %6362 = vmatprep.subr.mxu0 %v6148
    %6363 = vmatpush1.msra.mxu0 %v6147
    %6364 = vmatprep.subr.mxu0 %v6146
    %6365 = vmatpush1.msra.mxu0 %v6145
    %6366 = vmatprep.subr.mxu0 %v6144
    %6367 = vmatpush1.msra.mxu0 %v6143
    %6368 = vmatprep.subr.mxu0 %v6142
    %6369 = vmatpush1.msra.mxu0 %v6141
    %6370 = vmatprep.subr.mxu0 %v6140
    %6371 = vmatpush1.msra.mxu0 %v6139
    %6372 = vmatprep.subr.mxu0 %v6138
    %6373 = vmatpush1.msra.mxu0 %v6137
    %6374 = vmatprep.subr.mxu0 %v6136
    %6375 = vmatpush1.msra.mxu0 %v6135
    %6376 = vmatprep.subr.mxu0 %v6134
    %6377 = vmatpush1.msra.mxu0 %v6133
    %6378 = vmatprep.subr.mxu0 %v6132
    %6379 = vmatpush1.msra.mxu0 %v6131
    %6380 = vmatprep.subr.mxu0 %v6130
    %6381 = vmatpush1.msra.mxu0 %v6129
    %6382 = vmatprep.subr.mxu0 %v6128
    %6383 = vmatpush1.msra.mxu0 %v6127
    %6384 = vmatprep.subr.mxu0 %v6126
    %6385 = vmatpush1.msra.mxu0 %v6125
    %6386 = vmatprep.subr.mxu0 %v6124
    %6387 = vmatpush1.msra.mxu0 %v6123
    %6388 = vmatprep.subr.mxu0 %v6122
    %6389 = vmatpush1.msra.mxu0 %v6121
    %6390 = vmatprep.subr.mxu0 %v6120
    %6391 = vmatpush1.msra.mxu0 %v6119
    %6392 = vmatprep.subr.mxu0 %v6118
    %6393 = vmatpush1.msra.mxu0 %v6117
    %6394 = vmatprep.subr.mxu0 0.0
    %6395 = vmatpush2.msra.mxu0 0.0
    %6396 = vmatprep.subr.mxu0 0.0
    %6397 = vmatpush2.msra.mxu0 0.0
    %6398 = vmatprep.subr.mxu0 0.0
    %6399 = vmatpush2.msra.mxu0 0.0
    %6400 = vmatprep.subr.mxu0 0.0
    %6401 = vmatpush2.msra.mxu0 0.0
    %6402 = vmatprep.subr.mxu0 0.0
    %6403 = vmatpush2.msra.mxu0 0.0
    %6404 = vmatprep.subr.mxu0 0.0
    %6405 = vmatpush2.msra.mxu0 0.0
    %6406 = vmatprep.subr.mxu0 0.0
    %6407 = vmatpush2.msra.mxu0 0.0
    %6408 = vmatprep.subr.mxu0 0.0
    %6409 = vmatpush2.msra.mxu0 0.0
    %6410 = vmatprep.subr.mxu0 0.0
    %6411 = vmatpush2.msra.mxu0 0.0
    %6412 = vmatprep.subr.mxu0 0.0
    %6413 = vmatpush2.msra.mxu0 0.0
    %6414 = vmatprep.subr.mxu0 0.0
    %6415 = vmatpush2.msra.mxu0 0.0
    %6416 = vmatprep.subr.mxu0 0.0
    %6417 = vmatpush2.msra.mxu0 0.0
    %6418 = vmatprep.subr.mxu0 0.0
    %6419 = vmatpush2.msra.mxu0 0.0
    %6420 = vmatprep.subr.mxu0 0.0
    %6421 = vmatpush2.msra.mxu0 0.0
    %6422 = vmatprep.subr.mxu0 0.0
    %6423 = vmatpush2.msra.mxu0 0.0
    %6424 = vmatprep.subr.mxu0 0.0
    %6425 = vmatpush2.msra.mxu0 0.0
    %6426 = vmatprep.mubr.f32.mxu0 0.0
    %6427 = vmatmul.mubr.f32.gmra.mxu0 %v5923
    %v6428 = vpop.f32.mrf.mxu0
    %v6429 = vadd.f32 %v6358, %v6428
    %v6430 = vpop.f32.mrf.mxu0
    %v6431 = vadd.f32 %v6360, %v6430
    %6432 = vdwg.mxu0
    %v6433 = vadd.f32 %v5915, %v6429
    %v6434 = vadd.f32 %v5916, %v6431
    %v6435 = vmax.f32 %v5392, 0.0
    %v6436 = vmax.f32 %v5393, 0.0
    %v6437 = vmax.f32 %v5394, 0.0
    %v6438 = vmax.f32 %v5395, 0.0
    %v6439 = vmax.f32 %v5396, 0.0
    %v6440 = vmax.f32 %v5397, 0.0
    %v6441 = vmax.f32 %v5398, 0.0
    %s6442 = scalar_lea.vmem %s5, 8960
    %v6443 = vld [vmem:[%s6442] sm:$0xff]
    %v6444 = vld [vmem:[%s6442 + $0x8] sm:$0xff]
    %v6445 = vld [vmem:[%s6442 + $0x10] sm:$0xff]
    %v6446 = vld [vmem:[%s6442 + $0x18] sm:$0xff]
    %v6447 = vld [vmem:[%s6442 + $0x20] sm:$0xff]
    %v6448 = vld [vmem:[%s6442 + $0x28] sm:$0xff]
    %v6449 = vld [vmem:[%s6442 + $0x30] sm:$0xff]
    %v6450 = vld [vmem:[%s6442 + $0x38] sm:$0xff]
    %v6451 = vld [vmem:[%s6442 + $0x40] sm:$0xff]
    %v6452 = vld [vmem:[%s6442 + $0x48] sm:$0xff]
    %v6453 = vld [vmem:[%s6442 + $0x50] sm:$0xff]
    %v6454 = vld [vmem:[%s6442 + $0x58] sm:$0xff]
    %v6455 = vld [vmem:[%s6442 + $0x60] sm:$0xff]
    %v6456 = vld [vmem:[%s6442 + $0x68] sm:$0xff]
    %v6457 = vld [vmem:[%s6442 + $0x70] sm:$0xff]
    %v6458 = vld [vmem:[%s6442 + $0x78] sm:$0xff]
    %v6459 = vld [vmem:[%s6442 + $0x80] sm:$0xff]
    %v6460 = vld [vmem:[%s6442 + $0x88] sm:$0xff]
    %v6461 = vld [vmem:[%s6442 + $0x90] sm:$0xff]
    %v6462 = vld [vmem:[%s6442 + $0x98] sm:$0xff]
    %v6463 = vld [vmem:[%s6442 + $0xa0] sm:$0xff]
    %v6464 = vld [vmem:[%s6442 + $0xa8] sm:$0xff]
    %v6465 = vld [vmem:[%s6442 + $0xb0] sm:$0xff]
    %v6466 = vld [vmem:[%s6442 + $0xb8] sm:$0xff]
    %v6467 = vld [vmem:[%s6442 + $0xc0] sm:$0xff]
    %v6468 = vld [vmem:[%s6442 + $0xc8] sm:$0xff]
    %v6469 = vld [vmem:[%s6442 + $0xd0] sm:$0xff]
    %v6470 = vld [vmem:[%s6442 + $0xd8] sm:$0xff]
    %v6471 = vld [vmem:[%s6442 + $0xe0] sm:$0xff]
    %v6472 = vld [vmem:[%s6442 + $0xe8] sm:$0xff]
    %v6473 = vld [vmem:[%s6442 + $0xf0] sm:$0xff]
    %v6474 = vld [vmem:[%s6442 + $0xf8] sm:$0xff]
    %v6475 = vld [vmem:[%s6442 + $0x100] sm:$0xff]
    %v6476 = vld [vmem:[%s6442 + $0x108] sm:$0xff]
    %v6477 = vld [vmem:[%s6442 + $0x110] sm:$0xff]
    %v6478 = vld [vmem:[%s6442 + $0x118] sm:$0xff]
    %v6479 = vld [vmem:[%s6442 + $0x120] sm:$0xff]
    %v6480 = vld [vmem:[%s6442 + $0x128] sm:$0xff]
    %v6481 = vld [vmem:[%s6442 + $0x130] sm:$0xff]
    %v6482 = vld [vmem:[%s6442 + $0x138] sm:$0xff]
    %v6483 = vld [vmem:[%s6442 + $0x140] sm:$0xff]
    %v6484 = vld [vmem:[%s6442 + $0x148] sm:$0xff]
    %v6485 = vld [vmem:[%s6442 + $0x150] sm:$0xff]
    %v6486 = vld [vmem:[%s6442 + $0x158] sm:$0xff]
    %v6487 = vld [vmem:[%s6442 + $0x160] sm:$0xff]
    %v6488 = vld [vmem:[%s6442 + $0x168] sm:$0xff]
    %v6489 = vld [vmem:[%s6442 + $0x170] sm:$0xff]
    %v6490 = vld [vmem:[%s6442 + $0x178] sm:$0xff]
    %v6491 = vld [vmem:[%s6442 + $0x180] sm:$0xff]
    %v6492 = vld [vmem:[%s6442 + $0x188] sm:$0xff]
    %v6493 = vld [vmem:[%s6442 + $0x190] sm:$0xff]
    %v6494 = vld [vmem:[%s6442 + $0x198] sm:$0xff]
    %v6495 = vld [vmem:[%s6442 + $0x1a0] sm:$0xff]
    %v6496 = vld [vmem:[%s6442 + $0x1a8] sm:$0xff]
    %v6497 = vld [vmem:[%s6442 + $0x1b0] sm:$0xff]
    %v6498 = vld [vmem:[%s6442 + $0x1b8] sm:$0xff]
    %v6499 = vld [vmem:[%s6442 + $0x1c0] sm:$0xff]
    %v6500 = vld [vmem:[%s6442 + $0x1c8] sm:$0xff]
    %v6501 = vld [vmem:[%s6442 + $0x1d0] sm:$0xff]
    %v6502 = vld [vmem:[%s6442 + $0x1d8] sm:$0xff]
    %v6503 = vld [vmem:[%s6442 + $0x1e0] sm:$0xff]
    %v6504 = vld [vmem:[%s6442 + $0x1e8] sm:$0xff]
    %v6505 = vld [vmem:[%s6442 + $0x1f0] sm:$0xff]
    %v6506 = vld [vmem:[%s6442 + $0x1f8] sm:$0xff]
    %v6507 = vld [vmem:[%s6442 + $0x200] sm:$0xff]
    %v6508 = vld [vmem:[%s6442 + $0x208] sm:$0xff]
    %v6509 = vld [vmem:[%s6442 + $0x210] sm:$0xff]
    %v6510 = vld [vmem:[%s6442 + $0x218] sm:$0xff]
    %v6511 = vld [vmem:[%s6442 + $0x220] sm:$0xff]
    %v6512 = vld [vmem:[%s6442 + $0x228] sm:$0xff]
    %v6513 = vld [vmem:[%s6442 + $0x230] sm:$0xff]
    %v6514 = vld [vmem:[%s6442 + $0x238] sm:$0xff]
    %v6515 = vld [vmem:[%s6442 + $0x240] sm:$0xff]
    %v6516 = vld [vmem:[%s6442 + $0x248] sm:$0xff]
    %v6517 = vld [vmem:[%s6442 + $0x250] sm:$0xff]
    %v6518 = vld [vmem:[%s6442 + $0x258] sm:$0xff]
    %v6519 = vld [vmem:[%s6442 + $0x260] sm:$0xff]
    %v6520 = vld [vmem:[%s6442 + $0x268] sm:$0xff]
    %v6521 = vld [vmem:[%s6442 + $0x270] sm:$0xff]
    %v6522 = vld [vmem:[%s6442 + $0x278] sm:$0xff]
    %v6523 = vld [vmem:[%s6442 + $0x280] sm:$0xff]
    %v6524 = vld [vmem:[%s6442 + $0x288] sm:$0xff]
    %v6525 = vld [vmem:[%s6442 + $0x290] sm:$0xff]
    %v6526 = vld [vmem:[%s6442 + $0x298] sm:$0xff]
    %v6527 = vld [vmem:[%s6442 + $0x2a0] sm:$0xff]
    %v6528 = vld [vmem:[%s6442 + $0x2a8] sm:$0xff]
    %v6529 = vld [vmem:[%s6442 + $0x2b0] sm:$0xff]
    %v6530 = vld [vmem:[%s6442 + $0x2b8] sm:$0xff]
    %v6531 = vld [vmem:[%s6442 + $0x2c0] sm:$0xff]
    %v6532 = vld [vmem:[%s6442 + $0x2c8] sm:$0xff]
    %v6533 = vld [vmem:[%s6442 + $0x2d0] sm:$0xff]
    %v6534 = vld [vmem:[%s6442 + $0x2d8] sm:$0xff]
    %v6535 = vld [vmem:[%s6442 + $0x2e0] sm:$0xff]
    %v6536 = vld [vmem:[%s6442 + $0x2e8] sm:$0xff]
    %v6537 = vld [vmem:[%s6442 + $0x2f0] sm:$0xff]
    %v6538 = vld [vmem:[%s6442 + $0x2f8] sm:$0xff]
    %v6539 = vld [vmem:[%s6442 + $0x300] sm:$0xff]
    %v6540 = vld [vmem:[%s6442 + $0x308] sm:$0xff]
    %v6541 = vld [vmem:[%s6442 + $0x310] sm:$0xff]
    %v6542 = vld [vmem:[%s6442 + $0x318] sm:$0xff]
    %v6543 = vld [vmem:[%s6442 + $0x320] sm:$0xff]
    %v6544 = vld [vmem:[%s6442 + $0x328] sm:$0xff]
    %v6545 = vld [vmem:[%s6442 + $0x330] sm:$0xff]
    %v6546 = vld [vmem:[%s6442 + $0x338] sm:$0xff]
    %v6547 = vld [vmem:[%s6442 + $0x340] sm:$0xff]
    %v6548 = vld [vmem:[%s6442 + $0x348] sm:$0xff]
    %v6549 = vld [vmem:[%s6442 + $0x350] sm:$0xff]
    %v6550 = vld [vmem:[%s6442 + $0x358] sm:$0xff]
    %v6551 = vld [vmem:[%s6442 + $0x360] sm:$0xff]
    %v6552 = vld [vmem:[%s6442 + $0x368] sm:$0xff]
    %v6553 = vld [vmem:[%s6442 + $0x370] sm:$0xff]
    %v6554 = vld [vmem:[%s6442 + $0x378] sm:$0xff]
    %v6555 = vld [vmem:[%s6442 + $0x380] sm:$0xff]
    %v6556 = vld [vmem:[%s6442 + $0x388] sm:$0xff]
    %v6557 = vld [vmem:[%s6442 + $0x390] sm:$0xff]
    %v6558 = vld [vmem:[%s6442 + $0x398] sm:$0xff]
    %v6559 = vld [vmem:[%s6442 + $0x3a0] sm:$0xff]
    %v6560 = vld [vmem:[%s6442 + $0x3a8] sm:$0xff]
    %v6561 = vld [vmem:[%s6442 + $0x3b0] sm:$0xff]
    %v6562 = vld [vmem:[%s6442 + $0x3b8] sm:$0xff]
    %v6563 = vld [vmem:[%s6442 + $0x3c0] sm:$0xff]
    %v6564 = vld [vmem:[%s6442 + $0x3c8] sm:$0xff]
    %v6565 = vld [vmem:[%s6442 + $0x3d0] sm:$0xff]
    %v6566 = vld [vmem:[%s6442 + $0x3d8] sm:$0xff]
    %v6567 = vld [vmem:[%s6442 + $0x3e0] sm:$0xff]
    %v6568 = vld [vmem:[%s6442 + $0x3e8] sm:$0xff]
    %v6569 = vld [vmem:[%s6442 + $0x3f0] sm:$0xff]
    %v6570 = vld [vmem:[%s6442 + $0x3f8] sm:$0xff]
    %v6571 = vld [vmem:[%s6442 + $0x400] sm:$0xff]
    %v6572 = vld [vmem:[%s6442 + $0x408] sm:$0xff]
    %v6573 = vld [vmem:[%s6442 + $0x410] sm:$0xff]
    %v6574 = vld [vmem:[%s6442 + $0x418] sm:$0xff]
    %v6575 = vld [vmem:[%s6442 + $0x420] sm:$0xff]
    %v6576 = vld [vmem:[%s6442 + $0x428] sm:$0xff]
    %v6577 = vld [vmem:[%s6442 + $0x430] sm:$0xff]
    %v6578 = vld [vmem:[%s6442 + $0x438] sm:$0xff]
    %v6579 = vld [vmem:[%s6442 + $0x440] sm:$0xff]
    %v6580 = vld [vmem:[%s6442 + $0x448] sm:$0xff]
    %v6581 = vld [vmem:[%s6442 + $0x450] sm:$0xff]
    %v6582 = vld [vmem:[%s6442 + $0x458] sm:$0xff]
    %v6583 = vld [vmem:[%s6442 + $0x460] sm:$0xff]
    %v6584 = vld [vmem:[%s6442 + $0x468] sm:$0xff]
    %v6585 = vld [vmem:[%s6442 + $0x470] sm:$0xff]
    %v6586 = vld [vmem:[%s6442 + $0x478] sm:$0xff]
    %v6587 = vld [vmem:[%s6442 + $0x480] sm:$0xff]
    %v6588 = vld [vmem:[%s6442 + $0x488] sm:$0xff]
    %v6589 = vld [vmem:[%s6442 + $0x490] sm:$0xff]
    %v6590 = vld [vmem:[%s6442 + $0x498] sm:$0xff]
    %v6591 = vld [vmem:[%s6442 + $0x4a0] sm:$0xff]
    %v6592 = vld [vmem:[%s6442 + $0x4a8] sm:$0xff]
    %v6593 = vld [vmem:[%s6442 + $0x4b0] sm:$0xff]
    %v6594 = vld [vmem:[%s6442 + $0x4b8] sm:$0xff]
    %v6595 = vld [vmem:[%s6442 + $0x4c0] sm:$0xff]
    %v6596 = vld [vmem:[%s6442 + $0x4c8] sm:$0xff]
    %v6597 = vld [vmem:[%s6442 + $0x4d0] sm:$0xff]
    %v6598 = vld [vmem:[%s6442 + $0x4d8] sm:$0xff]
    %v6599 = vld [vmem:[%s6442 + $0x4e0] sm:$0xff]
    %v6600 = vld [vmem:[%s6442 + $0x4e8] sm:$0xff]
    %v6601 = vld [vmem:[%s6442 + $0x4f0] sm:$0xff]
    %v6602 = vld [vmem:[%s6442 + $0x4f8] sm:$0xff]
    %v6603 = vld [vmem:[%s6442 + $0x500] sm:$0xff]
    %v6604 = vld [vmem:[%s6442 + $0x508] sm:$0xff]
    %v6605 = vld [vmem:[%s6442 + $0x510] sm:$0xff]
    %v6606 = vld [vmem:[%s6442 + $0x518] sm:$0xff]
    %v6607 = vld [vmem:[%s6442 + $0x520] sm:$0xff]
    %v6608 = vld [vmem:[%s6442 + $0x528] sm:$0xff]
    %v6609 = vld [vmem:[%s6442 + $0x530] sm:$0xff]
    %v6610 = vld [vmem:[%s6442 + $0x538] sm:$0xff]
    %v6611 = vld [vmem:[%s6442 + $0x540] sm:$0xff]
    %v6612 = vld [vmem:[%s6442 + $0x548] sm:$0xff]
    %v6613 = vld [vmem:[%s6442 + $0x550] sm:$0xff]
    %v6614 = vld [vmem:[%s6442 + $0x558] sm:$0xff]
    %v6615 = vld [vmem:[%s6442 + $0x560] sm:$0xff]
    %v6616 = vld [vmem:[%s6442 + $0x568] sm:$0xff]
    %v6617 = vld [vmem:[%s6442 + $0x570] sm:$0xff]
    %v6618 = vld [vmem:[%s6442 + $0x578] sm:$0xff]
    %v6619 = vld [vmem:[%s6442 + $0x580] sm:$0xff]
    %v6620 = vld [vmem:[%s6442 + $0x588] sm:$0xff]
    %v6621 = vld [vmem:[%s6442 + $0x590] sm:$0xff]
    %v6622 = vld [vmem:[%s6442 + $0x598] sm:$0xff]
    %v6623 = vld [vmem:[%s6442 + $0x5a0] sm:$0xff]
    %v6624 = vld [vmem:[%s6442 + $0x5a8] sm:$0xff]
    %v6625 = vld [vmem:[%s6442 + $0x5b0] sm:$0xff]
    %v6626 = vld [vmem:[%s6442 + $0x5b8] sm:$0xff]
    %v6627 = vld [vmem:[%s6442 + $0x5c0] sm:$0xff]
    %v6628 = vld [vmem:[%s6442 + $0x5c8] sm:$0xff]
    %v6629 = vld [vmem:[%s6442 + $0x5d0] sm:$0xff]
    %v6630 = vld [vmem:[%s6442 + $0x5d8] sm:$0xff]
    %v6631 = vld [vmem:[%s6442 + $0x5e0] sm:$0xff]
    %v6632 = vld [vmem:[%s6442 + $0x5e8] sm:$0xff]
    %v6633 = vld [vmem:[%s6442 + $0x5f0] sm:$0xff]
    %v6634 = vld [vmem:[%s6442 + $0x5f8] sm:$0xff]
    %v6635 = vld [vmem:[%s6442 + $0x600] sm:$0xff]
    %v6636 = vld [vmem:[%s6442 + $0x608] sm:$0xff]
    %v6637 = vld [vmem:[%s6442 + $0x610] sm:$0xff]
    %v6638 = vld [vmem:[%s6442 + $0x618] sm:$0xff]
    %v6639 = vld [vmem:[%s6442 + $0x620] sm:$0xff]
    %v6640 = vld [vmem:[%s6442 + $0x628] sm:$0xff]
    %v6641 = vld [vmem:[%s6442 + $0x630] sm:$0xff]
    %v6642 = vld [vmem:[%s6442 + $0x638] sm:$0xff]
    %v6643 = vld [vmem:[%s6442 + $0x640] sm:$0xff]
    %v6644 = vld [vmem:[%s6442 + $0x648] sm:$0xff]
    %v6645 = vld [vmem:[%s6442 + $0x650] sm:$0xff]
    %v6646 = vld [vmem:[%s6442 + $0x658] sm:$0xff]
    %v6647 = vld [vmem:[%s6442 + $0x660] sm:$0xff]
    %v6648 = vld [vmem:[%s6442 + $0x668] sm:$0xff]
    %v6649 = vld [vmem:[%s6442 + $0x670] sm:$0xff]
    %v6650 = vld [vmem:[%s6442 + $0x678] sm:$0xff]
    %v6651 = vld [vmem:[%s6442 + $0x680] sm:$0xff]
    %v6652 = vld [vmem:[%s6442 + $0x688] sm:$0xff]
    %v6653 = vld [vmem:[%s6442 + $0x690] sm:$0xff]
    %v6654 = vld [vmem:[%s6442 + $0x698] sm:$0xff]
    %v6655 = vld [vmem:[%s6442 + $0x6a0] sm:$0xff]
    %v6656 = vld [vmem:[%s6442 + $0x6a8] sm:$0xff]
    %v6657 = vld [vmem:[%s6442 + $0x6b0] sm:$0xff]
    %v6658 = vld [vmem:[%s6442 + $0x6b8] sm:$0xff]
    %v6659 = vld [vmem:[%s6442 + $0x6c0] sm:$0xff]
    %v6660 = vld [vmem:[%s6442 + $0x6c8] sm:$0xff]
    %v6661 = vld [vmem:[%s6442 + $0x6d0] sm:$0xff]
    %v6662 = vld [vmem:[%s6442 + $0x6d8] sm:$0xff]
    %v6663 = vld [vmem:[%s6442 + $0x6e0] sm:$0xff]
    %v6664 = vld [vmem:[%s6442 + $0x6e8] sm:$0xff]
    %v6665 = vld [vmem:[%s6442 + $0x6f0] sm:$0xff]
    %v6666 = vld [vmem:[%s6442 + $0x6f8] sm:$0xff]
    %6667 = vmatprep.subr.mxu0 %v6474
    %6668 = vmatpush1.msra.mxu0 %v6473
    %6669 = vmatprep.subr.mxu0 %v6472
    %6670 = vmatpush1.msra.mxu0 %v6471
    %6671 = vmatprep.subr.mxu0 %v6470
    %6672 = vmatpush1.msra.mxu0 %v6469
    %6673 = vmatprep.subr.mxu0 %v6468
    %6674 = vmatpush1.msra.mxu0 %v6467
    %6675 = vmatprep.subr.mxu0 %v6466
    %6676 = vmatpush1.msra.mxu0 %v6465
    %6677 = vmatprep.subr.mxu0 %v6464
    %6678 = vmatpush1.msra.mxu0 %v6463
    %6679 = vmatprep.subr.mxu0 %v6462
    %6680 = vmatpush1.msra.mxu0 %v6461
    %6681 = vmatprep.subr.mxu0 %v6460
    %6682 = vmatpush1.msra.mxu0 %v6459
    %6683 = vmatprep.subr.mxu0 %v6458
    %6684 = vmatpush1.msra.mxu0 %v6457
    %6685 = vmatprep.subr.mxu0 %v6456
    %6686 = vmatpush1.msra.mxu0 %v6455
    %6687 = vmatprep.subr.mxu0 %v6454
    %6688 = vmatpush1.msra.mxu0 %v6453
    %6689 = vmatprep.subr.mxu0 %v6452
    %6690 = vmatpush1.msra.mxu0 %v6451
    %6691 = vmatprep.subr.mxu0 %v6450
    %6692 = vmatpush1.msra.mxu0 %v6449
    %6693 = vmatprep.subr.mxu0 %v6448
    %6694 = vmatpush1.msra.mxu0 %v6447
    %6695 = vmatprep.subr.mxu0 %v6446
    %6696 = vmatpush1.msra.mxu0 %v6445
    %6697 = vmatprep.subr.mxu0 %v6444
    %6698 = vmatpush1.msra.mxu0 %v6443
    %6699 = vmatprep.subr.mxu0 %v6506
    %6700 = vmatpush2.msra.mxu0 %v6505
    %6701 = vmatprep.subr.mxu0 %v6504
    %6702 = vmatpush2.msra.mxu0 %v6503
    %6703 = vmatprep.subr.mxu0 %v6502
    %6704 = vmatpush2.msra.mxu0 %v6501
    %6705 = vmatprep.subr.mxu0 %v6500
    %6706 = vmatpush2.msra.mxu0 %v6499
    %6707 = vmatprep.subr.mxu0 %v6498
    %6708 = vmatpush2.msra.mxu0 %v6497
    %6709 = vmatprep.subr.mxu0 %v6496
    %6710 = vmatpush2.msra.mxu0 %v6495
    %6711 = vmatprep.subr.mxu0 %v6494
    %6712 = vmatpush2.msra.mxu0 %v6493
    %6713 = vmatprep.subr.mxu0 %v6492
    %6714 = vmatpush2.msra.mxu0 %v6491
    %6715 = vmatprep.subr.mxu0 %v6490
    %6716 = vmatpush2.msra.mxu0 %v6489
    %6717 = vmatprep.subr.mxu0 %v6488
    %6718 = vmatpush2.msra.mxu0 %v6487
    %6719 = vmatprep.subr.mxu0 %v6486
    %6720 = vmatpush2.msra.mxu0 %v6485
    %6721 = vmatprep.subr.mxu0 %v6484
    %6722 = vmatpush2.msra.mxu0 %v6483
    %6723 = vmatprep.subr.mxu0 %v6482
    %6724 = vmatpush2.msra.mxu0 %v6481
    %6725 = vmatprep.subr.mxu0 %v6480
    %6726 = vmatpush2.msra.mxu0 %v6479
    %6727 = vmatprep.subr.mxu0 %v6478
    %6728 = vmatpush2.msra.mxu0 %v6477
    %6729 = vmatprep.subr.mxu0 %v6476
    %6730 = vmatpush2.msra.mxu0 %v6475
    %6731 = vmatprep.mubr.f32.mxu0 %v6436
    %6732 = vmatmul.mubr.f32.gmra.mxu0 %v6435
    %v6733 = vpop.f32.mrf.mxu0
    %v6734 = vadd.f32 0.0, %v6733
    %v6735 = vpop.f32.mrf.mxu0
    %v6736 = vadd.f32 0.0, %v6735
    %6737 = vdwg.mxu0
    %6738 = vmatprep.subr.mxu0 %v6538
    %6739 = vmatpush1.msra.mxu0 %v6537
    %6740 = vmatprep.subr.mxu0 %v6536
    %6741 = vmatpush1.msra.mxu0 %v6535
    %6742 = vmatprep.subr.mxu0 %v6534
    %6743 = vmatpush1.msra.mxu0 %v6533
    %6744 = vmatprep.subr.mxu0 %v6532
    %6745 = vmatpush1.msra.mxu0 %v6531
    %6746 = vmatprep.subr.mxu0 %v6530
    %6747 = vmatpush1.msra.mxu0 %v6529
    %6748 = vmatprep.subr.mxu0 %v6528
    %6749 = vmatpush1.msra.mxu0 %v6527
    %6750 = vmatprep.subr.mxu0 %v6526
    %6751 = vmatpush1.msra.mxu0 %v6525
    %6752 = vmatprep.subr.mxu0 %v6524
    %6753 = vmatpush1.msra.mxu0 %v6523
    %6754 = vmatprep.subr.mxu0 %v6522
    %6755 = vmatpush1.msra.mxu0 %v6521
    %6756 = vmatprep.subr.mxu0 %v6520
    %6757 = vmatpush1.msra.mxu0 %v6519
    %6758 = vmatprep.subr.mxu0 %v6518
    %6759 = vmatpush1.msra.mxu0 %v6517
    %6760 = vmatprep.subr.mxu0 %v6516
    %6761 = vmatpush1.msra.mxu0 %v6515
    %6762 = vmatprep.subr.mxu0 %v6514
    %6763 = vmatpush1.msra.mxu0 %v6513
    %6764 = vmatprep.subr.mxu0 %v6512
    %6765 = vmatpush1.msra.mxu0 %v6511
    %6766 = vmatprep.subr.mxu0 %v6510
    %6767 = vmatpush1.msra.mxu0 %v6509
    %6768 = vmatprep.subr.mxu0 %v6508
    %6769 = vmatpush1.msra.mxu0 %v6507
    %6770 = vmatprep.subr.mxu0 %v6570
    %6771 = vmatpush2.msra.mxu0 %v6569
    %6772 = vmatprep.subr.mxu0 %v6568
    %6773 = vmatpush2.msra.mxu0 %v6567
    %6774 = vmatprep.subr.mxu0 %v6566
    %6775 = vmatpush2.msra.mxu0 %v6565
    %6776 = vmatprep.subr.mxu0 %v6564
    %6777 = vmatpush2.msra.mxu0 %v6563
    %6778 = vmatprep.subr.mxu0 %v6562
    %6779 = vmatpush2.msra.mxu0 %v6561
    %6780 = vmatprep.subr.mxu0 %v6560
    %6781 = vmatpush2.msra.mxu0 %v6559
    %6782 = vmatprep.subr.mxu0 %v6558
    %6783 = vmatpush2.msra.mxu0 %v6557
    %6784 = vmatprep.subr.mxu0 %v6556
    %6785 = vmatpush2.msra.mxu0 %v6555
    %6786 = vmatprep.subr.mxu0 %v6554
    %6787 = vmatpush2.msra.mxu0 %v6553
    %6788 = vmatprep.subr.mxu0 %v6552
    %6789 = vmatpush2.msra.mxu0 %v6551
    %6790 = vmatprep.subr.mxu0 %v6550
    %6791 = vmatpush2.msra.mxu0 %v6549
    %6792 = vmatprep.subr.mxu0 %v6548
    %6793 = vmatpush2.msra.mxu0 %v6547
    %6794 = vmatprep.subr.mxu0 %v6546
    %6795 = vmatpush2.msra.mxu0 %v6545
    %6796 = vmatprep.subr.mxu0 %v6544
    %6797 = vmatpush2.msra.mxu0 %v6543
    %6798 = vmatprep.subr.mxu0 %v6542
    %6799 = vmatpush2.msra.mxu0 %v6541
    %6800 = vmatprep.subr.mxu0 %v6540
    %6801 = vmatpush2.msra.mxu0 %v6539
    %6802 = vmatprep.mubr.f32.mxu0 %v6438
    %6803 = vmatmul.mubr.f32.gmra.mxu0 %v6437
    %v6804 = vpop.f32.mrf.mxu0
    %v6805 = vadd.f32 %v6734, %v6804
    %v6806 = vpop.f32.mrf.mxu0
    %v6807 = vadd.f32 %v6736, %v6806
    %6808 = vdwg.mxu0
    %6809 = vmatprep.subr.mxu0 %v6602
    %6810 = vmatpush1.msra.mxu0 %v6601
    %6811 = vmatprep.subr.mxu0 %v6600
    %6812 = vmatpush1.msra.mxu0 %v6599
    %6813 = vmatprep.subr.mxu0 %v6598
    %6814 = vmatpush1.msra.mxu0 %v6597
    %6815 = vmatprep.subr.mxu0 %v6596
    %6816 = vmatpush1.msra.mxu0 %v6595
    %6817 = vmatprep.subr.mxu0 %v6594
    %6818 = vmatpush1.msra.mxu0 %v6593
    %6819 = vmatprep.subr.mxu0 %v6592
    %6820 = vmatpush1.msra.mxu0 %v6591
    %6821 = vmatprep.subr.mxu0 %v6590
    %6822 = vmatpush1.msra.mxu0 %v6589
    %6823 = vmatprep.subr.mxu0 %v6588
    %6824 = vmatpush1.msra.mxu0 %v6587
    %6825 = vmatprep.subr.mxu0 %v6586
    %6826 = vmatpush1.msra.mxu0 %v6585
    %6827 = vmatprep.subr.mxu0 %v6584
    %6828 = vmatpush1.msra.mxu0 %v6583
    %6829 = vmatprep.subr.mxu0 %v6582
    %6830 = vmatpush1.msra.mxu0 %v6581
    %6831 = vmatprep.subr.mxu0 %v6580
    %6832 = vmatpush1.msra.mxu0 %v6579
    %6833 = vmatprep.subr.mxu0 %v6578
    %6834 = vmatpush1.msra.mxu0 %v6577
    %6835 = vmatprep.subr.mxu0 %v6576
    %6836 = vmatpush1.msra.mxu0 %v6575
    %6837 = vmatprep.subr.mxu0 %v6574
    %6838 = vmatpush1.msra.mxu0 %v6573
    %6839 = vmatprep.subr.mxu0 %v6572
    %6840 = vmatpush1.msra.mxu0 %v6571
    %6841 = vmatprep.subr.mxu0 %v6634
    %6842 = vmatpush2.msra.mxu0 %v6633
    %6843 = vmatprep.subr.mxu0 %v6632
    %6844 = vmatpush2.msra.mxu0 %v6631
    %6845 = vmatprep.subr.mxu0 %v6630
    %6846 = vmatpush2.msra.mxu0 %v6629
    %6847 = vmatprep.subr.mxu0 %v6628
    %6848 = vmatpush2.msra.mxu0 %v6627
    %6849 = vmatprep.subr.mxu0 %v6626
    %6850 = vmatpush2.msra.mxu0 %v6625
    %6851 = vmatprep.subr.mxu0 %v6624
    %6852 = vmatpush2.msra.mxu0 %v6623
    %6853 = vmatprep.subr.mxu0 %v6622
    %6854 = vmatpush2.msra.mxu0 %v6621
    %6855 = vmatprep.subr.mxu0 %v6620
    %6856 = vmatpush2.msra.mxu0 %v6619
    %6857 = vmatprep.subr.mxu0 %v6618
    %6858 = vmatpush2.msra.mxu0 %v6617
    %6859 = vmatprep.subr.mxu0 %v6616
    %6860 = vmatpush2.msra.mxu0 %v6615
    %6861 = vmatprep.subr.mxu0 %v6614
    %6862 = vmatpush2.msra.mxu0 %v6613
    %6863 = vmatprep.subr.mxu0 %v6612
    %6864 = vmatpush2.msra.mxu0 %v6611
    %6865 = vmatprep.subr.mxu0 %v6610
    %6866 = vmatpush2.msra.mxu0 %v6609
    %6867 = vmatprep.subr.mxu0 %v6608
    %6868 = vmatpush2.msra.mxu0 %v6607
    %6869 = vmatprep.subr.mxu0 %v6606
    %6870 = vmatpush2.msra.mxu0 %v6605
    %6871 = vmatprep.subr.mxu0 %v6604
    %6872 = vmatpush2.msra.mxu0 %v6603
    %6873 = vmatprep.mubr.f32.mxu0 %v6440
    %6874 = vmatmul.mubr.f32.gmra.mxu0 %v6439
    %v6875 = vpop.f32.mrf.mxu0
    %v6876 = vadd.f32 %v6805, %v6875
    %v6877 = vpop.f32.mrf.mxu0
    %v6878 = vadd.f32 %v6807, %v6877
    %6879 = vdwg.mxu0
    %6880 = vmatprep.subr.mxu0 %v6666
    %6881 = vmatpush1.msra.mxu0 %v6665
    %6882 = vmatprep.subr.mxu0 %v6664
    %6883 = vmatpush1.msra.mxu0 %v6663
    %6884 = vmatprep.subr.mxu0 %v6662
    %6885 = vmatpush1.msra.mxu0 %v6661
    %6886 = vmatprep.subr.mxu0 %v6660
    %6887 = vmatpush1.msra.mxu0 %v6659
    %6888 = vmatprep.subr.mxu0 %v6658
    %6889 = vmatpush1.msra.mxu0 %v6657
    %6890 = vmatprep.subr.mxu0 %v6656
    %6891 = vmatpush1.msra.mxu0 %v6655
    %6892 = vmatprep.subr.mxu0 %v6654
    %6893 = vmatpush1.msra.mxu0 %v6653
    %6894 = vmatprep.subr.mxu0 %v6652
    %6895 = vmatpush1.msra.mxu0 %v6651
    %6896 = vmatprep.subr.mxu0 %v6650
    %6897 = vmatpush1.msra.mxu0 %v6649
    %6898 = vmatprep.subr.mxu0 %v6648
    %6899 = vmatpush1.msra.mxu0 %v6647
    %6900 = vmatprep.subr.mxu0 %v6646
    %6901 = vmatpush1.msra.mxu0 %v6645
    %6902 = vmatprep.subr.mxu0 %v6644
    %6903 = vmatpush1.msra.mxu0 %v6643
    %6904 = vmatprep.subr.mxu0 %v6642
    %6905 = vmatpush1.msra.mxu0 %v6641
    %6906 = vmatprep.subr.mxu0 %v6640
    %6907 = vmatpush1.msra.mxu0 %v6639
    %6908 = vmatprep.subr.mxu0 %v6638
    %6909 = vmatpush1.msra.mxu0 %v6637
    %6910 = vmatprep.subr.mxu0 %v6636
    %6911 = vmatpush1.msra.mxu0 %v6635
    %6912 = vmatprep.subr.mxu0 0.0
    %6913 = vmatpush2.msra.mxu0 0.0
    %6914 = vmatprep.subr.mxu0 0.0
    %6915 = vmatpush2.msra.mxu0 0.0
    %6916 = vmatprep.subr.mxu0 0.0
    %6917 = vmatpush2.msra.mxu0 0.0
    %6918 = vmatprep.subr.mxu0 0.0
    %6919 = vmatpush2.msra.mxu0 0.0
    %6920 = vmatprep.subr.mxu0 0.0
    %6921 = vmatpush2.msra.mxu0 0.0
    %6922 = vmatprep.subr.mxu0 0.0
    %6923 = vmatpush2.msra.mxu0 0.0
    %6924 = vmatprep.subr.mxu0 0.0
    %6925 = vmatpush2.msra.mxu0 0.0
    %6926 = vmatprep.subr.mxu0 0.0
    %6927 = vmatpush2.msra.mxu0 0.0
    %6928 = vmatprep.subr.mxu0 0.0
    %6929 = vmatpush2.msra.mxu0 0.0
    %6930 = vmatprep.subr.mxu0 0.0
    %6931 = vmatpush2.msra.mxu0 0.0
    %6932 = vmatprep.subr.mxu0 0.0
    %6933 = vmatpush2.msra.mxu0 0.0
    %6934 = vmatprep.subr.mxu0 0.0
    %6935 = vmatpush2.msra.mxu0 0.0
    %6936 = vmatprep.subr.mxu0 0.0
    %6937 = vmatpush2.msra.mxu0 0.0
    %6938 = vmatprep.subr.mxu0 0.0
    %6939 = vmatpush2.msra.mxu0 0.0
    %6940 = vmatprep.subr.mxu0 0.0
    %6941 = vmatpush2.msra.mxu0 0.0
    %6942 = vmatprep.subr.mxu0 0.0
    %6943 = vmatpush2.msra.mxu0 0.0
    %6944 = vmatprep.mubr.f32.mxu0 0.0
    %6945 = vmatmul.mubr.f32.gmra.mxu0 %v6441
    %v6946 = vpop.f32.mrf.mxu0
    %v6947 = vadd.f32 %v6876, %v6946
    %v6948 = vpop.f32.mrf.mxu0
    %v6949 = vadd.f32 %v6878, %v6948
    %6950 = vdwg.mxu0
    %v6951 = vadd.f32 %v6433, %v6947
    %v6952 = vadd.f32 %v6434, %v6949
    %v6953 = vmax.f32 %v6951, 0.0
    %v6954 = vmax.f32 %v6952, 0.0
    %v6955 = vld [vmem:[%s7] sm:$0xff]
    %v6956 = vld [vmem:[%s7 + $0x8] sm:$0xff]
    %v6957 = vld [vmem:[%s7 + $0x10] sm:$0xff]
    %v6958 = vld [vmem:[%s7 + $0x18] sm:$0xff]
    %v6959 = vld [vmem:[%s7 + $0x20] sm:$0xff]
    %v6960 = vld [vmem:[%s7 + $0x28] sm:$0xff]
    %v6961 = vld [vmem:[%s7 + $0x30] sm:$0xff]
    %v6962 = vld [vmem:[%s7 + $0x38] sm:$0xff]
    %v6963 = vld [vmem:[%s7 + $0x40] sm:$0xff]
    %v6964 = vld [vmem:[%s7 + $0x48] sm:$0xff]
    %v6965 = vld [vmem:[%s7 + $0x50] sm:$0xff]
    %v6966 = vld [vmem:[%s7 + $0x58] sm:$0xff]
    %v6967 = vld [vmem:[%s7 + $0x60] sm:$0xff]
    %v6968 = vld [vmem:[%s7 + $0x68] sm:$0xff]
    %v6969 = vld [vmem:[%s7 + $0x70] sm:$0xff]
    %v6970 = vld [vmem:[%s7 + $0x78] sm:$0xff]
    %v6971 = vld [vmem:[%s7 + $0x80] sm:$0xff]
    %v6972 = vld [vmem:[%s7 + $0x88] sm:$0xff]
    %v6973 = vld [vmem:[%s7 + $0x90] sm:$0xff]
    %v6974 = vld [vmem:[%s7 + $0x98] sm:$0xff]
    %v6975 = vld [vmem:[%s7 + $0xa0] sm:$0xff]
    %v6976 = vld [vmem:[%s7 + $0xa8] sm:$0xff]
    %v6977 = vld [vmem:[%s7 + $0xb0] sm:$0xff]
    %v6978 = vld [vmem:[%s7 + $0xb8] sm:$0xff]
    %v6979 = vld [vmem:[%s7 + $0xc0] sm:$0xff]
    %v6980 = vld [vmem:[%s7 + $0xc8] sm:$0xff]
    %v6981 = vld [vmem:[%s7 + $0xd0] sm:$0xff]
    %v6982 = vld [vmem:[%s7 + $0xd8] sm:$0xff]
    %v6983 = vld [vmem:[%s7 + $0xe0] sm:$0xff]
    %v6984 = vld [vmem:[%s7 + $0xe8] sm:$0xff]
    %v6985 = vld [vmem:[%s7 + $0xf0] sm:$0xff]
    %v6986 = vld [vmem:[%s7 + $0xf8] sm:$0xff]
    %v6987 = vld [vmem:[%s8] sm:$0x1]
    %v6989 = vlaneseq
    %v6990 = vshrl.u32 %v6989, 7
    %v6991 = vsub.s32 0, %v6990
    %v6992 = vrot.slane %v6987, %v6991
    %6994 = vmatprep.subr.mxu0 0.0
    %6995 = vmatpush1.msra.mxu0 %v6970
    %6996 = vmatprep.subr.mxu0 0.0
    %6997 = vmatpush1.msra.mxu0 %v6969
    %6998 = vmatprep.subr.mxu0 0.0
    %6999 = vmatpush1.msra.mxu0 %v6968
    %7000 = vmatprep.subr.mxu0 0.0
    %7001 = vmatpush1.msra.mxu0 %v6967
    %7002 = vmatprep.subr.mxu0 0.0
    %7003 = vmatpush1.msra.mxu0 %v6966
    %7004 = vmatprep.subr.mxu0 0.0
    %7005 = vmatpush1.msra.mxu0 %v6965
    %7006 = vmatprep.subr.mxu0 0.0
    %7007 = vmatpush1.msra.mxu0 %v6964
    %7008 = vmatprep.subr.mxu0 0.0
    %7009 = vmatpush1.msra.mxu0 %v6963
    %7010 = vmatprep.subr.mxu0 0.0
    %7011 = vmatpush1.msra.mxu0 %v6962
    %7012 = vmatprep.subr.mxu0 0.0
    %7013 = vmatpush1.msra.mxu0 %v6961
    %7014 = vmatprep.subr.mxu0 0.0
    %7015 = vmatpush1.msra.mxu0 %v6960
    %7016 = vmatprep.subr.mxu0 0.0
    %7017 = vmatpush1.msra.mxu0 %v6959
    %7018 = vmatprep.subr.mxu0 0.0
    %7019 = vmatpush1.msra.mxu0 %v6958
    %7020 = vmatprep.subr.mxu0 0.0
    %7021 = vmatpush1.msra.mxu0 %v6957
    %7022 = vmatprep.subr.mxu0 0.0
    %7023 = vmatpush1.msra.mxu0 %v6956
    %7024 = vmatprep.subr.mxu0 0.0
    %7025 = vmatpush1.msra.mxu0 %v6955
    %7026 = vmatprep.subr.mxu0 0.0
    %7027 = vmatpush2.msra.mxu0 %v6986
    %7028 = vmatprep.subr.mxu0 0.0
    %7029 = vmatpush2.msra.mxu0 %v6985
    %7030 = vmatprep.subr.mxu0 0.0
    %7031 = vmatpush2.msra.mxu0 %v6984
    %7032 = vmatprep.subr.mxu0 0.0
    %7033 = vmatpush2.msra.mxu0 %v6983
    %7034 = vmatprep.subr.mxu0 0.0
    %7035 = vmatpush2.msra.mxu0 %v6982
    %7036 = vmatprep.subr.mxu0 0.0
    %7037 = vmatpush2.msra.mxu0 %v6981
    %7038 = vmatprep.subr.mxu0 0.0
    %7039 = vmatpush2.msra.mxu0 %v6980
    %7040 = vmatprep.subr.mxu0 0.0
    %7041 = vmatpush2.msra.mxu0 %v6979
    %7042 = vmatprep.subr.mxu0 0.0
    %7043 = vmatpush2.msra.mxu0 %v6978
    %7044 = vmatprep.subr.mxu0 0.0
    %7045 = vmatpush2.msra.mxu0 %v6977
    %7046 = vmatprep.subr.mxu0 0.0
    %7047 = vmatpush2.msra.mxu0 %v6976
    %7048 = vmatprep.subr.mxu0 0.0
    %7049 = vmatpush2.msra.mxu0 %v6975
    %7050 = vmatprep.subr.mxu0 0.0
    %7051 = vmatpush2.msra.mxu0 %v6974
    %7052 = vmatprep.subr.mxu0 0.0
    %7053 = vmatpush2.msra.mxu0 %v6973
    %7054 = vmatprep.subr.mxu0 0.0
    %7055 = vmatpush2.msra.mxu0 %v6972
    %7056 = vmatprep.subr.mxu0 0.0
    %7057 = vmatpush2.msra.mxu0 %v6971
    %7058 = vmatprep.mubr.f32.mxu0 %v6954
    %7059 = vmatmul.mubr.f32.gmra.mxu0 %v6953
    %v7060 = vpop.f32.mrf.mxu0
    %v7061 = vadd.f32 %v6992, %v7060
    %v7062 = vpop.f32.mrf.mxu0
    %7063 = vdwg.mxu0
    %7064 = vst [vmem:[%s9] sm:$0xff] %v7061
    // Predicated region
    $region54: #{net_forward.1} parent=1 // pred_check
      _
    $region55: #{net_forward.1} parent=1 // pred_check_branch
      %7066 = sbr.rel (0) target = $region57
    $region56: #{net_forward.1} parent=1 // pred_region
      _
    $region57: #{net_forward.1} parent=1 // pred_fallthru
      _
    // Predicated region
    $region58: #{net_forward.1} parent=1 // pred_check
      _
    $region59: #{net_forward.1} parent=1 // pred_check_branch
      %7068 = sbr.rel (0) target = $region61
    $region60: #{net_forward.1} parent=1 // pred_region
      _
    $region61: #{net_forward.1} parent=1 // pred_fallthru
      _
    %7069 = vsyncpa [#allocation3], 1
    %7070 = vsyncpa [#allocation5], 1
    %7071 = vsyncpa [#allocation8], 1

</llo_original>
